<compile_context>
chip_gen: v7x
topology: tpu7x:2x2x1
jax: 0.10.0
libtpu: 0.0.40
codegen_flags: <defaults>
</compile_context>

<pallas_src>
import jax
import jax.numpy as jnp
from jax.experimental import pallas as pl
from jax.experimental.pallas import tpu as pltpu

# ---------------- model configuration (PyTorch Decoder defaults) -------------
CH = 2
CH_MULT = (2, 4)
IN_CHANNELS = 1
Z_CHANNELS = 8
ACTION_DIM = 1                    # W axis == 1, squeezed in the kernel layout
NUM_ACTIONS = 16
H_IN = NUM_ACTIONS // 4           # two 2x upsamples: 4 -> 8 -> 16
EPS = 1e-6                        # Normalize() sets eps=1e-06 explicitly

C_TOP = CH * CH_MULT[-1]          # 8
C_MID = CH * CH_MULT[-2]          # 4
C_LOW = CH                        # 2

LANES = 128                       # parameter-slab lane width / sample granule
MAX_TB = 2048                     # samples per grid step cap (v7x-VMEM safe)

# dropout = 0.0 in the reference config -> nn.Identity (nothing to implement)


# ---------------- in-kernel building blocks (layout: [C, h*tb]) ---------------
def _silu(x):
    return x * jax.nn.sigmoid(x)


def _shift_h(x, direction, tb, zeros_fn):
    """x[:, h*tb+b] -> x[:, (h+direction)*tb+b], zero-filled past the ends.

    Shifts are whole multiples of tb, so they only move data between h-chunks
    of the *same* sample; samples never leak into each other."""
    n = x.shape[1]
    z = zeros_fn(x.shape[0])                 # cached per channel count
    if direction == +1:
        return jnp.concatenate([x[:, tb:], z], axis=1)
    return jnp.concatenate([z, x[:, :n - tb]], axis=1)


def _fold_h(v, h, tb):
    """[1, h*tb] -> [1, tb]: pairwise tree-sum of the h aligned lane chunks."""
    chunks = [v[:, m * tb:(m + 1) * tb] for m in range(h)]
    while len(chunks) > 1:
        nxt = []
        for i in range(0, len(chunks) - 1, 2):
            nxt.append(chunks[i] + chunks[i + 1])
        if len(chunks) % 2:
            nxt.append(chunks[-1])
        chunks = nxt
    return chunks[0]


def _tile_h(v, h):
    """[1, tb] -> [1, h*tb]: repeat the per-sample vector for every h."""
    return jnp.concatenate([v] * h, axis=1)


def _group_norm(x, gamma_col, beta_col, h, tb):
    # GroupNorm(num_groups=1): normalize over all (C, H, W) of each sample,
    # then per-channel affine.  x: [C, h*tb]; gamma/beta: [C, 1] columns.
    c = x.shape[0]
    inv_cnt = 1.0 / float(c * h)
    s1 = _fold_h(jnp.sum(x, axis=0, keepdims=True), h, tb)        # [1, tb]
    mean = _tile_h(s1 * inv_cnt, h)                                # [1, h*tb]
    xc = x - mean
    s2 = _fold_h(jnp.sum(xc * xc, axis=0, keepdims=True), h, tb)  # [1, tb]
    inv = _tile_h(jax.lax.rsqrt(s2 * inv_cnt + EPS), h)            # [1, h*tb]
    return xc * inv * gamma_col + beta_col


def _conv3(x, w_fused, b_col, tb, zeros_fn):
    # Conv2d kernel=(3,1), stride=(1,1), padding=(1,0) with W==1: 1-D conv
    # along h, the three taps fused into a single im2col matmul:
    #   y[:, h] = Wf @ [x[:, h-1]; x[:, h]; x[:, h+1]]
    # x: [Cin, h*tb], w_fused: [Cout, 3*Cin], b_col: [Cout, 1]
    win = jnp.concatenate(
        [_shift_h(x, -1, tb, zeros_fn), x, _shift_h(x, +1, tb, zeros_fn)],
        axis=0)
    return jnp.dot(w_fused, win, preferred_element_type=jnp.float32) + b_col


def _conv_transpose2x(x, w_even, w_odd, b_col, h, tb, zeros_fn, scr):
    # ConvTranspose2d kernel=(3,1), stride=(2,1), padding=(1,0),
    # output_padding=(1,0):
    #   y[2m]   = W1 @ x[m]
    #   y[2m+1] = W2 @ x[m] + W0 @ x[m+1]   (x[h] treated as 0)
    # x: [C, h*tb], w_even: [C, C], w_odd: [C, 2C] = [W2 | W0], b_col: [C, 1].
    # Even/odd interleave via aligned tb-wide stores into a VMEM scratch ref
    # (lane-aligned, 128-multiple chunks) instead of a 2h-way concat.
    c = x.shape[0]
    even = jnp.dot(w_even, x, preferred_element_type=jnp.float32) + b_col
    win = jnp.concatenate([x, _shift_h(x, +1, tb, zeros_fn)], axis=0)
    odd = jnp.dot(w_odd, win, preferred_element_type=jnp.float32) + b_col
    for m in range(h):
        scr[0:c, (2 * m) * tb:(2 * m + 1) * tb] = even[:, m * tb:(m + 1) * tb]
        scr[0:c, (2 * m + 1) * tb:(2 * m + 2) * tb] = odd[:, m * tb:(m + 1) * tb]
    return scr[0:c, 0:2 * h * tb]                                  # [C, 2h*tb]


def _conv_block(x, nxt, h, tb, zeros_fn, has_shortcut):
    # ConvBlock: conv1(silu(norm1(x))) -> conv2(silu(norm2(y))) + shortcut(x)
    n1g, n1b = nxt(), nxt()
    c1w, c1b = nxt(), nxt()
    n2g, n2b = nxt(), nxt()
    c2w, c2b = nxt(), nxt()
    y = _conv3(_silu(_group_norm(x, n1g, n1b, h, tb)), c1w, c1b, tb, zeros_fn)
    y = _conv3(_silu(_group_norm(y, n2g, n2b, h, tb)), c2w, c2b, tb, zeros_fn)
    if has_shortcut:
        sw, sb = nxt(), nxt()        # 1x1 conv == channel matmul
        x = jnp.dot(sw, x, preferred_element_type=jnp.float32) + sb
    return x + y


# ---------------- Pallas kernel ------------------------------------------------
def _make_decoder_kernel(specs, tb):
    """specs: static (row_off, rows, col_off, cols) of each packed parameter,
    in exactly the order the kernel consumes them.  tb: samples per step."""

    def kernel(z_ref, p_ref, o_ref, ct_scr):
        cursor = [0]

        def nxt():
            ro, r, co, c = specs[cursor[0]]
            cursor[0] += 1
            return p_ref[ro:ro + r, co:co + c]    # static slice, zero cost

        zcache = {}

        def zeros_fn(c):                          # one broadcast per channel ct
            if c not in zcache:
                zcache[c] = jnp.zeros((c, tb), jnp.float32)
            return zcache[c]

        x = z_ref[0]                              # [Z_CHANNELS, H_IN*tb]
        h = H_IN
        # conv_in(silu(norm_in(z)))
        ng, nb_ = nxt(), nxt()
        cw, cb = nxt(), nxt()
        y = _conv3(_silu(_group_norm(x, ng, nb_, h, tb)), cw, cb, tb, zeros_fn)
        # up_1
        y = _conv_block(y, nxt, h, tb, zeros_fn, has_shortcut=False)   # 8 -> 8
        we, wo, ub = nxt(), nxt(), nxt()
        y = _conv_transpose2x(y, we, wo, ub, h, tb, zeros_fn, ct_scr)  # h 4->8
        h *= 2
        y = _conv_block(y, nxt, h, tb, zeros_fn, has_shortcut=True)    # 8 -> 4
        # up_2
        y = _conv_block(y, nxt, h, tb, zeros_fn, has_shortcut=False)   # 4 -> 4
        we, wo, ub = nxt(), nxt(), nxt()
        y = _conv_transpose2x(y, we, wo, ub, h, tb, zeros_fn, ct_scr)  # h 8->16
        h *= 2
        y = _conv_block(y, nxt, h, tb, zeros_fn, has_shortcut=True)    # 4 -> 2
        # conv_out
        cw, cb = nxt(), nxt()
        y = _conv3(y, cw, cb, tb, zeros_fn)                            # [1,16tb]
        o_ref[0] = y.astype(o_ref.dtype)

    return kernel


# ---------------- parameter packing (one lane-padded slab) --------------------
def pack_params(params):
    """Pack all Decoder parameters into one f32 slab [R, 128].

      * matrix params each get their own 8-row-aligned block at column 0:
          conv weight  [3, Cin, Cout] -> fused matmul LHS [Cout, 3*Cin]
          convT weight [3, Cin, Cout] -> even [Cout, Cin] + odd [Cout, 2*Cin]
          1x1 shortcut [Cin, Cout]    -> [Cout, Cin]
      * ALL column params (norm gamma/beta, conv biases) share one 8x128
        block (rows 0..7), one lane each -> slab is ~3x smaller than padding
        every [C,1] to its own 8x128 block.
    Returns (slab, specs) with static python (row_off, rows, col_off, cols)
    so the kernel can slice the slab at zero runtime cost.
    """
    it = iter(params)
    mats, cols, order = [], [], []

    def add_mat(a):
        order.append(("mat", len(mats)))
        mats.append(jnp.asarray(a, jnp.float32))

    def add_col(a):
        order.append(("col", len(cols)))
        cols.append(jnp.asarray(a, jnp.float32).reshape(-1))

    def take_norm():
        g, b = next(it), next(it)
        add_col(g)
        add_col(b)

    def take_conv():
        w, b = next(it), next(it)                 # w: [3, Cin, Cout]
        cout = w.shape[2]
        add_mat(jnp.transpose(w, (2, 0, 1)).reshape(cout, -1))
        add_col(b)

    def take_convT():
        w, b = next(it), next(it)                 # w: [3, Cin, Cout]
        add_mat(w[1].T)                                        # even taps
        add_mat(jnp.concatenate([w[2].T, w[0].T], axis=1))     # odd [W2 | W0]
        add_col(b)

    def take_shortcut():
        w, b = next(it), next(it)                 # w: [Cin, Cout]
        add_mat(w.T)
        add_col(b)

    def take_block(has_sc):
        take_norm(); take_conv(); take_norm(); take_conv()
        if has_sc:
            take_shortcut()

    take_norm(); take_conv()                              # norm_in, conv_in
    take_block(False); take_convT(); take_block(True)     # up_1
    take_block(False); take_convT(); take_block(True)     # up_2
    take_conv()                                           # conv_out

    assert len(cols) <= LANES, "too many column params for one shared block"
    col_block = jnp.zeros((8, LANES), jnp.float32)
    col_specs = []
    for lane, v in enumerate(cols):
        r = int(v.shape[0])
        assert r <= 8
        col_block = col_block.at[0:r, lane].set(v)
        col_specs.append((0, r, lane, 1))

    mat_specs, padded = [], [col_block]
    off = 8
    for m in mats:
        r, c = int(m.shape[0]), int(m.shape[1])
        rp = -(-r // 8) * 8
        mat_specs.append((off, r, 0, c))
        padded.append(jnp.pad(m, ((0, rp - r), (0, LANES - c))))
        off += rp
    slab = jnp.concatenate(padded, axis=0)                # [R, 128]

    specs = tuple(mat_specs[i] if k == "mat" else col_specs[i] for k, i in order)
    return slab, specs


# ---------------- wrapper ------------------------------------------------------
def _choose_tb(batch):
    """Samples per grid step: big enough to amortize per-step overhead, capped
    for v7x VMEM, and split into >=2 blocks (when possible) so the 'parallel'
    grid axis feeds both TensorCores."""
    bp = -(-max(batch, 1) // LANES) * LANES
    if bp <= LANES:
        return LANES
    if bp <= 2 * MAX_TB:
        return -(-bp // (2 * LANES)) * LANES      # ~two blocks
    return MAX_TB


def decoder_forward(z, params):
    """z: [B, H_IN, Z_CHANNELS] (PyTorch [B, z_channels, 4, 1] with W squeezed
    and (C, H) transposed).  Returns [B, NUM_ACTIONS, IN_CHANNELS]."""
    B = z.shape[0]
    tb = _choose_tb(B)
    nb = pl.cdiv(B, tb)
    bp = nb * tb
    slab, specs = pack_params(params)

    # [B, H, C] -> pad batch -> [nb, C, H*tb] with lane = h*tb + b
    # (single fused pad+reshape+transpose pass on the host side)
    zp = jnp.pad(z.astype(jnp.float32), ((0, bp - B), (0, 0), (0, 0)))
    zp = (zp.reshape(nb, tb, H_IN, Z_CHANNELS)
            .transpose(0, 3, 2, 1)
            .reshape(nb, Z_CHANNELS, H_IN * tb))

    kernel = _make_decoder_kernel(specs, tb)
    out = pl.pallas_call(
        kernel,
        out_shape=jax.ShapeDtypeStruct((nb, IN_CHANNELS, NUM_ACTIONS * tb),
                                       jnp.float32),
        grid_spec=pltpu.PrefetchScalarGridSpec(
            num_scalar_prefetch=0,
            grid=(nb,),
            in_specs=[
                pl.BlockSpec((1, Z_CHANNELS, H_IN * tb), lambda i: (i, 0, 0)),
                # single param slab; constant block index -> fetched once.
                pl.BlockSpec(slab.shape, lambda i: (0, 0)),
            ],
            out_specs=pl.BlockSpec((1, IN_CHANNELS, NUM_ACTIONS * tb),
                                   lambda i: (i, 0, 0)),
            scratch_shapes=[
                # interleave scratch for both ConvTranspose stages
                pltpu.VMEM((C_TOP, NUM_ACTIONS * tb), jnp.float32),
            ]),
        compiler_params=pltpu.CompilerParams(
            dimension_semantics=("parallel",),
            vmem_limit_bytes=40 * 1024 * 1024),
    )(zp, slab)

    # [nb, 1, 16*tb] -> [bp, 16, 1] -> [B, 16, 1]
    out = (out.reshape(nb, IN_CHANNELS, NUM_ACTIONS, tb)
              .transpose(0, 3, 2, 1)
              .reshape(bp, NUM_ACTIONS, IN_CHANNELS))
    return out[:B]


# ---------------- pure-JAX reference (per-sample, original param layout) ------
def _group_norm_ref(x, gamma, beta):
    mu = jnp.mean(x)
    var = jnp.mean((x - mu) ** 2)
    xn = (x - mu) * jax.lax.rsqrt(var + EPS)
    return xn * gamma[None, :] + beta[None, :]


def _conv3_ref(x, w, b):
    h, cin = x.shape
    zrow = jnp.zeros((1, cin), jnp.float32)
    xp = jnp.concatenate([zrow, x, zrow], axis=0)
    y = xp[0:h] @ w[0] + xp[1:h + 1] @ w[1] + xp[2:h + 2] @ w[2]
    return y + b[None, :]


def _conv_transpose2x_ref(x, w, b):
    h, cin = x.shape
    even = x @ w[1]
    x_next = jnp.concatenate([x[1:], jnp.zeros((1, cin), jnp.float32)], axis=0)
    odd = x @ w[2] + x_next @ w[0]
    y = jnp.stack([even, odd], axis=1).reshape(2 * h, -1)
    return y + b[None, :]


def _conv_block_ref(x, it, has_shortcut):
    n1g, n1b = next(it), next(it)
    c1w, c1b = next(it), next(it)
    n2g, n2b = next(it), next(it)
    c2w, c2b = next(it), next(it)
    h = _conv3_ref(_silu(_group_norm_ref(x, n1g, n1b)), c1w, c1b)
    h = _conv3_ref(_silu(_group_norm_ref(h, n2g, n2b)), c2w, c2b)
    if has_shortcut:
        sw, sb = next(it), next(it)
        x = x @ sw + sb[None, :]
    return x + h


def _decoder_body_ref(z, params):
    """Pure jnp decoder forward on one sample. z: [H_IN, Z_CHANNELS]."""
    it = iter(params)
    ng, nb_ = next(it), next(it)
    cw, cb = next(it), next(it)
    h = _conv3_ref(_silu(_group_norm_ref(z, ng, nb_)), cw, cb)
    h = _conv_block_ref(h, it, has_shortcut=False)
    uw, ub = next(it), next(it)
    h = _conv_transpose2x_ref(h, uw, ub)
    h = _conv_block_ref(h, it, has_shortcut=True)
    h = _conv_block_ref(h, it, has_shortcut=False)
    uw, ub = next(it), next(it)
    h = _conv_transpose2x_ref(h, uw, ub)
    h = _conv_block_ref(h, it, has_shortcut=True)
    cw, cb = next(it), next(it)
    return _conv3_ref(h, cw, cb)


# ---------------- deterministic synthetic parameters --------------------------
def init_params(key):
    keys = iter(jax.random.split(key, 128))

    def norm_p(c):
        g = (1.0 + 0.1 * jax.random.normal(next(keys), (c,))).astype(jnp.float32)
        b = (0.1 * jax.random.normal(next(keys), (c,))).astype(jnp.float32)
        return [g, b]

    def conv_p(cin, cout):
        w = (0.2 * jax.random.normal(next(keys), (3, cin, cout))).astype(jnp.float32)
        b = (0.1 * jax.random.normal(next(keys), (cout,))).astype(jnp.float32)
        return [w, b]

    def shortcut_p(cin, cout):
        w = (0.2 * jax.random.normal(next(keys), (cin, cout))).astype(jnp.float32)
        b = (0.1 * jax.random.normal(next(keys), (cout,))).astype(jnp.float32)
        return [w, b]

    def block_p(cin, cout):
        p = []
        p += norm_p(cin)
        p += conv_p(cin, cout)
        p += norm_p(cout)
        p += conv_p(cout, cout)
        if cin != cout:
            p += shortcut_p(cin, cout)
        return p

    def upsample_p(c):
        return conv_p(c, c)      # ConvTranspose weight stored as [3, Cin, Cout]

    params = []
    params += norm_p(Z_CHANNELS)                  # norm_in
    params += conv_p(Z_CHANNELS, C_TOP)           # conv_in
    params += block_p(C_TOP, C_TOP)               # up_1.block_1
    params += upsample_p(C_TOP)                   # up_1.upsample
    params += block_p(C_TOP, C_MID)               # up_1.block_2
    params += block_p(C_MID, C_MID)               # up_2.block_1
    params += upsample_p(C_MID)                   # up_2.upsample
    params += block_p(C_MID, C_LOW)               # up_2.block_2
    params += conv_p(C_LOW, IN_CHANNELS)          # conv_out
    return params


# ---------------- main ---------------------------------------------------------
if __name__ == "__main__":
    key = jax.random.PRNGKey(0)
    kz, kz2, kp = jax.random.split(key, 3)
    params = init_params(kp)

    # PyTorch input would be z: [B=2, z_channels=8, 4, action_dim=1] (NCHW);
    # wrapper layout is [B, H=4, C=8] with W squeezed.
    B = 2
    z = jax.random.normal(kz, (B, H_IN, Z_CHANNELS), dtype=jnp.float32)
    out = jax.block_until_ready(decoder_forward(z, params))
    ref = jax.vmap(lambda zb: _decoder_body_ref(zb, params))(z)
    assert out.shape == (B, NUM_ACTIONS, IN_CHANNELS), out.shape
    err = float(jnp.max(jnp.abs(out - ref)))
    assert jnp.allclose(out, ref, atol=1e-3, rtol=1e-3), err

    # secondary check: multi-block grid (nb=2), tb>128 path, padded batch rows
    B2 = 300
    z2 = jax.random.normal(kz2, (B2, H_IN, Z_CHANNELS), dtype=jnp.float32)
    out2 = jax.block_until_ready(decoder_forward(z2, params))
    ref2 = jax.vmap(lambda zb: _decoder_body_ref(zb, params))(z2)
    err2 = float(jnp.max(jnp.abs(out2 - ref2)))
    assert jnp.allclose(out2, ref2, atol=1e-3, rtol=1e-3), err2

    print("KERNEL_OK")
</pallas_src>

<mosaic_0001>
module attributes {stable_mosaic.version = 11 : i64} {
  func.func @kernel(%arg0: i32, %arg1: memref<1x8x512xf32, #tpu.memory_space<vmem>>, %arg2: memref<136x128xf32, #tpu.memory_space<vmem>>, %arg3: memref<1x1x2048xf32, #tpu.memory_space<vmem>>, %arg4: memref<8x2048xf32, #tpu.memory_space<vmem>>) attributes {dimension_semantics = [#tpu.dimension_semantics<parallel>], iteration_bounds = array<i64: 1>, scalar_prefetch = 0 : i64, scratch_operands = 1 : i64, tpu.core_type = #tpu.core_type<tc>, window_params = [{transform_indices = @transform_0, window_bounds = array<i64: 1, 8, 512>}, {pipeline_mode = #tpu.pipeline_mode<synchronous>, transform_indices = @transform_1, window_bounds = array<i64: 136, 128>}, {transform_indices = @transform_2, window_bounds = array<i64: 1, 1, 2048>}]} {
    %c0 = arith.constant 0 : index
    %c0_0 = arith.constant 0 : index
    %c0_1 = arith.constant 0 : index
    %0 = vector.load %arg1[%c0, %c0_0, %c0_1] : memref<1x8x512xf32, #tpu.memory_space<vmem>>, vector<1x8x512xf32>
    %1 = vector.shape_cast %0 : vector<1x8x512xf32> to vector<8x512xf32>
    %c0_2 = arith.constant 0 : index
    %c0_3 = arith.constant 0 : index
    %2 = vector.load %arg2[%c0_2, %c0_3] : memref<136x128xf32, #tpu.memory_space<vmem>>, vector<8x1xf32>
    %c0_4 = arith.constant 0 : index
    %c1 = arith.constant 1 : index
    %3 = vector.load %arg2[%c0_4, %c1] : memref<136x128xf32, #tpu.memory_space<vmem>>, vector<8x1xf32>
    %c8 = arith.constant 8 : index
    %c0_5 = arith.constant 0 : index
    %4 = vector.load %arg2[%c8, %c0_5] : memref<136x128xf32, #tpu.memory_space<vmem>>, vector<8x24xf32>
    %c0_6 = arith.constant 0 : index
    %c2 = arith.constant 2 : index
    %5 = vector.load %arg2[%c0_6, %c2] : memref<136x128xf32, #tpu.memory_space<vmem>>, vector<8x1xf32>
    %cst = arith.constant dense<0.000000e+00> : vector<512xf32>
    %6 = vector.multi_reduction <add>, %1, %cst [0] : vector<8x512xf32> to vector<512xf32>
    %7 = vector.shape_cast %6 : vector<512xf32> to vector<1x512xf32>
    %8 = vector.extract_strided_slice %7 {offsets = [0, 0], sizes = [1, 128], strides = [1, 1]} : vector<1x512xf32> to vector<1x128xf32>
    %9 = vector.extract_strided_slice %7 {offsets = [0, 128], sizes = [1, 128], strides = [1, 1]} : vector<1x512xf32> to vector<1x128xf32>
    %10 = vector.extract_strided_slice %7 {offsets = [0, 256], sizes = [1, 128], strides = [1, 1]} : vector<1x512xf32> to vector<1x128xf32>
    %11 = vector.extract_strided_slice %7 {offsets = [0, 384], sizes = [1, 128], strides = [1, 1]} : vector<1x512xf32> to vector<1x128xf32>
    %12 = arith.addf %8, %9 : vector<1x128xf32>
    %13 = arith.addf %10, %11 : vector<1x128xf32>
    %14 = arith.addf %12, %13 : vector<1x128xf32>
    %cst_7 = arith.constant 3.125000e-02 : f32
    %15 = vector.broadcast %cst_7 : f32 to vector<1x128xf32>
    %16 = arith.mulf %14, %15 : vector<1x128xf32>
    %17 = tpu.concatenate %16, %16, %16, %16 in 1 : vector<1x128xf32>, vector<1x128xf32>, vector<1x128xf32>, vector<1x128xf32> -> vector<1x512xf32>
    %18 = vector.broadcast %17 : vector<1x512xf32> to vector<8x512xf32>
    %19 = arith.subf %1, %18 : vector<8x512xf32>
    %20 = arith.mulf %19, %19 : vector<8x512xf32>
    %cst_8 = arith.constant dense<0.000000e+00> : vector<512xf32>
    %21 = vector.multi_reduction <add>, %20, %cst_8 [0] : vector<8x512xf32> to vector<512xf32>
    %22 = vector.shape_cast %21 : vector<512xf32> to vector<1x512xf32>
    %23 = vector.extract_strided_slice %22 {offsets = [0, 0], sizes = [1, 128], strides = [1, 1]} : vector<1x512xf32> to vector<1x128xf32>
    %24 = vector.extract_strided_slice %22 {offsets = [0, 128], sizes = [1, 128], strides = [1, 1]} : vector<1x512xf32> to vector<1x128xf32>
    %25 = vector.extract_strided_slice %22 {offsets = [0, 256], sizes = [1, 128], strides = [1, 1]} : vector<1x512xf32> to vector<1x128xf32>
    %26 = vector.extract_strided_slice %22 {offsets = [0, 384], sizes = [1, 128], strides = [1, 1]} : vector<1x512xf32> to vector<1x128xf32>
    %27 = arith.addf %23, %24 : vector<1x128xf32>
    %28 = arith.addf %25, %26 : vector<1x128xf32>
    %29 = arith.addf %27, %28 : vector<1x128xf32>
    %cst_9 = arith.constant 3.125000e-02 : f32
    %30 = vector.broadcast %cst_9 : f32 to vector<1x128xf32>
    %31 = arith.mulf %29, %30 : vector<1x128xf32>
    %cst_10 = arith.constant 9.99999997E-7 : f32
    %32 = vector.broadcast %cst_10 : f32 to vector<1x128xf32>
    %33 = arith.addf %31, %32 : vector<1x128xf32>
    %34 = math.rsqrt %33 : vector<1x128xf32>
    %35 = tpu.concatenate %34, %34, %34, %34 in 1 : vector<1x128xf32>, vector<1x128xf32>, vector<1x128xf32>, vector<1x128xf32> -> vector<1x512xf32>
    %36 = vector.broadcast %35 : vector<1x512xf32> to vector<8x512xf32>
    %37 = arith.mulf %19, %36 : vector<8x512xf32>
    %38 = vector.broadcast %2 : vector<8x1xf32> to vector<8x512xf32>
    %39 = arith.mulf %37, %38 : vector<8x512xf32>
    %40 = vector.broadcast %3 : vector<8x1xf32> to vector<8x512xf32>
    %41 = arith.addf %39, %40 : vector<8x512xf32>
    %42 = arith.negf %41 : vector<8x512xf32>
    %43 = math.exp %42 : vector<8x512xf32>
    %cst_11 = arith.constant 1.000000e+00 : f32
    %44 = vector.broadcast %cst_11 : f32 to vector<8x512xf32>
    %45 = arith.addf %44, %43 : vector<8x512xf32>
    %46 = arith.divf %44, %45 : vector<8x512xf32>
    %47 = arith.mulf %41, %46 : vector<8x512xf32>
    %cst_12 = arith.constant 0.000000e+00 : f32
    %48 = vector.broadcast %cst_12 : f32 to vector<8x128xf32>
    %49 = vector.extract_strided_slice %47 {offsets = [0, 0], sizes = [8, 384], strides = [1, 1]} : vector<8x512xf32> to vector<8x384xf32>
    %50 = tpu.concatenate %48, %49 in 1 : vector<8x128xf32>, vector<8x384xf32> -> vector<8x512xf32>
    %51 = vector.extract_strided_slice %47 {offsets = [0, 128], sizes = [8, 384], strides = [1, 1]} : vector<8x512xf32> to vector<8x384xf32>
    %52 = tpu.concatenate %51, %48 in 1 : vector<8x384xf32>, vector<8x128xf32> -> vector<8x512xf32>
    %53 = tpu.concatenate %50, %47, %52 in 0 : vector<8x512xf32>, vector<8x512xf32>, vector<8x512xf32> -> vector<24x512xf32>
    %cst_13 = arith.constant dense<0.000000e+00> : vector<8x512xf32>
    %54 = tpu.matmul %4, %53, %cst_13 {dimension_numbers = #tpu.dot_dimension_numbers<[1], [0], [0], [1], [0, 0, 1, 1], [], []>} : vector<8x24xf32>, vector<24x512xf32>, vector<8x512xf32> -> vector<8x512xf32>
    %55 = vector.broadcast %5 : vector<8x1xf32> to vector<8x512xf32>
    %56 = arith.addf %54, %55 : vector<8x512xf32>
    %c0_14 = arith.constant 0 : index
    %c3 = arith.constant 3 : index
    %57 = vector.load %arg2[%c0_14, %c3] : memref<136x128xf32, #tpu.memory_space<vmem>>, vector<8x1xf32>
    %c0_15 = arith.constant 0 : index
    %c4 = arith.constant 4 : index
    %58 = vector.load %arg2[%c0_15, %c4] : memref<136x128xf32, #tpu.memory_space<vmem>>, vector<8x1xf32>
    %c16 = arith.constant 16 : index
    %c0_16 = arith.constant 0 : index
    %59 = vector.load %arg2[%c16, %c0_16] : memref<136x128xf32, #tpu.memory_space<vmem>>, vector<8x24xf32>
    %c0_17 = arith.constant 0 : index
    %c5 = arith.constant 5 : index
    %60 = vector.load %arg2[%c0_17, %c5] : memref<136x128xf32, #tpu.memory_space<vmem>>, vector<8x1xf32>
    %c0_18 = arith.constant 0 : index
    %c6 = arith.constant 6 : index
    %61 = vector.load %arg2[%c0_18, %c6] : memref<136x128xf32, #tpu.memory_space<vmem>>, vector<8x1xf32>
    %c0_19 = arith.constant 0 : index
    %c7 = arith.constant 7 : index
    %62 = vector.load %arg2[%c0_19, %c7] : memref<136x128xf32, #tpu.memory_space<vmem>>, vector<8x1xf32>
    %c24 = arith.constant 24 : index
    %c0_20 = arith.constant 0 : index
    %63 = vector.load %arg2[%c24, %c0_20] : memref<136x128xf32, #tpu.memory_space<vmem>>, vector<8x24xf32>
    %c0_21 = arith.constant 0 : index
    %c8_22 = arith.constant 8 : index
    %64 = vector.load %arg2[%c0_21, %c8_22] : memref<136x128xf32, #tpu.memory_space<vmem>>, vector<8x1xf32>
    %cst_23 = arith.constant dense<0.000000e+00> : vector<512xf32>
    %65 = vector.multi_reduction <add>, %56, %cst_23 [0] : vector<8x512xf32> to vector<512xf32>
    %66 = vector.shape_cast %65 : vector<512xf32> to vector<1x512xf32>
    %67 = vector.extract_strided_slice %66 {offsets = [0, 0], sizes = [1, 128], strides = [1, 1]} : vector<1x512xf32> to vector<1x128xf32>
    %68 = vector.extract_strided_slice %66 {offsets = [0, 128], sizes = [1, 128], strides = [1, 1]} : vector<1x512xf32> to vector<1x128xf32>
    %69 = vector.extract_strided_slice %66 {offsets = [0, 256], sizes = [1, 128], strides = [1, 1]} : vector<1x512xf32> to vector<1x128xf32>
    %70 = vector.extract_strided_slice %66 {offsets = [0, 384], sizes = [1, 128], strides = [1, 1]} : vector<1x512xf32> to vector<1x128xf32>
    %71 = arith.addf %67, %68 : vector<1x128xf32>
    %72 = arith.addf %69, %70 : vector<1x128xf32>
    %73 = arith.addf %71, %72 : vector<1x128xf32>
    %cst_24 = arith.constant 3.125000e-02 : f32
    %74 = vector.broadcast %cst_24 : f32 to vector<1x128xf32>
    %75 = arith.mulf %73, %74 : vector<1x128xf32>
    %76 = tpu.concatenate %75, %75, %75, %75 in 1 : vector<1x128xf32>, vector<1x128xf32>, vector<1x128xf32>, vector<1x128xf32> -> vector<1x512xf32>
    %77 = vector.broadcast %76 : vector<1x512xf32> to vector<8x512xf32>
    %78 = arith.subf %56, %77 : vector<8x512xf32>
    %79 = arith.mulf %78, %78 : vector<8x512xf32>
    %cst_25 = arith.constant dense<0.000000e+00> : vector<512xf32>
    %80 = vector.multi_reduction <add>, %79, %cst_25 [0] : vector<8x512xf32> to vector<512xf32>
    %81 = vector.shape_cast %80 : vector<512xf32> to vector<1x512xf32>
    %82 = vector.extract_strided_slice %81 {offsets = [0, 0], sizes = [1, 128], strides = [1, 1]} : vector<1x512xf32> to vector<1x128xf32>
    %83 = vector.extract_strided_slice %81 {offsets = [0, 128], sizes = [1, 128], strides = [1, 1]} : vector<1x512xf32> to vector<1x128xf32>
    %84 = vector.extract_strided_slice %81 {offsets = [0, 256], sizes = [1, 128], strides = [1, 1]} : vector<1x512xf32> to vector<1x128xf32>
    %85 = vector.extract_strided_slice %81 {offsets = [0, 384], sizes = [1, 128], strides = [1, 1]} : vector<1x512xf32> to vector<1x128xf32>
    %86 = arith.addf %82, %83 : vector<1x128xf32>
    %87 = arith.addf %84, %85 : vector<1x128xf32>
    %88 = arith.addf %86, %87 : vector<1x128xf32>
    %cst_26 = arith.constant 3.125000e-02 : f32
    %89 = vector.broadcast %cst_26 : f32 to vector<1x128xf32>
    %90 = arith.mulf %88, %89 : vector<1x128xf32>
    %cst_27 = arith.constant 9.99999997E-7 : f32
    %91 = vector.broadcast %cst_27 : f32 to vector<1x128xf32>
    %92 = arith.addf %90, %91 : vector<1x128xf32>
    %93 = math.rsqrt %92 : vector<1x128xf32>
    %94 = tpu.concatenate %93, %93, %93, %93 in 1 : vector<1x128xf32>, vector<1x128xf32>, vector<1x128xf32>, vector<1x128xf32> -> vector<1x512xf32>
    %95 = vector.broadcast %94 : vector<1x512xf32> to vector<8x512xf32>
    %96 = arith.mulf %78, %95 : vector<8x512xf32>
    %97 = vector.broadcast %57 : vector<8x1xf32> to vector<8x512xf32>
    %98 = arith.mulf %96, %97 : vector<8x512xf32>
    %99 = vector.broadcast %58 : vector<8x1xf32> to vector<8x512xf32>
    %100 = arith.addf %98, %99 : vector<8x512xf32>
    %101 = arith.negf %100 : vector<8x512xf32>
    %102 = math.exp %101 : vector<8x512xf32>
    %cst_28 = arith.constant 1.000000e+00 : f32
    %103 = vector.broadcast %cst_28 : f32 to vector<8x512xf32>
    %104 = arith.addf %103, %102 : vector<8x512xf32>
    %105 = arith.divf %103, %104 : vector<8x512xf32>
    %106 = arith.mulf %100, %105 : vector<8x512xf32>
    %107 = vector.extract_strided_slice %106 {offsets = [0, 0], sizes = [8, 384], strides = [1, 1]} : vector<8x512xf32> to vector<8x384xf32>
    %108 = tpu.concatenate %48, %107 in 1 : vector<8x128xf32>, vector<8x384xf32> -> vector<8x512xf32>
    %109 = vector.extract_strided_slice %106 {offsets = [0, 128], sizes = [8, 384], strides = [1, 1]} : vector<8x512xf32> to vector<8x384xf32>
    %110 = tpu.concatenate %109, %48 in 1 : vector<8x384xf32>, vector<8x128xf32> -> vector<8x512xf32>
    %111 = tpu.concatenate %108, %106, %110 in 0 : vector<8x512xf32>, vector<8x512xf32>, vector<8x512xf32> -> vector<24x512xf32>
    %cst_29 = arith.constant dense<0.000000e+00> : vector<8x512xf32>
    %112 = tpu.matmul %59, %111, %cst_29 {dimension_numbers = #tpu.dot_dimension_numbers<[1], [0], [0], [1], [0, 0, 1, 1], [], []>} : vector<8x24xf32>, vector<24x512xf32>, vector<8x512xf32> -> vector<8x512xf32>
    %113 = vector.broadcast %60 : vector<8x1xf32> to vector<8x512xf32>
    %114 = arith.addf %112, %113 : vector<8x512xf32>
    %cst_30 = arith.constant dense<0.000000e+00> : vector<512xf32>
    %115 = vector.multi_reduction <add>, %114, %cst_30 [0] : vector<8x512xf32> to vector<512xf32>
    %116 = vector.shape_cast %115 : vector<512xf32> to vector<1x512xf32>
    %117 = vector.extract_strided_slice %116 {offsets = [0, 0], sizes = [1, 128], strides = [1, 1]} : vector<1x512xf32> to vector<1x128xf32>
    %118 = vector.extract_strided_slice %116 {offsets = [0, 128], sizes = [1, 128], strides = [1, 1]} : vector<1x512xf32> to vector<1x128xf32>
    %119 = vector.extract_strided_slice %116 {offsets = [0, 256], sizes = [1, 128], strides = [1, 1]} : vector<1x512xf32> to vector<1x128xf32>
    %120 = vector.extract_strided_slice %116 {offsets = [0, 384], sizes = [1, 128], strides = [1, 1]} : vector<1x512xf32> to vector<1x128xf32>
    %121 = arith.addf %117, %118 : vector<1x128xf32>
    %122 = arith.addf %119, %120 : vector<1x128xf32>
    %123 = arith.addf %121, %122 : vector<1x128xf32>
    %cst_31 = arith.constant 3.125000e-02 : f32
    %124 = vector.broadcast %cst_31 : f32 to vector<1x128xf32>
    %125 = arith.mulf %123, %124 : vector<1x128xf32>
    %126 = tpu.concatenate %125, %125, %125, %125 in 1 : vector<1x128xf32>, vector<1x128xf32>, vector<1x128xf32>, vector<1x128xf32> -> vector<1x512xf32>
    %127 = vector.broadcast %126 : vector<1x512xf32> to vector<8x512xf32>
    %128 = arith.subf %114, %127 : vector<8x512xf32>
    %129 = arith.mulf %128, %128 : vector<8x512xf32>
    %cst_32 = arith.constant dense<0.000000e+00> : vector<512xf32>
    %130 = vector.multi_reduction <add>, %129, %cst_32 [0] : vector<8x512xf32> to vector<512xf32>
    %131 = vector.shape_cast %130 : vector<512xf32> to vector<1x512xf32>
    %132 = vector.extract_strided_slice %131 {offsets = [0, 0], sizes = [1, 128], strides = [1, 1]} : vector<1x512xf32> to vector<1x128xf32>
    %133 = vector.extract_strided_slice %131 {offsets = [0, 128], sizes = [1, 128], strides = [1, 1]} : vector<1x512xf32> to vector<1x128xf32>
    %134 = vector.extract_strided_slice %131 {offsets = [0, 256], sizes = [1, 128], strides = [1, 1]} : vector<1x512xf32> to vector<1x128xf32>
    %135 = vector.extract_strided_slice %131 {offsets = [0, 384], sizes = [1, 128], strides = [1, 1]} : vector<1x512xf32> to vector<1x128xf32>
    %136 = arith.addf %132, %133 : vector<1x128xf32>
    %137 = arith.addf %134, %135 : vector<1x128xf32>
    %138 = arith.addf %136, %137 : vector<1x128xf32>
    %cst_33 = arith.constant 3.125000e-02 : f32
    %139 = vector.broadcast %cst_33 : f32 to vector<1x128xf32>
    %140 = arith.mulf %138, %139 : vector<1x128xf32>
    %cst_34 = arith.constant 9.99999997E-7 : f32
    %141 = vector.broadcast %cst_34 : f32 to vector<1x128xf32>
    %142 = arith.addf %140, %141 : vector<1x128xf32>
    %143 = math.rsqrt %142 : vector<1x128xf32>
    %144 = tpu.concatenate %143, %143, %143, %143 in 1 : vector<1x128xf32>, vector<1x128xf32>, vector<1x128xf32>, vector<1x128xf32> -> vector<1x512xf32>
    %145 = vector.broadcast %144 : vector<1x512xf32> to vector<8x512xf32>
    %146 = arith.mulf %128, %145 : vector<8x512xf32>
    %147 = vector.broadcast %61 : vector<8x1xf32> to vector<8x512xf32>
    %148 = arith.mulf %146, %147 : vector<8x512xf32>
    %149 = vector.broadcast %62 : vector<8x1xf32> to vector<8x512xf32>
    %150 = arith.addf %148, %149 : vector<8x512xf32>
    %151 = arith.negf %150 : vector<8x512xf32>
    %152 = math.exp %151 : vector<8x512xf32>
    %cst_35 = arith.constant 1.000000e+00 : f32
    %153 = vector.broadcast %cst_35 : f32 to vector<8x512xf32>
    %154 = arith.addf %153, %152 : vector<8x512xf32>
    %155 = arith.divf %153, %154 : vector<8x512xf32>
    %156 = arith.mulf %150, %155 : vector<8x512xf32>
    %157 = vector.extract_strided_slice %156 {offsets = [0, 0], sizes = [8, 384], strides = [1, 1]} : vector<8x512xf32> to vector<8x384xf32>
    %158 = tpu.concatenate %48, %157 in 1 : vector<8x128xf32>, vector<8x384xf32> -> vector<8x512xf32>
    %159 = vector.extract_strided_slice %156 {offsets = [0, 128], sizes = [8, 384], strides = [1, 1]} : vector<8x512xf32> to vector<8x384xf32>
    %160 = tpu.concatenate %159, %48 in 1 : vector<8x384xf32>, vector<8x128xf32> -> vector<8x512xf32>
    %161 = tpu.concatenate %158, %156, %160 in 0 : vector<8x512xf32>, vector<8x512xf32>, vector<8x512xf32> -> vector<24x512xf32>
    %cst_36 = arith.constant dense<0.000000e+00> : vector<8x512xf32>
    %162 = tpu.matmul %63, %161, %cst_36 {dimension_numbers = #tpu.dot_dimension_numbers<[1], [0], [0], [1], [0, 0, 1, 1], [], []>} : vector<8x24xf32>, vector<24x512xf32>, vector<8x512xf32> -> vector<8x512xf32>
    %163 = vector.broadcast %64 : vector<8x1xf32> to vector<8x512xf32>
    %164 = arith.addf %162, %163 : vector<8x512xf32>
    %165 = arith.addf %56, %164 : vector<8x512xf32>
    %c32 = arith.constant 32 : index
    %c0_37 = arith.constant 0 : index
    %166 = vector.load %arg2[%c32, %c0_37] : memref<136x128xf32, #tpu.memory_space<vmem>>, vector<8x8xf32>
    %c40 = arith.constant 40 : index
    %c0_38 = arith.constant 0 : index
    %167 = vector.load %arg2[%c40, %c0_38] : memref<136x128xf32, #tpu.memory_space<vmem>>, vector<8x16xf32>
    %c0_39 = arith.constant 0 : index
    %c9 = arith.constant 9 : index
    %168 = vector.load %arg2[%c0_39, %c9] : memref<136x128xf32, #tpu.memory_space<vmem>>, vector<8x1xf32>
    %cst_40 = arith.constant dense<0.000000e+00> : vector<8x512xf32>
    %169 = tpu.matmul %166, %165, %cst_40 {dimension_numbers = #tpu.dot_dimension_numbers<[1], [0], [0], [1], [0, 0, 1, 1], [], []>} : vector<8x8xf32>, vector<8x512xf32>, vector<8x512xf32> -> vector<8x512xf32>
    %170 = vector.broadcast %168 : vector<8x1xf32> to vector<8x512xf32>
    %171 = arith.addf %169, %170 : vector<8x512xf32>
    %172 = vector.extract_strided_slice %165 {offsets = [0, 128], sizes = [8, 384], strides = [1, 1]} : vector<8x512xf32> to vector<8x384xf32>
    %173 = tpu.concatenate %172, %48 in 1 : vector<8x384xf32>, vector<8x128xf32> -> vector<8x512xf32>
    %174 = tpu.concatenate %165, %173 in 0 : vector<8x512xf32>, vector<8x512xf32> -> vector<16x512xf32>
    %cst_41 = arith.constant dense<0.000000e+00> : vector<8x512xf32>
    %175 = tpu.matmul %167, %174, %cst_41 {dimension_numbers = #tpu.dot_dimension_numbers<[1], [0], [0], [1], [0, 0, 1, 1], [], []>} : vector<8x16xf32>, vector<16x512xf32>, vector<8x512xf32> -> vector<8x512xf32>
    %176 = vector.broadcast %168 : vector<8x1xf32> to vector<8x512xf32>
    %177 = arith.addf %175, %176 : vector<8x512xf32>
    %178 = vector.extract_strided_slice %171 {offsets = [0, 0], sizes = [8, 128], strides = [1, 1]} : vector<8x512xf32> to vector<8x128xf32>
    %c0_42 = arith.constant 0 : index
    %c0_43 = arith.constant 0 : index
    %179 = vector.load %arg4[%c0_42, %c0_43] : memref<8x2048xf32, #tpu.memory_space<vmem>>, vector<8x128xf32>
    tpu.vector_store %arg4[%c0_42, %c0_43], %178 {strides = array<i32>} : memref<8x2048xf32, #tpu.memory_space<vmem>>, vector<8x128xf32>,
    %180 = vector.extract_strided_slice %177 {offsets = [0, 0], sizes = [8, 128], strides = [1, 1]} : vector<8x512xf32> to vector<8x128xf32>
    %c0_44 = arith.constant 0 : index
    %c128 = arith.constant 128 : index
    %181 = vector.load %arg4[%c0_44, %c128] : memref<8x2048xf32, #tpu.memory_space<vmem>>, vector<8x128xf32>
    tpu.vector_store %arg4[%c0_44, %c128], %180 {strides = array<i32>} : memref<8x2048xf32, #tpu.memory_space<vmem>>, vector<8x128xf32>,
    %182 = vector.extract_strided_slice %171 {offsets = [0, 128], sizes = [8, 128], strides = [1, 1]} : vector<8x512xf32> to vector<8x128xf32>
    %c0_45 = arith.constant 0 : index
    %c256 = arith.constant 256 : index
    %183 = vector.load %arg4[%c0_45, %c256] : memref<8x2048xf32, #tpu.memory_space<vmem>>, vector<8x128xf32>
    tpu.vector_store %arg4[%c0_45, %c256], %182 {strides = array<i32>} : memref<8x2048xf32, #tpu.memory_space<vmem>>, vector<8x128xf32>,
    %184 = vector.extract_strided_slice %177 {offsets = [0, 128], sizes = [8, 128], strides = [1, 1]} : vector<8x512xf32> to vector<8x128xf32>
    %c0_46 = arith.constant 0 : index
    %c384 = arith.constant 384 : index
    %185 = vector.load %arg4[%c0_46, %c384] : memref<8x2048xf32, #tpu.memory_space<vmem>>, vector<8x128xf32>
    tpu.vector_store %arg4[%c0_46, %c384], %184 {strides = array<i32>} : memref<8x2048xf32, #tpu.memory_space<vmem>>, vector<8x128xf32>,
    %186 = vector.extract_strided_slice %171 {offsets = [0, 256], sizes = [8, 128], strides = [1, 1]} : vector<8x512xf32> to vector<8x128xf32>
    %c0_47 = arith.constant 0 : index
    %c512 = arith.constant 512 : index
    %187 = vector.load %arg4[%c0_47, %c512] : memref<8x2048xf32, #tpu.memory_space<vmem>>, vector<8x128xf32>
    tpu.vector_store %arg4[%c0_47, %c512], %186 {strides = array<i32>} : memref<8x2048xf32, #tpu.memory_space<vmem>>, vector<8x128xf32>,
    %188 = vector.extract_strided_slice %177 {offsets = [0, 256], sizes = [8, 128], strides = [1, 1]} : vector<8x512xf32> to vector<8x128xf32>
    %c0_48 = arith.constant 0 : index
    %c640 = arith.constant 640 : index
    %189 = vector.load %arg4[%c0_48, %c640] : memref<8x2048xf32, #tpu.memory_space<vmem>>, vector<8x128xf32>
    tpu.vector_store %arg4[%c0_48, %c640], %188 {strides = array<i32>} : memref<8x2048xf32, #tpu.memory_space<vmem>>, vector<8x128xf32>,
    %190 = vector.extract_strided_slice %171 {offsets = [0, 384], sizes = [8, 128], strides = [1, 1]} : vector<8x512xf32> to vector<8x128xf32>
    %c0_49 = arith.constant 0 : index
    %c768 = arith.constant 768 : index
    %191 = vector.load %arg4[%c0_49, %c768] : memref<8x2048xf32, #tpu.memory_space<vmem>>, vector<8x128xf32>
    tpu.vector_store %arg4[%c0_49, %c768], %190 {strides = array<i32>} : memref<8x2048xf32, #tpu.memory_space<vmem>>, vector<8x128xf32>,
    %192 = vector.extract_strided_slice %177 {offsets = [0, 384], sizes = [8, 128], strides = [1, 1]} : vector<8x512xf32> to vector<8x128xf32>
    %c0_50 = arith.constant 0 : index
    %c896 = arith.constant 896 : index
    %193 = vector.load %arg4[%c0_50, %c896] : memref<8x2048xf32, #tpu.memory_space<vmem>>, vector<8x128xf32>
    tpu.vector_store %arg4[%c0_50, %c896], %192 {strides = array<i32>} : memref<8x2048xf32, #tpu.memory_space<vmem>>, vector<8x128xf32>,
    %c0_51 = arith.constant 0 : index
    %c0_52 = arith.constant 0 : index
    %194 = vector.load %arg4[%c0_51, %c0_52] : memref<8x2048xf32, #tpu.memory_space<vmem>>, vector<8x1024xf32>
    %c0_53 = arith.constant 0 : index
    %c10 = arith.constant 10 : index
    %195 = vector.load %arg2[%c0_53, %c10] : memref<136x128xf32, #tpu.memory_space<vmem>>, vector<8x1xf32>
    %c0_54 = arith.constant 0 : index
    %c11 = arith.constant 11 : index
    %196 = vector.load %arg2[%c0_54, %c11] : memref<136x128xf32, #tpu.memory_space<vmem>>, vector<8x1xf32>
    %c48 = arith.constant 48 : index
    %c0_55 = arith.constant 0 : index
    %197 = vector.load %arg2[%c48, %c0_55] : memref<136x128xf32, #tpu.memory_space<vmem>>, vector<4x24xf32>
    %c0_56 = arith.constant 0 : index
    %c12 = arith.constant 12 : index
    %198 = vector.load %arg2[%c0_56, %c12] : memref<136x128xf32, #tpu.memory_space<vmem>>, vector<4x1xf32>
    %c0_57 = arith.constant 0 : index
    %c13 = arith.constant 13 : index
    %199 = vector.load %arg2[%c0_57, %c13] : memref<136x128xf32, #tpu.memory_space<vmem>>, vector<4x1xf32>
    %c0_58 = arith.constant 0 : index
    %c14 = arith.constant 14 : index
    %200 = vector.load %arg2[%c0_58, %c14] : memref<136x128xf32, #tpu.memory_space<vmem>>, vector<4x1xf32>
    %c56 = arith.constant 56 : index
    %c0_59 = arith.constant 0 : index
    %201 = vector.load %arg2[%c56, %c0_59] : memref<136x128xf32, #tpu.memory_space<vmem>>, vector<4x12xf32>
    %c0_60 = arith.constant 0 : index
    %c15 = arith.constant 15 : index
    %202 = vector.load %arg2[%c0_60, %c15] : memref<136x128xf32, #tpu.memory_space<vmem>>, vector<4x1xf32>
    %cst_61 = arith.constant dense<0.000000e+00> : vector<1024xf32>
    %203 = vector.multi_reduction <add>, %194, %cst_61 [0] : vector<8x1024xf32> to vector<1024xf32>
    %204 = vector.shape_cast %203 : vector<1024xf32> to vector<1x1024xf32>
    %205 = vector.extract_strided_slice %204 {offsets = [0, 0], sizes = [1, 128], strides = [1, 1]} : vector<1x1024xf32> to vector<1x128xf32>
    %206 = vector.extract_strided_slice %204 {offsets = [0, 128], sizes = [1, 128], strides = [1, 1]} : vector<1x1024xf32> to vector<1x128xf32>
    %207 = vector.extract_strided_slice %204 {offsets = [0, 256], sizes = [1, 128], strides = [1, 1]} : vector<1x1024xf32> to vector<1x128xf32>
    %208 = vector.extract_strided_slice %204 {offsets = [0, 384], sizes = [1, 128], strides = [1, 1]} : vector<1x1024xf32> to vector<1x128xf32>
    %209 = vector.extract_strided_slice %204 {offsets = [0, 512], sizes = [1, 128], strides = [1, 1]} : vector<1x1024xf32> to vector<1x128xf32>
    %210 = vector.extract_strided_slice %204 {offsets = [0, 640], sizes = [1, 128], strides = [1, 1]} : vector<1x1024xf32> to vector<1x128xf32>
    %211 = vector.extract_strided_slice %204 {offsets = [0, 768], sizes = [1, 128], strides = [1, 1]} : vector<1x1024xf32> to vector<1x128xf32>
    %212 = vector.extract_strided_slice %204 {offsets = [0, 896], sizes = [1, 128], strides = [1, 1]} : vector<1x1024xf32> to vector<1x128xf32>
    %213 = arith.addf %205, %206 : vector<1x128xf32>
    %214 = arith.addf %207, %208 : vector<1x128xf32>
    %215 = arith.addf %209, %210 : vector<1x128xf32>
    %216 = arith.addf %211, %212 : vector<1x128xf32>
    %217 = arith.addf %213, %214 : vector<1x128xf32>
    %218 = arith.addf %215, %216 : vector<1x128xf32>
    %219 = arith.addf %217, %218 : vector<1x128xf32>
    %cst_62 = arith.constant 1.562500e-02 : f32
    %220 = vector.broadcast %cst_62 : f32 to vector<1x128xf32>
    %221 = arith.mulf %219, %220 : vector<1x128xf32>
    %222 = tpu.concatenate %221, %221, %221, %221, %221, %221, %221, %221 in 1 : vector<1x128xf32>, vector<1x128xf32>, vector<1x128xf32>, vector<1x128xf32>, vector<1x128xf32>, vector<1x128xf32>, vector<1x128xf32>, vector<1x128xf32> -> vector<1x1024xf32>
    %223 = vector.broadcast %222 : vector<1x1024xf32> to vector<8x1024xf32>
    %224 = arith.subf %194, %223 : vector<8x1024xf32>
    %225 = arith.mulf %224, %224 : vector<8x1024xf32>
    %cst_63 = arith.constant dense<0.000000e+00> : vector<1024xf32>
    %226 = vector.multi_reduction <add>, %225, %cst_63 [0] : vector<8x1024xf32> to vector<1024xf32>
    %227 = vector.shape_cast %226 : vector<1024xf32> to vector<1x1024xf32>
    %228 = vector.extract_strided_slice %227 {offsets = [0, 0], sizes = [1, 128], strides = [1, 1]} : vector<1x1024xf32> to vector<1x128xf32>
    %229 = vector.extract_strided_slice %227 {offsets = [0, 128], sizes = [1, 128], strides = [1, 1]} : vector<1x1024xf32> to vector<1x128xf32>
    %230 = vector.extract_strided_slice %227 {offsets = [0, 256], sizes = [1, 128], strides = [1, 1]} : vector<1x1024xf32> to vector<1x128xf32>
    %231 = vector.extract_strided_slice %227 {offsets = [0, 384], sizes = [1, 128], strides = [1, 1]} : vector<1x1024xf32> to vector<1x128xf32>
    %232 = vector.extract_strided_slice %227 {offsets = [0, 512], sizes = [1, 128], strides = [1, 1]} : vector<1x1024xf32> to vector<1x128xf32>
    %233 = vector.extract_strided_slice %227 {offsets = [0, 640], sizes = [1, 128], strides = [1, 1]} : vector<1x1024xf32> to vector<1x128xf32>
    %234 = vector.extract_strided_slice %227 {offsets = [0, 768], sizes = [1, 128], strides = [1, 1]} : vector<1x1024xf32> to vector<1x128xf32>
    %235 = vector.extract_strided_slice %227 {offsets = [0, 896], sizes = [1, 128], strides = [1, 1]} : vector<1x1024xf32> to vector<1x128xf32>
    %236 = arith.addf %228, %229 : vector<1x128xf32>
    %237 = arith.addf %230, %231 : vector<1x128xf32>
    %238 = arith.addf %232, %233 : vector<1x128xf32>
    %239 = arith.addf %234, %235 : vector<1x128xf32>
    %240 = arith.addf %236, %237 : vector<1x128xf32>
    %241 = arith.addf %238, %239 : vector<1x128xf32>
    %242 = arith.addf %240, %241 : vector<1x128xf32>
    %cst_64 = arith.constant 1.562500e-02 : f32
    %243 = vector.broadcast %cst_64 : f32 to vector<1x128xf32>
    %244 = arith.mulf %242, %243 : vector<1x128xf32>
    %cst_65 = arith.constant 9.99999997E-7 : f32
    %245 = vector.broadcast %cst_65 : f32 to vector<1x128xf32>
    %246 = arith.addf %244, %245 : vector<1x128xf32>
    %247 = math.rsqrt %246 : vector<1x128xf32>
    %248 = tpu.concatenate %247, %247, %247, %247, %247, %247, %247, %247 in 1 : vector<1x128xf32>, vector<1x128xf32>, vector<1x128xf32>, vector<1x128xf32>, vector<1x128xf32>, vector<1x128xf32>, vector<1x128xf32>, vector<1x128xf32> -> vector<1x1024xf32>
    %249 = vector.broadcast %248 : vector<1x1024xf32> to vector<8x1024xf32>
    %250 = arith.mulf %224, %249 : vector<8x1024xf32>
    %251 = vector.broadcast %195 : vector<8x1xf32> to vector<8x1024xf32>
    %252 = arith.mulf %250, %251 : vector<8x1024xf32>
    %253 = vector.broadcast %196 : vector<8x1xf32> to vector<8x1024xf32>
    %254 = arith.addf %252, %253 : vector<8x1024xf32>
    %255 = arith.negf %254 : vector<8x1024xf32>
    %256 = math.exp %255 : vector<8x1024xf32>
    %cst_66 = arith.constant 1.000000e+00 : f32
    %257 = vector.broadcast %cst_66 : f32 to vector<8x1024xf32>
    %258 = arith.addf %257, %256 : vector<8x1024xf32>
    %259 = arith.divf %257, %258 : vector<8x1024xf32>
    %260 = arith.mulf %254, %259 : vector<8x1024xf32>
    %261 = vector.extract_strided_slice %260 {offsets = [0, 0], sizes = [8, 896], strides = [1, 1]} : vector<8x1024xf32> to vector<8x896xf32>
    %262 = tpu.concatenate %48, %261 in 1 : vector<8x128xf32>, vector<8x896xf32> -> vector<8x1024xf32>
    %263 = vector.extract_strided_slice %260 {offsets = [0, 128], sizes = [8, 896], strides = [1, 1]} : vector<8x1024xf32> to vector<8x896xf32>
    %264 = tpu.concatenate %263, %48 in 1 : vector<8x896xf32>, vector<8x128xf32> -> vector<8x1024xf32>
    %265 = tpu.concatenate %262, %260, %264 in 0 : vector<8x1024xf32>, vector<8x1024xf32>, vector<8x1024xf32> -> vector<24x1024xf32>
    %cst_67 = arith.constant dense<0.000000e+00> : vector<4x1024xf32>
    %266 = tpu.matmul %197, %265, %cst_67 {dimension_numbers = #tpu.dot_dimension_numbers<[1], [0], [0], [1], [0, 0, 1, 1], [], []>} : vector<4x24xf32>, vector<24x1024xf32>, vector<4x1024xf32> -> vector<4x1024xf32>
    %267 = vector.broadcast %198 : vector<4x1xf32> to vector<4x1024xf32>
    %268 = arith.addf %266, %267 : vector<4x1024xf32>
    %cst_68 = arith.constant dense<0.000000e+00> : vector<1024xf32>
    %269 = vector.multi_reduction <add>, %268, %cst_68 [0] : vector<4x1024xf32> to vector<1024xf32>
    %270 = vector.shape_cast %269 : vector<1024xf32> to vector<1x1024xf32>
    %271 = vector.extract_strided_slice %270 {offsets = [0, 0], sizes = [1, 128], strides = [1, 1]} : vector<1x1024xf32> to vector<1x128xf32>
    %272 = vector.extract_strided_slice %270 {offsets = [0, 128], sizes = [1, 128], strides = [1, 1]} : vector<1x1024xf32> to vector<1x128xf32>
    %273 = vector.extract_strided_slice %270 {offsets = [0, 256], sizes = [1, 128], strides = [1, 1]} : vector<1x1024xf32> to vector<1x128xf32>
    %274 = vector.extract_strided_slice %270 {offsets = [0, 384], sizes = [1, 128], strides = [1, 1]} : vector<1x1024xf32> to vector<1x128xf32>
    %275 = vector.extract_strided_slice %270 {offsets = [0, 512], sizes = [1, 128], strides = [1, 1]} : vector<1x1024xf32> to vector<1x128xf32>
    %276 = vector.extract_strided_slice %270 {offsets = [0, 640], sizes = [1, 128], strides = [1, 1]} : vector<1x1024xf32> to vector<1x128xf32>
    %277 = vector.extract_strided_slice %270 {offsets = [0, 768], sizes = [1, 128], strides = [1, 1]} : vector<1x1024xf32> to vector<1x128xf32>
    %278 = vector.extract_strided_slice %270 {offsets = [0, 896], sizes = [1, 128], strides = [1, 1]} : vector<1x1024xf32> to vector<1x128xf32>
    %279 = arith.addf %271, %272 : vector<1x128xf32>
    %280 = arith.addf %273, %274 : vector<1x128xf32>
    %281 = arith.addf %275, %276 : vector<1x128xf32>
    %282 = arith.addf %277, %278 : vector<1x128xf32>
    %283 = arith.addf %279, %280 : vector<1x128xf32>
    %284 = arith.addf %281, %282 : vector<1x128xf32>
    %285 = arith.addf %283, %284 : vector<1x128xf32>
    %cst_69 = arith.constant 3.125000e-02 : f32
    %286 = vector.broadcast %cst_69 : f32 to vector<1x128xf32>
    %287 = arith.mulf %285, %286 : vector<1x128xf32>
    %288 = tpu.concatenate %287, %287, %287, %287, %287, %287, %287, %287 in 1 : vector<1x128xf32>, vector<1x128xf32>, vector<1x128xf32>, vector<1x128xf32>, vector<1x128xf32>, vector<1x128xf32>, vector<1x128xf32>, vector<1x128xf32> -> vector<1x1024xf32>
    %289 = vector.broadcast %288 : vector<1x1024xf32> to vector<4x1024xf32>
    %290 = arith.subf %268, %289 : vector<4x1024xf32>
    %291 = arith.mulf %290, %290 : vector<4x1024xf32>
    %cst_70 = arith.constant dense<0.000000e+00> : vector<1024xf32>
    %292 = vector.multi_reduction <add>, %291, %cst_70 [0] : vector<4x1024xf32> to vector<1024xf32>
    %293 = vector.shape_cast %292 : vector<1024xf32> to vector<1x1024xf32>
    %294 = vector.extract_strided_slice %293 {offsets = [0, 0], sizes = [1, 128], strides = [1, 1]} : vector<1x1024xf32> to vector<1x128xf32>
    %295 = vector.extract_strided_slice %293 {offsets = [0, 128], sizes = [1, 128], strides = [1, 1]} : vector<1x1024xf32> to vector<1x128xf32>
    %296 = vector.extract_strided_slice %293 {offsets = [0, 256], sizes = [1, 128], strides = [1, 1]} : vector<1x1024xf32> to vector<1x128xf32>
    %297 = vector.extract_strided_slice %293 {offsets = [0, 384], sizes = [1, 128], strides = [1, 1]} : vector<1x1024xf32> to vector<1x128xf32>
    %298 = vector.extract_strided_slice %293 {offsets = [0, 512], sizes = [1, 128], strides = [1, 1]} : vector<1x1024xf32> to vector<1x128xf32>
    %299 = vector.extract_strided_slice %293 {offsets = [0, 640], sizes = [1, 128], strides = [1, 1]} : vector<1x1024xf32> to vector<1x128xf32>
    %300 = vector.extract_strided_slice %293 {offsets = [0, 768], sizes = [1, 128], strides = [1, 1]} : vector<1x1024xf32> to vector<1x128xf32>
    %301 = vector.extract_strided_slice %293 {offsets = [0, 896], sizes = [1, 128], strides = [1, 1]} : vector<1x1024xf32> to vector<1x128xf32>
    %302 = arith.addf %294, %295 : vector<1x128xf32>
    %303 = arith.addf %296, %297 : vector<1x128xf32>
    %304 = arith.addf %298, %299 : vector<1x128xf32>
    %305 = arith.addf %300, %301 : vector<1x128xf32>
    %306 = arith.addf %302, %303 : vector<1x128xf32>
    %307 = arith.addf %304, %305 : vector<1x128xf32>
    %308 = arith.addf %306, %307 : vector<1x128xf32>
    %cst_71 = arith.constant 3.125000e-02 : f32
    %309 = vector.broadcast %cst_71 : f32 to vector<1x128xf32>
    %310 = arith.mulf %308, %309 : vector<1x128xf32>
    %cst_72 = arith.constant 9.99999997E-7 : f32
    %311 = vector.broadcast %cst_72 : f32 to vector<1x128xf32>
    %312 = arith.addf %310, %311 : vector<1x128xf32>
    %313 = math.rsqrt %312 : vector<1x128xf32>
    %314 = tpu.concatenate %313, %313, %313, %313, %313, %313, %313, %313 in 1 : vector<1x128xf32>, vector<1x128xf32>, vector<1x128xf32>, vector<1x128xf32>, vector<1x128xf32>, vector<1x128xf32>, vector<1x128xf32>, vector<1x128xf32> -> vector<1x1024xf32>
    %315 = vector.broadcast %314 : vector<1x1024xf32> to vector<4x1024xf32>
    %316 = arith.mulf %290, %315 : vector<4x1024xf32>
    %317 = vector.broadcast %199 : vector<4x1xf32> to vector<4x1024xf32>
    %318 = arith.mulf %316, %317 : vector<4x1024xf32>
    %319 = vector.broadcast %200 : vector<4x1xf32> to vector<4x1024xf32>
    %320 = arith.addf %318, %319 : vector<4x1024xf32>
    %321 = arith.negf %320 : vector<4x1024xf32>
    %322 = math.exp %321 : vector<4x1024xf32>
    %cst_73 = arith.constant 1.000000e+00 : f32
    %323 = vector.broadcast %cst_73 : f32 to vector<4x1024xf32>
    %324 = arith.addf %323, %322 : vector<4x1024xf32>
    %325 = arith.divf %323, %324 : vector<4x1024xf32>
    %326 = arith.mulf %320, %325 : vector<4x1024xf32>
    %cst_74 = arith.constant 0.000000e+00 : f32
    %327 = vector.broadcast %cst_74 : f32 to vector<4x128xf32>
    %328 = vector.extract_strided_slice %326 {offsets = [0, 0], sizes = [4, 896], strides = [1, 1]} : vector<4x1024xf32> to vector<4x896xf32>
    %329 = tpu.concatenate %327, %328 in 1 : vector<4x128xf32>, vector<4x896xf32> -> vector<4x1024xf32>
    %330 = vector.extract_strided_slice %326 {offsets = [0, 128], sizes = [4, 896], strides = [1, 1]} : vector<4x1024xf32> to vector<4x896xf32>
    %331 = tpu.concatenate %330, %327 in 1 : vector<4x896xf32>, vector<4x128xf32> -> vector<4x1024xf32>
    %332 = tpu.concatenate %329, %326, %331 in 0 : vector<4x1024xf32>, vector<4x1024xf32>, vector<4x1024xf32> -> vector<12x1024xf32>
    %cst_75 = arith.constant dense<0.000000e+00> : vector<4x1024xf32>
    %333 = tpu.matmul %201, %332, %cst_75 {dimension_numbers = #tpu.dot_dimension_numbers<[1], [0], [0], [1], [0, 0, 1, 1], [], []>} : vector<4x12xf32>, vector<12x1024xf32>, vector<4x1024xf32> -> vector<4x1024xf32>
    %334 = vector.broadcast %202 : vector<4x1xf32> to vector<4x1024xf32>
    %335 = arith.addf %333, %334 : vector<4x1024xf32>
    %c64 = arith.constant 64 : index
    %c0_76 = arith.constant 0 : index
    %336 = vector.load %arg2[%c64, %c0_76] : memref<136x128xf32, #tpu.memory_space<vmem>>, vector<4x8xf32>
    %c0_77 = arith.constant 0 : index
    %c16_78 = arith.constant 16 : index
    %337 = vector.load %arg2[%c0_77, %c16_78] : memref<136x128xf32, #tpu.memory_space<vmem>>, vector<4x1xf32>
    %cst_79 = arith.constant dense<0.000000e+00> : vector<4x1024xf32>
    %338 = tpu.matmul %336, %194, %cst_79 {dimension_numbers = #tpu.dot_dimension_numbers<[1], [0], [0], [1], [0, 0, 1, 1], [], []>} : vector<4x8xf32>, vector<8x1024xf32>, vector<4x1024xf32> -> vector<4x1024xf32>
    %339 = vector.broadcast %337 : vector<4x1xf32> to vector<4x1024xf32>
    %340 = arith.addf %338, %339 : vector<4x1024xf32>
    %341 = arith.addf %340, %335 : vector<4x1024xf32>
    %c0_80 = arith.constant 0 : index
    %c17 = arith.constant 17 : index
    %342 = vector.load %arg2[%c0_80, %c17] : memref<136x128xf32, #tpu.memory_space<vmem>>, vector<4x1xf32>
    %c0_81 = arith.constant 0 : index
    %c18 = arith.constant 18 : index
    %343 = vector.load %arg2[%c0_81, %c18] : memref<136x128xf32, #tpu.memory_space<vmem>>, vector<4x1xf32>
    %c72 = arith.constant 72 : index
    %c0_82 = arith.constant 0 : index
    %344 = vector.load %arg2[%c72, %c0_82] : memref<136x128xf32, #tpu.memory_space<vmem>>, vector<4x12xf32>
    %c0_83 = arith.constant 0 : index
    %c19 = arith.constant 19 : index
    %345 = vector.load %arg2[%c0_83, %c19] : memref<136x128xf32, #tpu.memory_space<vmem>>, vector<4x1xf32>
    %c0_84 = arith.constant 0 : index
    %c20 = arith.constant 20 : index
    %346 = vector.load %arg2[%c0_84, %c20] : memref<136x128xf32, #tpu.memory_space<vmem>>, vector<4x1xf32>
    %c0_85 = arith.constant 0 : index
    %c21 = arith.constant 21 : index
    %347 = vector.load %arg2[%c0_85, %c21] : memref<136x128xf32, #tpu.memory_space<vmem>>, vector<4x1xf32>
    %c80 = arith.constant 80 : index
    %c0_86 = arith.constant 0 : index
    %348 = vector.load %arg2[%c80, %c0_86] : memref<136x128xf32, #tpu.memory_space<vmem>>, vector<4x12xf32>
    %c0_87 = arith.constant 0 : index
    %c22 = arith.constant 22 : index
    %349 = vector.load %arg2[%c0_87, %c22] : memref<136x128xf32, #tpu.memory_space<vmem>>, vector<4x1xf32>
    %cst_88 = arith.constant dense<0.000000e+00> : vector<1024xf32>
    %350 = vector.multi_reduction <add>, %341, %cst_88 [0] : vector<4x1024xf32> to vector<1024xf32>
    %351 = vector.shape_cast %350 : vector<1024xf32> to vector<1x1024xf32>
    %352 = vector.extract_strided_slice %351 {offsets = [0, 0], sizes = [1, 128], strides = [1, 1]} : vector<1x1024xf32> to vector<1x128xf32>
    %353 = vector.extract_strided_slice %351 {offsets = [0, 128], sizes = [1, 128], strides = [1, 1]} : vector<1x1024xf32> to vector<1x128xf32>
    %354 = vector.extract_strided_slice %351 {offsets = [0, 256], sizes = [1, 128], strides = [1, 1]} : vector<1x1024xf32> to vector<1x128xf32>
    %355 = vector.extract_strided_slice %351 {offsets = [0, 384], sizes = [1, 128], strides = [1, 1]} : vector<1x1024xf32> to vector<1x128xf32>
    %356 = vector.extract_strided_slice %351 {offsets = [0, 512], sizes = [1, 128], strides = [1, 1]} : vector<1x1024xf32> to vector<1x128xf32>
    %357 = vector.extract_strided_slice %351 {offsets = [0, 640], sizes = [1, 128], strides = [1, 1]} : vector<1x1024xf32> to vector<1x128xf32>
    %358 = vector.extract_strided_slice %351 {offsets = [0, 768], sizes = [1, 128], strides = [1, 1]} : vector<1x1024xf32> to vector<1x128xf32>
    %359 = vector.extract_strided_slice %351 {offsets = [0, 896], sizes = [1, 128], strides = [1, 1]} : vector<1x1024xf32> to vector<1x128xf32>
    %360 = arith.addf %352, %353 : vector<1x128xf32>
    %361 = arith.addf %354, %355 : vector<1x128xf32>
    %362 = arith.addf %356, %357 : vector<1x128xf32>
    %363 = arith.addf %358, %359 : vector<1x128xf32>
    %364 = arith.addf %360, %361 : vector<1x128xf32>
    %365 = arith.addf %362, %363 : vector<1x128xf32>
    %366 = arith.addf %364, %365 : vector<1x128xf32>
    %cst_89 = arith.constant 3.125000e-02 : f32
    %367 = vector.broadcast %cst_89 : f32 to vector<1x128xf32>
    %368 = arith.mulf %366, %367 : vector<1x128xf32>
    %369 = tpu.concatenate %368, %368, %368, %368, %368, %368, %368, %368 in 1 : vector<1x128xf32>, vector<1x128xf32>, vector<1x128xf32>, vector<1x128xf32>, vector<1x128xf32>, vector<1x128xf32>, vector<1x128xf32>, vector<1x128xf32> -> vector<1x1024xf32>
    %370 = vector.broadcast %369 : vector<1x1024xf32> to vector<4x1024xf32>
    %371 = arith.subf %341, %370 : vector<4x1024xf32>
    %372 = arith.mulf %371, %371 : vector<4x1024xf32>
    %cst_90 = arith.constant dense<0.000000e+00> : vector<1024xf32>
    %373 = vector.multi_reduction <add>, %372, %cst_90 [0] : vector<4x1024xf32> to vector<1024xf32>
    %374 = vector.shape_cast %373 : vector<1024xf32> to vector<1x1024xf32>
    %375 = vector.extract_strided_slice %374 {offsets = [0, 0], sizes = [1, 128], strides = [1, 1]} : vector<1x1024xf32> to vector<1x128xf32>
    %376 = vector.extract_strided_slice %374 {offsets = [0, 128], sizes = [1, 128], strides = [1, 1]} : vector<1x1024xf32> to vector<1x128xf32>
    %377 = vector.extract_strided_slice %374 {offsets = [0, 256], sizes = [1, 128], strides = [1, 1]} : vector<1x1024xf32> to vector<1x128xf32>
    %378 = vector.extract_strided_slice %374 {offsets = [0, 384], sizes = [1, 128], strides = [1, 1]} : vector<1x1024xf32> to vector<1x128xf32>
    %379 = vector.extract_strided_slice %374 {offsets = [0, 512], sizes = [1, 128], strides = [1, 1]} : vector<1x1024xf32> to vector<1x128xf32>
    %380 = vector.extract_strided_slice %374 {offsets = [0, 640], sizes = [1, 128], strides = [1, 1]} : vector<1x1024xf32> to vector<1x128xf32>
    %381 = vector.extract_strided_slice %374 {offsets = [0, 768], sizes = [1, 128], strides = [1, 1]} : vector<1x1024xf32> to vector<1x128xf32>
    %382 = vector.extract_strided_slice %374 {offsets = [0, 896], sizes = [1, 128], strides = [1, 1]} : vector<1x1024xf32> to vector<1x128xf32>
    %383 = arith.addf %375, %376 : vector<1x128xf32>
    %384 = arith.addf %377, %378 : vector<1x128xf32>
    %385 = arith.addf %379, %380 : vector<1x128xf32>
    %386 = arith.addf %381, %382 : vector<1x128xf32>
    %387 = arith.addf %383, %384 : vector<1x128xf32>
    %388 = arith.addf %385, %386 : vector<1x128xf32>
    %389 = arith.addf %387, %388 : vector<1x128xf32>
    %cst_91 = arith.constant 3.125000e-02 : f32
    %390 = vector.broadcast %cst_91 : f32 to vector<1x128xf32>
    %391 = arith.mulf %389, %390 : vector<1x128xf32>
    %cst_92 = arith.constant 9.99999997E-7 : f32
    %392 = vector.broadcast %cst_92 : f32 to vector<1x128xf32>
    %393 = arith.addf %391, %392 : vector<1x128xf32>
    %394 = math.rsqrt %393 : vector<1x128xf32>
    %395 = tpu.concatenate %394, %394, %394, %394, %394, %394, %394, %394 in 1 : vector<1x128xf32>, vector<1x128xf32>, vector<1x128xf32>, vector<1x128xf32>, vector<1x128xf32>, vector<1x128xf32>, vector<1x128xf32>, vector<1x128xf32> -> vector<1x1024xf32>
    %396 = vector.broadcast %395 : vector<1x1024xf32> to vector<4x1024xf32>
    %397 = arith.mulf %371, %396 : vector<4x1024xf32>
    %398 = vector.broadcast %342 : vector<4x1xf32> to vector<4x1024xf32>
    %399 = arith.mulf %397, %398 : vector<4x1024xf32>
    %400 = vector.broadcast %343 : vector<4x1xf32> to vector<4x1024xf32>
    %401 = arith.addf %399, %400 : vector<4x1024xf32>
    %402 = arith.negf %401 : vector<4x1024xf32>
    %403 = math.exp %402 : vector<4x1024xf32>
    %cst_93 = arith.constant 1.000000e+00 : f32
    %404 = vector.broadcast %cst_93 : f32 to vector<4x1024xf32>
    %405 = arith.addf %404, %403 : vector<4x1024xf32>
    %406 = arith.divf %404, %405 : vector<4x1024xf32>
    %407 = arith.mulf %401, %406 : vector<4x1024xf32>
    %408 = vector.extract_strided_slice %407 {offsets = [0, 0], sizes = [4, 896], strides = [1, 1]} : vector<4x1024xf32> to vector<4x896xf32>
    %409 = tpu.concatenate %327, %408 in 1 : vector<4x128xf32>, vector<4x896xf32> -> vector<4x1024xf32>
    %410 = vector.extract_strided_slice %407 {offsets = [0, 128], sizes = [4, 896], strides = [1, 1]} : vector<4x1024xf32> to vector<4x896xf32>
    %411 = tpu.concatenate %410, %327 in 1 : vector<4x896xf32>, vector<4x128xf32> -> vector<4x1024xf32>
    %412 = tpu.concatenate %409, %407, %411 in 0 : vector<4x1024xf32>, vector<4x1024xf32>, vector<4x1024xf32> -> vector<12x1024xf32>
    %cst_94 = arith.constant dense<0.000000e+00> : vector<4x1024xf32>
    %413 = tpu.matmul %344, %412, %cst_94 {dimension_numbers = #tpu.dot_dimension_numbers<[1], [0], [0], [1], [0, 0, 1, 1], [], []>} : vector<4x12xf32>, vector<12x1024xf32>, vector<4x1024xf32> -> vector<4x1024xf32>
    %414 = vector.broadcast %345 : vector<4x1xf32> to vector<4x1024xf32>
    %415 = arith.addf %413, %414 : vector<4x1024xf32>
    %cst_95 = arith.constant dense<0.000000e+00> : vector<1024xf32>
    %416 = vector.multi_reduction <add>, %415, %cst_95 [0] : vector<4x1024xf32> to vector<1024xf32>
    %417 = vector.shape_cast %416 : vector<1024xf32> to vector<1x1024xf32>
    %418 = vector.extract_strided_slice %417 {offsets = [0, 0], sizes = [1, 128], strides = [1, 1]} : vector<1x1024xf32> to vector<1x128xf32>
    %419 = vector.extract_strided_slice %417 {offsets = [0, 128], sizes = [1, 128], strides = [1, 1]} : vector<1x1024xf32> to vector<1x128xf32>
    %420 = vector.extract_strided_slice %417 {offsets = [0, 256], sizes = [1, 128], strides = [1, 1]} : vector<1x1024xf32> to vector<1x128xf32>
    %421 = vector.extract_strided_slice %417 {offsets = [0, 384], sizes = [1, 128], strides = [1, 1]} : vector<1x1024xf32> to vector<1x128xf32>
    %422 = vector.extract_strided_slice %417 {offsets = [0, 512], sizes = [1, 128], strides = [1, 1]} : vector<1x1024xf32> to vector<1x128xf32>
    %423 = vector.extract_strided_slice %417 {offsets = [0, 640], sizes = [1, 128], strides = [1, 1]} : vector<1x1024xf32> to vector<1x128xf32>
    %424 = vector.extract_strided_slice %417 {offsets = [0, 768], sizes = [1, 128], strides = [1, 1]} : vector<1x1024xf32> to vector<1x128xf32>
    %425 = vector.extract_strided_slice %417 {offsets = [0, 896], sizes = [1, 128], strides = [1, 1]} : vector<1x1024xf32> to vector<1x128xf32>
    %426 = arith.addf %418, %419 : vector<1x128xf32>
    %427 = arith.addf %420, %421 : vector<1x128xf32>
    %428 = arith.addf %422, %423 : vector<1x128xf32>
    %429 = arith.addf %424, %425 : vector<1x128xf32>
    %430 = arith.addf %426, %427 : vector<1x128xf32>
    %431 = arith.addf %428, %429 : vector<1x128xf32>
    %432 = arith.addf %430, %431 : vector<1x128xf32>
    %cst_96 = arith.constant 3.125000e-02 : f32
    %433 = vector.broadcast %cst_96 : f32 to vector<1x128xf32>
    %434 = arith.mulf %432, %433 : vector<1x128xf32>
    %435 = tpu.concatenate %434, %434, %434, %434, %434, %434, %434, %434 in 1 : vector<1x128xf32>, vector<1x128xf32>, vector<1x128xf32>, vector<1x128xf32>, vector<1x128xf32>, vector<1x128xf32>, vector<1x128xf32>, vector<1x128xf32> -> vector<1x1024xf32>
    %436 = vector.broadcast %435 : vector<1x1024xf32> to vector<4x1024xf32>
    %437 = arith.subf %415, %436 : vector<4x1024xf32>
    %438 = arith.mulf %437, %437 : vector<4x1024xf32>
    %cst_97 = arith.constant dense<0.000000e+00> : vector<1024xf32>
    %439 = vector.multi_reduction <add>, %438, %cst_97 [0] : vector<4x1024xf32> to vector<1024xf32>
    %440 = vector.shape_cast %439 : vector<1024xf32> to vector<1x1024xf32>
    %441 = vector.extract_strided_slice %440 {offsets = [0, 0], sizes = [1, 128], strides = [1, 1]} : vector<1x1024xf32> to vector<1x128xf32>
    %442 = vector.extract_strided_slice %440 {offsets = [0, 128], sizes = [1, 128], strides = [1, 1]} : vector<1x1024xf32> to vector<1x128xf32>
    %443 = vector.extract_strided_slice %440 {offsets = [0, 256], sizes = [1, 128], strides = [1, 1]} : vector<1x1024xf32> to vector<1x128xf32>
    %444 = vector.extract_strided_slice %440 {offsets = [0, 384], sizes = [1, 128], strides = [1, 1]} : vector<1x1024xf32> to vector<1x128xf32>
    %445 = vector.extract_strided_slice %440 {offsets = [0, 512], sizes = [1, 128], strides = [1, 1]} : vector<1x1024xf32> to vector<1x128xf32>
    %446 = vector.extract_strided_slice %440 {offsets = [0, 640], sizes = [1, 128], strides = [1, 1]} : vector<1x1024xf32> to vector<1x128xf32>
    %447 = vector.extract_strided_slice %440 {offsets = [0, 768], sizes = [1, 128], strides = [1, 1]} : vector<1x1024xf32> to vector<1x128xf32>
    %448 = vector.extract_strided_slice %440 {offsets = [0, 896], sizes = [1, 128], strides = [1, 1]} : vector<1x1024xf32> to vector<1x128xf32>
    %449 = arith.addf %441, %442 : vector<1x128xf32>
    %450 = arith.addf %443, %444 : vector<1x128xf32>
    %451 = arith.addf %445, %446 : vector<1x128xf32>
    %452 = arith.addf %447, %448 : vector<1x128xf32>
    %453 = arith.addf %449, %450 : vector<1x128xf32>
    %454 = arith.addf %451, %452 : vector<1x128xf32>
    %455 = arith.addf %453, %454 : vector<1x128xf32>
    %cst_98 = arith.constant 3.125000e-02 : f32
    %456 = vector.broadcast %cst_98 : f32 to vector<1x128xf32>
    %457 = arith.mulf %455, %456 : vector<1x128xf32>
    %cst_99 = arith.constant 9.99999997E-7 : f32
    %458 = vector.broadcast %cst_99 : f32 to vector<1x128xf32>
    %459 = arith.addf %457, %458 : vector<1x128xf32>
    %460 = math.rsqrt %459 : vector<1x128xf32>
    %461 = tpu.concatenate %460, %460, %460, %460, %460, %460, %460, %460 in 1 : vector<1x128xf32>, vector<1x128xf32>, vector<1x128xf32>, vector<1x128xf32>, vector<1x128xf32>, vector<1x128xf32>, vector<1x128xf32>, vector<1x128xf32> -> vector<1x1024xf32>
    %462 = vector.broadcast %461 : vector<1x1024xf32> to vector<4x1024xf32>
    %463 = arith.mulf %437, %462 : vector<4x1024xf32>
    %464 = vector.broadcast %346 : vector<4x1xf32> to vector<4x1024xf32>
    %465 = arith.mulf %463, %464 : vector<4x1024xf32>
    %466 = vector.broadcast %347 : vector<4x1xf32> to vector<4x1024xf32>
    %467 = arith.addf %465, %466 : vector<4x1024xf32>
    %468 = arith.negf %467 : vector<4x1024xf32>
    %469 = math.exp %468 : vector<4x1024xf32>
    %cst_100 = arith.constant 1.000000e+00 : f32
    %470 = vector.broadcast %cst_100 : f32 to vector<4x1024xf32>
    %471 = arith.addf %470, %469 : vector<4x1024xf32>
    %472 = arith.divf %470, %471 : vector<4x1024xf32>
    %473 = arith.mulf %467, %472 : vector<4x1024xf32>
    %474 = vector.extract_strided_slice %473 {offsets = [0, 0], sizes = [4, 896], strides = [1, 1]} : vector<4x1024xf32> to vector<4x896xf32>
    %475 = tpu.concatenate %327, %474 in 1 : vector<4x128xf32>, vector<4x896xf32> -> vector<4x1024xf32>
    %476 = vector.extract_strided_slice %473 {offsets = [0, 128], sizes = [4, 896], strides = [1, 1]} : vector<4x1024xf32> to vector<4x896xf32>
    %477 = tpu.concatenate %476, %327 in 1 : vector<4x896xf32>, vector<4x128xf32> -> vector<4x1024xf32>
    %478 = tpu.concatenate %475, %473, %477 in 0 : vector<4x1024xf32>, vector<4x1024xf32>, vector<4x1024xf32> -> vector<12x1024xf32>
    %cst_101 = arith.constant dense<0.000000e+00> : vector<4x1024xf32>
    %479 = tpu.matmul %348, %478, %cst_101 {dimension_numbers = #tpu.dot_dimension_numbers<[1], [0], [0], [1], [0, 0, 1, 1], [], []>} : vector<4x12xf32>, vector<12x1024xf32>, vector<4x1024xf32> -> vector<4x1024xf32>
    %480 = vector.broadcast %349 : vector<4x1xf32> to vector<4x1024xf32>
    %481 = arith.addf %479, %480 : vector<4x1024xf32>
    %482 = arith.addf %341, %481 : vector<4x1024xf32>
    %c88 = arith.constant 88 : index
    %c0_102 = arith.constant 0 : index
    %483 = vector.load %arg2[%c88, %c0_102] : memref<136x128xf32, #tpu.memory_space<vmem>>, vector<4x4xf32>
    %c96 = arith.constant 96 : index
    %c0_103 = arith.constant 0 : index
    %484 = vector.load %arg2[%c96, %c0_103] : memref<136x128xf32, #tpu.memory_space<vmem>>, vector<4x8xf32>
    %c0_104 = arith.constant 0 : index
    %c23 = arith.constant 23 : index
    %485 = vector.load %arg2[%c0_104, %c23] : memref<136x128xf32, #tpu.memory_space<vmem>>, vector<4x1xf32>
    %cst_105 = arith.constant dense<0.000000e+00> : vector<4x1024xf32>
    %486 = tpu.matmul %483, %482, %cst_105 {dimension_numbers = #tpu.dot_dimension_numbers<[1], [0], [0], [1], [0, 0, 1, 1], [], []>} : vector<4x4xf32>, vector<4x1024xf32>, vector<4x1024xf32> -> vector<4x1024xf32>
    %487 = vector.broadcast %485 : vector<4x1xf32> to vector<4x1024xf32>
    %488 = arith.addf %486, %487 : vector<4x1024xf32>
    %489 = vector.extract_strided_slice %482 {offsets = [0, 128], sizes = [4, 896], strides = [1, 1]} : vector<4x1024xf32> to vector<4x896xf32>
    %490 = tpu.concatenate %489, %327 in 1 : vector<4x896xf32>, vector<4x128xf32> -> vector<4x1024xf32>
    %491 = tpu.concatenate %482, %490 in 0 : vector<4x1024xf32>, vector<4x1024xf32> -> vector<8x1024xf32>
    %cst_106 = arith.constant dense<0.000000e+00> : vector<4x1024xf32>
    %492 = tpu.matmul %484, %491, %cst_106 {dimension_numbers = #tpu.dot_dimension_numbers<[1], [0], [0], [1], [0, 0, 1, 1], [], []>} : vector<4x8xf32>, vector<8x1024xf32>, vector<4x1024xf32> -> vector<4x1024xf32>
    %493 = vector.broadcast %485 : vector<4x1xf32> to vector<4x1024xf32>
    %494 = arith.addf %492, %493 : vector<4x1024xf32>
    %495 = vector.extract_strided_slice %488 {offsets = [0, 0], sizes = [4, 128], strides = [1, 1]} : vector<4x1024xf32> to vector<4x128xf32>
    %c0_107 = arith.constant 0 : index
    %c0_108 = arith.constant 0 : index
    %496 = vector.load %arg4[%c0_107, %c0_108] : memref<8x2048xf32, #tpu.memory_space<vmem>>, vector<4x128xf32>
    tpu.vector_store %arg4[%c0_107, %c0_108], %495 {strides = array<i32>} : memref<8x2048xf32, #tpu.memory_space<vmem>>, vector<4x128xf32>,
    %497 = vector.extract_strided_slice %494 {offsets = [0, 0], sizes = [4, 128], strides = [1, 1]} : vector<4x1024xf32> to vector<4x128xf32>
    %c0_109 = arith.constant 0 : index
    %c128_110 = arith.constant 128 : index
    %498 = vector.load %arg4[%c0_109, %c128_110] : memref<8x2048xf32, #tpu.memory_space<vmem>>, vector<4x128xf32>
    tpu.vector_store %arg4[%c0_109, %c128_110], %497 {strides = array<i32>} : memref<8x2048xf32, #tpu.memory_space<vmem>>, vector<4x128xf32>,
    %499 = vector.extract_strided_slice %488 {offsets = [0, 128], sizes = [4, 128], strides = [1, 1]} : vector<4x1024xf32> to vector<4x128xf32>
    %c0_111 = arith.constant 0 : index
    %c256_112 = arith.constant 256 : index
    %500 = vector.load %arg4[%c0_111, %c256_112] : memref<8x2048xf32, #tpu.memory_space<vmem>>, vector<4x128xf32>
    tpu.vector_store %arg4[%c0_111, %c256_112], %499 {strides = array<i32>} : memref<8x2048xf32, #tpu.memory_space<vmem>>, vector<4x128xf32>,
    %501 = vector.extract_strided_slice %494 {offsets = [0, 128], sizes = [4, 128], strides = [1, 1]} : vector<4x1024xf32> to vector<4x128xf32>
    %c0_113 = arith.constant 0 : index
    %c384_114 = arith.constant 384 : index
    %502 = vector.load %arg4[%c0_113, %c384_114] : memref<8x2048xf32, #tpu.memory_space<vmem>>, vector<4x128xf32>
    tpu.vector_store %arg4[%c0_113, %c384_114], %501 {strides = array<i32>} : memref<8x2048xf32, #tpu.memory_space<vmem>>, vector<4x128xf32>,
    %503 = vector.extract_strided_slice %488 {offsets = [0, 256], sizes = [4, 128], strides = [1, 1]} : vector<4x1024xf32> to vector<4x128xf32>
    %c0_115 = arith.constant 0 : index
    %c512_116 = arith.constant 512 : index
    %504 = vector.load %arg4[%c0_115, %c512_116] : memref<8x2048xf32, #tpu.memory_space<vmem>>, vector<4x128xf32>
    tpu.vector_store %arg4[%c0_115, %c512_116], %503 {strides = array<i32>} : memref<8x2048xf32, #tpu.memory_space<vmem>>, vector<4x128xf32>,
    %505 = vector.extract_strided_slice %494 {offsets = [0, 256], sizes = [4, 128], strides = [1, 1]} : vector<4x1024xf32> to vector<4x128xf32>
    %c0_117 = arith.constant 0 : index
    %c640_118 = arith.constant 640 : index
    %506 = vector.load %arg4[%c0_117, %c640_118] : memref<8x2048xf32, #tpu.memory_space<vmem>>, vector<4x128xf32>
    tpu.vector_store %arg4[%c0_117, %c640_118], %505 {strides = array<i32>} : memref<8x2048xf32, #tpu.memory_space<vmem>>, vector<4x128xf32>,
    %507 = vector.extract_strided_slice %488 {offsets = [0, 384], sizes = [4, 128], strides = [1, 1]} : vector<4x1024xf32> to vector<4x128xf32>
    %c0_119 = arith.constant 0 : index
    %c768_120 = arith.constant 768 : index
    %508 = vector.load %arg4[%c0_119, %c768_120] : memref<8x2048xf32, #tpu.memory_space<vmem>>, vector<4x128xf32>
    tpu.vector_store %arg4[%c0_119, %c768_120], %507 {strides = array<i32>} : memref<8x2048xf32, #tpu.memory_space<vmem>>, vector<4x128xf32>,
    %509 = vector.extract_strided_slice %494 {offsets = [0, 384], sizes = [4, 128], strides = [1, 1]} : vector<4x1024xf32> to vector<4x128xf32>
    %c0_121 = arith.constant 0 : index
    %c896_122 = arith.constant 896 : index
    %510 = vector.load %arg4[%c0_121, %c896_122] : memref<8x2048xf32, #tpu.memory_space<vmem>>, vector<4x128xf32>
    tpu.vector_store %arg4[%c0_121, %c896_122], %509 {strides = array<i32>} : memref<8x2048xf32, #tpu.memory_space<vmem>>, vector<4x128xf32>,
    %511 = vector.extract_strided_slice %488 {offsets = [0, 512], sizes = [4, 128], strides = [1, 1]} : vector<4x1024xf32> to vector<4x128xf32>
    %c0_123 = arith.constant 0 : index
    %c1024 = arith.constant 1024 : index
    %512 = vector.load %arg4[%c0_123, %c1024] : memref<8x2048xf32, #tpu.memory_space<vmem>>, vector<4x128xf32>
    tpu.vector_store %arg4[%c0_123, %c1024], %511 {strides = array<i32>} : memref<8x2048xf32, #tpu.memory_space<vmem>>, vector<4x128xf32>,
    %513 = vector.extract_strided_slice %494 {offsets = [0, 512], sizes = [4, 128], strides = [1, 1]} : vector<4x1024xf32> to vector<4x128xf32>
    %c0_124 = arith.constant 0 : index
    %c1152 = arith.constant 1152 : index
    %514 = vector.load %arg4[%c0_124, %c1152] : memref<8x2048xf32, #tpu.memory_space<vmem>>, vector<4x128xf32>
    tpu.vector_store %arg4[%c0_124, %c1152], %513 {strides = array<i32>} : memref<8x2048xf32, #tpu.memory_space<vmem>>, vector<4x128xf32>,
    %515 = vector.extract_strided_slice %488 {offsets = [0, 640], sizes = [4, 128], strides = [1, 1]} : vector<4x1024xf32> to vector<4x128xf32>
    %c0_125 = arith.constant 0 : index
    %c1280 = arith.constant 1280 : index
    %516 = vector.load %arg4[%c0_125, %c1280] : memref<8x2048xf32, #tpu.memory_space<vmem>>, vector<4x128xf32>
    tpu.vector_store %arg4[%c0_125, %c1280], %515 {strides = array<i32>} : memref<8x2048xf32, #tpu.memory_space<vmem>>, vector<4x128xf32>,
    %517 = vector.extract_strided_slice %494 {offsets = [0, 640], sizes = [4, 128], strides = [1, 1]} : vector<4x1024xf32> to vector<4x128xf32>
    %c0_126 = arith.constant 0 : index
    %c1408 = arith.constant 1408 : index
    %518 = vector.load %arg4[%c0_126, %c1408] : memref<8x2048xf32, #tpu.memory_space<vmem>>, vector<4x128xf32>
    tpu.vector_store %arg4[%c0_126, %c1408], %517 {strides = array<i32>} : memref<8x2048xf32, #tpu.memory_space<vmem>>, vector<4x128xf32>,
    %519 = vector.extract_strided_slice %488 {offsets = [0, 768], sizes = [4, 128], strides = [1, 1]} : vector<4x1024xf32> to vector<4x128xf32>
    %c0_127 = arith.constant 0 : index
    %c1536 = arith.constant 1536 : index
    %520 = vector.load %arg4[%c0_127, %c1536] : memref<8x2048xf32, #tpu.memory_space<vmem>>, vector<4x128xf32>
    tpu.vector_store %arg4[%c0_127, %c1536], %519 {strides = array<i32>} : memref<8x2048xf32, #tpu.memory_space<vmem>>, vector<4x128xf32>,
    %521 = vector.extract_strided_slice %494 {offsets = [0, 768], sizes = [4, 128], strides = [1, 1]} : vector<4x1024xf32> to vector<4x128xf32>
    %c0_128 = arith.constant 0 : index
    %c1664 = arith.constant 1664 : index
    %522 = vector.load %arg4[%c0_128, %c1664] : memref<8x2048xf32, #tpu.memory_space<vmem>>, vector<4x128xf32>
    tpu.vector_store %arg4[%c0_128, %c1664], %521 {strides = array<i32>} : memref<8x2048xf32, #tpu.memory_space<vmem>>, vector<4x128xf32>,
    %523 = vector.extract_strided_slice %488 {offsets = [0, 896], sizes = [4, 128], strides = [1, 1]} : vector<4x1024xf32> to vector<4x128xf32>
    %c0_129 = arith.constant 0 : index
    %c1792 = arith.constant 1792 : index
    %524 = vector.load %arg4[%c0_129, %c1792] : memref<8x2048xf32, #tpu.memory_space<vmem>>, vector<4x128xf32>
    tpu.vector_store %arg4[%c0_129, %c1792], %523 {strides = array<i32>} : memref<8x2048xf32, #tpu.memory_space<vmem>>, vector<4x128xf32>,
    %525 = vector.extract_strided_slice %494 {offsets = [0, 896], sizes = [4, 128], strides = [1, 1]} : vector<4x1024xf32> to vector<4x128xf32>
    %c0_130 = arith.constant 0 : index
    %c1920 = arith.constant 1920 : index
    %526 = vector.load %arg4[%c0_130, %c1920] : memref<8x2048xf32, #tpu.memory_space<vmem>>, vector<4x128xf32>
    tpu.vector_store %arg4[%c0_130, %c1920], %525 {strides = array<i32>} : memref<8x2048xf32, #tpu.memory_space<vmem>>, vector<4x128xf32>,
    %c0_131 = arith.constant 0 : index
    %c0_132 = arith.constant 0 : index
    %527 = vector.load %arg4[%c0_131, %c0_132] : memref<8x2048xf32, #tpu.memory_space<vmem>>, vector<4x2048xf32>
    %c0_133 = arith.constant 0 : index
    %c24_134 = arith.constant 24 : index
    %528 = vector.load %arg2[%c0_133, %c24_134] : memref<136x128xf32, #tpu.memory_space<vmem>>, vector<4x1xf32>
    %c0_135 = arith.constant 0 : index
    %c25 = arith.constant 25 : index
    %529 = vector.load %arg2[%c0_135, %c25] : memref<136x128xf32, #tpu.memory_space<vmem>>, vector<4x1xf32>
    %c104 = arith.constant 104 : index
    %c0_136 = arith.constant 0 : index
    %530 = vector.load %arg2[%c104, %c0_136] : memref<136x128xf32, #tpu.memory_space<vmem>>, vector<2x12xf32>
    %c0_137 = arith.constant 0 : index
    %c26 = arith.constant 26 : index
    %531 = vector.load %arg2[%c0_137, %c26] : memref<136x128xf32, #tpu.memory_space<vmem>>, vector<2x1xf32>
    %c0_138 = arith.constant 0 : index
    %c27 = arith.constant 27 : index
    %532 = vector.load %arg2[%c0_138, %c27] : memref<136x128xf32, #tpu.memory_space<vmem>>, vector<2x1xf32>
    %c0_139 = arith.constant 0 : index
    %c28 = arith.constant 28 : index
    %533 = vector.load %arg2[%c0_139, %c28] : memref<136x128xf32, #tpu.memory_space<vmem>>, vector<2x1xf32>
    %c112 = arith.constant 112 : index
    %c0_140 = arith.constant 0 : index
    %534 = vector.load %arg2[%c112, %c0_140] : memref<136x128xf32, #tpu.memory_space<vmem>>, vector<2x6xf32>
    %c0_141 = arith.constant 0 : index
    %c29 = arith.constant 29 : index
    %535 = vector.load %arg2[%c0_141, %c29] : memref<136x128xf32, #tpu.memory_space<vmem>>, vector<2x1xf32>
    %cst_142 = arith.constant dense<0.000000e+00> : vector<2048xf32>
    %536 = vector.multi_reduction <add>, %527, %cst_142 [0] : vector<4x2048xf32> to vector<2048xf32>
    %537 = vector.shape_cast %536 : vector<2048xf32> to vector<1x2048xf32>
    %538 = vector.extract_strided_slice %537 {offsets = [0, 0], sizes = [1, 128], strides = [1, 1]} : vector<1x2048xf32> to vector<1x128xf32>
    %539 = vector.extract_strided_slice %537 {offsets = [0, 128], sizes = [1, 128], strides = [1, 1]} : vector<1x2048xf32> to vector<1x128xf32>
    %540 = vector.extract_strided_slice %537 {offsets = [0, 256], sizes = [1, 128], strides = [1, 1]} : vector<1x2048xf32> to vector<1x128xf32>
    %541 = vector.extract_strided_slice %537 {offsets = [0, 384], sizes = [1, 128], strides = [1, 1]} : vector<1x2048xf32> to vector<1x128xf32>
    %542 = vector.extract_strided_slice %537 {offsets = [0, 512], sizes = [1, 128], strides = [1, 1]} : vector<1x2048xf32> to vector<1x128xf32>
    %543 = vector.extract_strided_slice %537 {offsets = [0, 640], sizes = [1, 128], strides = [1, 1]} : vector<1x2048xf32> to vector<1x128xf32>
    %544 = vector.extract_strided_slice %537 {offsets = [0, 768], sizes = [1, 128], strides = [1, 1]} : vector<1x2048xf32> to vector<1x128xf32>
    %545 = vector.extract_strided_slice %537 {offsets = [0, 896], sizes = [1, 128], strides = [1, 1]} : vector<1x2048xf32> to vector<1x128xf32>
    %546 = vector.extract_strided_slice %537 {offsets = [0, 1024], sizes = [1, 128], strides = [1, 1]} : vector<1x2048xf32> to vector<1x128xf32>
    %547 = vector.extract_strided_slice %537 {offsets = [0, 1152], sizes = [1, 128], strides = [1, 1]} : vector<1x2048xf32> to vector<1x128xf32>
    %548 = vector.extract_strided_slice %537 {offsets = [0, 1280], sizes = [1, 128], strides = [1, 1]} : vector<1x2048xf32> to vector<1x128xf32>
    %549 = vector.extract_strided_slice %537 {offsets = [0, 1408], sizes = [1, 128], strides = [1, 1]} : vector<1x2048xf32> to vector<1x128xf32>
    %550 = vector.extract_strided_slice %537 {offsets = [0, 1536], sizes = [1, 128], strides = [1, 1]} : vector<1x2048xf32> to vector<1x128xf32>
    %551 = vector.extract_strided_slice %537 {offsets = [0, 1664], sizes = [1, 128], strides = [1, 1]} : vector<1x2048xf32> to vector<1x128xf32>
    %552 = vector.extract_strided_slice %537 {offsets = [0, 1792], sizes = [1, 128], strides = [1, 1]} : vector<1x2048xf32> to vector<1x128xf32>
    %553 = vector.extract_strided_slice %537 {offsets = [0, 1920], sizes = [1, 128], strides = [1, 1]} : vector<1x2048xf32> to vector<1x128xf32>
    %554 = arith.addf %538, %539 : vector<1x128xf32>
    %555 = arith.addf %540, %541 : vector<1x128xf32>
    %556 = arith.addf %542, %543 : vector<1x128xf32>
    %557 = arith.addf %544, %545 : vector<1x128xf32>
    %558 = arith.addf %546, %547 : vector<1x128xf32>
    %559 = arith.addf %548, %549 : vector<1x128xf32>
    %560 = arith.addf %550, %551 : vector<1x128xf32>
    %561 = arith.addf %552, %553 : vector<1x128xf32>
    %562 = arith.addf %554, %555 : vector<1x128xf32>
    %563 = arith.addf %556, %557 : vector<1x128xf32>
    %564 = arith.addf %558, %559 : vector<1x128xf32>
    %565 = arith.addf %560, %561 : vector<1x128xf32>
    %566 = arith.addf %562, %563 : vector<1x128xf32>
    %567 = arith.addf %564, %565 : vector<1x128xf32>
    %568 = arith.addf %566, %567 : vector<1x128xf32>
    %cst_143 = arith.constant 1.562500e-02 : f32
    %569 = vector.broadcast %cst_143 : f32 to vector<1x128xf32>
    %570 = arith.mulf %568, %569 : vector<1x128xf32>
    %571 = tpu.concatenate %570, %570, %570, %570, %570, %570, %570, %570, %570, %570, %570, %570, %570, %570, %570, %570 in 1 : vector<1x128xf32>, vector<1x128xf32>, vector<1x128xf32>, vector<1x128xf32>, vector<1x128xf32>, vector<1x128xf32>, vector<1x128xf32>, vector<1x128xf32>, vector<1x128xf32>, vector<1x128xf32>, vector<1x128xf32>, vector<1x128xf32>, vector<1x128xf32>, vector<1x128xf32>, vector<1x128xf32>, vector<1x128xf32> -> vector<1x2048xf32>
    %572 = vector.broadcast %571 : vector<1x2048xf32> to vector<4x2048xf32>
    %573 = arith.subf %527, %572 : vector<4x2048xf32>
    %574 = arith.mulf %573, %573 : vector<4x2048xf32>
    %cst_144 = arith.constant dense<0.000000e+00> : vector<2048xf32>
    %575 = vector.multi_reduction <add>, %574, %cst_144 [0] : vector<4x2048xf32> to vector<2048xf32>
    %576 = vector.shape_cast %575 : vector<2048xf32> to vector<1x2048xf32>
    %577 = vector.extract_strided_slice %576 {offsets = [0, 0], sizes = [1, 128], strides = [1, 1]} : vector<1x2048xf32> to vector<1x128xf32>
    %578 = vector.extract_strided_slice %576 {offsets = [0, 128], sizes = [1, 128], strides = [1, 1]} : vector<1x2048xf32> to vector<1x128xf32>
    %579 = vector.extract_strided_slice %576 {offsets = [0, 256], sizes = [1, 128], strides = [1, 1]} : vector<1x2048xf32> to vector<1x128xf32>
    %580 = vector.extract_strided_slice %576 {offsets = [0, 384], sizes = [1, 128], strides = [1, 1]} : vector<1x2048xf32> to vector<1x128xf32>
    %581 = vector.extract_strided_slice %576 {offsets = [0, 512], sizes = [1, 128], strides = [1, 1]} : vector<1x2048xf32> to vector<1x128xf32>
    %582 = vector.extract_strided_slice %576 {offsets = [0, 640], sizes = [1, 128], strides = [1, 1]} : vector<1x2048xf32> to vector<1x128xf32>
    %583 = vector.extract_strided_slice %576 {offsets = [0, 768], sizes = [1, 128], strides = [1, 1]} : vector<1x2048xf32> to vector<1x128xf32>
    %584 = vector.extract_strided_slice %576 {offsets = [0, 896], sizes = [1, 128], strides = [1, 1]} : vector<1x2048xf32> to vector<1x128xf32>
    %585 = vector.extract_strided_slice %576 {offsets = [0, 1024], sizes = [1, 128], strides = [1, 1]} : vector<1x2048xf32> to vector<1x128xf32>
    %586 = vector.extract_strided_slice %576 {offsets = [0, 1152], sizes = [1, 128], strides = [1, 1]} : vector<1x2048xf32> to vector<1x128xf32>
    %587 = vector.extract_strided_slice %576 {offsets = [0, 1280], sizes = [1, 128], strides = [1, 1]} : vector<1x2048xf32> to vector<1x128xf32>
    %588 = vector.extract_strided_slice %576 {offsets = [0, 1408], sizes = [1, 128], strides = [1, 1]} : vector<1x2048xf32> to vector<1x128xf32>
    %589 = vector.extract_strided_slice %576 {offsets = [0, 1536], sizes = [1, 128], strides = [1, 1]} : vector<1x2048xf32> to vector<1x128xf32>
    %590 = vector.extract_strided_slice %576 {offsets = [0, 1664], sizes = [1, 128], strides = [1, 1]} : vector<1x2048xf32> to vector<1x128xf32>
    %591 = vector.extract_strided_slice %576 {offsets = [0, 1792], sizes = [1, 128], strides = [1, 1]} : vector<1x2048xf32> to vector<1x128xf32>
    %592 = vector.extract_strided_slice %576 {offsets = [0, 1920], sizes = [1, 128], strides = [1, 1]} : vector<1x2048xf32> to vector<1x128xf32>
    %593 = arith.addf %577, %578 : vector<1x128xf32>
    %594 = arith.addf %579, %580 : vector<1x128xf32>
    %595 = arith.addf %581, %582 : vector<1x128xf32>
    %596 = arith.addf %583, %584 : vector<1x128xf32>
    %597 = arith.addf %585, %586 : vector<1x128xf32>
    %598 = arith.addf %587, %588 : vector<1x128xf32>
    %599 = arith.addf %589, %590 : vector<1x128xf32>
    %600 = arith.addf %591, %592 : vector<1x128xf32>
    %601 = arith.addf %593, %594 : vector<1x128xf32>
    %602 = arith.addf %595, %596 : vector<1x128xf32>
    %603 = arith.addf %597, %598 : vector<1x128xf32>
    %604 = arith.addf %599, %600 : vector<1x128xf32>
    %605 = arith.addf %601, %602 : vector<1x128xf32>
    %606 = arith.addf %603, %604 : vector<1x128xf32>
    %607 = arith.addf %605, %606 : vector<1x128xf32>
    %cst_145 = arith.constant 1.562500e-02 : f32
    %608 = vector.broadcast %cst_145 : f32 to vector<1x128xf32>
    %609 = arith.mulf %607, %608 : vector<1x128xf32>
    %cst_146 = arith.constant 9.99999997E-7 : f32
    %610 = vector.broadcast %cst_146 : f32 to vector<1x128xf32>
    %611 = arith.addf %609, %610 : vector<1x128xf32>
    %612 = math.rsqrt %611 : vector<1x128xf32>
    %613 = tpu.concatenate %612, %612, %612, %612, %612, %612, %612, %612, %612, %612, %612, %612, %612, %612, %612, %612 in 1 : vector<1x128xf32>, vector<1x128xf32>, vector<1x128xf32>, vector<1x128xf32>, vector<1x128xf32>, vector<1x128xf32>, vector<1x128xf32>, vector<1x128xf32>, vector<1x128xf32>, vector<1x128xf32>, vector<1x128xf32>, vector<1x128xf32>, vector<1x128xf32>, vector<1x128xf32>, vector<1x128xf32>, vector<1x128xf32> -> vector<1x2048xf32>
    %614 = vector.broadcast %613 : vector<1x2048xf32> to vector<4x2048xf32>
    %615 = arith.mulf %573, %614 : vector<4x2048xf32>
    %616 = vector.broadcast %528 : vector<4x1xf32> to vector<4x2048xf32>
    %617 = arith.mulf %615, %616 : vector<4x2048xf32>
    %618 = vector.broadcast %529 : vector<4x1xf32> to vector<4x2048xf32>
    %619 = arith.addf %617, %618 : vector<4x2048xf32>
    %620 = arith.negf %619 : vector<4x2048xf32>
    %621 = math.exp %620 : vector<4x2048xf32>
    %cst_147 = arith.constant 1.000000e+00 : f32
    %622 = vector.broadcast %cst_147 : f32 to vector<4x2048xf32>
    %623 = arith.addf %622, %621 : vector<4x2048xf32>
    %624 = arith.divf %622, %623 : vector<4x2048xf32>
    %625 = arith.mulf %619, %624 : vector<4x2048xf32>
    %626 = vector.extract_strided_slice %625 {offsets = [0, 0], sizes = [4, 1920], strides = [1, 1]} : vector<4x2048xf32> to vector<4x1920xf32>
    %627 = tpu.concatenate %327, %626 in 1 : vector<4x128xf32>, vector<4x1920xf32> -> vector<4x2048xf32>
    %628 = vector.extract_strided_slice %625 {offsets = [0, 128], sizes = [4, 1920], strides = [1, 1]} : vector<4x2048xf32> to vector<4x1920xf32>
    %629 = tpu.concatenate %628, %327 in 1 : vector<4x1920xf32>, vector<4x128xf32> -> vector<4x2048xf32>
    %630 = tpu.concatenate %627, %625, %629 in 0 : vector<4x2048xf32>, vector<4x2048xf32>, vector<4x2048xf32> -> vector<12x2048xf32>
    %cst_148 = arith.constant dense<0.000000e+00> : vector<2x2048xf32>
    %631 = tpu.matmul %530, %630, %cst_148 {dimension_numbers = #tpu.dot_dimension_numbers<[1], [0], [0], [1], [0, 0, 1, 1], [], []>} : vector<2x12xf32>, vector<12x2048xf32>, vector<2x2048xf32> -> vector<2x2048xf32>
    %632 = vector.broadcast %531 : vector<2x1xf32> to vector<2x2048xf32>
    %633 = arith.addf %631, %632 : vector<2x2048xf32>
    %cst_149 = arith.constant dense<0.000000e+00> : vector<2048xf32>
    %634 = vector.multi_reduction <add>, %633, %cst_149 [0] : vector<2x2048xf32> to vector<2048xf32>
    %635 = vector.shape_cast %634 : vector<2048xf32> to vector<1x2048xf32>
    %636 = vector.extract_strided_slice %635 {offsets = [0, 0], sizes = [1, 128], strides = [1, 1]} : vector<1x2048xf32> to vector<1x128xf32>
    %637 = vector.extract_strided_slice %635 {offsets = [0, 128], sizes = [1, 128], strides = [1, 1]} : vector<1x2048xf32> to vector<1x128xf32>
    %638 = vector.extract_strided_slice %635 {offsets = [0, 256], sizes = [1, 128], strides = [1, 1]} : vector<1x2048xf32> to vector<1x128xf32>
    %639 = vector.extract_strided_slice %635 {offsets = [0, 384], sizes = [1, 128], strides = [1, 1]} : vector<1x2048xf32> to vector<1x128xf32>
    %640 = vector.extract_strided_slice %635 {offsets = [0, 512], sizes = [1, 128], strides = [1, 1]} : vector<1x2048xf32> to vector<1x128xf32>
    %641 = vector.extract_strided_slice %635 {offsets = [0, 640], sizes = [1, 128], strides = [1, 1]} : vector<1x2048xf32> to vector<1x128xf32>
    %642 = vector.extract_strided_slice %635 {offsets = [0, 768], sizes = [1, 128], strides = [1, 1]} : vector<1x2048xf32> to vector<1x128xf32>
    %643 = vector.extract_strided_slice %635 {offsets = [0, 896], sizes = [1, 128], strides = [1, 1]} : vector<1x2048xf32> to vector<1x128xf32>
    %644 = vector.extract_strided_slice %635 {offsets = [0, 1024], sizes = [1, 128], strides = [1, 1]} : vector<1x2048xf32> to vector<1x128xf32>
    %645 = vector.extract_strided_slice %635 {offsets = [0, 1152], sizes = [1, 128], strides = [1, 1]} : vector<1x2048xf32> to vector<1x128xf32>
    %646 = vector.extract_strided_slice %635 {offsets = [0, 1280], sizes = [1, 128], strides = [1, 1]} : vector<1x2048xf32> to vector<1x128xf32>
    %647 = vector.extract_strided_slice %635 {offsets = [0, 1408], sizes = [1, 128], strides = [1, 1]} : vector<1x2048xf32> to vector<1x128xf32>
    %648 = vector.extract_strided_slice %635 {offsets = [0, 1536], sizes = [1, 128], strides = [1, 1]} : vector<1x2048xf32> to vector<1x128xf32>
    %649 = vector.extract_strided_slice %635 {offsets = [0, 1664], sizes = [1, 128], strides = [1, 1]} : vector<1x2048xf32> to vector<1x128xf32>
    %650 = vector.extract_strided_slice %635 {offsets = [0, 1792], sizes = [1, 128], strides = [1, 1]} : vector<1x2048xf32> to vector<1x128xf32>
    %651 = vector.extract_strided_slice %635 {offsets = [0, 1920], sizes = [1, 128], strides = [1, 1]} : vector<1x2048xf32> to vector<1x128xf32>
    %652 = arith.addf %636, %637 : vector<1x128xf32>
    %653 = arith.addf %638, %639 : vector<1x128xf32>
    %654 = arith.addf %640, %641 : vector<1x128xf32>
    %655 = arith.addf %642, %643 : vector<1x128xf32>
    %656 = arith.addf %644, %645 : vector<1x128xf32>
    %657 = arith.addf %646, %647 : vector<1x128xf32>
    %658 = arith.addf %648, %649 : vector<1x128xf32>
    %659 = arith.addf %650, %651 : vector<1x128xf32>
    %660 = arith.addf %652, %653 : vector<1x128xf32>
    %661 = arith.addf %654, %655 : vector<1x128xf32>
    %662 = arith.addf %656, %657 : vector<1x128xf32>
    %663 = arith.addf %658, %659 : vector<1x128xf32>
    %664 = arith.addf %660, %661 : vector<1x128xf32>
    %665 = arith.addf %662, %663 : vector<1x128xf32>
    %666 = arith.addf %664, %665 : vector<1x128xf32>
    %cst_150 = arith.constant 3.125000e-02 : f32
    %667 = vector.broadcast %cst_150 : f32 to vector<1x128xf32>
    %668 = arith.mulf %666, %667 : vector<1x128xf32>
    %669 = tpu.concatenate %668, %668, %668, %668, %668, %668, %668, %668, %668, %668, %668, %668, %668, %668, %668, %668 in 1 : vector<1x128xf32>, vector<1x128xf32>, vector<1x128xf32>, vector<1x128xf32>, vector<1x128xf32>, vector<1x128xf32>, vector<1x128xf32>, vector<1x128xf32>, vector<1x128xf32>, vector<1x128xf32>, vector<1x128xf32>, vector<1x128xf32>, vector<1x128xf32>, vector<1x128xf32>, vector<1x128xf32>, vector<1x128xf32> -> vector<1x2048xf32>
    %670 = vector.broadcast %669 : vector<1x2048xf32> to vector<2x2048xf32>
    %671 = arith.subf %633, %670 : vector<2x2048xf32>
    %672 = arith.mulf %671, %671 : vector<2x2048xf32>
    %cst_151 = arith.constant dense<0.000000e+00> : vector<2048xf32>
    %673 = vector.multi_reduction <add>, %672, %cst_151 [0] : vector<2x2048xf32> to vector<2048xf32>
    %674 = vector.shape_cast %673 : vector<2048xf32> to vector<1x2048xf32>
    %675 = vector.extract_strided_slice %674 {offsets = [0, 0], sizes = [1, 128], strides = [1, 1]} : vector<1x2048xf32> to vector<1x128xf32>
    %676 = vector.extract_strided_slice %674 {offsets = [0, 128], sizes = [1, 128], strides = [1, 1]} : vector<1x2048xf32> to vector<1x128xf32>
    %677 = vector.extract_strided_slice %674 {offsets = [0, 256], sizes = [1, 128], strides = [1, 1]} : vector<1x2048xf32> to vector<1x128xf32>
    %678 = vector.extract_strided_slice %674 {offsets = [0, 384], sizes = [1, 128], strides = [1, 1]} : vector<1x2048xf32> to vector<1x128xf32>
    %679 = vector.extract_strided_slice %674 {offsets = [0, 512], sizes = [1, 128], strides = [1, 1]} : vector<1x2048xf32> to vector<1x128xf32>
    %680 = vector.extract_strided_slice %674 {offsets = [0, 640], sizes = [1, 128], strides = [1, 1]} : vector<1x2048xf32> to vector<1x128xf32>
    %681 = vector.extract_strided_slice %674 {offsets = [0, 768], sizes = [1, 128], strides = [1, 1]} : vector<1x2048xf32> to vector<1x128xf32>
    %682 = vector.extract_strided_slice %674 {offsets = [0, 896], sizes = [1, 128], strides = [1, 1]} : vector<1x2048xf32> to vector<1x128xf32>
    %683 = vector.extract_strided_slice %674 {offsets = [0, 1024], sizes = [1, 128], strides = [1, 1]} : vector<1x2048xf32> to vector<1x128xf32>
    %684 = vector.extract_strided_slice %674 {offsets = [0, 1152], sizes = [1, 128], strides = [1, 1]} : vector<1x2048xf32> to vector<1x128xf32>
    %685 = vector.extract_strided_slice %674 {offsets = [0, 1280], sizes = [1, 128], strides = [1, 1]} : vector<1x2048xf32> to vector<1x128xf32>
    %686 = vector.extract_strided_slice %674 {offsets = [0, 1408], sizes = [1, 128], strides = [1, 1]} : vector<1x2048xf32> to vector<1x128xf32>
    %687 = vector.extract_strided_slice %674 {offsets = [0, 1536], sizes = [1, 128], strides = [1, 1]} : vector<1x2048xf32> to vector<1x128xf32>
    %688 = vector.extract_strided_slice %674 {offsets = [0, 1664], sizes = [1, 128], strides = [1, 1]} : vector<1x2048xf32> to vector<1x128xf32>
    %689 = vector.extract_strided_slice %674 {offsets = [0, 1792], sizes = [1, 128], strides = [1, 1]} : vector<1x2048xf32> to vector<1x128xf32>
    %690 = vector.extract_strided_slice %674 {offsets = [0, 1920], sizes = [1, 128], strides = [1, 1]} : vector<1x2048xf32> to vector<1x128xf32>
    %691 = arith.addf %675, %676 : vector<1x128xf32>
    %692 = arith.addf %677, %678 : vector<1x128xf32>
    %693 = arith.addf %679, %680 : vector<1x128xf32>
    %694 = arith.addf %681, %682 : vector<1x128xf32>
    %695 = arith.addf %683, %684 : vector<1x128xf32>
    %696 = arith.addf %685, %686 : vector<1x128xf32>
    %697 = arith.addf %687, %688 : vector<1x128xf32>
    %698 = arith.addf %689, %690 : vector<1x128xf32>
    %699 = arith.addf %691, %692 : vector<1x128xf32>
    %700 = arith.addf %693, %694 : vector<1x128xf32>
    %701 = arith.addf %695, %696 : vector<1x128xf32>
    %702 = arith.addf %697, %698 : vector<1x128xf32>
    %703 = arith.addf %699, %700 : vector<1x128xf32>
    %704 = arith.addf %701, %702 : vector<1x128xf32>
    %705 = arith.addf %703, %704 : vector<1x128xf32>
    %cst_152 = arith.constant 3.125000e-02 : f32
    %706 = vector.broadcast %cst_152 : f32 to vector<1x128xf32>
    %707 = arith.mulf %705, %706 : vector<1x128xf32>
    %cst_153 = arith.constant 9.99999997E-7 : f32
    %708 = vector.broadcast %cst_153 : f32 to vector<1x128xf32>
    %709 = arith.addf %707, %708 : vector<1x128xf32>
    %710 = math.rsqrt %709 : vector<1x128xf32>
    %711 = tpu.concatenate %710, %710, %710, %710, %710, %710, %710, %710, %710, %710, %710, %710, %710, %710, %710, %710 in 1 : vector<1x128xf32>, vector<1x128xf32>, vector<1x128xf32>, vector<1x128xf32>, vector<1x128xf32>, vector<1x128xf32>, vector<1x128xf32>, vector<1x128xf32>, vector<1x128xf32>, vector<1x128xf32>, vector<1x128xf32>, vector<1x128xf32>, vector<1x128xf32>, vector<1x128xf32>, vector<1x128xf32>, vector<1x128xf32> -> vector<1x2048xf32>
    %712 = vector.broadcast %711 : vector<1x2048xf32> to vector<2x2048xf32>
    %713 = arith.mulf %671, %712 : vector<2x2048xf32>
    %714 = vector.broadcast %532 : vector<2x1xf32> to vector<2x2048xf32>
    %715 = arith.mulf %713, %714 : vector<2x2048xf32>
    %716 = vector.broadcast %533 : vector<2x1xf32> to vector<2x2048xf32>
    %717 = arith.addf %715, %716 : vector<2x2048xf32>
    %718 = arith.negf %717 : vector<2x2048xf32>
    %719 = math.exp %718 : vector<2x2048xf32>
    %cst_154 = arith.constant 1.000000e+00 : f32
    %720 = vector.broadcast %cst_154 : f32 to vector<2x2048xf32>
    %721 = arith.addf %720, %719 : vector<2x2048xf32>
    %722 = arith.divf %720, %721 : vector<2x2048xf32>
    %723 = arith.mulf %717, %722 : vector<2x2048xf32>
    %cst_155 = arith.constant 0.000000e+00 : f32
    %724 = vector.broadcast %cst_155 : f32 to vector<2x128xf32>
    %725 = vector.extract_strided_slice %723 {offsets = [0, 0], sizes = [2, 1920], strides = [1, 1]} : vector<2x2048xf32> to vector<2x1920xf32>
    %726 = tpu.concatenate %724, %725 in 1 : vector<2x128xf32>, vector<2x1920xf32> -> vector<2x2048xf32>
    %727 = vector.extract_strided_slice %723 {offsets = [0, 128], sizes = [2, 1920], strides = [1, 1]} : vector<2x2048xf32> to vector<2x1920xf32>
    %728 = tpu.concatenate %727, %724 in 1 : vector<2x1920xf32>, vector<2x128xf32> -> vector<2x2048xf32>
    %729 = tpu.concatenate %726, %723, %728 in 0 : vector<2x2048xf32>, vector<2x2048xf32>, vector<2x2048xf32> -> vector<6x2048xf32>
    %cst_156 = arith.constant dense<0.000000e+00> : vector<2x2048xf32>
    %730 = tpu.matmul %534, %729, %cst_156 {dimension_numbers = #tpu.dot_dimension_numbers<[1], [0], [0], [1], [0, 0, 1, 1], [], []>} : vector<2x6xf32>, vector<6x2048xf32>, vector<2x2048xf32> -> vector<2x2048xf32>
    %731 = vector.broadcast %535 : vector<2x1xf32> to vector<2x2048xf32>
    %732 = arith.addf %730, %731 : vector<2x2048xf32>
    %c120 = arith.constant 120 : index
    %c0_157 = arith.constant 0 : index
    %733 = vector.load %arg2[%c120, %c0_157] : memref<136x128xf32, #tpu.memory_space<vmem>>, vector<2x4xf32>
    %c0_158 = arith.constant 0 : index
    %c30 = arith.constant 30 : index
    %734 = vector.load %arg2[%c0_158, %c30] : memref<136x128xf32, #tpu.memory_space<vmem>>, vector<2x1xf32>
    %cst_159 = arith.constant dense<0.000000e+00> : vector<2x2048xf32>
    %735 = tpu.matmul %733, %527, %cst_159 {dimension_numbers = #tpu.dot_dimension_numbers<[1], [0], [0], [1], [0, 0, 1, 1], [], []>} : vector<2x4xf32>, vector<4x2048xf32>, vector<2x2048xf32> -> vector<2x2048xf32>
    %736 = vector.broadcast %734 : vector<2x1xf32> to vector<2x2048xf32>
    %737 = arith.addf %735, %736 : vector<2x2048xf32>
    %738 = arith.addf %737, %732 : vector<2x2048xf32>
    %c128_160 = arith.constant 128 : index
    %c0_161 = arith.constant 0 : index
    %739 = vector.load %arg2[%c128_160, %c0_161] : memref<136x128xf32, #tpu.memory_space<vmem>>, vector<1x6xf32>
    %c0_162 = arith.constant 0 : index
    %c31 = arith.constant 31 : index
    %740 = vector.load %arg2[%c0_162, %c31] : memref<136x128xf32, #tpu.memory_space<vmem>>, vector<1x1xf32>
    %741 = vector.extract_strided_slice %738 {offsets = [0, 0], sizes = [2, 1920], strides = [1, 1]} : vector<2x2048xf32> to vector<2x1920xf32>
    %742 = tpu.concatenate %724, %741 in 1 : vector<2x128xf32>, vector<2x1920xf32> -> vector<2x2048xf32>
    %743 = vector.extract_strided_slice %738 {offsets = [0, 128], sizes = [2, 1920], strides = [1, 1]} : vector<2x2048xf32> to vector<2x1920xf32>
    %744 = tpu.concatenate %743, %724 in 1 : vector<2x1920xf32>, vector<2x128xf32> -> vector<2x2048xf32>
    %745 = tpu.concatenate %742, %738, %744 in 0 : vector<2x2048xf32>, vector<2x2048xf32>, vector<2x2048xf32> -> vector<6x2048xf32>
    %cst_163 = arith.constant dense<0.000000e+00> : vector<1x2048xf32>
    %746 = tpu.matmul %739, %745, %cst_163 {dimension_numbers = #tpu.dot_dimension_numbers<[1], [0], [0], [1], [0, 0, 1, 1], [], []>} : vector<1x6xf32>, vector<6x2048xf32>, vector<1x2048xf32> -> vector<1x2048xf32>
    %747 = vector.broadcast %740 : vector<1x1xf32> to vector<1x2048xf32>
    %748 = arith.addf %746, %747 : vector<1x2048xf32>
    %c0_164 = arith.constant 0 : index
    %c0_165 = arith.constant 0 : index
    %c0_166 = arith.constant 0 : index
    %749 = vector.load %arg3[%c0_164, %c0_165, %c0_166] : memref<1x1x2048xf32, #tpu.memory_space<vmem>>, vector<1x1x2048xf32>
    %750 = vector.shape_cast %749 : vector<1x1x2048xf32> to vector<1x2048xf32>
    %751 = vector.shape_cast %748 : vector<1x2048xf32> to vector<1x1x2048xf32>
    tpu.vector_store %arg3[%c0_164, %c0_165, %c0_166], %751 {strides = array<i32>} : memref<1x1x2048xf32, #tpu.memory_space<vmem>>, vector<1x1x2048xf32>,
    return
  }
  func.func @transform_0(%arg0: i32) -> (i32, i32, i32) {
    %c0_i32 = arith.constant 0 : i32
    %c0_i32_0 = arith.constant 0 : i32
    %c0_i32_1 = arith.constant 0 : i32
    return %arg0, %c0_i32, %c0_i32_0 : i32, i32, i32
  }
  func.func @transform_1(%arg0: i32) -> (i32, i32) {
    %c0_i32 = arith.constant 0 : i32
    %c0_i32_0 = arith.constant 0 : i32
    %c0_i32_1 = arith.constant 0 : i32
    return %c0_i32, %c0_i32_0 : i32, i32
  }
  func.func @transform_2(%arg0: i32) -> (i32, i32, i32) {
    %c0_i32 = arith.constant 0 : i32
    %c0_i32_0 = arith.constant 0 : i32
    %c0_i32_1 = arith.constant 0 : i32
    return %arg0, %c0_i32, %c0_i32_0 : i32, i32, i32
  }
}

</mosaic_0001>

<llo_original>
// kernel: tpu_custom_call.1
$region0: #{tpu_custom_call.1}
  #allocation0 [shape = 'u32[]', space=smem, size = 0x4, offset = 0x4, fixed_abs, tag = 'smem constant byte address 0x4 - core index']
  #allocation1 [shape = 'u32[144,128]{1,0:T(1,128)}', space=vmem, size = 0x12000, scoped, tag = 'internal scratch']
  #allocation2 [shape = 'f32[8,2048]{1,0:T(8,128)}', space=vmem, size = 0x10000, scoped, tag = 'scratch operand']
  %s0 = inlined_call_operand.hbm [shape: f32[1,8,512], index: 0, kind: input, shape index: {}]
  %s1 = inlined_call_operand.hbm [shape: f32[136,128], index: 1, kind: input, shape index: {}]
  %s2 = inlined_call_operand.hbm [shape: f32[1,1,2048], index: 2, kind: output, shape index: {}]
  %s3 = sld [smem:[#allocation0]]
  $region26: #{tpu_custom_call.1} parent=0
    _
  %s5 = ssub.s32 1, %s3
  %s6 = scalar_select 0, %s5, %s3
  $region1: #{tpu_custom_call.1} parent=0
    #allocation3 [shape = 'u8[16384]{0}', space=vmem, size = 0x4000, scoped, tag = 'input window, operand 0, single buffered']
    #allocation4 [shape = 's32[1]{0}', space=sflag, size = 0x4, scoped, tag = 'scoped memory for tpu_custom_call.1']
    #allocation5 [shape = 's32[1]{0}', space=sflag, size = 0x4, scoped, tag = 'scoped memory for tpu_custom_call.1']
    #allocation6 [shape = 'u8[69632]{0}', space=vmem, size = 0x11000, scoped, tag = 'input window, operand 1, single buffered']
    #allocation7 [shape = 's32[1]{0}', space=sflag, size = 0x4, scoped, tag = 'scoped memory for tpu_custom_call.1']
    #allocation8 [shape = 'u8[8192]{0}', space=vmem, size = 0x2000, scoped, tag = 'output window, operand 0, single buffered']
    %7 = vsyncpa [#allocation4], 0
    %8 = vsyncpa [#allocation7], 0
    %9 = vsyncpa [#allocation5], 0
    // Predicated region
    $region2: #{tpu_custom_call.1} parent=1 // pred_check
      _
    $region3: #{tpu_custom_call.1} parent=1 // pred_check_branch
      %11 = sbr.rel (0) target = $region5
    $region4: #{tpu_custom_call.1} parent=1 // pred_region
      %s13 = ssub.s32 512, 512
      %14 = vsyncadd [#allocation4], %s13
      %s16 = sshll.u32 [#allocation3], 4
      %s17 = int_to_ptr.vmem [resolvable:$true] %s16
      %19 = dma.hbm_to_vmem [thread:$0]  %s0, 512, %s17, [#allocation4]
    $region5: #{tpu_custom_call.1} parent=1 // pred_fallthru
      _
    // Predicated region
    $region6: #{tpu_custom_call.1} parent=1 // pred_check
      _
    $region7: #{tpu_custom_call.1} parent=1 // pred_check_branch
      %21 = sbr.rel (0) target = $region9
    $region8: #{tpu_custom_call.1} parent=1 // pred_region
      %s23 = ssub.s32 2176, 2176
      %24 = vsyncadd [#allocation7], %s23
      %s25 = sshll.u32 [#allocation6], 4
      %s26 = int_to_ptr.vmem [resolvable:$true] %s25
      %31 = dma.hbm_to_vmem [thread:$0]  %s1, 2176, %s26, [#allocation7], 128, 128, 8
    $region9: #{tpu_custom_call.1} parent=1 // pred_fallthru
      _
    // Predicated region
    $region10: #{tpu_custom_call.1} parent=1 // pred_check
      _
    $region11: #{tpu_custom_call.1} parent=1 // pred_check_branch
      %33 = sbr.rel (0) target = $region13
    $region12: #{tpu_custom_call.1} parent=1 // pred_region
      %34 = dma.done [#allocation4], 512
    $region13: #{tpu_custom_call.1} parent=1 // pred_fallthru
      _
    // Predicated region
    $region14: #{tpu_custom_call.1} parent=1 // pred_check
      _
    $region15: #{tpu_custom_call.1} parent=1 // pred_check_branch
      %36 = sbr.rel (0) target = $region17
    $region16: #{tpu_custom_call.1} parent=1 // pred_region
      %37 = dma.done [#allocation7], 2176
    $region17: #{tpu_custom_call.1} parent=1 // pred_fallthru
      _
    %v38 = vld [vmem:[#allocation3] sm:$0xff]
    %v39 = vld [vmem:[#allocation3 + $0x8] sm:$0xff]
    %v40 = vld [vmem:[#allocation3 + $0x10] sm:$0xff]
    %v41 = vld [vmem:[#allocation3 + $0x18] sm:$0xff]
    %v42 = vld [vmem:[#allocation6] sm:$0xff]
    %v43 = vld [vmem:[#allocation6 + $0x8] sm:$0xff]
    %v44 = vrot.slane %v38, 4
    %v45 = vadd.f32 %v38, %v44
    %v46 = vrot.slane %v45, 2
    %v47 = vadd.f32 %v45, %v46
    %v48 = vrot.slane %v47, 1
    %v49 = vadd.f32 %v47, %v48
    %v50 = vrot.slane %v39, 4
    %v51 = vadd.f32 %v39, %v50
    %v52 = vrot.slane %v51, 2
    %v53 = vadd.f32 %v51, %v52
    %v54 = vrot.slane %v53, 1
    %v55 = vadd.f32 %v53, %v54
    %v56 = vrot.slane %v40, 4
    %v57 = vadd.f32 %v40, %v56
    %v58 = vrot.slane %v57, 2
    %v59 = vadd.f32 %v57, %v58
    %v60 = vrot.slane %v59, 1
    %v61 = vadd.f32 %v59, %v60
    %v62 = vrot.slane %v41, 4
    %v63 = vadd.f32 %v41, %v62
    %v64 = vrot.slane %v63, 2
    %v65 = vadd.f32 %v63, %v64
    %v66 = vrot.slane %v65, 1
    %v67 = vadd.f32 %v65, %v66
    %v68 = vadd.f32 %v49, %v55
    %v69 = vadd.f32 %v61, %v67
    %v70 = vadd.f32 %v68, %v69
    %v71 = vmul.f32 %v70, 0.03125
    %v72 = vlaneseq
    %v73 = vshrl.u32 %v72, 7
    %v74 = vsub.s32 0, %v73
    %v75 = vrot.slane %v71, %v74
    %v76 = vsub.f32 %v38, %v75
    %v77 = vsub.f32 %v39, %v75
    %v78 = vsub.f32 %v40, %v75
    %v79 = vsub.f32 %v41, %v75
    %v80 = vmul.f32 %v76, %v76
    %v81 = vmul.f32 %v77, %v77
    %v82 = vmul.f32 %v78, %v78
    %v83 = vmul.f32 %v79, %v79
    %v84 = vrot.slane %v80, 4
    %v85 = vadd.f32 %v80, %v84
    %v86 = vrot.slane %v85, 2
    %v87 = vadd.f32 %v85, %v86
    %v88 = vrot.slane %v87, 1
    %v89 = vadd.f32 %v87, %v88
    %v90 = vrot.slane %v81, 4
    %v91 = vadd.f32 %v81, %v90
    %v92 = vrot.slane %v91, 2
    %v93 = vadd.f32 %v91, %v92
    %v94 = vrot.slane %v93, 1
    %v95 = vadd.f32 %v93, %v94
    %v96 = vrot.slane %v82, 4
    %v97 = vadd.f32 %v82, %v96
    %v98 = vrot.slane %v97, 2
    %v99 = vadd.f32 %v97, %v98
    %v100 = vrot.slane %v99, 1
    %v101 = vadd.f32 %v99, %v100
    %v102 = vrot.slane %v83, 4
    %v103 = vadd.f32 %v83, %v102
    %v104 = vrot.slane %v103, 2
    %v105 = vadd.f32 %v103, %v104
    %v106 = vrot.slane %v105, 1
    %v107 = vadd.f32 %v105, %v106
    %v108 = vadd.f32 %v89, %v95
    %v109 = vadd.f32 %v101, %v107
    %v110 = vadd.f32 %v108, %v109
    %v111 = vmul.f32 %v110, 0.03125
    %v112 = vadd.f32 %v111, 1e-06
    %v113 = vrsqrt.pop %v112
    %v114 = vlaneseq
    %v115 = vshrl.u32 %v114, 7
    %v116 = vsub.s32 0, %v115
    %v117 = vrot.slane %v113, %v116
    %v118 = vmul.f32 %v76, %v117
    %v119 = vmul.f32 %v77, %v117
    %v120 = vmul.f32 %v78, %v117
    %v121 = vmul.f32 %v79, %v117
    %123 = vset.pattern.permute.xlu0 0
    %124 = vperm.xlu0 %123, %v42
    %v125 = vpop.permute.xlu0 %124
    %v127 = vmul.f32 %v118, %v125
    %v128 = vmul.f32 %v119, %v125
    %v129 = vmul.f32 %v120, %v125
    %v130 = vmul.f32 %v121, %v125
    %131 = vset.pattern.permute.xlu0 1
    %132 = vperm.xlu0 %131, %v42
    %v133 = vpop.permute.xlu0 %132
    %v135 = vadd.f32 %v127, %v133
    %v136 = vadd.f32 %v128, %v133
    %v137 = vadd.f32 %v129, %v133
    %v138 = vadd.f32 %v130, %v133
    %v139 = vxor.u32 %v135, 2147483648
    %v140 = vxor.u32 %v136, 2147483648
    %v141 = vxor.u32 %v137, 2147483648
    %v142 = vxor.u32 %v138, 2147483648
    %v143 = vmul.f32 %v139, 1.442695
    %v144 = vpow.pop %v143
    %v145 = vmul.f32 %v140, 1.442695
    %v146 = vpow.pop %v145
    %v147 = vmul.f32 %v141, 1.442695
    %v148 = vpow.pop %v147
    %v149 = vmul.f32 %v142, 1.442695
    %v150 = vpow.pop %v149
    %v151 = vadd.f32 %v144, 1.0
    %v152 = vadd.f32 %v146, 1.0
    %v153 = vadd.f32 %v148, 1.0
    %v154 = vadd.f32 %v150, 1.0
    %v155 = vrcp.pop %v151
    %v156 = vmul.f32 1.0, %v155
    %v157 = vrcp.pop %v152
    %v158 = vmul.f32 1.0, %v157
    %v159 = vrcp.pop %v153
    %v160 = vmul.f32 1.0, %v159
    %v161 = vrcp.pop %v154
    %v162 = vmul.f32 1.0, %v161
    %v163 = vmul.f32 %v135, %v156
    %v164 = vmul.f32 %v136, %v158
    %v165 = vmul.f32 %v137, %v160
    %v166 = vmul.f32 %v138, %v162
    %167 = vset.pattern.permute.xlu0 2
    %168 = vperm.xlu0 %167, %v42
    %v169 = vpop.permute.xlu0 %168
    %vm171 = vcmask 195584
    %v173 = vsel %vm171, %v43, 0
    %175 = vmatprep.subr.mxu0 %v163
    %176 = vmatpush1.msra.mxu0 0.0
    %177 = vmatprep.subr.mxu0 %v164
    %178 = vmatpush1.msra.mxu0 %v163
    %179 = vmatprep.subr.mxu0 %v165
    %180 = vmatpush1.msra.mxu0 %v164
    %181 = vmatprep.subr.mxu0 0.0
    %182 = vmatpush1.msra.mxu0 0.0
    %183 = vmatprep.subr.mxu0 0.0
    %184 = vmatpush1.msra.mxu0 0.0
    %185 = vmatprep.subr.mxu0 0.0
    %186 = vmatpush1.msra.mxu0 0.0
    %187 = vmatprep.subr.mxu0 0.0
    %188 = vmatpush1.msra.mxu0 0.0
    %189 = vmatprep.subr.mxu0 0.0
    %190 = vmatpush1.msra.mxu0 0.0
    %191 = vmatprep.subr.mxu0 0.0
    %192 = vmatpush1.msra.mxu0 0.0
    %193 = vmatprep.subr.mxu0 0.0
    %194 = vmatpush1.msra.mxu0 0.0
    %195 = vmatprep.subr.mxu0 0.0
    %196 = vmatpush1.msra.mxu0 0.0
    %197 = vmatprep.subr.mxu0 0.0
    %198 = vmatpush1.msra.mxu0 0.0
    %199 = vmatprep.subr.mxu0 0.0
    %200 = vmatpush1.msra.mxu0 0.0
    %201 = vmatprep.subr.mxu0 0.0
    %202 = vmatpush1.msra.mxu0 0.0
    %203 = vmatprep.subr.mxu0 0.0
    %204 = vmatpush1.msra.mxu0 0.0
    %205 = vmatprep.subr.mxu0 0.0
    %206 = vmatpush1.msra.mxu0 0.0
    %207 = vmatprep.subr.mxu0 0.0
    %208 = vmatpush1.msra.mxu0 0.0
    %209 = vmatprep.subr.mxu0 0.0
    %210 = vmatpush1.msra.mxu0 0.0
    %211 = vmatprep.subr.mxu0 0.0
    %212 = vmatpush1.msra.mxu0 0.0
    %213 = vmatprep.subr.mxu0 0.0
    %214 = vmatpush1.msra.mxu0 0.0
    %215 = vmatprep.subr.mxu0 0.0
    %216 = vmatpush1.msra.mxu0 0.0
    %217 = vmatprep.subr.mxu0 0.0
    %218 = vmatpush1.msra.mxu0 0.0
    %219 = vmatprep.subr.mxu0 0.0
    %220 = vmatpush1.msra.mxu0 0.0
    %221 = vmatprep.subr.mxu0 0.0
    %222 = vmatpush1.msra.mxu0 0.0
    %223 = vmatprep.subr.mxu0 0.0
    %224 = vmatpush1.msra.mxu0 0.0
    %225 = vmatprep.subr.mxu0 0.0
    %226 = vmatpush1.msra.mxu0 0.0
    %227 = vmatprep.subr.mxu0 0.0
    %228 = vmatpush1.msra.mxu0 0.0
    %229 = vmatprep.subr.mxu0 0.0
    %230 = vmatpush1.msra.mxu0 0.0
    %231 = vmatprep.subr.mxu0 0.0
    %232 = vmatpush1.msra.mxu0 0.0
    %233 = vmatprep.subr.mxu0 0.0
    %234 = vmatpush1.msra.mxu0 0.0
    %235 = vmatprep.subr.mxu0 0.0
    %236 = vmatpush1.msra.mxu0 0.0
    %237 = vmatprep.subr.mxu0 0.0
    %238 = vmatpush1.msra.mxu0 0.0
    %239 = vmatprep.mubr.f32.mxu0 0.0
    %240 = vmatmul.mubr.f32.gmra.mrb[0].mxu0 %v173
    %v241 = vpop.f32.mrb[0].mxu0
    %v242 = vadd.f32 %v169, %v241
    %v243 = vpop.f32.mrb[0].mxu0
    %v244 = vadd.f32 %v169, %v243
    %245 = vdwg.mxu0
    %246 = vmatprep.subr.mxu0 %v165
    %247 = vmatpush1.msra.mxu0 %v164
    %248 = vmatprep.subr.mxu0 %v166
    %249 = vmatpush1.msra.mxu0 %v165
    %250 = vmatprep.subr.mxu0 0.0
    %251 = vmatpush1.msra.mxu0 %v166
    %252 = vmatprep.subr.mxu0 0.0
    %253 = vmatpush1.msra.mxu0 0.0
    %254 = vmatprep.subr.mxu0 0.0
    %255 = vmatpush1.msra.mxu0 0.0
    %256 = vmatprep.subr.mxu0 0.0
    %257 = vmatpush1.msra.mxu0 0.0
    %258 = vmatprep.subr.mxu0 0.0
    %259 = vmatpush1.msra.mxu0 0.0
    %260 = vmatprep.subr.mxu0 0.0
    %261 = vmatpush1.msra.mxu0 0.0
    %262 = vmatprep.subr.mxu0 0.0
    %263 = vmatpush1.msra.mxu0 0.0
    %264 = vmatprep.subr.mxu0 0.0
    %265 = vmatpush1.msra.mxu0 0.0
    %266 = vmatprep.subr.mxu0 0.0
    %267 = vmatpush1.msra.mxu0 0.0
    %268 = vmatprep.subr.mxu0 0.0
    %269 = vmatpush1.msra.mxu0 0.0
    %270 = vmatprep.subr.mxu0 0.0
    %271 = vmatpush1.msra.mxu0 0.0
    %272 = vmatprep.subr.mxu0 0.0
    %273 = vmatpush1.msra.mxu0 0.0
    %274 = vmatprep.subr.mxu0 0.0
    %275 = vmatpush1.msra.mxu0 0.0
    %276 = vmatprep.subr.mxu0 0.0
    %277 = vmatpush1.msra.mxu0 0.0
    %278 = vmatprep.subr.mxu0 0.0
    %279 = vmatpush1.msra.mxu0 0.0
    %280 = vmatprep.subr.mxu0 0.0
    %281 = vmatpush1.msra.mxu0 0.0
    %282 = vmatprep.subr.mxu0 0.0
    %283 = vmatpush1.msra.mxu0 0.0
    %284 = vmatprep.subr.mxu0 0.0
    %285 = vmatpush1.msra.mxu0 0.0
    %286 = vmatprep.subr.mxu0 0.0
    %287 = vmatpush1.msra.mxu0 0.0
    %288 = vmatprep.subr.mxu0 0.0
    %289 = vmatpush1.msra.mxu0 0.0
    %290 = vmatprep.subr.mxu0 0.0
    %291 = vmatpush1.msra.mxu0 0.0
    %292 = vmatprep.subr.mxu0 0.0
    %293 = vmatpush1.msra.mxu0 0.0
    %294 = vmatprep.subr.mxu0 0.0
    %295 = vmatpush1.msra.mxu0 0.0
    %296 = vmatprep.subr.mxu0 0.0
    %297 = vmatpush1.msra.mxu0 0.0
    %298 = vmatprep.subr.mxu0 0.0
    %299 = vmatpush1.msra.mxu0 0.0
    %300 = vmatprep.subr.mxu0 0.0
    %301 = vmatpush1.msra.mxu0 0.0
    %302 = vmatprep.subr.mxu0 0.0
    %303 = vmatpush1.msra.mxu0 0.0
    %304 = vmatprep.subr.mxu0 0.0
    %305 = vmatpush1.msra.mxu0 0.0
    %306 = vmatprep.subr.mxu0 0.0
    %307 = vmatpush1.msra.mxu0 0.0
    %308 = vmatprep.subr.mxu0 0.0
    %309 = vmatpush1.msra.mxu0 0.0
    %310 = vmatprep.mubr.f32.mxu0 0.0
    %311 = vmatmul.mubr.f32.gmra.mrb[0].mxu0 %v173
    %v312 = vpop.f32.mrb[0].mxu0
    %v313 = vadd.f32 %v169, %v312
    %v314 = vpop.f32.mrb[0].mxu0
    %v315 = vadd.f32 %v169, %v314
    %316 = vdwg.mxu0
    %v317 = vld [vmem:[#allocation6 + $0x10] sm:$0xff]
    %v318 = vld [vmem:[#allocation6 + $0x18] sm:$0xff]
    %v319 = vrot.slane %v242, 4
    %v320 = vadd.f32 %v242, %v319
    %v321 = vrot.slane %v320, 2
    %v322 = vadd.f32 %v320, %v321
    %v323 = vrot.slane %v322, 1
    %v324 = vadd.f32 %v322, %v323
    %v325 = vrot.slane %v244, 4
    %v326 = vadd.f32 %v244, %v325
    %v327 = vrot.slane %v326, 2
    %v328 = vadd.f32 %v326, %v327
    %v329 = vrot.slane %v328, 1
    %v330 = vadd.f32 %v328, %v329
    %v331 = vrot.slane %v313, 4
    %v332 = vadd.f32 %v313, %v331
    %v333 = vrot.slane %v332, 2
    %v334 = vadd.f32 %v332, %v333
    %v335 = vrot.slane %v334, 1
    %v336 = vadd.f32 %v334, %v335
    %v337 = vrot.slane %v315, 4
    %v338 = vadd.f32 %v315, %v337
    %v339 = vrot.slane %v338, 2
    %v340 = vadd.f32 %v338, %v339
    %v341 = vrot.slane %v340, 1
    %v342 = vadd.f32 %v340, %v341
    %v343 = vadd.f32 %v324, %v330
    %v344 = vadd.f32 %v336, %v342
    %v345 = vadd.f32 %v343, %v344
    %v346 = vmul.f32 %v345, 0.03125
    %v347 = vlaneseq
    %v348 = vshrl.u32 %v347, 7
    %v349 = vsub.s32 0, %v348
    %v350 = vrot.slane %v346, %v349
    %v351 = vsub.f32 %v242, %v350
    %v352 = vsub.f32 %v244, %v350
    %v353 = vsub.f32 %v313, %v350
    %v354 = vsub.f32 %v315, %v350
    %v355 = vmul.f32 %v351, %v351
    %v356 = vmul.f32 %v352, %v352
    %v357 = vmul.f32 %v353, %v353
    %v358 = vmul.f32 %v354, %v354
    %v359 = vrot.slane %v355, 4
    %v360 = vadd.f32 %v355, %v359
    %v361 = vrot.slane %v360, 2
    %v362 = vadd.f32 %v360, %v361
    %v363 = vrot.slane %v362, 1
    %v364 = vadd.f32 %v362, %v363
    %v365 = vrot.slane %v356, 4
    %v366 = vadd.f32 %v356, %v365
    %v367 = vrot.slane %v366, 2
    %v368 = vadd.f32 %v366, %v367
    %v369 = vrot.slane %v368, 1
    %v370 = vadd.f32 %v368, %v369
    %v371 = vrot.slane %v357, 4
    %v372 = vadd.f32 %v357, %v371
    %v373 = vrot.slane %v372, 2
    %v374 = vadd.f32 %v372, %v373
    %v375 = vrot.slane %v374, 1
    %v376 = vadd.f32 %v374, %v375
    %v377 = vrot.slane %v358, 4
    %v378 = vadd.f32 %v358, %v377
    %v379 = vrot.slane %v378, 2
    %v380 = vadd.f32 %v378, %v379
    %v381 = vrot.slane %v380, 1
    %v382 = vadd.f32 %v380, %v381
    %v383 = vadd.f32 %v364, %v370
    %v384 = vadd.f32 %v376, %v382
    %v385 = vadd.f32 %v383, %v384
    %v386 = vmul.f32 %v385, 0.03125
    %v387 = vadd.f32 %v386, 1e-06
    %v388 = vrsqrt.pop %v387
    %v389 = vlaneseq
    %v390 = vshrl.u32 %v389, 7
    %v391 = vsub.s32 0, %v390
    %v392 = vrot.slane %v388, %v391
    %v393 = vmul.f32 %v351, %v392
    %v394 = vmul.f32 %v352, %v392
    %v395 = vmul.f32 %v353, %v392
    %v396 = vmul.f32 %v354, %v392
    %397 = vset.pattern.permute.xlu0 3
    %398 = vperm.xlu0 %397, %v42
    %v399 = vpop.permute.xlu0 %398
    %v401 = vmul.f32 %v393, %v399
    %v402 = vmul.f32 %v394, %v399
    %v403 = vmul.f32 %v395, %v399
    %v404 = vmul.f32 %v396, %v399
    %405 = vset.pattern.permute.xlu0 4
    %406 = vperm.xlu0 %405, %v42
    %v407 = vpop.permute.xlu0 %406
    %v409 = vadd.f32 %v401, %v407
    %v410 = vadd.f32 %v402, %v407
    %v411 = vadd.f32 %v403, %v407
    %v412 = vadd.f32 %v404, %v407
    %v413 = vxor.u32 %v409, 2147483648
    %v414 = vxor.u32 %v410, 2147483648
    %v415 = vxor.u32 %v411, 2147483648
    %v416 = vxor.u32 %v412, 2147483648
    %v417 = vmul.f32 %v413, 1.442695
    %v418 = vpow.pop %v417
    %v419 = vmul.f32 %v414, 1.442695
    %v420 = vpow.pop %v419
    %v421 = vmul.f32 %v415, 1.442695
    %v422 = vpow.pop %v421
    %v423 = vmul.f32 %v416, 1.442695
    %v424 = vpow.pop %v423
    %v425 = vadd.f32 %v418, 1.0
    %v426 = vadd.f32 %v420, 1.0
    %v427 = vadd.f32 %v422, 1.0
    %v428 = vadd.f32 %v424, 1.0
    %v429 = vrcp.pop %v425
    %v430 = vmul.f32 1.0, %v429
    %v431 = vrcp.pop %v426
    %v432 = vmul.f32 1.0, %v431
    %v433 = vrcp.pop %v427
    %v434 = vmul.f32 1.0, %v433
    %v435 = vrcp.pop %v428
    %v436 = vmul.f32 1.0, %v435
    %v437 = vmul.f32 %v409, %v430
    %v438 = vmul.f32 %v410, %v432
    %v439 = vmul.f32 %v411, %v434
    %v440 = vmul.f32 %v412, %v436
    %441 = vset.pattern.permute.xlu0 5
    %442 = vperm.xlu0 %441, %v42
    %v443 = vpop.permute.xlu0 %442
    %v446 = vsel %vm171, %v317, 0
    %448 = vmatprep.subr.mxu0 %v437
    %449 = vmatpush1.msra.mxu0 0.0
    %450 = vmatprep.subr.mxu0 %v438
    %451 = vmatpush1.msra.mxu0 %v437
    %452 = vmatprep.subr.mxu0 %v439
    %453 = vmatpush1.msra.mxu0 %v438
    %454 = vmatprep.subr.mxu0 0.0
    %455 = vmatpush1.msra.mxu0 0.0
    %456 = vmatprep.subr.mxu0 0.0
    %457 = vmatpush1.msra.mxu0 0.0
    %458 = vmatprep.subr.mxu0 0.0
    %459 = vmatpush1.msra.mxu0 0.0
    %460 = vmatprep.subr.mxu0 0.0
    %461 = vmatpush1.msra.mxu0 0.0
    %462 = vmatprep.subr.mxu0 0.0
    %463 = vmatpush1.msra.mxu0 0.0
    %464 = vmatprep.subr.mxu0 0.0
    %465 = vmatpush1.msra.mxu0 0.0
    %466 = vmatprep.subr.mxu0 0.0
    %467 = vmatpush1.msra.mxu0 0.0
    %468 = vmatprep.subr.mxu0 0.0
    %469 = vmatpush1.msra.mxu0 0.0
    %470 = vmatprep.subr.mxu0 0.0
    %471 = vmatpush1.msra.mxu0 0.0
    %472 = vmatprep.subr.mxu0 0.0
    %473 = vmatpush1.msra.mxu0 0.0
    %474 = vmatprep.subr.mxu0 0.0
    %475 = vmatpush1.msra.mxu0 0.0
    %476 = vmatprep.subr.mxu0 0.0
    %477 = vmatpush1.msra.mxu0 0.0
    %478 = vmatprep.subr.mxu0 0.0
    %479 = vmatpush1.msra.mxu0 0.0
    %480 = vmatprep.subr.mxu0 0.0
    %481 = vmatpush1.msra.mxu0 0.0
    %482 = vmatprep.subr.mxu0 0.0
    %483 = vmatpush1.msra.mxu0 0.0
    %484 = vmatprep.subr.mxu0 0.0
    %485 = vmatpush1.msra.mxu0 0.0
    %486 = vmatprep.subr.mxu0 0.0
    %487 = vmatpush1.msra.mxu0 0.0
    %488 = vmatprep.subr.mxu0 0.0
    %489 = vmatpush1.msra.mxu0 0.0
    %490 = vmatprep.subr.mxu0 0.0
    %491 = vmatpush1.msra.mxu0 0.0
    %492 = vmatprep.subr.mxu0 0.0
    %493 = vmatpush1.msra.mxu0 0.0
    %494 = vmatprep.subr.mxu0 0.0
    %495 = vmatpush1.msra.mxu0 0.0
    %496 = vmatprep.subr.mxu0 0.0
    %497 = vmatpush1.msra.mxu0 0.0
    %498 = vmatprep.subr.mxu0 0.0
    %499 = vmatpush1.msra.mxu0 0.0
    %500 = vmatprep.subr.mxu0 0.0
    %501 = vmatpush1.msra.mxu0 0.0
    %502 = vmatprep.subr.mxu0 0.0
    %503 = vmatpush1.msra.mxu0 0.0
    %504 = vmatprep.subr.mxu0 0.0
    %505 = vmatpush1.msra.mxu0 0.0
    %506 = vmatprep.subr.mxu0 0.0
    %507 = vmatpush1.msra.mxu0 0.0
    %508 = vmatprep.subr.mxu0 0.0
    %509 = vmatpush1.msra.mxu0 0.0
    %510 = vmatprep.subr.mxu0 0.0
    %511 = vmatpush1.msra.mxu0 0.0
    %512 = vmatprep.mubr.f32.mxu0 0.0
    %513 = vmatmul.mubr.f32.gmra.mrb[0].mxu0 %v446
    %v514 = vpop.f32.mrb[0].mxu0
    %v515 = vadd.f32 %v443, %v514
    %v516 = vpop.f32.mrb[0].mxu0
    %v517 = vadd.f32 %v443, %v516
    %518 = vdwg.mxu0
    %519 = vmatprep.subr.mxu0 %v439
    %520 = vmatpush1.msra.mxu0 %v438
    %521 = vmatprep.subr.mxu0 %v440
    %522 = vmatpush1.msra.mxu0 %v439
    %523 = vmatprep.subr.mxu0 0.0
    %524 = vmatpush1.msra.mxu0 %v440
    %525 = vmatprep.subr.mxu0 0.0
    %526 = vmatpush1.msra.mxu0 0.0
    %527 = vmatprep.subr.mxu0 0.0
    %528 = vmatpush1.msra.mxu0 0.0
    %529 = vmatprep.subr.mxu0 0.0
    %530 = vmatpush1.msra.mxu0 0.0
    %531 = vmatprep.subr.mxu0 0.0
    %532 = vmatpush1.msra.mxu0 0.0
    %533 = vmatprep.subr.mxu0 0.0
    %534 = vmatpush1.msra.mxu0 0.0
    %535 = vmatprep.subr.mxu0 0.0
    %536 = vmatpush1.msra.mxu0 0.0
    %537 = vmatprep.subr.mxu0 0.0
    %538 = vmatpush1.msra.mxu0 0.0
    %539 = vmatprep.subr.mxu0 0.0
    %540 = vmatpush1.msra.mxu0 0.0
    %541 = vmatprep.subr.mxu0 0.0
    %542 = vmatpush1.msra.mxu0 0.0
    %543 = vmatprep.subr.mxu0 0.0
    %544 = vmatpush1.msra.mxu0 0.0
    %545 = vmatprep.subr.mxu0 0.0
    %546 = vmatpush1.msra.mxu0 0.0
    %547 = vmatprep.subr.mxu0 0.0
    %548 = vmatpush1.msra.mxu0 0.0
    %549 = vmatprep.subr.mxu0 0.0
    %550 = vmatpush1.msra.mxu0 0.0
    %551 = vmatprep.subr.mxu0 0.0
    %552 = vmatpush1.msra.mxu0 0.0
    %553 = vmatprep.subr.mxu0 0.0
    %554 = vmatpush1.msra.mxu0 0.0
    %555 = vmatprep.subr.mxu0 0.0
    %556 = vmatpush1.msra.mxu0 0.0
    %557 = vmatprep.subr.mxu0 0.0
    %558 = vmatpush1.msra.mxu0 0.0
    %559 = vmatprep.subr.mxu0 0.0
    %560 = vmatpush1.msra.mxu0 0.0
    %561 = vmatprep.subr.mxu0 0.0
    %562 = vmatpush1.msra.mxu0 0.0
    %563 = vmatprep.subr.mxu0 0.0
    %564 = vmatpush1.msra.mxu0 0.0
    %565 = vmatprep.subr.mxu0 0.0
    %566 = vmatpush1.msra.mxu0 0.0
    %567 = vmatprep.subr.mxu0 0.0
    %568 = vmatpush1.msra.mxu0 0.0
    %569 = vmatprep.subr.mxu0 0.0
    %570 = vmatpush1.msra.mxu0 0.0
    %571 = vmatprep.subr.mxu0 0.0
    %572 = vmatpush1.msra.mxu0 0.0
    %573 = vmatprep.subr.mxu0 0.0
    %574 = vmatpush1.msra.mxu0 0.0
    %575 = vmatprep.subr.mxu0 0.0
    %576 = vmatpush1.msra.mxu0 0.0
    %577 = vmatprep.subr.mxu0 0.0
    %578 = vmatpush1.msra.mxu0 0.0
    %579 = vmatprep.subr.mxu0 0.0
    %580 = vmatpush1.msra.mxu0 0.0
    %581 = vmatprep.subr.mxu0 0.0
    %582 = vmatpush1.msra.mxu0 0.0
    %583 = vmatprep.mubr.f32.mxu0 0.0
    %584 = vmatmul.mubr.f32.gmra.mrb[0].mxu0 %v446
    %v585 = vpop.f32.mrb[0].mxu0
    %v586 = vadd.f32 %v443, %v585
    %v587 = vpop.f32.mrb[0].mxu0
    %v588 = vadd.f32 %v443, %v587
    %589 = vdwg.mxu0
    %v590 = vrot.slane %v515, 4
    %v591 = vadd.f32 %v515, %v590
    %v592 = vrot.slane %v591, 2
    %v593 = vadd.f32 %v591, %v592
    %v594 = vrot.slane %v593, 1
    %v595 = vadd.f32 %v593, %v594
    %v596 = vrot.slane %v517, 4
    %v597 = vadd.f32 %v517, %v596
    %v598 = vrot.slane %v597, 2
    %v599 = vadd.f32 %v597, %v598
    %v600 = vrot.slane %v599, 1
    %v601 = vadd.f32 %v599, %v600
    %v602 = vrot.slane %v586, 4
    %v603 = vadd.f32 %v586, %v602
    %v604 = vrot.slane %v603, 2
    %v605 = vadd.f32 %v603, %v604
    %v606 = vrot.slane %v605, 1
    %v607 = vadd.f32 %v605, %v606
    %v608 = vrot.slane %v588, 4
    %v609 = vadd.f32 %v588, %v608
    %v610 = vrot.slane %v609, 2
    %v611 = vadd.f32 %v609, %v610
    %v612 = vrot.slane %v611, 1
    %v613 = vadd.f32 %v611, %v612
    %v614 = vadd.f32 %v595, %v601
    %v615 = vadd.f32 %v607, %v613
    %v616 = vadd.f32 %v614, %v615
    %v617 = vmul.f32 %v616, 0.03125
    %v618 = vlaneseq
    %v619 = vshrl.u32 %v618, 7
    %v620 = vsub.s32 0, %v619
    %v621 = vrot.slane %v617, %v620
    %v622 = vsub.f32 %v515, %v621
    %v623 = vsub.f32 %v517, %v621
    %v624 = vsub.f32 %v586, %v621
    %v625 = vsub.f32 %v588, %v621
    %v626 = vmul.f32 %v622, %v622
    %v627 = vmul.f32 %v623, %v623
    %v628 = vmul.f32 %v624, %v624
    %v629 = vmul.f32 %v625, %v625
    %v630 = vrot.slane %v626, 4
    %v631 = vadd.f32 %v626, %v630
    %v632 = vrot.slane %v631, 2
    %v633 = vadd.f32 %v631, %v632
    %v634 = vrot.slane %v633, 1
    %v635 = vadd.f32 %v633, %v634
    %v636 = vrot.slane %v627, 4
    %v637 = vadd.f32 %v627, %v636
    %v638 = vrot.slane %v637, 2
    %v639 = vadd.f32 %v637, %v638
    %v640 = vrot.slane %v639, 1
    %v641 = vadd.f32 %v639, %v640
    %v642 = vrot.slane %v628, 4
    %v643 = vadd.f32 %v628, %v642
    %v644 = vrot.slane %v643, 2
    %v645 = vadd.f32 %v643, %v644
    %v646 = vrot.slane %v645, 1
    %v647 = vadd.f32 %v645, %v646
    %v648 = vrot.slane %v629, 4
    %v649 = vadd.f32 %v629, %v648
    %v650 = vrot.slane %v649, 2
    %v651 = vadd.f32 %v649, %v650
    %v652 = vrot.slane %v651, 1
    %v653 = vadd.f32 %v651, %v652
    %v654 = vadd.f32 %v635, %v641
    %v655 = vadd.f32 %v647, %v653
    %v656 = vadd.f32 %v654, %v655
    %v657 = vmul.f32 %v656, 0.03125
    %v658 = vadd.f32 %v657, 1e-06
    %v659 = vrsqrt.pop %v658
    %v660 = vlaneseq
    %v661 = vshrl.u32 %v660, 7
    %v662 = vsub.s32 0, %v661
    %v663 = vrot.slane %v659, %v662
    %v664 = vmul.f32 %v622, %v663
    %v665 = vmul.f32 %v623, %v663
    %v666 = vmul.f32 %v624, %v663
    %v667 = vmul.f32 %v625, %v663
    %668 = vset.pattern.permute.xlu0 6
    %669 = vperm.xlu0 %668, %v42
    %v670 = vpop.permute.xlu0 %669
    %v672 = vmul.f32 %v664, %v670
    %v673 = vmul.f32 %v665, %v670
    %v674 = vmul.f32 %v666, %v670
    %v675 = vmul.f32 %v667, %v670
    %676 = vset.pattern.permute.xlu0 7
    %677 = vperm.xlu0 %676, %v42
    %v678 = vpop.permute.xlu0 %677
    %v680 = vadd.f32 %v672, %v678
    %v681 = vadd.f32 %v673, %v678
    %v682 = vadd.f32 %v674, %v678
    %v683 = vadd.f32 %v675, %v678
    %v684 = vxor.u32 %v680, 2147483648
    %v685 = vxor.u32 %v681, 2147483648
    %v686 = vxor.u32 %v682, 2147483648
    %v687 = vxor.u32 %v683, 2147483648
    %v688 = vmul.f32 %v684, 1.442695
    %v689 = vpow.pop %v688
    %v690 = vmul.f32 %v685, 1.442695
    %v691 = vpow.pop %v690
    %v692 = vmul.f32 %v686, 1.442695
    %v693 = vpow.pop %v692
    %v694 = vmul.f32 %v687, 1.442695
    %v695 = vpow.pop %v694
    %v696 = vadd.f32 %v689, 1.0
    %v697 = vadd.f32 %v691, 1.0
    %v698 = vadd.f32 %v693, 1.0
    %v699 = vadd.f32 %v695, 1.0
    %v700 = vrcp.pop %v696
    %v701 = vmul.f32 1.0, %v700
    %v702 = vrcp.pop %v697
    %v703 = vmul.f32 1.0, %v702
    %v704 = vrcp.pop %v698
    %v705 = vmul.f32 1.0, %v704
    %v706 = vrcp.pop %v699
    %v707 = vmul.f32 1.0, %v706
    %v708 = vmul.f32 %v680, %v701
    %v709 = vmul.f32 %v681, %v703
    %v710 = vmul.f32 %v682, %v705
    %v711 = vmul.f32 %v683, %v707
    %712 = vset.pattern.permute.xlu0 8
    %713 = vperm.xlu0 %712, %v42
    %v714 = vpop.permute.xlu0 %713
    %v717 = vsel %vm171, %v318, 0
    %719 = vmatprep.subr.mxu0 %v708
    %720 = vmatpush1.msra.mxu0 0.0
    %721 = vmatprep.subr.mxu0 %v709
    %722 = vmatpush1.msra.mxu0 %v708
    %723 = vmatprep.subr.mxu0 %v710
    %724 = vmatpush1.msra.mxu0 %v709
    %725 = vmatprep.subr.mxu0 0.0
    %726 = vmatpush1.msra.mxu0 0.0
    %727 = vmatprep.subr.mxu0 0.0
    %728 = vmatpush1.msra.mxu0 0.0
    %729 = vmatprep.subr.mxu0 0.0
    %730 = vmatpush1.msra.mxu0 0.0
    %731 = vmatprep.subr.mxu0 0.0
    %732 = vmatpush1.msra.mxu0 0.0
    %733 = vmatprep.subr.mxu0 0.0
    %734 = vmatpush1.msra.mxu0 0.0
    %735 = vmatprep.subr.mxu0 0.0
    %736 = vmatpush1.msra.mxu0 0.0
    %737 = vmatprep.subr.mxu0 0.0
    %738 = vmatpush1.msra.mxu0 0.0
    %739 = vmatprep.subr.mxu0 0.0
    %740 = vmatpush1.msra.mxu0 0.0
    %741 = vmatprep.subr.mxu0 0.0
    %742 = vmatpush1.msra.mxu0 0.0
    %743 = vmatprep.subr.mxu0 0.0
    %744 = vmatpush1.msra.mxu0 0.0
    %745 = vmatprep.subr.mxu0 0.0
    %746 = vmatpush1.msra.mxu0 0.0
    %747 = vmatprep.subr.mxu0 0.0
    %748 = vmatpush1.msra.mxu0 0.0
    %749 = vmatprep.subr.mxu0 0.0
    %750 = vmatpush1.msra.mxu0 0.0
    %751 = vmatprep.subr.mxu0 0.0
    %752 = vmatpush1.msra.mxu0 0.0
    %753 = vmatprep.subr.mxu0 0.0
    %754 = vmatpush1.msra.mxu0 0.0
    %755 = vmatprep.subr.mxu0 0.0
    %756 = vmatpush1.msra.mxu0 0.0
    %757 = vmatprep.subr.mxu0 0.0
    %758 = vmatpush1.msra.mxu0 0.0
    %759 = vmatprep.subr.mxu0 0.0
    %760 = vmatpush1.msra.mxu0 0.0
    %761 = vmatprep.subr.mxu0 0.0
    %762 = vmatpush1.msra.mxu0 0.0
    %763 = vmatprep.subr.mxu0 0.0
    %764 = vmatpush1.msra.mxu0 0.0
    %765 = vmatprep.subr.mxu0 0.0
    %766 = vmatpush1.msra.mxu0 0.0
    %767 = vmatprep.subr.mxu0 0.0
    %768 = vmatpush1.msra.mxu0 0.0
    %769 = vmatprep.subr.mxu0 0.0
    %770 = vmatpush1.msra.mxu0 0.0
    %771 = vmatprep.subr.mxu0 0.0
    %772 = vmatpush1.msra.mxu0 0.0
    %773 = vmatprep.subr.mxu0 0.0
    %774 = vmatpush1.msra.mxu0 0.0
    %775 = vmatprep.subr.mxu0 0.0
    %776 = vmatpush1.msra.mxu0 0.0
    %777 = vmatprep.subr.mxu0 0.0
    %778 = vmatpush1.msra.mxu0 0.0
    %779 = vmatprep.subr.mxu0 0.0
    %780 = vmatpush1.msra.mxu0 0.0
    %781 = vmatprep.subr.mxu0 0.0
    %782 = vmatpush1.msra.mxu0 0.0
    %783 = vmatprep.mubr.f32.mxu0 0.0
    %784 = vmatmul.mubr.f32.gmra.mrb[0].mxu0 %v717
    %v785 = vpop.f32.mrb[0].mxu0
    %v786 = vadd.f32 %v714, %v785
    %v787 = vpop.f32.mrb[0].mxu0
    %v788 = vadd.f32 %v714, %v787
    %789 = vdwg.mxu0
    %790 = vmatprep.subr.mxu0 %v710
    %791 = vmatpush1.msra.mxu0 %v709
    %792 = vmatprep.subr.mxu0 %v711
    %793 = vmatpush1.msra.mxu0 %v710
    %794 = vmatprep.subr.mxu0 0.0
    %795 = vmatpush1.msra.mxu0 %v711
    %796 = vmatprep.subr.mxu0 0.0
    %797 = vmatpush1.msra.mxu0 0.0
    %798 = vmatprep.subr.mxu0 0.0
    %799 = vmatpush1.msra.mxu0 0.0
    %800 = vmatprep.subr.mxu0 0.0
    %801 = vmatpush1.msra.mxu0 0.0
    %802 = vmatprep.subr.mxu0 0.0
    %803 = vmatpush1.msra.mxu0 0.0
    %804 = vmatprep.subr.mxu0 0.0
    %805 = vmatpush1.msra.mxu0 0.0
    %806 = vmatprep.subr.mxu0 0.0
    %807 = vmatpush1.msra.mxu0 0.0
    %808 = vmatprep.subr.mxu0 0.0
    %809 = vmatpush1.msra.mxu0 0.0
    %810 = vmatprep.subr.mxu0 0.0
    %811 = vmatpush1.msra.mxu0 0.0
    %812 = vmatprep.subr.mxu0 0.0
    %813 = vmatpush1.msra.mxu0 0.0
    %814 = vmatprep.subr.mxu0 0.0
    %815 = vmatpush1.msra.mxu0 0.0
    %816 = vmatprep.subr.mxu0 0.0
    %817 = vmatpush1.msra.mxu0 0.0
    %818 = vmatprep.subr.mxu0 0.0
    %819 = vmatpush1.msra.mxu0 0.0
    %820 = vmatprep.subr.mxu0 0.0
    %821 = vmatpush1.msra.mxu0 0.0
    %822 = vmatprep.subr.mxu0 0.0
    %823 = vmatpush1.msra.mxu0 0.0
    %824 = vmatprep.subr.mxu0 0.0
    %825 = vmatpush1.msra.mxu0 0.0
    %826 = vmatprep.subr.mxu0 0.0
    %827 = vmatpush1.msra.mxu0 0.0
    %828 = vmatprep.subr.mxu0 0.0
    %829 = vmatpush1.msra.mxu0 0.0
    %830 = vmatprep.subr.mxu0 0.0
    %831 = vmatpush1.msra.mxu0 0.0
    %832 = vmatprep.subr.mxu0 0.0
    %833 = vmatpush1.msra.mxu0 0.0
    %834 = vmatprep.subr.mxu0 0.0
    %835 = vmatpush1.msra.mxu0 0.0
    %836 = vmatprep.subr.mxu0 0.0
    %837 = vmatpush1.msra.mxu0 0.0
    %838 = vmatprep.subr.mxu0 0.0
    %839 = vmatpush1.msra.mxu0 0.0
    %840 = vmatprep.subr.mxu0 0.0
    %841 = vmatpush1.msra.mxu0 0.0
    %842 = vmatprep.subr.mxu0 0.0
    %843 = vmatpush1.msra.mxu0 0.0
    %844 = vmatprep.subr.mxu0 0.0
    %845 = vmatpush1.msra.mxu0 0.0
    %846 = vmatprep.subr.mxu0 0.0
    %847 = vmatpush1.msra.mxu0 0.0
    %848 = vmatprep.subr.mxu0 0.0
    %849 = vmatpush1.msra.mxu0 0.0
    %850 = vmatprep.subr.mxu0 0.0
    %851 = vmatpush1.msra.mxu0 0.0
    %852 = vmatprep.subr.mxu0 0.0
    %853 = vmatpush1.msra.mxu0 0.0
    %854 = vmatprep.mubr.f32.mxu0 0.0
    %855 = vmatmul.mubr.f32.gmra.mrb[0].mxu0 %v717
    %v856 = vpop.f32.mrb[0].mxu0
    %v857 = vadd.f32 %v714, %v856
    %v858 = vpop.f32.mrb[0].mxu0
    %v859 = vadd.f32 %v714, %v858
    %860 = vdwg.mxu0
    %v861 = vadd.f32 %v242, %v786
    %v862 = vadd.f32 %v244, %v788
    %v863 = vadd.f32 %v313, %v857
    %v864 = vadd.f32 %v315, %v859
    %v865 = vld [vmem:[#allocation6 + $0x20] sm:$0xff]
    %v866 = vld [vmem:[#allocation6 + $0x28] sm:$0xff]
    %867 = vset.pattern.permute.xlu0 9
    %868 = vperm.xlu0 %867, %v42
    %v869 = vpop.permute.xlu0 %868
    %vm871 = vcmask 64512
    %v873 = vsel %vm871, %v865, 0
    %875 = vmatprep.subr.mxu0 %v862
    %876 = vmatpush1.msra.mxu0 %v861
    %877 = vmatprep.subr.mxu0 0.0
    %878 = vmatpush1.msra.mxu0 0.0
    %879 = vmatprep.subr.mxu0 0.0
    %880 = vmatpush1.msra.mxu0 0.0
    %881 = vmatprep.subr.mxu0 0.0
    %882 = vmatpush1.msra.mxu0 0.0
    %883 = vmatprep.subr.mxu0 0.0
    %884 = vmatpush1.msra.mxu0 0.0
    %885 = vmatprep.subr.mxu0 0.0
    %886 = vmatpush1.msra.mxu0 0.0
    %887 = vmatprep.subr.mxu0 0.0
    %888 = vmatpush1.msra.mxu0 0.0
    %889 = vmatprep.subr.mxu0 0.0
    %890 = vmatpush1.msra.mxu0 0.0
    %891 = vmatprep.subr.mxu0 0.0
    %892 = vmatpush1.msra.mxu0 0.0
    %893 = vmatprep.subr.mxu0 0.0
    %894 = vmatpush1.msra.mxu0 0.0
    %895 = vmatprep.subr.mxu0 0.0
    %896 = vmatpush1.msra.mxu0 0.0
    %897 = vmatprep.subr.mxu0 0.0
    %898 = vmatpush1.msra.mxu0 0.0
    %899 = vmatprep.subr.mxu0 0.0
    %900 = vmatpush1.msra.mxu0 0.0
    %901 = vmatprep.subr.mxu0 0.0
    %902 = vmatpush1.msra.mxu0 0.0
    %903 = vmatprep.subr.mxu0 0.0
    %904 = vmatpush1.msra.mxu0 0.0
    %905 = vmatprep.subr.mxu0 0.0
    %906 = vmatpush1.msra.mxu0 0.0
    %907 = vmatprep.subr.mxu0 0.0
    %908 = vmatpush1.msra.mxu0 0.0
    %909 = vmatprep.subr.mxu0 0.0
    %910 = vmatpush1.msra.mxu0 0.0
    %911 = vmatprep.subr.mxu0 0.0
    %912 = vmatpush1.msra.mxu0 0.0
    %913 = vmatprep.subr.mxu0 0.0
    %914 = vmatpush1.msra.mxu0 0.0
    %915 = vmatprep.subr.mxu0 0.0
    %916 = vmatpush1.msra.mxu0 0.0
    %917 = vmatprep.subr.mxu0 0.0
    %918 = vmatpush1.msra.mxu0 0.0
    %919 = vmatprep.subr.mxu0 0.0
    %920 = vmatpush1.msra.mxu0 0.0
    %921 = vmatprep.subr.mxu0 0.0
    %922 = vmatpush1.msra.mxu0 0.0
    %923 = vmatprep.subr.mxu0 0.0
    %924 = vmatpush1.msra.mxu0 0.0
    %925 = vmatprep.subr.mxu0 0.0
    %926 = vmatpush1.msra.mxu0 0.0
    %927 = vmatprep.subr.mxu0 0.0
    %928 = vmatpush1.msra.mxu0 0.0
    %929 = vmatprep.subr.mxu0 0.0
    %930 = vmatpush1.msra.mxu0 0.0
    %931 = vmatprep.subr.mxu0 0.0
    %932 = vmatpush1.msra.mxu0 0.0
    %933 = vmatprep.subr.mxu0 0.0
    %934 = vmatpush1.msra.mxu0 0.0
    %935 = vmatprep.subr.mxu0 0.0
    %936 = vmatpush1.msra.mxu0 0.0
    %937 = vmatprep.subr.mxu0 0.0
    %938 = vmatpush1.msra.mxu0 0.0
    %939 = vmatprep.mubr.f32.mxu0 0.0
    %940 = vmatmul.mubr.f32.gmra.mrb[0].mxu0 %v873
    %v941 = vpop.f32.mrb[0].mxu0
    %v942 = vadd.f32 %v869, %v941
    %v943 = vpop.f32.mrb[0].mxu0
    %v944 = vadd.f32 %v869, %v943
    %945 = vdwg.mxu0
    %946 = vmatprep.subr.mxu0 %v864
    %947 = vmatpush1.msra.mxu0 %v863
    %948 = vmatprep.subr.mxu0 0.0
    %949 = vmatpush1.msra.mxu0 0.0
    %950 = vmatprep.subr.mxu0 0.0
    %951 = vmatpush1.msra.mxu0 0.0
    %952 = vmatprep.subr.mxu0 0.0
    %953 = vmatpush1.msra.mxu0 0.0
    %954 = vmatprep.subr.mxu0 0.0
    %955 = vmatpush1.msra.mxu0 0.0
    %956 = vmatprep.subr.mxu0 0.0
    %957 = vmatpush1.msra.mxu0 0.0
    %958 = vmatprep.subr.mxu0 0.0
    %959 = vmatpush1.msra.mxu0 0.0
    %960 = vmatprep.subr.mxu0 0.0
    %961 = vmatpush1.msra.mxu0 0.0
    %962 = vmatprep.subr.mxu0 0.0
    %963 = vmatpush1.msra.mxu0 0.0
    %964 = vmatprep.subr.mxu0 0.0
    %965 = vmatpush1.msra.mxu0 0.0
    %966 = vmatprep.subr.mxu0 0.0
    %967 = vmatpush1.msra.mxu0 0.0
    %968 = vmatprep.subr.mxu0 0.0
    %969 = vmatpush1.msra.mxu0 0.0
    %970 = vmatprep.subr.mxu0 0.0
    %971 = vmatpush1.msra.mxu0 0.0
    %972 = vmatprep.subr.mxu0 0.0
    %973 = vmatpush1.msra.mxu0 0.0
    %974 = vmatprep.subr.mxu0 0.0
    %975 = vmatpush1.msra.mxu0 0.0
    %976 = vmatprep.subr.mxu0 0.0
    %977 = vmatpush1.msra.mxu0 0.0
    %978 = vmatprep.subr.mxu0 0.0
    %979 = vmatpush1.msra.mxu0 0.0
    %980 = vmatprep.subr.mxu0 0.0
    %981 = vmatpush1.msra.mxu0 0.0
    %982 = vmatprep.subr.mxu0 0.0
    %983 = vmatpush1.msra.mxu0 0.0
    %984 = vmatprep.subr.mxu0 0.0
    %985 = vmatpush1.msra.mxu0 0.0
    %986 = vmatprep.subr.mxu0 0.0
    %987 = vmatpush1.msra.mxu0 0.0
    %988 = vmatprep.subr.mxu0 0.0
    %989 = vmatpush1.msra.mxu0 0.0
    %990 = vmatprep.subr.mxu0 0.0
    %991 = vmatpush1.msra.mxu0 0.0
    %992 = vmatprep.subr.mxu0 0.0
    %993 = vmatpush1.msra.mxu0 0.0
    %994 = vmatprep.subr.mxu0 0.0
    %995 = vmatpush1.msra.mxu0 0.0
    %996 = vmatprep.subr.mxu0 0.0
    %997 = vmatpush1.msra.mxu0 0.0
    %998 = vmatprep.subr.mxu0 0.0
    %999 = vmatpush1.msra.mxu0 0.0
    %1000 = vmatprep.subr.mxu0 0.0
    %1001 = vmatpush1.msra.mxu0 0.0
    %1002 = vmatprep.subr.mxu0 0.0
    %1003 = vmatpush1.msra.mxu0 0.0
    %1004 = vmatprep.subr.mxu0 0.0
    %1005 = vmatpush1.msra.mxu0 0.0
    %1006 = vmatprep.subr.mxu0 0.0
    %1007 = vmatpush1.msra.mxu0 0.0
    %1008 = vmatprep.subr.mxu0 0.0
    %1009 = vmatpush1.msra.mxu0 0.0
    %1010 = vmatprep.mubr.f32.mxu0 0.0
    %1011 = vmatmul.mubr.f32.gmra.mrb[0].mxu0 %v873
    %v1012 = vpop.f32.mrb[0].mxu0
    %v1013 = vadd.f32 %v869, %v1012
    %v1014 = vpop.f32.mrb[0].mxu0
    %v1015 = vadd.f32 %v869, %v1014
    %1016 = vdwg.mxu0
    %vm1017 = vcmask 130048
    %v1019 = vsel %vm1017, %v866, 0
    %1021 = vmatprep.subr.mxu0 %v862
    %1022 = vmatpush1.msra.mxu0 %v861
    %1023 = vmatprep.subr.mxu0 %v863
    %1024 = vmatpush1.msra.mxu0 %v862
    %1025 = vmatprep.subr.mxu0 0.0
    %1026 = vmatpush1.msra.mxu0 0.0
    %1027 = vmatprep.subr.mxu0 0.0
    %1028 = vmatpush1.msra.mxu0 0.0
    %1029 = vmatprep.subr.mxu0 0.0
    %1030 = vmatpush1.msra.mxu0 0.0
    %1031 = vmatprep.subr.mxu0 0.0
    %1032 = vmatpush1.msra.mxu0 0.0
    %1033 = vmatprep.subr.mxu0 0.0
    %1034 = vmatpush1.msra.mxu0 0.0
    %1035 = vmatprep.subr.mxu0 0.0
    %1036 = vmatpush1.msra.mxu0 0.0
    %1037 = vmatprep.subr.mxu0 0.0
    %1038 = vmatpush1.msra.mxu0 0.0
    %1039 = vmatprep.subr.mxu0 0.0
    %1040 = vmatpush1.msra.mxu0 0.0
    %1041 = vmatprep.subr.mxu0 0.0
    %1042 = vmatpush1.msra.mxu0 0.0
    %1043 = vmatprep.subr.mxu0 0.0
    %1044 = vmatpush1.msra.mxu0 0.0
    %1045 = vmatprep.subr.mxu0 0.0
    %1046 = vmatpush1.msra.mxu0 0.0
    %1047 = vmatprep.subr.mxu0 0.0
    %1048 = vmatpush1.msra.mxu0 0.0
    %1049 = vmatprep.subr.mxu0 0.0
    %1050 = vmatpush1.msra.mxu0 0.0
    %1051 = vmatprep.subr.mxu0 0.0
    %1052 = vmatpush1.msra.mxu0 0.0
    %1053 = vmatprep.subr.mxu0 0.0
    %1054 = vmatpush1.msra.mxu0 0.0
    %1055 = vmatprep.subr.mxu0 0.0
    %1056 = vmatpush1.msra.mxu0 0.0
    %1057 = vmatprep.subr.mxu0 0.0
    %1058 = vmatpush1.msra.mxu0 0.0
    %1059 = vmatprep.subr.mxu0 0.0
    %1060 = vmatpush1.msra.mxu0 0.0
    %1061 = vmatprep.subr.mxu0 0.0
    %1062 = vmatpush1.msra.mxu0 0.0
    %1063 = vmatprep.subr.mxu0 0.0
    %1064 = vmatpush1.msra.mxu0 0.0
    %1065 = vmatprep.subr.mxu0 0.0
    %1066 = vmatpush1.msra.mxu0 0.0
    %1067 = vmatprep.subr.mxu0 0.0
    %1068 = vmatpush1.msra.mxu0 0.0
    %1069 = vmatprep.subr.mxu0 0.0
    %1070 = vmatpush1.msra.mxu0 0.0
    %1071 = vmatprep.subr.mxu0 0.0
    %1072 = vmatpush1.msra.mxu0 0.0
    %1073 = vmatprep.subr.mxu0 0.0
    %1074 = vmatpush1.msra.mxu0 0.0
    %1075 = vmatprep.subr.mxu0 0.0
    %1076 = vmatpush1.msra.mxu0 0.0
    %1077 = vmatprep.subr.mxu0 0.0
    %1078 = vmatpush1.msra.mxu0 0.0
    %1079 = vmatprep.subr.mxu0 0.0
    %1080 = vmatpush1.msra.mxu0 0.0
    %1081 = vmatprep.subr.mxu0 0.0
    %1082 = vmatpush1.msra.mxu0 0.0
    %1083 = vmatprep.subr.mxu0 0.0
    %1084 = vmatpush1.msra.mxu0 0.0
    %1085 = vmatprep.mubr.f32.mxu0 0.0
    %1086 = vmatmul.mubr.f32.gmra.mrb[0].mxu0 %v1019
    %v1087 = vpop.f32.mrb[0].mxu0
    %v1088 = vadd.f32 %v869, %v1087
    %v1089 = vpop.f32.mrb[0].mxu0
    %v1090 = vadd.f32 %v869, %v1089
    %1091 = vdwg.mxu0
    %1092 = vmatprep.subr.mxu0 %v864
    %1093 = vmatpush1.msra.mxu0 %v863
    %1094 = vmatprep.subr.mxu0 0.0
    %1095 = vmatpush1.msra.mxu0 %v864
    %1096 = vmatprep.subr.mxu0 0.0
    %1097 = vmatpush1.msra.mxu0 0.0
    %1098 = vmatprep.subr.mxu0 0.0
    %1099 = vmatpush1.msra.mxu0 0.0
    %1100 = vmatprep.subr.mxu0 0.0
    %1101 = vmatpush1.msra.mxu0 0.0
    %1102 = vmatprep.subr.mxu0 0.0
    %1103 = vmatpush1.msra.mxu0 0.0
    %1104 = vmatprep.subr.mxu0 0.0
    %1105 = vmatpush1.msra.mxu0 0.0
    %1106 = vmatprep.subr.mxu0 0.0
    %1107 = vmatpush1.msra.mxu0 0.0
    %1108 = vmatprep.subr.mxu0 0.0
    %1109 = vmatpush1.msra.mxu0 0.0
    %1110 = vmatprep.subr.mxu0 0.0
    %1111 = vmatpush1.msra.mxu0 0.0
    %1112 = vmatprep.subr.mxu0 0.0
    %1113 = vmatpush1.msra.mxu0 0.0
    %1114 = vmatprep.subr.mxu0 0.0
    %1115 = vmatpush1.msra.mxu0 0.0
    %1116 = vmatprep.subr.mxu0 0.0
    %1117 = vmatpush1.msra.mxu0 0.0
    %1118 = vmatprep.subr.mxu0 0.0
    %1119 = vmatpush1.msra.mxu0 0.0
    %1120 = vmatprep.subr.mxu0 0.0
    %1121 = vmatpush1.msra.mxu0 0.0
    %1122 = vmatprep.subr.mxu0 0.0
    %1123 = vmatpush1.msra.mxu0 0.0
    %1124 = vmatprep.subr.mxu0 0.0
    %1125 = vmatpush1.msra.mxu0 0.0
    %1126 = vmatprep.subr.mxu0 0.0
    %1127 = vmatpush1.msra.mxu0 0.0
    %1128 = vmatprep.subr.mxu0 0.0
    %1129 = vmatpush1.msra.mxu0 0.0
    %1130 = vmatprep.subr.mxu0 0.0
    %1131 = vmatpush1.msra.mxu0 0.0
    %1132 = vmatprep.subr.mxu0 0.0
    %1133 = vmatpush1.msra.mxu0 0.0
    %1134 = vmatprep.subr.mxu0 0.0
    %1135 = vmatpush1.msra.mxu0 0.0
    %1136 = vmatprep.subr.mxu0 0.0
    %1137 = vmatpush1.msra.mxu0 0.0
    %1138 = vmatprep.subr.mxu0 0.0
    %1139 = vmatpush1.msra.mxu0 0.0
    %1140 = vmatprep.subr.mxu0 0.0
    %1141 = vmatpush1.msra.mxu0 0.0
    %1142 = vmatprep.subr.mxu0 0.0
    %1143 = vmatpush1.msra.mxu0 0.0
    %1144 = vmatprep.subr.mxu0 0.0
    %1145 = vmatpush1.msra.mxu0 0.0
    %1146 = vmatprep.subr.mxu0 0.0
    %1147 = vmatpush1.msra.mxu0 0.0
    %1148 = vmatprep.subr.mxu0 0.0
    %1149 = vmatpush1.msra.mxu0 0.0
    %1150 = vmatprep.subr.mxu0 0.0
    %1151 = vmatpush1.msra.mxu0 0.0
    %1152 = vmatprep.subr.mxu0 0.0
    %1153 = vmatpush1.msra.mxu0 0.0
    %1154 = vmatprep.subr.mxu0 0.0
    %1155 = vmatpush1.msra.mxu0 0.0
    %1156 = vmatprep.mubr.f32.mxu0 0.0
    %1157 = vmatmul.mubr.f32.gmra.mrb[0].mxu0 %v1019
    %v1158 = vpop.f32.mrb[0].mxu0
    %v1159 = vadd.f32 %v869, %v1158
    %v1160 = vpop.f32.mrb[0].mxu0
    %v1161 = vadd.f32 %v869, %v1160
    %1162 = vdwg.mxu0
    %1163 = vst [vmem:[#allocation2] sm:$0xff] %v942
    %1164 = vst [vmem:[#allocation2 + $0x8] sm:$0xff] %v1088
    %1165 = vst [vmem:[#allocation2 + $0x10] sm:$0xff] %v944
    %1166 = vst [vmem:[#allocation2 + $0x18] sm:$0xff] %v1090
    %1167 = vst [vmem:[#allocation2 + $0x20] sm:$0xff] %v1013
    %1168 = vst [vmem:[#allocation2 + $0x28] sm:$0xff] %v1159
    %1169 = vst [vmem:[#allocation2 + $0x30] sm:$0xff] %v1015
    %1170 = vst [vmem:[#allocation2 + $0x38] sm:$0xff] %v1161
    %v1171 = vld [vmem:[#allocation2] sm:$0xff]
    %v1172 = vld [vmem:[#allocation2 + $0x8] sm:$0xff]
    %v1173 = vld [vmem:[#allocation2 + $0x10] sm:$0xff]
    %v1174 = vld [vmem:[#allocation2 + $0x18] sm:$0xff]
    %v1175 = vld [vmem:[#allocation2 + $0x20] sm:$0xff]
    %v1176 = vld [vmem:[#allocation2 + $0x28] sm:$0xff]
    %v1177 = vld [vmem:[#allocation2 + $0x30] sm:$0xff]
    %v1178 = vld [vmem:[#allocation2 + $0x38] sm:$0xff]
    %v1179 = vld [vmem:[#allocation6] sm:$0xff]
    %v1180 = vld [vmem:[#allocation6 + $0x30] sm:$0xf]
    %v1181 = vld [vmem:[#allocation6] sm:$0xf]
    %v1182 = vld [vmem:[#allocation6 + $0x38] sm:$0xf]
    %v1183 = vrot.slane %v1171, 4
    %v1184 = vadd.f32 %v1171, %v1183
    %v1185 = vrot.slane %v1184, 2
    %v1186 = vadd.f32 %v1184, %v1185
    %v1187 = vrot.slane %v1186, 1
    %v1188 = vadd.f32 %v1186, %v1187
    %v1189 = vrot.slane %v1172, 4
    %v1190 = vadd.f32 %v1172, %v1189
    %v1191 = vrot.slane %v1190, 2
    %v1192 = vadd.f32 %v1190, %v1191
    %v1193 = vrot.slane %v1192, 1
    %v1194 = vadd.f32 %v1192, %v1193
    %v1195 = vrot.slane %v1173, 4
    %v1196 = vadd.f32 %v1173, %v1195
    %v1197 = vrot.slane %v1196, 2
    %v1198 = vadd.f32 %v1196, %v1197
    %v1199 = vrot.slane %v1198, 1
    %v1200 = vadd.f32 %v1198, %v1199
    %v1201 = vrot.slane %v1174, 4
    %v1202 = vadd.f32 %v1174, %v1201
    %v1203 = vrot.slane %v1202, 2
    %v1204 = vadd.f32 %v1202, %v1203
    %v1205 = vrot.slane %v1204, 1
    %v1206 = vadd.f32 %v1204, %v1205
    %v1207 = vrot.slane %v1175, 4
    %v1208 = vadd.f32 %v1175, %v1207
    %v1209 = vrot.slane %v1208, 2
    %v1210 = vadd.f32 %v1208, %v1209
    %v1211 = vrot.slane %v1210, 1
    %v1212 = vadd.f32 %v1210, %v1211
    %v1213 = vrot.slane %v1176, 4
    %v1214 = vadd.f32 %v1176, %v1213
    %v1215 = vrot.slane %v1214, 2
    %v1216 = vadd.f32 %v1214, %v1215
    %v1217 = vrot.slane %v1216, 1
    %v1218 = vadd.f32 %v1216, %v1217
    %v1219 = vrot.slane %v1177, 4
    %v1220 = vadd.f32 %v1177, %v1219
    %v1221 = vrot.slane %v1220, 2
    %v1222 = vadd.f32 %v1220, %v1221
    %v1223 = vrot.slane %v1222, 1
    %v1224 = vadd.f32 %v1222, %v1223
    %v1225 = vrot.slane %v1178, 4
    %v1226 = vadd.f32 %v1178, %v1225
    %v1227 = vrot.slane %v1226, 2
    %v1228 = vadd.f32 %v1226, %v1227
    %v1229 = vrot.slane %v1228, 1
    %v1230 = vadd.f32 %v1228, %v1229
    %v1231 = vadd.f32 %v1188, %v1194
    %v1232 = vadd.f32 %v1200, %v1206
    %v1233 = vadd.f32 %v1212, %v1218
    %v1234 = vadd.f32 %v1224, %v1230
    %v1235 = vadd.f32 %v1231, %v1232
    %v1236 = vadd.f32 %v1233, %v1234
    %v1237 = vadd.f32 %v1235, %v1236
    %v1238 = vmul.f32 %v1237, 0.015625
    %v1239 = vlaneseq
    %v1240 = vshrl.u32 %v1239, 7
    %v1241 = vsub.s32 0, %v1240
    %v1242 = vrot.slane %v1238, %v1241
    %v1243 = vsub.f32 %v1171, %v1242
    %v1244 = vsub.f32 %v1172, %v1242
    %v1245 = vsub.f32 %v1173, %v1242
    %v1246 = vsub.f32 %v1174, %v1242
    %v1247 = vsub.f32 %v1175, %v1242
    %v1248 = vsub.f32 %v1176, %v1242
    %v1249 = vsub.f32 %v1177, %v1242
    %v1250 = vsub.f32 %v1178, %v1242
    %v1251 = vmul.f32 %v1243, %v1243
    %v1252 = vmul.f32 %v1244, %v1244
    %v1253 = vmul.f32 %v1245, %v1245
    %v1254 = vmul.f32 %v1246, %v1246
    %v1255 = vmul.f32 %v1247, %v1247
    %v1256 = vmul.f32 %v1248, %v1248
    %v1257 = vmul.f32 %v1249, %v1249
    %v1258 = vmul.f32 %v1250, %v1250
    %v1259 = vrot.slane %v1251, 4
    %v1260 = vadd.f32 %v1251, %v1259
    %v1261 = vrot.slane %v1260, 2
    %v1262 = vadd.f32 %v1260, %v1261
    %v1263 = vrot.slane %v1262, 1
    %v1264 = vadd.f32 %v1262, %v1263
    %v1265 = vrot.slane %v1252, 4
    %v1266 = vadd.f32 %v1252, %v1265
    %v1267 = vrot.slane %v1266, 2
    %v1268 = vadd.f32 %v1266, %v1267
    %v1269 = vrot.slane %v1268, 1
    %v1270 = vadd.f32 %v1268, %v1269
    %v1271 = vrot.slane %v1253, 4
    %v1272 = vadd.f32 %v1253, %v1271
    %v1273 = vrot.slane %v1272, 2
    %v1274 = vadd.f32 %v1272, %v1273
    %v1275 = vrot.slane %v1274, 1
    %v1276 = vadd.f32 %v1274, %v1275
    %v1277 = vrot.slane %v1254, 4
    %v1278 = vadd.f32 %v1254, %v1277
    %v1279 = vrot.slane %v1278, 2
    %v1280 = vadd.f32 %v1278, %v1279
    %v1281 = vrot.slane %v1280, 1
    %v1282 = vadd.f32 %v1280, %v1281
    %v1283 = vrot.slane %v1255, 4
    %v1284 = vadd.f32 %v1255, %v1283
    %v1285 = vrot.slane %v1284, 2
    %v1286 = vadd.f32 %v1284, %v1285
    %v1287 = vrot.slane %v1286, 1
    %v1288 = vadd.f32 %v1286, %v1287
    %v1289 = vrot.slane %v1256, 4
    %v1290 = vadd.f32 %v1256, %v1289
    %v1291 = vrot.slane %v1290, 2
    %v1292 = vadd.f32 %v1290, %v1291
    %v1293 = vrot.slane %v1292, 1
    %v1294 = vadd.f32 %v1292, %v1293
    %v1295 = vrot.slane %v1257, 4
    %v1296 = vadd.f32 %v1257, %v1295
    %v1297 = vrot.slane %v1296, 2
    %v1298 = vadd.f32 %v1296, %v1297
    %v1299 = vrot.slane %v1298, 1
    %v1300 = vadd.f32 %v1298, %v1299
    %v1301 = vrot.slane %v1258, 4
    %v1302 = vadd.f32 %v1258, %v1301
    %v1303 = vrot.slane %v1302, 2
    %v1304 = vadd.f32 %v1302, %v1303
    %v1305 = vrot.slane %v1304, 1
    %v1306 = vadd.f32 %v1304, %v1305
    %v1307 = vadd.f32 %v1264, %v1270
    %v1308 = vadd.f32 %v1276, %v1282
    %v1309 = vadd.f32 %v1288, %v1294
    %v1310 = vadd.f32 %v1300, %v1306
    %v1311 = vadd.f32 %v1307, %v1308
    %v1312 = vadd.f32 %v1309, %v1310
    %v1313 = vadd.f32 %v1311, %v1312
    %v1314 = vmul.f32 %v1313, 0.015625
    %v1315 = vadd.f32 %v1314, 1e-06
    %v1316 = vrsqrt.pop %v1315
    %v1317 = vlaneseq
    %v1318 = vshrl.u32 %v1317, 7
    %v1319 = vsub.s32 0, %v1318
    %v1320 = vrot.slane %v1316, %v1319
    %v1321 = vmul.f32 %v1243, %v1320
    %v1322 = vmul.f32 %v1244, %v1320
    %v1323 = vmul.f32 %v1245, %v1320
    %v1324 = vmul.f32 %v1246, %v1320
    %v1325 = vmul.f32 %v1247, %v1320
    %v1326 = vmul.f32 %v1248, %v1320
    %v1327 = vmul.f32 %v1249, %v1320
    %v1328 = vmul.f32 %v1250, %v1320
    %1330 = vset.pattern.permute.xlu0 10
    %1331 = vperm.xlu0 %1330, %v1179
    %v1332 = vpop.permute.xlu0 %1331
    %v1334 = vmul.f32 %v1321, %v1332
    %v1335 = vmul.f32 %v1322, %v1332
    %v1336 = vmul.f32 %v1323, %v1332
    %v1337 = vmul.f32 %v1324, %v1332
    %v1338 = vmul.f32 %v1325, %v1332
    %v1339 = vmul.f32 %v1326, %v1332
    %v1340 = vmul.f32 %v1327, %v1332
    %v1341 = vmul.f32 %v1328, %v1332
    %1342 = vset.pattern.permute.xlu0 11
    %1343 = vperm.xlu0 %1342, %v1179
    %v1344 = vpop.permute.xlu0 %1343
    %v1346 = vadd.f32 %v1334, %v1344
    %v1347 = vadd.f32 %v1335, %v1344
    %v1348 = vadd.f32 %v1336, %v1344
    %v1349 = vadd.f32 %v1337, %v1344
    %v1350 = vadd.f32 %v1338, %v1344
    %v1351 = vadd.f32 %v1339, %v1344
    %v1352 = vadd.f32 %v1340, %v1344
    %v1353 = vadd.f32 %v1341, %v1344
    %v1354 = vxor.u32 %v1346, 2147483648
    %v1355 = vxor.u32 %v1347, 2147483648
    %v1356 = vxor.u32 %v1348, 2147483648
    %v1357 = vxor.u32 %v1349, 2147483648
    %v1358 = vxor.u32 %v1350, 2147483648
    %v1359 = vxor.u32 %v1351, 2147483648
    %v1360 = vxor.u32 %v1352, 2147483648
    %v1361 = vxor.u32 %v1353, 2147483648
    %v1362 = vmul.f32 %v1354, 1.442695
    %v1363 = vpow.pop %v1362
    %v1364 = vmul.f32 %v1355, 1.442695
    %v1365 = vpow.pop %v1364
    %v1366 = vmul.f32 %v1356, 1.442695
    %v1367 = vpow.pop %v1366
    %v1368 = vmul.f32 %v1357, 1.442695
    %v1369 = vpow.pop %v1368
    %v1370 = vmul.f32 %v1358, 1.442695
    %v1371 = vpow.pop %v1370
    %v1372 = vmul.f32 %v1359, 1.442695
    %v1373 = vpow.pop %v1372
    %v1374 = vmul.f32 %v1360, 1.442695
    %v1375 = vpow.pop %v1374
    %v1376 = vmul.f32 %v1361, 1.442695
    %v1377 = vpow.pop %v1376
    %v1378 = vadd.f32 %v1363, 1.0
    %v1379 = vadd.f32 %v1365, 1.0
    %v1380 = vadd.f32 %v1367, 1.0
    %v1381 = vadd.f32 %v1369, 1.0
    %v1382 = vadd.f32 %v1371, 1.0
    %v1383 = vadd.f32 %v1373, 1.0
    %v1384 = vadd.f32 %v1375, 1.0
    %v1385 = vadd.f32 %v1377, 1.0
    %v1386 = vrcp.pop %v1378
    %v1387 = vmul.f32 1.0, %v1386
    %v1388 = vrcp.pop %v1379
    %v1389 = vmul.f32 1.0, %v1388
    %v1390 = vrcp.pop %v1380
    %v1391 = vmul.f32 1.0, %v1390
    %v1392 = vrcp.pop %v1381
    %v1393 = vmul.f32 1.0, %v1392
    %v1394 = vrcp.pop %v1382
    %v1395 = vmul.f32 1.0, %v1394
    %v1396 = vrcp.pop %v1383
    %v1397 = vmul.f32 1.0, %v1396
    %v1398 = vrcp.pop %v1384
    %v1399 = vmul.f32 1.0, %v1398
    %v1400 = vrcp.pop %v1385
    %v1401 = vmul.f32 1.0, %v1400
    %v1402 = vmul.f32 %v1346, %v1387
    %v1403 = vmul.f32 %v1347, %v1389
    %v1404 = vmul.f32 %v1348, %v1391
    %v1405 = vmul.f32 %v1349, %v1393
    %v1406 = vmul.f32 %v1350, %v1395
    %v1407 = vmul.f32 %v1351, %v1397
    %v1408 = vmul.f32 %v1352, %v1399
    %v1409 = vmul.f32 %v1353, %v1401
    %1411 = vset.pattern.permute.xlu0 12
    %1412 = vperm.xlu0 %1411, %v1181
    %v1413 = vpop.permute.xlu0 %1412
    %v1416 = vsel %vm171, %v1180, 0
    %1418 = vmatprep.subr.mxu0 %v1402
    %1419 = vmatpush1.msra.mxu0 0.0
    %1420 = vmatprep.subr.mxu0 %v1403
    %1421 = vmatpush1.msra.mxu0 %v1402
    %1422 = vmatprep.subr.mxu0 %v1404
    %1423 = vmatpush1.msra.mxu0 %v1403
    %1424 = vmatprep.subr.mxu0 0.0
    %1425 = vmatpush1.msra.mxu0 0.0
    %1426 = vmatprep.subr.mxu0 0.0
    %1427 = vmatpush1.msra.mxu0 0.0
    %1428 = vmatprep.subr.mxu0 0.0
    %1429 = vmatpush1.msra.mxu0 0.0
    %1430 = vmatprep.subr.mxu0 0.0
    %1431 = vmatpush1.msra.mxu0 0.0
    %1432 = vmatprep.subr.mxu0 0.0
    %1433 = vmatpush1.msra.mxu0 0.0
    %1434 = vmatprep.subr.mxu0 0.0
    %1435 = vmatpush1.msra.mxu0 0.0
    %1436 = vmatprep.subr.mxu0 0.0
    %1437 = vmatpush1.msra.mxu0 0.0
    %1438 = vmatprep.subr.mxu0 0.0
    %1439 = vmatpush1.msra.mxu0 0.0
    %1440 = vmatprep.subr.mxu0 0.0
    %1441 = vmatpush1.msra.mxu0 0.0
    %1442 = vmatprep.subr.mxu0 0.0
    %1443 = vmatpush1.msra.mxu0 0.0
    %1444 = vmatprep.subr.mxu0 0.0
    %1445 = vmatpush1.msra.mxu0 0.0
    %1446 = vmatprep.subr.mxu0 0.0
    %1447 = vmatpush1.msra.mxu0 0.0
    %1448 = vmatprep.subr.mxu0 0.0
    %1449 = vmatpush1.msra.mxu0 0.0
    %1450 = vmatprep.subr.mxu0 0.0
    %1451 = vmatpush1.msra.mxu0 0.0
    %1452 = vmatprep.subr.mxu0 0.0
    %1453 = vmatpush1.msra.mxu0 0.0
    %1454 = vmatprep.subr.mxu0 0.0
    %1455 = vmatpush1.msra.mxu0 0.0
    %1456 = vmatprep.subr.mxu0 0.0
    %1457 = vmatpush1.msra.mxu0 0.0
    %1458 = vmatprep.subr.mxu0 0.0
    %1459 = vmatpush1.msra.mxu0 0.0
    %1460 = vmatprep.subr.mxu0 0.0
    %1461 = vmatpush1.msra.mxu0 0.0
    %1462 = vmatprep.subr.mxu0 0.0
    %1463 = vmatpush1.msra.mxu0 0.0
    %1464 = vmatprep.subr.mxu0 0.0
    %1465 = vmatpush1.msra.mxu0 0.0
    %1466 = vmatprep.subr.mxu0 0.0
    %1467 = vmatpush1.msra.mxu0 0.0
    %1468 = vmatprep.subr.mxu0 0.0
    %1469 = vmatpush1.msra.mxu0 0.0
    %1470 = vmatprep.subr.mxu0 0.0
    %1471 = vmatpush1.msra.mxu0 0.0
    %1472 = vmatprep.subr.mxu0 0.0
    %1473 = vmatpush1.msra.mxu0 0.0
    %1474 = vmatprep.subr.mxu0 0.0
    %1475 = vmatpush1.msra.mxu0 0.0
    %1476 = vmatprep.subr.mxu0 0.0
    %1477 = vmatpush1.msra.mxu0 0.0
    %1478 = vmatprep.subr.mxu0 0.0
    %1479 = vmatpush1.msra.mxu0 0.0
    %1480 = vmatprep.subr.mxu0 0.0
    %1481 = vmatpush1.msra.mxu0 0.0
    %1482 = vmatprep.mubr.f32.mxu0 0.0
    %1483 = vmatmul.mubr.f32.gmra.mrb[0].mxu0 %v1416
    %v1484 = vpop.f32.mrb[0].mxu0
    %v1485 = vadd.f32 %v1413, %v1484
    %v1486 = vpop.f32.mrb[0].mxu0
    %v1487 = vadd.f32 %v1413, %v1486
    %1488 = vdwg.mxu0
    %1489 = vmatprep.subr.mxu0 %v1404
    %1490 = vmatpush1.msra.mxu0 %v1403
    %1491 = vmatprep.subr.mxu0 %v1405
    %1492 = vmatpush1.msra.mxu0 %v1404
    %1493 = vmatprep.subr.mxu0 %v1406
    %1494 = vmatpush1.msra.mxu0 %v1405
    %1495 = vmatprep.subr.mxu0 0.0
    %1496 = vmatpush1.msra.mxu0 0.0
    %1497 = vmatprep.subr.mxu0 0.0
    %1498 = vmatpush1.msra.mxu0 0.0
    %1499 = vmatprep.subr.mxu0 0.0
    %1500 = vmatpush1.msra.mxu0 0.0
    %1501 = vmatprep.subr.mxu0 0.0
    %1502 = vmatpush1.msra.mxu0 0.0
    %1503 = vmatprep.subr.mxu0 0.0
    %1504 = vmatpush1.msra.mxu0 0.0
    %1505 = vmatprep.subr.mxu0 0.0
    %1506 = vmatpush1.msra.mxu0 0.0
    %1507 = vmatprep.subr.mxu0 0.0
    %1508 = vmatpush1.msra.mxu0 0.0
    %1509 = vmatprep.subr.mxu0 0.0
    %1510 = vmatpush1.msra.mxu0 0.0
    %1511 = vmatprep.subr.mxu0 0.0
    %1512 = vmatpush1.msra.mxu0 0.0
    %1513 = vmatprep.subr.mxu0 0.0
    %1514 = vmatpush1.msra.mxu0 0.0
    %1515 = vmatprep.subr.mxu0 0.0
    %1516 = vmatpush1.msra.mxu0 0.0
    %1517 = vmatprep.subr.mxu0 0.0
    %1518 = vmatpush1.msra.mxu0 0.0
    %1519 = vmatprep.subr.mxu0 0.0
    %1520 = vmatpush1.msra.mxu0 0.0
    %1521 = vmatprep.subr.mxu0 0.0
    %1522 = vmatpush1.msra.mxu0 0.0
    %1523 = vmatprep.subr.mxu0 0.0
    %1524 = vmatpush1.msra.mxu0 0.0
    %1525 = vmatprep.subr.mxu0 0.0
    %1526 = vmatpush1.msra.mxu0 0.0
    %1527 = vmatprep.subr.mxu0 0.0
    %1528 = vmatpush1.msra.mxu0 0.0
    %1529 = vmatprep.subr.mxu0 0.0
    %1530 = vmatpush1.msra.mxu0 0.0
    %1531 = vmatprep.subr.mxu0 0.0
    %1532 = vmatpush1.msra.mxu0 0.0
    %1533 = vmatprep.subr.mxu0 0.0
    %1534 = vmatpush1.msra.mxu0 0.0
    %1535 = vmatprep.subr.mxu0 0.0
    %1536 = vmatpush1.msra.mxu0 0.0
    %1537 = vmatprep.subr.mxu0 0.0
    %1538 = vmatpush1.msra.mxu0 0.0
    %1539 = vmatprep.subr.mxu0 0.0
    %1540 = vmatpush1.msra.mxu0 0.0
    %1541 = vmatprep.subr.mxu0 0.0
    %1542 = vmatpush1.msra.mxu0 0.0
    %1543 = vmatprep.subr.mxu0 0.0
    %1544 = vmatpush1.msra.mxu0 0.0
    %1545 = vmatprep.subr.mxu0 0.0
    %1546 = vmatpush1.msra.mxu0 0.0
    %1547 = vmatprep.subr.mxu0 0.0
    %1548 = vmatpush1.msra.mxu0 0.0
    %1549 = vmatprep.subr.mxu0 0.0
    %1550 = vmatpush1.msra.mxu0 0.0
    %1551 = vmatprep.subr.mxu0 0.0
    %1552 = vmatpush1.msra.mxu0 0.0
    %1553 = vmatprep.mubr.f32.mxu0 0.0
    %1554 = vmatmul.mubr.f32.gmra.mrb[0].mxu0 %v1416
    %v1555 = vpop.f32.mrb[0].mxu0
    %v1556 = vadd.f32 %v1413, %v1555
    %v1557 = vpop.f32.mrb[0].mxu0
    %v1558 = vadd.f32 %v1413, %v1557
    %1559 = vdwg.mxu0
    %1560 = vmatprep.subr.mxu0 %v1406
    %1561 = vmatpush1.msra.mxu0 %v1405
    %1562 = vmatprep.subr.mxu0 %v1407
    %1563 = vmatpush1.msra.mxu0 %v1406
    %1564 = vmatprep.subr.mxu0 %v1408
    %1565 = vmatpush1.msra.mxu0 %v1407
    %1566 = vmatprep.subr.mxu0 0.0
    %1567 = vmatpush1.msra.mxu0 0.0
    %1568 = vmatprep.subr.mxu0 0.0
    %1569 = vmatpush1.msra.mxu0 0.0
    %1570 = vmatprep.subr.mxu0 0.0
    %1571 = vmatpush1.msra.mxu0 0.0
    %1572 = vmatprep.subr.mxu0 0.0
    %1573 = vmatpush1.msra.mxu0 0.0
    %1574 = vmatprep.subr.mxu0 0.0
    %1575 = vmatpush1.msra.mxu0 0.0
    %1576 = vmatprep.subr.mxu0 0.0
    %1577 = vmatpush1.msra.mxu0 0.0
    %1578 = vmatprep.subr.mxu0 0.0
    %1579 = vmatpush1.msra.mxu0 0.0
    %1580 = vmatprep.subr.mxu0 0.0
    %1581 = vmatpush1.msra.mxu0 0.0
    %1582 = vmatprep.subr.mxu0 0.0
    %1583 = vmatpush1.msra.mxu0 0.0
    %1584 = vmatprep.subr.mxu0 0.0
    %1585 = vmatpush1.msra.mxu0 0.0
    %1586 = vmatprep.subr.mxu0 0.0
    %1587 = vmatpush1.msra.mxu0 0.0
    %1588 = vmatprep.subr.mxu0 0.0
    %1589 = vmatpush1.msra.mxu0 0.0
    %1590 = vmatprep.subr.mxu0 0.0
    %1591 = vmatpush1.msra.mxu0 0.0
    %1592 = vmatprep.subr.mxu0 0.0
    %1593 = vmatpush1.msra.mxu0 0.0
    %1594 = vmatprep.subr.mxu0 0.0
    %1595 = vmatpush1.msra.mxu0 0.0
    %1596 = vmatprep.subr.mxu0 0.0
    %1597 = vmatpush1.msra.mxu0 0.0
    %1598 = vmatprep.subr.mxu0 0.0
    %1599 = vmatpush1.msra.mxu0 0.0
    %1600 = vmatprep.subr.mxu0 0.0
    %1601 = vmatpush1.msra.mxu0 0.0
    %1602 = vmatprep.subr.mxu0 0.0
    %1603 = vmatpush1.msra.mxu0 0.0
    %1604 = vmatprep.subr.mxu0 0.0
    %1605 = vmatpush1.msra.mxu0 0.0
    %1606 = vmatprep.subr.mxu0 0.0
    %1607 = vmatpush1.msra.mxu0 0.0
    %1608 = vmatprep.subr.mxu0 0.0
    %1609 = vmatpush1.msra.mxu0 0.0
    %1610 = vmatprep.subr.mxu0 0.0
    %1611 = vmatpush1.msra.mxu0 0.0
    %1612 = vmatprep.subr.mxu0 0.0
    %1613 = vmatpush1.msra.mxu0 0.0
    %1614 = vmatprep.subr.mxu0 0.0
    %1615 = vmatpush1.msra.mxu0 0.0
    %1616 = vmatprep.subr.mxu0 0.0
    %1617 = vmatpush1.msra.mxu0 0.0
    %1618 = vmatprep.subr.mxu0 0.0
    %1619 = vmatpush1.msra.mxu0 0.0
    %1620 = vmatprep.subr.mxu0 0.0
    %1621 = vmatpush1.msra.mxu0 0.0
    %1622 = vmatprep.subr.mxu0 0.0
    %1623 = vmatpush1.msra.mxu0 0.0
    %1624 = vmatprep.mubr.f32.mxu0 0.0
    %1625 = vmatmul.mubr.f32.gmra.mrb[0].mxu0 %v1416
    %v1626 = vpop.f32.mrb[0].mxu0
    %v1627 = vadd.f32 %v1413, %v1626
    %v1628 = vpop.f32.mrb[0].mxu0
    %v1629 = vadd.f32 %v1413, %v1628
    %1630 = vdwg.mxu0
    %1631 = vmatprep.subr.mxu0 %v1408
    %1632 = vmatpush1.msra.mxu0 %v1407
    %1633 = vmatprep.subr.mxu0 %v1409
    %1634 = vmatpush1.msra.mxu0 %v1408
    %1635 = vmatprep.subr.mxu0 0.0
    %1636 = vmatpush1.msra.mxu0 %v1409
    %1637 = vmatprep.subr.mxu0 0.0
    %1638 = vmatpush1.msra.mxu0 0.0
    %1639 = vmatprep.subr.mxu0 0.0
    %1640 = vmatpush1.msra.mxu0 0.0
    %1641 = vmatprep.subr.mxu0 0.0
    %1642 = vmatpush1.msra.mxu0 0.0
    %1643 = vmatprep.subr.mxu0 0.0
    %1644 = vmatpush1.msra.mxu0 0.0
    %1645 = vmatprep.subr.mxu0 0.0
    %1646 = vmatpush1.msra.mxu0 0.0
    %1647 = vmatprep.subr.mxu0 0.0
    %1648 = vmatpush1.msra.mxu0 0.0
    %1649 = vmatprep.subr.mxu0 0.0
    %1650 = vmatpush1.msra.mxu0 0.0
    %1651 = vmatprep.subr.mxu0 0.0
    %1652 = vmatpush1.msra.mxu0 0.0
    %1653 = vmatprep.subr.mxu0 0.0
    %1654 = vmatpush1.msra.mxu0 0.0
    %1655 = vmatprep.subr.mxu0 0.0
    %1656 = vmatpush1.msra.mxu0 0.0
    %1657 = vmatprep.subr.mxu0 0.0
    %1658 = vmatpush1.msra.mxu0 0.0
    %1659 = vmatprep.subr.mxu0 0.0
    %1660 = vmatpush1.msra.mxu0 0.0
    %1661 = vmatprep.subr.mxu0 0.0
    %1662 = vmatpush1.msra.mxu0 0.0
    %1663 = vmatprep.subr.mxu0 0.0
    %1664 = vmatpush1.msra.mxu0 0.0
    %1665 = vmatprep.subr.mxu0 0.0
    %1666 = vmatpush1.msra.mxu0 0.0
    %1667 = vmatprep.subr.mxu0 0.0
    %1668 = vmatpush1.msra.mxu0 0.0
    %1669 = vmatprep.subr.mxu0 0.0
    %1670 = vmatpush1.msra.mxu0 0.0
    %1671 = vmatprep.subr.mxu0 0.0
    %1672 = vmatpush1.msra.mxu0 0.0
    %1673 = vmatprep.subr.mxu0 0.0
    %1674 = vmatpush1.msra.mxu0 0.0
    %1675 = vmatprep.subr.mxu0 0.0
    %1676 = vmatpush1.msra.mxu0 0.0
    %1677 = vmatprep.subr.mxu0 0.0
    %1678 = vmatpush1.msra.mxu0 0.0
    %1679 = vmatprep.subr.mxu0 0.0
    %1680 = vmatpush1.msra.mxu0 0.0
    %1681 = vmatprep.subr.mxu0 0.0
    %1682 = vmatpush1.msra.mxu0 0.0
    %1683 = vmatprep.subr.mxu0 0.0
    %1684 = vmatpush1.msra.mxu0 0.0
    %1685 = vmatprep.subr.mxu0 0.0
    %1686 = vmatpush1.msra.mxu0 0.0
    %1687 = vmatprep.subr.mxu0 0.0
    %1688 = vmatpush1.msra.mxu0 0.0
    %1689 = vmatprep.subr.mxu0 0.0
    %1690 = vmatpush1.msra.mxu0 0.0
    %1691 = vmatprep.subr.mxu0 0.0
    %1692 = vmatpush1.msra.mxu0 0.0
    %1693 = vmatprep.subr.mxu0 0.0
    %1694 = vmatpush1.msra.mxu0 0.0
    %1695 = vmatprep.mubr.f32.mxu0 0.0
    %1696 = vmatmul.mubr.f32.gmra.mrb[0].mxu0 %v1416
    %v1697 = vpop.f32.mrb[0].mxu0
    %v1698 = vadd.f32 %v1413, %v1697
    %v1699 = vpop.f32.mrb[0].mxu0
    %v1700 = vadd.f32 %v1413, %v1699
    %1701 = vdwg.mxu0
    %vm1702 = vcmask 1043456
    %v1703 = vsel %vm1702, %v1485, 0.0
    %v1704 = vrot.slane %v1703, 4
    %v1705 = vadd.f32 %v1703, %v1704
    %v1706 = vrot.slane %v1705, 2
    %v1707 = vadd.f32 %v1705, %v1706
    %v1708 = vrot.slane %v1707, 1
    %v1709 = vadd.f32 %v1707, %v1708
    %v1710 = vsel %vm1702, %v1487, 0.0
    %v1711 = vrot.slane %v1710, 4
    %v1712 = vadd.f32 %v1710, %v1711
    %v1713 = vrot.slane %v1712, 2
    %v1714 = vadd.f32 %v1712, %v1713
    %v1715 = vrot.slane %v1714, 1
    %v1716 = vadd.f32 %v1714, %v1715
    %v1717 = vsel %vm1702, %v1556, 0.0
    %v1718 = vrot.slane %v1717, 4
    %v1719 = vadd.f32 %v1717, %v1718
    %v1720 = vrot.slane %v1719, 2
    %v1721 = vadd.f32 %v1719, %v1720
    %v1722 = vrot.slane %v1721, 1
    %v1723 = vadd.f32 %v1721, %v1722
    %v1724 = vsel %vm1702, %v1558, 0.0
    %v1725 = vrot.slane %v1724, 4
    %v1726 = vadd.f32 %v1724, %v1725
    %v1727 = vrot.slane %v1726, 2
    %v1728 = vadd.f32 %v1726, %v1727
    %v1729 = vrot.slane %v1728, 1
    %v1730 = vadd.f32 %v1728, %v1729
    %v1731 = vsel %vm1702, %v1627, 0.0
    %v1732 = vrot.slane %v1731, 4
    %v1733 = vadd.f32 %v1731, %v1732
    %v1734 = vrot.slane %v1733, 2
    %v1735 = vadd.f32 %v1733, %v1734
    %v1736 = vrot.slane %v1735, 1
    %v1737 = vadd.f32 %v1735, %v1736
    %v1738 = vsel %vm1702, %v1629, 0.0
    %v1739 = vrot.slane %v1738, 4
    %v1740 = vadd.f32 %v1738, %v1739
    %v1741 = vrot.slane %v1740, 2
    %v1742 = vadd.f32 %v1740, %v1741
    %v1743 = vrot.slane %v1742, 1
    %v1744 = vadd.f32 %v1742, %v1743
    %v1745 = vsel %vm1702, %v1698, 0.0
    %v1746 = vrot.slane %v1745, 4
    %v1747 = vadd.f32 %v1745, %v1746
    %v1748 = vrot.slane %v1747, 2
    %v1749 = vadd.f32 %v1747, %v1748
    %v1750 = vrot.slane %v1749, 1
    %v1751 = vadd.f32 %v1749, %v1750
    %v1752 = vsel %vm1702, %v1700, 0.0
    %v1753 = vrot.slane %v1752, 4
    %v1754 = vadd.f32 %v1752, %v1753
    %v1755 = vrot.slane %v1754, 2
    %v1756 = vadd.f32 %v1754, %v1755
    %v1757 = vrot.slane %v1756, 1
    %v1758 = vadd.f32 %v1756, %v1757
    %v1759 = vadd.f32 %v1709, %v1716
    %v1760 = vadd.f32 %v1723, %v1730
    %v1761 = vadd.f32 %v1737, %v1744
    %v1762 = vadd.f32 %v1751, %v1758
    %v1763 = vadd.f32 %v1759, %v1760
    %v1764 = vadd.f32 %v1761, %v1762
    %v1765 = vadd.f32 %v1763, %v1764
    %v1766 = vmul.f32 %v1765, 0.03125
    %v1767 = vlaneseq
    %v1768 = vshrl.u32 %v1767, 7
    %v1769 = vsub.s32 0, %v1768
    %v1770 = vrot.slane %v1766, %v1769
    %v1771 = vsub.f32 %v1485, %v1770
    %v1772 = vsub.f32 %v1487, %v1770
    %v1773 = vsub.f32 %v1556, %v1770
    %v1774 = vsub.f32 %v1558, %v1770
    %v1775 = vsub.f32 %v1627, %v1770
    %v1776 = vsub.f32 %v1629, %v1770
    %v1777 = vsub.f32 %v1698, %v1770
    %v1778 = vsub.f32 %v1700, %v1770
    %v1779 = vmul.f32 %v1771, %v1771
    %v1780 = vmul.f32 %v1772, %v1772
    %v1781 = vmul.f32 %v1773, %v1773
    %v1782 = vmul.f32 %v1774, %v1774
    %v1783 = vmul.f32 %v1775, %v1775
    %v1784 = vmul.f32 %v1776, %v1776
    %v1785 = vmul.f32 %v1777, %v1777
    %v1786 = vmul.f32 %v1778, %v1778
    %v1787 = vsel %vm1702, %v1779, 0.0
    %v1788 = vrot.slane %v1787, 4
    %v1789 = vadd.f32 %v1787, %v1788
    %v1790 = vrot.slane %v1789, 2
    %v1791 = vadd.f32 %v1789, %v1790
    %v1792 = vrot.slane %v1791, 1
    %v1793 = vadd.f32 %v1791, %v1792
    %v1794 = vsel %vm1702, %v1780, 0.0
    %v1795 = vrot.slane %v1794, 4
    %v1796 = vadd.f32 %v1794, %v1795
    %v1797 = vrot.slane %v1796, 2
    %v1798 = vadd.f32 %v1796, %v1797
    %v1799 = vrot.slane %v1798, 1
    %v1800 = vadd.f32 %v1798, %v1799
    %v1801 = vsel %vm1702, %v1781, 0.0
    %v1802 = vrot.slane %v1801, 4
    %v1803 = vadd.f32 %v1801, %v1802
    %v1804 = vrot.slane %v1803, 2
    %v1805 = vadd.f32 %v1803, %v1804
    %v1806 = vrot.slane %v1805, 1
    %v1807 = vadd.f32 %v1805, %v1806
    %v1808 = vsel %vm1702, %v1782, 0.0
    %v1809 = vrot.slane %v1808, 4
    %v1810 = vadd.f32 %v1808, %v1809
    %v1811 = vrot.slane %v1810, 2
    %v1812 = vadd.f32 %v1810, %v1811
    %v1813 = vrot.slane %v1812, 1
    %v1814 = vadd.f32 %v1812, %v1813
    %v1815 = vsel %vm1702, %v1783, 0.0
    %v1816 = vrot.slane %v1815, 4
    %v1817 = vadd.f32 %v1815, %v1816
    %v1818 = vrot.slane %v1817, 2
    %v1819 = vadd.f32 %v1817, %v1818
    %v1820 = vrot.slane %v1819, 1
    %v1821 = vadd.f32 %v1819, %v1820
    %v1822 = vsel %vm1702, %v1784, 0.0
    %v1823 = vrot.slane %v1822, 4
    %v1824 = vadd.f32 %v1822, %v1823
    %v1825 = vrot.slane %v1824, 2
    %v1826 = vadd.f32 %v1824, %v1825
    %v1827 = vrot.slane %v1826, 1
    %v1828 = vadd.f32 %v1826, %v1827
    %v1829 = vsel %vm1702, %v1785, 0.0
    %v1830 = vrot.slane %v1829, 4
    %v1831 = vadd.f32 %v1829, %v1830
    %v1832 = vrot.slane %v1831, 2
    %v1833 = vadd.f32 %v1831, %v1832
    %v1834 = vrot.slane %v1833, 1
    %v1835 = vadd.f32 %v1833, %v1834
    %v1836 = vsel %vm1702, %v1786, 0.0
    %v1837 = vrot.slane %v1836, 4
    %v1838 = vadd.f32 %v1836, %v1837
    %v1839 = vrot.slane %v1838, 2
    %v1840 = vadd.f32 %v1838, %v1839
    %v1841 = vrot.slane %v1840, 1
    %v1842 = vadd.f32 %v1840, %v1841
    %v1843 = vadd.f32 %v1793, %v1800
    %v1844 = vadd.f32 %v1807, %v1814
    %v1845 = vadd.f32 %v1821, %v1828
    %v1846 = vadd.f32 %v1835, %v1842
    %v1847 = vadd.f32 %v1843, %v1844
    %v1848 = vadd.f32 %v1845, %v1846
    %v1849 = vadd.f32 %v1847, %v1848
    %v1850 = vmul.f32 %v1849, 0.03125
    %v1851 = vadd.f32 %v1850, 1e-06
    %v1852 = vrsqrt.pop %v1851
    %v1853 = vlaneseq
    %v1854 = vshrl.u32 %v1853, 7
    %v1855 = vsub.s32 0, %v1854
    %v1856 = vrot.slane %v1852, %v1855
    %v1857 = vmul.f32 %v1771, %v1856
    %v1858 = vmul.f32 %v1772, %v1856
    %v1859 = vmul.f32 %v1773, %v1856
    %v1860 = vmul.f32 %v1774, %v1856
    %v1861 = vmul.f32 %v1775, %v1856
    %v1862 = vmul.f32 %v1776, %v1856
    %v1863 = vmul.f32 %v1777, %v1856
    %v1864 = vmul.f32 %v1778, %v1856
    %1865 = vset.pattern.permute.xlu0 13
    %1866 = vperm.xlu0 %1865, %v1181
    %v1867 = vpop.permute.xlu0 %1866
    %v1869 = vmul.f32 %v1857, %v1867
    %v1870 = vmul.f32 %v1858, %v1867
    %v1871 = vmul.f32 %v1859, %v1867
    %v1872 = vmul.f32 %v1860, %v1867
    %v1873 = vmul.f32 %v1861, %v1867
    %v1874 = vmul.f32 %v1862, %v1867
    %v1875 = vmul.f32 %v1863, %v1867
    %v1876 = vmul.f32 %v1864, %v1867
    %1877 = vset.pattern.permute.xlu0 14
    %1878 = vperm.xlu0 %1877, %v1181
    %v1879 = vpop.permute.xlu0 %1878
    %v1881 = vadd.f32 %v1869, %v1879
    %v1882 = vadd.f32 %v1870, %v1879
    %v1883 = vadd.f32 %v1871, %v1879
    %v1884 = vadd.f32 %v1872, %v1879
    %v1885 = vadd.f32 %v1873, %v1879
    %v1886 = vadd.f32 %v1874, %v1879
    %v1887 = vadd.f32 %v1875, %v1879
    %v1888 = vadd.f32 %v1876, %v1879
    %v1889 = vxor.u32 %v1881, 2147483648
    %v1890 = vxor.u32 %v1882, 2147483648
    %v1891 = vxor.u32 %v1883, 2147483648
    %v1892 = vxor.u32 %v1884, 2147483648
    %v1893 = vxor.u32 %v1885, 2147483648
    %v1894 = vxor.u32 %v1886, 2147483648
    %v1895 = vxor.u32 %v1887, 2147483648
    %v1896 = vxor.u32 %v1888, 2147483648
    %v1897 = vmul.f32 %v1889, 1.442695
    %v1898 = vpow.pop %v1897
    %v1899 = vmul.f32 %v1890, 1.442695
    %v1900 = vpow.pop %v1899
    %v1901 = vmul.f32 %v1891, 1.442695
    %v1902 = vpow.pop %v1901
    %v1903 = vmul.f32 %v1892, 1.442695
    %v1904 = vpow.pop %v1903
    %v1905 = vmul.f32 %v1893, 1.442695
    %v1906 = vpow.pop %v1905
    %v1907 = vmul.f32 %v1894, 1.442695
    %v1908 = vpow.pop %v1907
    %v1909 = vmul.f32 %v1895, 1.442695
    %v1910 = vpow.pop %v1909
    %v1911 = vmul.f32 %v1896, 1.442695
    %v1912 = vpow.pop %v1911
    %v1913 = vadd.f32 %v1898, 1.0
    %v1914 = vadd.f32 %v1900, 1.0
    %v1915 = vadd.f32 %v1902, 1.0
    %v1916 = vadd.f32 %v1904, 1.0
    %v1917 = vadd.f32 %v1906, 1.0
    %v1918 = vadd.f32 %v1908, 1.0
    %v1919 = vadd.f32 %v1910, 1.0
    %v1920 = vadd.f32 %v1912, 1.0
    %v1921 = vrcp.pop %v1913
    %v1922 = vmul.f32 1.0, %v1921
    %v1923 = vrcp.pop %v1914
    %v1924 = vmul.f32 1.0, %v1923
    %v1925 = vrcp.pop %v1915
    %v1926 = vmul.f32 1.0, %v1925
    %v1927 = vrcp.pop %v1916
    %v1928 = vmul.f32 1.0, %v1927
    %v1929 = vrcp.pop %v1917
    %v1930 = vmul.f32 1.0, %v1929
    %v1931 = vrcp.pop %v1918
    %v1932 = vmul.f32 1.0, %v1931
    %v1933 = vrcp.pop %v1919
    %v1934 = vmul.f32 1.0, %v1933
    %v1935 = vrcp.pop %v1920
    %v1936 = vmul.f32 1.0, %v1935
    %v1937 = vmul.f32 %v1881, %v1922
    %v1938 = vmul.f32 %v1882, %v1924
    %v1939 = vmul.f32 %v1883, %v1926
    %v1940 = vmul.f32 %v1884, %v1928
    %v1941 = vmul.f32 %v1885, %v1930
    %v1942 = vmul.f32 %v1886, %v1932
    %v1943 = vmul.f32 %v1887, %v1934
    %v1944 = vmul.f32 %v1888, %v1936
    %v1953 = vrot.slane %v1937, 4
    %v1954 = vrot.slane %v1938, 4
    %v1955 = vrot.slane %v1939, 4
    %v1956 = vrot.slane %v1940, 4
    %v1957 = vrot.slane %v1941, 4
    %v1958 = vrot.slane %v1942, 4
    %v1959 = vrot.slane %v1943, 4
    %v1960 = vrot.slane %v1944, 4
    %v1969 = vsel %vm1702, 0.0, %v1953
    %v1970 = vsel %vm1702, %v1937, %v1954
    %v1971 = vsel %vm1702, %v1938, %v1955
    %v1972 = vsel %vm1702, %v1939, %v1956
    %v1973 = vsel %vm1702, %v1940, %v1957
    %v1974 = vsel %vm1702, %v1941, %v1958
    %v1975 = vsel %vm1702, %v1942, %v1959
    %v1976 = vsel %vm1702, %v1943, %v1960
    %1977 = vset.pattern.permute.xlu0 15
    %1978 = vperm.xlu0 %1977, %v1181
    %v1979 = vpop.permute.xlu0 %1978
    %vm1981 = vcmask 97280
    %v1983 = vsel %vm1981, %v1182, 0
    %v1985 = vsel %vm1702, %v1938, 0
    %v1987 = vsel %vm1702, %v1939, 0
    %v1989 = vsel %vm1702, %v1940, 0
    %v1991 = vsel %vm1702, %v1941, 0
    %v1993 = vsel %vm1702, %v1942, 0
    %v1995 = vsel %vm1702, %v1943, 0
    %v1997 = vsel %vm1702, %v1944, 0
    %v2000 = vsel %vm1702, 0.0, 0
    %2002 = vmatprep.subr.mxu0 %v1970
    %2003 = vmatpush1.msra.mxu0 %v1969
    %2004 = vmatprep.subr.mxu0 %v1987
    %2005 = vmatpush1.msra.mxu0 %v1985
    %2006 = vmatprep.subr.mxu0 0.0
    %2007 = vmatpush1.msra.mxu0 0.0
    %2008 = vmatprep.subr.mxu0 0.0
    %2009 = vmatpush1.msra.mxu0 0.0
    %2010 = vmatprep.subr.mxu0 0.0
    %2011 = vmatpush1.msra.mxu0 0.0
    %2012 = vmatprep.subr.mxu0 0.0
    %2013 = vmatpush1.msra.mxu0 0.0
    %2014 = vmatprep.subr.mxu0 0.0
    %2015 = vmatpush1.msra.mxu0 0.0
    %2016 = vmatprep.subr.mxu0 0.0
    %2017 = vmatpush1.msra.mxu0 0.0
    %2018 = vmatprep.subr.mxu0 0.0
    %2019 = vmatpush1.msra.mxu0 0.0
    %2020 = vmatprep.subr.mxu0 0.0
    %2021 = vmatpush1.msra.mxu0 0.0
    %2022 = vmatprep.subr.mxu0 0.0
    %2023 = vmatpush1.msra.mxu0 0.0
    %2024 = vmatprep.subr.mxu0 0.0
    %2025 = vmatpush1.msra.mxu0 0.0
    %2026 = vmatprep.subr.mxu0 0.0
    %2027 = vmatpush1.msra.mxu0 0.0
    %2028 = vmatprep.subr.mxu0 0.0
    %2029 = vmatpush1.msra.mxu0 0.0
    %2030 = vmatprep.subr.mxu0 0.0
    %2031 = vmatpush1.msra.mxu0 0.0
    %2032 = vmatprep.subr.mxu0 0.0
    %2033 = vmatpush1.msra.mxu0 0.0
    %2034 = vmatprep.subr.mxu0 0.0
    %2035 = vmatpush1.msra.mxu0 0.0
    %2036 = vmatprep.subr.mxu0 0.0
    %2037 = vmatpush1.msra.mxu0 0.0
    %2038 = vmatprep.subr.mxu0 0.0
    %2039 = vmatpush1.msra.mxu0 0.0
    %2040 = vmatprep.subr.mxu0 0.0
    %2041 = vmatpush1.msra.mxu0 0.0
    %2042 = vmatprep.subr.mxu0 0.0
    %2043 = vmatpush1.msra.mxu0 0.0
    %2044 = vmatprep.subr.mxu0 0.0
    %2045 = vmatpush1.msra.mxu0 0.0
    %2046 = vmatprep.subr.mxu0 0.0
    %2047 = vmatpush1.msra.mxu0 0.0
    %2048 = vmatprep.subr.mxu0 0.0
    %2049 = vmatpush1.msra.mxu0 0.0
    %2050 = vmatprep.subr.mxu0 0.0
    %2051 = vmatpush1.msra.mxu0 0.0
    %2052 = vmatprep.subr.mxu0 0.0
    %2053 = vmatpush1.msra.mxu0 0.0
    %2054 = vmatprep.subr.mxu0 0.0
    %2055 = vmatpush1.msra.mxu0 0.0
    %2056 = vmatprep.subr.mxu0 0.0
    %2057 = vmatpush1.msra.mxu0 0.0
    %2058 = vmatprep.subr.mxu0 0.0
    %2059 = vmatpush1.msra.mxu0 0.0
    %2060 = vmatprep.subr.mxu0 0.0
    %2061 = vmatpush1.msra.mxu0 0.0
    %2062 = vmatprep.subr.mxu0 0.0
    %2063 = vmatpush1.msra.mxu0 0.0
    %2064 = vmatprep.subr.mxu0 0.0
    %2065 = vmatpush1.msra.mxu0 0.0
    %2066 = vmatprep.mubr.f32.mxu0 0.0
    %2067 = vmatmul.mubr.f32.gmra.mrb[0].mxu0 %v1983
    %v2068 = vpop.f32.mrb[0].mxu0
    %v2069 = vadd.f32 %v1979, %v2068
    %v2070 = vpop.f32.mrb[0].mxu0
    %v2071 = vadd.f32 %v1979, %v2070
    %2072 = vdwg.mxu0
    %2073 = vmatprep.subr.mxu0 %v1972
    %2074 = vmatpush1.msra.mxu0 %v1971
    %2075 = vmatprep.subr.mxu0 %v1991
    %2076 = vmatpush1.msra.mxu0 %v1989
    %2077 = vmatprep.subr.mxu0 0.0
    %2078 = vmatpush1.msra.mxu0 0.0
    %2079 = vmatprep.subr.mxu0 0.0
    %2080 = vmatpush1.msra.mxu0 0.0
    %2081 = vmatprep.subr.mxu0 0.0
    %2082 = vmatpush1.msra.mxu0 0.0
    %2083 = vmatprep.subr.mxu0 0.0
    %2084 = vmatpush1.msra.mxu0 0.0
    %2085 = vmatprep.subr.mxu0 0.0
    %2086 = vmatpush1.msra.mxu0 0.0
    %2087 = vmatprep.subr.mxu0 0.0
    %2088 = vmatpush1.msra.mxu0 0.0
    %2089 = vmatprep.subr.mxu0 0.0
    %2090 = vmatpush1.msra.mxu0 0.0
    %2091 = vmatprep.subr.mxu0 0.0
    %2092 = vmatpush1.msra.mxu0 0.0
    %2093 = vmatprep.subr.mxu0 0.0
    %2094 = vmatpush1.msra.mxu0 0.0
    %2095 = vmatprep.subr.mxu0 0.0
    %2096 = vmatpush1.msra.mxu0 0.0
    %2097 = vmatprep.subr.mxu0 0.0
    %2098 = vmatpush1.msra.mxu0 0.0
    %2099 = vmatprep.subr.mxu0 0.0
    %2100 = vmatpush1.msra.mxu0 0.0
    %2101 = vmatprep.subr.mxu0 0.0
    %2102 = vmatpush1.msra.mxu0 0.0
    %2103 = vmatprep.subr.mxu0 0.0
    %2104 = vmatpush1.msra.mxu0 0.0
    %2105 = vmatprep.subr.mxu0 0.0
    %2106 = vmatpush1.msra.mxu0 0.0
    %2107 = vmatprep.subr.mxu0 0.0
    %2108 = vmatpush1.msra.mxu0 0.0
    %2109 = vmatprep.subr.mxu0 0.0
    %2110 = vmatpush1.msra.mxu0 0.0
    %2111 = vmatprep.subr.mxu0 0.0
    %2112 = vmatpush1.msra.mxu0 0.0
    %2113 = vmatprep.subr.mxu0 0.0
    %2114 = vmatpush1.msra.mxu0 0.0
    %2115 = vmatprep.subr.mxu0 0.0
    %2116 = vmatpush1.msra.mxu0 0.0
    %2117 = vmatprep.subr.mxu0 0.0
    %2118 = vmatpush1.msra.mxu0 0.0
    %2119 = vmatprep.subr.mxu0 0.0
    %2120 = vmatpush1.msra.mxu0 0.0
    %2121 = vmatprep.subr.mxu0 0.0
    %2122 = vmatpush1.msra.mxu0 0.0
    %2123 = vmatprep.subr.mxu0 0.0
    %2124 = vmatpush1.msra.mxu0 0.0
    %2125 = vmatprep.subr.mxu0 0.0
    %2126 = vmatpush1.msra.mxu0 0.0
    %2127 = vmatprep.subr.mxu0 0.0
    %2128 = vmatpush1.msra.mxu0 0.0
    %2129 = vmatprep.subr.mxu0 0.0
    %2130 = vmatpush1.msra.mxu0 0.0
    %2131 = vmatprep.subr.mxu0 0.0
    %2132 = vmatpush1.msra.mxu0 0.0
    %2133 = vmatprep.subr.mxu0 0.0
    %2134 = vmatpush1.msra.mxu0 0.0
    %2135 = vmatprep.subr.mxu0 0.0
    %2136 = vmatpush1.msra.mxu0 0.0
    %2137 = vmatprep.mubr.f32.mxu0 0.0
    %2138 = vmatmul.mubr.f32.gmra.mrb[0].mxu0 %v1983
    %v2139 = vpop.f32.mrb[0].mxu0
    %v2140 = vadd.f32 %v1979, %v2139
    %v2141 = vpop.f32.mrb[0].mxu0
    %v2142 = vadd.f32 %v1979, %v2141
    %2143 = vdwg.mxu0
    %2144 = vmatprep.subr.mxu0 %v1974
    %2145 = vmatpush1.msra.mxu0 %v1973
    %2146 = vmatprep.subr.mxu0 %v1995
    %2147 = vmatpush1.msra.mxu0 %v1993
    %2148 = vmatprep.subr.mxu0 0.0
    %2149 = vmatpush1.msra.mxu0 0.0
    %2150 = vmatprep.subr.mxu0 0.0
    %2151 = vmatpush1.msra.mxu0 0.0
    %2152 = vmatprep.subr.mxu0 0.0
    %2153 = vmatpush1.msra.mxu0 0.0
    %2154 = vmatprep.subr.mxu0 0.0
    %2155 = vmatpush1.msra.mxu0 0.0
    %2156 = vmatprep.subr.mxu0 0.0
    %2157 = vmatpush1.msra.mxu0 0.0
    %2158 = vmatprep.subr.mxu0 0.0
    %2159 = vmatpush1.msra.mxu0 0.0
    %2160 = vmatprep.subr.mxu0 0.0
    %2161 = vmatpush1.msra.mxu0 0.0
    %2162 = vmatprep.subr.mxu0 0.0
    %2163 = vmatpush1.msra.mxu0 0.0
    %2164 = vmatprep.subr.mxu0 0.0
    %2165 = vmatpush1.msra.mxu0 0.0
    %2166 = vmatprep.subr.mxu0 0.0
    %2167 = vmatpush1.msra.mxu0 0.0
    %2168 = vmatprep.subr.mxu0 0.0
    %2169 = vmatpush1.msra.mxu0 0.0
    %2170 = vmatprep.subr.mxu0 0.0
    %2171 = vmatpush1.msra.mxu0 0.0
    %2172 = vmatprep.subr.mxu0 0.0
    %2173 = vmatpush1.msra.mxu0 0.0
    %2174 = vmatprep.subr.mxu0 0.0
    %2175 = vmatpush1.msra.mxu0 0.0
    %2176 = vmatprep.subr.mxu0 0.0
    %2177 = vmatpush1.msra.mxu0 0.0
    %2178 = vmatprep.subr.mxu0 0.0
    %2179 = vmatpush1.msra.mxu0 0.0
    %2180 = vmatprep.subr.mxu0 0.0
    %2181 = vmatpush1.msra.mxu0 0.0
    %2182 = vmatprep.subr.mxu0 0.0
    %2183 = vmatpush1.msra.mxu0 0.0
    %2184 = vmatprep.subr.mxu0 0.0
    %2185 = vmatpush1.msra.mxu0 0.0
    %2186 = vmatprep.subr.mxu0 0.0
    %2187 = vmatpush1.msra.mxu0 0.0
    %2188 = vmatprep.subr.mxu0 0.0
    %2189 = vmatpush1.msra.mxu0 0.0
    %2190 = vmatprep.subr.mxu0 0.0
    %2191 = vmatpush1.msra.mxu0 0.0
    %2192 = vmatprep.subr.mxu0 0.0
    %2193 = vmatpush1.msra.mxu0 0.0
    %2194 = vmatprep.subr.mxu0 0.0
    %2195 = vmatpush1.msra.mxu0 0.0
    %2196 = vmatprep.subr.mxu0 0.0
    %2197 = vmatpush1.msra.mxu0 0.0
    %2198 = vmatprep.subr.mxu0 0.0
    %2199 = vmatpush1.msra.mxu0 0.0
    %2200 = vmatprep.subr.mxu0 0.0
    %2201 = vmatpush1.msra.mxu0 0.0
    %2202 = vmatprep.subr.mxu0 0.0
    %2203 = vmatpush1.msra.mxu0 0.0
    %2204 = vmatprep.subr.mxu0 0.0
    %2205 = vmatpush1.msra.mxu0 0.0
    %2206 = vmatprep.subr.mxu0 0.0
    %2207 = vmatpush1.msra.mxu0 0.0
    %2208 = vmatprep.mubr.f32.mxu0 0.0
    %2209 = vmatmul.mubr.f32.gmra.mrb[0].mxu0 %v1983
    %v2210 = vpop.f32.mrb[0].mxu0
    %v2211 = vadd.f32 %v1979, %v2210
    %v2212 = vpop.f32.mrb[0].mxu0
    %v2213 = vadd.f32 %v1979, %v2212
    %2214 = vdwg.mxu0
    %2215 = vmatprep.subr.mxu0 %v1976
    %2216 = vmatpush1.msra.mxu0 %v1975
    %2217 = vmatprep.subr.mxu0 %v2000
    %2218 = vmatpush1.msra.mxu0 %v1997
    %2219 = vmatprep.subr.mxu0 0.0
    %2220 = vmatpush1.msra.mxu0 0.0
    %2221 = vmatprep.subr.mxu0 0.0
    %2222 = vmatpush1.msra.mxu0 0.0
    %2223 = vmatprep.subr.mxu0 0.0
    %2224 = vmatpush1.msra.mxu0 0.0
    %2225 = vmatprep.subr.mxu0 0.0
    %2226 = vmatpush1.msra.mxu0 0.0
    %2227 = vmatprep.subr.mxu0 0.0
    %2228 = vmatpush1.msra.mxu0 0.0
    %2229 = vmatprep.subr.mxu0 0.0
    %2230 = vmatpush1.msra.mxu0 0.0
    %2231 = vmatprep.subr.mxu0 0.0
    %2232 = vmatpush1.msra.mxu0 0.0
    %2233 = vmatprep.subr.mxu0 0.0
    %2234 = vmatpush1.msra.mxu0 0.0
    %2235 = vmatprep.subr.mxu0 0.0
    %2236 = vmatpush1.msra.mxu0 0.0
    %2237 = vmatprep.subr.mxu0 0.0
    %2238 = vmatpush1.msra.mxu0 0.0
    %2239 = vmatprep.subr.mxu0 0.0
    %2240 = vmatpush1.msra.mxu0 0.0
    %2241 = vmatprep.subr.mxu0 0.0
    %2242 = vmatpush1.msra.mxu0 0.0
    %2243 = vmatprep.subr.mxu0 0.0
    %2244 = vmatpush1.msra.mxu0 0.0
    %2245 = vmatprep.subr.mxu0 0.0
    %2246 = vmatpush1.msra.mxu0 0.0
    %2247 = vmatprep.subr.mxu0 0.0
    %2248 = vmatpush1.msra.mxu0 0.0
    %2249 = vmatprep.subr.mxu0 0.0
    %2250 = vmatpush1.msra.mxu0 0.0
    %2251 = vmatprep.subr.mxu0 0.0
    %2252 = vmatpush1.msra.mxu0 0.0
    %2253 = vmatprep.subr.mxu0 0.0
    %2254 = vmatpush1.msra.mxu0 0.0
    %2255 = vmatprep.subr.mxu0 0.0
    %2256 = vmatpush1.msra.mxu0 0.0
    %2257 = vmatprep.subr.mxu0 0.0
    %2258 = vmatpush1.msra.mxu0 0.0
    %2259 = vmatprep.subr.mxu0 0.0
    %2260 = vmatpush1.msra.mxu0 0.0
    %2261 = vmatprep.subr.mxu0 0.0
    %2262 = vmatpush1.msra.mxu0 0.0
    %2263 = vmatprep.subr.mxu0 0.0
    %2264 = vmatpush1.msra.mxu0 0.0
    %2265 = vmatprep.subr.mxu0 0.0
    %2266 = vmatpush1.msra.mxu0 0.0
    %2267 = vmatprep.subr.mxu0 0.0
    %2268 = vmatpush1.msra.mxu0 0.0
    %2269 = vmatprep.subr.mxu0 0.0
    %2270 = vmatpush1.msra.mxu0 0.0
    %2271 = vmatprep.subr.mxu0 0.0
    %2272 = vmatpush1.msra.mxu0 0.0
    %2273 = vmatprep.subr.mxu0 0.0
    %2274 = vmatpush1.msra.mxu0 0.0
    %2275 = vmatprep.subr.mxu0 0.0
    %2276 = vmatpush1.msra.mxu0 0.0
    %2277 = vmatprep.subr.mxu0 0.0
    %2278 = vmatpush1.msra.mxu0 0.0
    %2279 = vmatprep.mubr.f32.mxu0 0.0
    %2280 = vmatmul.mubr.f32.gmra.mrb[0].mxu0 %v1983
    %v2281 = vpop.f32.mrb[0].mxu0
    %v2282 = vadd.f32 %v1979, %v2281
    %v2283 = vpop.f32.mrb[0].mxu0
    %v2284 = vadd.f32 %v1979, %v2283
    %2285 = vdwg.mxu0
    %v2286 = vld [vmem:[#allocation6 + $0x40] sm:$0xf]
    %2287 = vset.pattern.permute.xlu0 16
    %2288 = vperm.xlu0 %2287, %v1181
    %v2289 = vpop.permute.xlu0 %2288
    %v2292 = vsel %vm871, %v2286, 0
    %2294 = vmatprep.subr.mxu0 %v1172
    %2295 = vmatpush1.msra.mxu0 %v1171
    %2296 = vmatprep.subr.mxu0 0.0
    %2297 = vmatpush1.msra.mxu0 0.0
    %2298 = vmatprep.subr.mxu0 0.0
    %2299 = vmatpush1.msra.mxu0 0.0
    %2300 = vmatprep.subr.mxu0 0.0
    %2301 = vmatpush1.msra.mxu0 0.0
    %2302 = vmatprep.subr.mxu0 0.0
    %2303 = vmatpush1.msra.mxu0 0.0
    %2304 = vmatprep.subr.mxu0 0.0
    %2305 = vmatpush1.msra.mxu0 0.0
    %2306 = vmatprep.subr.mxu0 0.0
    %2307 = vmatpush1.msra.mxu0 0.0
    %2308 = vmatprep.subr.mxu0 0.0
    %2309 = vmatpush1.msra.mxu0 0.0
    %2310 = vmatprep.subr.mxu0 0.0
    %2311 = vmatpush1.msra.mxu0 0.0
    %2312 = vmatprep.subr.mxu0 0.0
    %2313 = vmatpush1.msra.mxu0 0.0
    %2314 = vmatprep.subr.mxu0 0.0
    %2315 = vmatpush1.msra.mxu0 0.0
    %2316 = vmatprep.subr.mxu0 0.0
    %2317 = vmatpush1.msra.mxu0 0.0
    %2318 = vmatprep.subr.mxu0 0.0
    %2319 = vmatpush1.msra.mxu0 0.0
    %2320 = vmatprep.subr.mxu0 0.0
    %2321 = vmatpush1.msra.mxu0 0.0
    %2322 = vmatprep.subr.mxu0 0.0
    %2323 = vmatpush1.msra.mxu0 0.0
    %2324 = vmatprep.subr.mxu0 0.0
    %2325 = vmatpush1.msra.mxu0 0.0
    %2326 = vmatprep.subr.mxu0 0.0
    %2327 = vmatpush1.msra.mxu0 0.0
    %2328 = vmatprep.subr.mxu0 0.0
    %2329 = vmatpush1.msra.mxu0 0.0
    %2330 = vmatprep.subr.mxu0 0.0
    %2331 = vmatpush1.msra.mxu0 0.0
    %2332 = vmatprep.subr.mxu0 0.0
    %2333 = vmatpush1.msra.mxu0 0.0
    %2334 = vmatprep.subr.mxu0 0.0
    %2335 = vmatpush1.msra.mxu0 0.0
    %2336 = vmatprep.subr.mxu0 0.0
    %2337 = vmatpush1.msra.mxu0 0.0
    %2338 = vmatprep.subr.mxu0 0.0
    %2339 = vmatpush1.msra.mxu0 0.0
    %2340 = vmatprep.subr.mxu0 0.0
    %2341 = vmatpush1.msra.mxu0 0.0
    %2342 = vmatprep.subr.mxu0 0.0
    %2343 = vmatpush1.msra.mxu0 0.0
    %2344 = vmatprep.subr.mxu0 0.0
    %2345 = vmatpush1.msra.mxu0 0.0
    %2346 = vmatprep.subr.mxu0 0.0
    %2347 = vmatpush1.msra.mxu0 0.0
    %2348 = vmatprep.subr.mxu0 0.0
    %2349 = vmatpush1.msra.mxu0 0.0
    %2350 = vmatprep.subr.mxu0 0.0
    %2351 = vmatpush1.msra.mxu0 0.0
    %2352 = vmatprep.subr.mxu0 0.0
    %2353 = vmatpush1.msra.mxu0 0.0
    %2354 = vmatprep.subr.mxu0 0.0
    %2355 = vmatpush1.msra.mxu0 0.0
    %2356 = vmatprep.subr.mxu0 0.0
    %2357 = vmatpush1.msra.mxu0 0.0
    %2358 = vmatprep.mubr.f32.mxu0 0.0
    %2359 = vmatmul.mubr.f32.gmra.mrb[0].mxu0 %v2292
    %v2360 = vpop.f32.mrb[0].mxu0
    %v2361 = vadd.f32 %v2289, %v2360
    %v2362 = vpop.f32.mrb[0].mxu0
    %v2363 = vadd.f32 %v2289, %v2362
    %2364 = vdwg.mxu0
    %2365 = vmatprep.subr.mxu0 %v1174
    %2366 = vmatpush1.msra.mxu0 %v1173
    %2367 = vmatprep.subr.mxu0 0.0
    %2368 = vmatpush1.msra.mxu0 0.0
    %2369 = vmatprep.subr.mxu0 0.0
    %2370 = vmatpush1.msra.mxu0 0.0
    %2371 = vmatprep.subr.mxu0 0.0
    %2372 = vmatpush1.msra.mxu0 0.0
    %2373 = vmatprep.subr.mxu0 0.0
    %2374 = vmatpush1.msra.mxu0 0.0
    %2375 = vmatprep.subr.mxu0 0.0
    %2376 = vmatpush1.msra.mxu0 0.0
    %2377 = vmatprep.subr.mxu0 0.0
    %2378 = vmatpush1.msra.mxu0 0.0
    %2379 = vmatprep.subr.mxu0 0.0
    %2380 = vmatpush1.msra.mxu0 0.0
    %2381 = vmatprep.subr.mxu0 0.0
    %2382 = vmatpush1.msra.mxu0 0.0
    %2383 = vmatprep.subr.mxu0 0.0
    %2384 = vmatpush1.msra.mxu0 0.0
    %2385 = vmatprep.subr.mxu0 0.0
    %2386 = vmatpush1.msra.mxu0 0.0
    %2387 = vmatprep.subr.mxu0 0.0
    %2388 = vmatpush1.msra.mxu0 0.0
    %2389 = vmatprep.subr.mxu0 0.0
    %2390 = vmatpush1.msra.mxu0 0.0
    %2391 = vmatprep.subr.mxu0 0.0
    %2392 = vmatpush1.msra.mxu0 0.0
    %2393 = vmatprep.subr.mxu0 0.0
    %2394 = vmatpush1.msra.mxu0 0.0
    %2395 = vmatprep.subr.mxu0 0.0
    %2396 = vmatpush1.msra.mxu0 0.0
    %2397 = vmatprep.subr.mxu0 0.0
    %2398 = vmatpush1.msra.mxu0 0.0
    %2399 = vmatprep.subr.mxu0 0.0
    %2400 = vmatpush1.msra.mxu0 0.0
    %2401 = vmatprep.subr.mxu0 0.0
    %2402 = vmatpush1.msra.mxu0 0.0
    %2403 = vmatprep.subr.mxu0 0.0
    %2404 = vmatpush1.msra.mxu0 0.0
    %2405 = vmatprep.subr.mxu0 0.0
    %2406 = vmatpush1.msra.mxu0 0.0
    %2407 = vmatprep.subr.mxu0 0.0
    %2408 = vmatpush1.msra.mxu0 0.0
    %2409 = vmatprep.subr.mxu0 0.0
    %2410 = vmatpush1.msra.mxu0 0.0
    %2411 = vmatprep.subr.mxu0 0.0
    %2412 = vmatpush1.msra.mxu0 0.0
    %2413 = vmatprep.subr.mxu0 0.0
    %2414 = vmatpush1.msra.mxu0 0.0
    %2415 = vmatprep.subr.mxu0 0.0
    %2416 = vmatpush1.msra.mxu0 0.0
    %2417 = vmatprep.subr.mxu0 0.0
    %2418 = vmatpush1.msra.mxu0 0.0
    %2419 = vmatprep.subr.mxu0 0.0
    %2420 = vmatpush1.msra.mxu0 0.0
    %2421 = vmatprep.subr.mxu0 0.0
    %2422 = vmatpush1.msra.mxu0 0.0
    %2423 = vmatprep.subr.mxu0 0.0
    %2424 = vmatpush1.msra.mxu0 0.0
    %2425 = vmatprep.subr.mxu0 0.0
    %2426 = vmatpush1.msra.mxu0 0.0
    %2427 = vmatprep.subr.mxu0 0.0
    %2428 = vmatpush1.msra.mxu0 0.0
    %2429 = vmatprep.mubr.f32.mxu0 0.0
    %2430 = vmatmul.mubr.f32.gmra.mrb[0].mxu0 %v2292
    %v2431 = vpop.f32.mrb[0].mxu0
    %v2432 = vadd.f32 %v2289, %v2431
    %v2433 = vpop.f32.mrb[0].mxu0
    %v2434 = vadd.f32 %v2289, %v2433
    %2435 = vdwg.mxu0
    %2436 = vmatprep.subr.mxu0 %v1176
    %2437 = vmatpush1.msra.mxu0 %v1175
    %2438 = vmatprep.subr.mxu0 0.0
    %2439 = vmatpush1.msra.mxu0 0.0
    %2440 = vmatprep.subr.mxu0 0.0
    %2441 = vmatpush1.msra.mxu0 0.0
    %2442 = vmatprep.subr.mxu0 0.0
    %2443 = vmatpush1.msra.mxu0 0.0
    %2444 = vmatprep.subr.mxu0 0.0
    %2445 = vmatpush1.msra.mxu0 0.0
    %2446 = vmatprep.subr.mxu0 0.0
    %2447 = vmatpush1.msra.mxu0 0.0
    %2448 = vmatprep.subr.mxu0 0.0
    %2449 = vmatpush1.msra.mxu0 0.0
    %2450 = vmatprep.subr.mxu0 0.0
    %2451 = vmatpush1.msra.mxu0 0.0
    %2452 = vmatprep.subr.mxu0 0.0
    %2453 = vmatpush1.msra.mxu0 0.0
    %2454 = vmatprep.subr.mxu0 0.0
    %2455 = vmatpush1.msra.mxu0 0.0
    %2456 = vmatprep.subr.mxu0 0.0
    %2457 = vmatpush1.msra.mxu0 0.0
    %2458 = vmatprep.subr.mxu0 0.0
    %2459 = vmatpush1.msra.mxu0 0.0
    %2460 = vmatprep.subr.mxu0 0.0
    %2461 = vmatpush1.msra.mxu0 0.0
    %2462 = vmatprep.subr.mxu0 0.0
    %2463 = vmatpush1.msra.mxu0 0.0
    %2464 = vmatprep.subr.mxu0 0.0
    %2465 = vmatpush1.msra.mxu0 0.0
    %2466 = vmatprep.subr.mxu0 0.0
    %2467 = vmatpush1.msra.mxu0 0.0
    %2468 = vmatprep.subr.mxu0 0.0
    %2469 = vmatpush1.msra.mxu0 0.0
    %2470 = vmatprep.subr.mxu0 0.0
    %2471 = vmatpush1.msra.mxu0 0.0
    %2472 = vmatprep.subr.mxu0 0.0
    %2473 = vmatpush1.msra.mxu0 0.0
    %2474 = vmatprep.subr.mxu0 0.0
    %2475 = vmatpush1.msra.mxu0 0.0
    %2476 = vmatprep.subr.mxu0 0.0
    %2477 = vmatpush1.msra.mxu0 0.0
    %2478 = vmatprep.subr.mxu0 0.0
    %2479 = vmatpush1.msra.mxu0 0.0
    %2480 = vmatprep.subr.mxu0 0.0
    %2481 = vmatpush1.msra.mxu0 0.0
    %2482 = vmatprep.subr.mxu0 0.0
    %2483 = vmatpush1.msra.mxu0 0.0
    %2484 = vmatprep.subr.mxu0 0.0
    %2485 = vmatpush1.msra.mxu0 0.0
    %2486 = vmatprep.subr.mxu0 0.0
    %2487 = vmatpush1.msra.mxu0 0.0
    %2488 = vmatprep.subr.mxu0 0.0
    %2489 = vmatpush1.msra.mxu0 0.0
    %2490 = vmatprep.subr.mxu0 0.0
    %2491 = vmatpush1.msra.mxu0 0.0
    %2492 = vmatprep.subr.mxu0 0.0
    %2493 = vmatpush1.msra.mxu0 0.0
    %2494 = vmatprep.subr.mxu0 0.0
    %2495 = vmatpush1.msra.mxu0 0.0
    %2496 = vmatprep.subr.mxu0 0.0
    %2497 = vmatpush1.msra.mxu0 0.0
    %2498 = vmatprep.subr.mxu0 0.0
    %2499 = vmatpush1.msra.mxu0 0.0
    %2500 = vmatprep.mubr.f32.mxu0 0.0
    %2501 = vmatmul.mubr.f32.gmra.mrb[0].mxu0 %v2292
    %v2502 = vpop.f32.mrb[0].mxu0
    %v2503 = vadd.f32 %v2289, %v2502
    %v2504 = vpop.f32.mrb[0].mxu0
    %v2505 = vadd.f32 %v2289, %v2504
    %2506 = vdwg.mxu0
    %2507 = vmatprep.subr.mxu0 %v1178
    %2508 = vmatpush1.msra.mxu0 %v1177
    %2509 = vmatprep.subr.mxu0 0.0
    %2510 = vmatpush1.msra.mxu0 0.0
    %2511 = vmatprep.subr.mxu0 0.0
    %2512 = vmatpush1.msra.mxu0 0.0
    %2513 = vmatprep.subr.mxu0 0.0
    %2514 = vmatpush1.msra.mxu0 0.0
    %2515 = vmatprep.subr.mxu0 0.0
    %2516 = vmatpush1.msra.mxu0 0.0
    %2517 = vmatprep.subr.mxu0 0.0
    %2518 = vmatpush1.msra.mxu0 0.0
    %2519 = vmatprep.subr.mxu0 0.0
    %2520 = vmatpush1.msra.mxu0 0.0
    %2521 = vmatprep.subr.mxu0 0.0
    %2522 = vmatpush1.msra.mxu0 0.0
    %2523 = vmatprep.subr.mxu0 0.0
    %2524 = vmatpush1.msra.mxu0 0.0
    %2525 = vmatprep.subr.mxu0 0.0
    %2526 = vmatpush1.msra.mxu0 0.0
    %2527 = vmatprep.subr.mxu0 0.0
    %2528 = vmatpush1.msra.mxu0 0.0
    %2529 = vmatprep.subr.mxu0 0.0
    %2530 = vmatpush1.msra.mxu0 0.0
    %2531 = vmatprep.subr.mxu0 0.0
    %2532 = vmatpush1.msra.mxu0 0.0
    %2533 = vmatprep.subr.mxu0 0.0
    %2534 = vmatpush1.msra.mxu0 0.0
    %2535 = vmatprep.subr.mxu0 0.0
    %2536 = vmatpush1.msra.mxu0 0.0
    %2537 = vmatprep.subr.mxu0 0.0
    %2538 = vmatpush1.msra.mxu0 0.0
    %2539 = vmatprep.subr.mxu0 0.0
    %2540 = vmatpush1.msra.mxu0 0.0
    %2541 = vmatprep.subr.mxu0 0.0
    %2542 = vmatpush1.msra.mxu0 0.0
    %2543 = vmatprep.subr.mxu0 0.0
    %2544 = vmatpush1.msra.mxu0 0.0
    %2545 = vmatprep.subr.mxu0 0.0
    %2546 = vmatpush1.msra.mxu0 0.0
    %2547 = vmatprep.subr.mxu0 0.0
    %2548 = vmatpush1.msra.mxu0 0.0
    %2549 = vmatprep.subr.mxu0 0.0
    %2550 = vmatpush1.msra.mxu0 0.0
    %2551 = vmatprep.subr.mxu0 0.0
    %2552 = vmatpush1.msra.mxu0 0.0
    %2553 = vmatprep.subr.mxu0 0.0
    %2554 = vmatpush1.msra.mxu0 0.0
    %2555 = vmatprep.subr.mxu0 0.0
    %2556 = vmatpush1.msra.mxu0 0.0
    %2557 = vmatprep.subr.mxu0 0.0
    %2558 = vmatpush1.msra.mxu0 0.0
    %2559 = vmatprep.subr.mxu0 0.0
    %2560 = vmatpush1.msra.mxu0 0.0
    %2561 = vmatprep.subr.mxu0 0.0
    %2562 = vmatpush1.msra.mxu0 0.0
    %2563 = vmatprep.subr.mxu0 0.0
    %2564 = vmatpush1.msra.mxu0 0.0
    %2565 = vmatprep.subr.mxu0 0.0
    %2566 = vmatpush1.msra.mxu0 0.0
    %2567 = vmatprep.subr.mxu0 0.0
    %2568 = vmatpush1.msra.mxu0 0.0
    %2569 = vmatprep.subr.mxu0 0.0
    %2570 = vmatpush1.msra.mxu0 0.0
    %2571 = vmatprep.mubr.f32.mxu0 0.0
    %2572 = vmatmul.mubr.f32.gmra.mrb[0].mxu0 %v2292
    %v2573 = vpop.f32.mrb[0].mxu0
    %v2574 = vadd.f32 %v2289, %v2573
    %v2575 = vpop.f32.mrb[0].mxu0
    %v2576 = vadd.f32 %v2289, %v2575
    %2577 = vdwg.mxu0
    %v2578 = vadd.f32 %v2361, %v2069
    %v2579 = vadd.f32 %v2363, %v2071
    %v2580 = vadd.f32 %v2432, %v2140
    %v2581 = vadd.f32 %v2434, %v2142
    %v2582 = vadd.f32 %v2503, %v2211
    %v2583 = vadd.f32 %v2505, %v2213
    %v2584 = vadd.f32 %v2574, %v2282
    %v2585 = vadd.f32 %v2576, %v2284
    %v2586 = vld [vmem:[#allocation6 + $0x48] sm:$0xf]
    %v2587 = vld [vmem:[#allocation6 + $0x50] sm:$0xf]
    %v2588 = vsel %vm1702, %v2578, 0.0
    %v2589 = vrot.slane %v2588, 4
    %v2590 = vadd.f32 %v2588, %v2589
    %v2591 = vrot.slane %v2590, 2
    %v2592 = vadd.f32 %v2590, %v2591
    %v2593 = vrot.slane %v2592, 1
    %v2594 = vadd.f32 %v2592, %v2593
    %v2595 = vsel %vm1702, %v2579, 0.0
    %v2596 = vrot.slane %v2595, 4
    %v2597 = vadd.f32 %v2595, %v2596
    %v2598 = vrot.slane %v2597, 2
    %v2599 = vadd.f32 %v2597, %v2598
    %v2600 = vrot.slane %v2599, 1
    %v2601 = vadd.f32 %v2599, %v2600
    %v2602 = vsel %vm1702, %v2580, 0.0
    %v2603 = vrot.slane %v2602, 4
    %v2604 = vadd.f32 %v2602, %v2603
    %v2605 = vrot.slane %v2604, 2
    %v2606 = vadd.f32 %v2604, %v2605
    %v2607 = vrot.slane %v2606, 1
    %v2608 = vadd.f32 %v2606, %v2607
    %v2609 = vsel %vm1702, %v2581, 0.0
    %v2610 = vrot.slane %v2609, 4
    %v2611 = vadd.f32 %v2609, %v2610
    %v2612 = vrot.slane %v2611, 2
    %v2613 = vadd.f32 %v2611, %v2612
    %v2614 = vrot.slane %v2613, 1
    %v2615 = vadd.f32 %v2613, %v2614
    %v2616 = vsel %vm1702, %v2582, 0.0
    %v2617 = vrot.slane %v2616, 4
    %v2618 = vadd.f32 %v2616, %v2617
    %v2619 = vrot.slane %v2618, 2
    %v2620 = vadd.f32 %v2618, %v2619
    %v2621 = vrot.slane %v2620, 1
    %v2622 = vadd.f32 %v2620, %v2621
    %v2623 = vsel %vm1702, %v2583, 0.0
    %v2624 = vrot.slane %v2623, 4
    %v2625 = vadd.f32 %v2623, %v2624
    %v2626 = vrot.slane %v2625, 2
    %v2627 = vadd.f32 %v2625, %v2626
    %v2628 = vrot.slane %v2627, 1
    %v2629 = vadd.f32 %v2627, %v2628
    %v2630 = vsel %vm1702, %v2584, 0.0
    %v2631 = vrot.slane %v2630, 4
    %v2632 = vadd.f32 %v2630, %v2631
    %v2633 = vrot.slane %v2632, 2
    %v2634 = vadd.f32 %v2632, %v2633
    %v2635 = vrot.slane %v2634, 1
    %v2636 = vadd.f32 %v2634, %v2635
    %v2637 = vsel %vm1702, %v2585, 0.0
    %v2638 = vrot.slane %v2637, 4
    %v2639 = vadd.f32 %v2637, %v2638
    %v2640 = vrot.slane %v2639, 2
    %v2641 = vadd.f32 %v2639, %v2640
    %v2642 = vrot.slane %v2641, 1
    %v2643 = vadd.f32 %v2641, %v2642
    %v2644 = vadd.f32 %v2594, %v2601
    %v2645 = vadd.f32 %v2608, %v2615
    %v2646 = vadd.f32 %v2622, %v2629
    %v2647 = vadd.f32 %v2636, %v2643
    %v2648 = vadd.f32 %v2644, %v2645
    %v2649 = vadd.f32 %v2646, %v2647
    %v2650 = vadd.f32 %v2648, %v2649
    %v2651 = vmul.f32 %v2650, 0.03125
    %v2652 = vlaneseq
    %v2653 = vshrl.u32 %v2652, 7
    %v2654 = vsub.s32 0, %v2653
    %v2655 = vrot.slane %v2651, %v2654
    %v2656 = vsub.f32 %v2578, %v2655
    %v2657 = vsub.f32 %v2579, %v2655
    %v2658 = vsub.f32 %v2580, %v2655
    %v2659 = vsub.f32 %v2581, %v2655
    %v2660 = vsub.f32 %v2582, %v2655
    %v2661 = vsub.f32 %v2583, %v2655
    %v2662 = vsub.f32 %v2584, %v2655
    %v2663 = vsub.f32 %v2585, %v2655
    %v2664 = vmul.f32 %v2656, %v2656
    %v2665 = vmul.f32 %v2657, %v2657
    %v2666 = vmul.f32 %v2658, %v2658
    %v2667 = vmul.f32 %v2659, %v2659
    %v2668 = vmul.f32 %v2660, %v2660
    %v2669 = vmul.f32 %v2661, %v2661
    %v2670 = vmul.f32 %v2662, %v2662
    %v2671 = vmul.f32 %v2663, %v2663
    %v2672 = vsel %vm1702, %v2664, 0.0
    %v2673 = vrot.slane %v2672, 4
    %v2674 = vadd.f32 %v2672, %v2673
    %v2675 = vrot.slane %v2674, 2
    %v2676 = vadd.f32 %v2674, %v2675
    %v2677 = vrot.slane %v2676, 1
    %v2678 = vadd.f32 %v2676, %v2677
    %v2679 = vsel %vm1702, %v2665, 0.0
    %v2680 = vrot.slane %v2679, 4
    %v2681 = vadd.f32 %v2679, %v2680
    %v2682 = vrot.slane %v2681, 2
    %v2683 = vadd.f32 %v2681, %v2682
    %v2684 = vrot.slane %v2683, 1
    %v2685 = vadd.f32 %v2683, %v2684
    %v2686 = vsel %vm1702, %v2666, 0.0
    %v2687 = vrot.slane %v2686, 4
    %v2688 = vadd.f32 %v2686, %v2687
    %v2689 = vrot.slane %v2688, 2
    %v2690 = vadd.f32 %v2688, %v2689
    %v2691 = vrot.slane %v2690, 1
    %v2692 = vadd.f32 %v2690, %v2691
    %v2693 = vsel %vm1702, %v2667, 0.0
    %v2694 = vrot.slane %v2693, 4
    %v2695 = vadd.f32 %v2693, %v2694
    %v2696 = vrot.slane %v2695, 2
    %v2697 = vadd.f32 %v2695, %v2696
    %v2698 = vrot.slane %v2697, 1
    %v2699 = vadd.f32 %v2697, %v2698
    %v2700 = vsel %vm1702, %v2668, 0.0
    %v2701 = vrot.slane %v2700, 4
    %v2702 = vadd.f32 %v2700, %v2701
    %v2703 = vrot.slane %v2702, 2
    %v2704 = vadd.f32 %v2702, %v2703
    %v2705 = vrot.slane %v2704, 1
    %v2706 = vadd.f32 %v2704, %v2705
    %v2707 = vsel %vm1702, %v2669, 0.0
    %v2708 = vrot.slane %v2707, 4
    %v2709 = vadd.f32 %v2707, %v2708
    %v2710 = vrot.slane %v2709, 2
    %v2711 = vadd.f32 %v2709, %v2710
    %v2712 = vrot.slane %v2711, 1
    %v2713 = vadd.f32 %v2711, %v2712
    %v2714 = vsel %vm1702, %v2670, 0.0
    %v2715 = vrot.slane %v2714, 4
    %v2716 = vadd.f32 %v2714, %v2715
    %v2717 = vrot.slane %v2716, 2
    %v2718 = vadd.f32 %v2716, %v2717
    %v2719 = vrot.slane %v2718, 1
    %v2720 = vadd.f32 %v2718, %v2719
    %v2721 = vsel %vm1702, %v2671, 0.0
    %v2722 = vrot.slane %v2721, 4
    %v2723 = vadd.f32 %v2721, %v2722
    %v2724 = vrot.slane %v2723, 2
    %v2725 = vadd.f32 %v2723, %v2724
    %v2726 = vrot.slane %v2725, 1
    %v2727 = vadd.f32 %v2725, %v2726
    %v2728 = vadd.f32 %v2678, %v2685
    %v2729 = vadd.f32 %v2692, %v2699
    %v2730 = vadd.f32 %v2706, %v2713
    %v2731 = vadd.f32 %v2720, %v2727
    %v2732 = vadd.f32 %v2728, %v2729
    %v2733 = vadd.f32 %v2730, %v2731
    %v2734 = vadd.f32 %v2732, %v2733
    %v2735 = vmul.f32 %v2734, 0.03125
    %v2736 = vadd.f32 %v2735, 1e-06
    %v2737 = vrsqrt.pop %v2736
    %v2738 = vlaneseq
    %v2739 = vshrl.u32 %v2738, 7
    %v2740 = vsub.s32 0, %v2739
    %v2741 = vrot.slane %v2737, %v2740
    %v2742 = vmul.f32 %v2656, %v2741
    %v2743 = vmul.f32 %v2657, %v2741
    %v2744 = vmul.f32 %v2658, %v2741
    %v2745 = vmul.f32 %v2659, %v2741
    %v2746 = vmul.f32 %v2660, %v2741
    %v2747 = vmul.f32 %v2661, %v2741
    %v2748 = vmul.f32 %v2662, %v2741
    %v2749 = vmul.f32 %v2663, %v2741
    %2750 = vset.pattern.permute.xlu0 17
    %2751 = vperm.xlu0 %2750, %v1181
    %v2752 = vpop.permute.xlu0 %2751
    %v2754 = vmul.f32 %v2742, %v2752
    %v2755 = vmul.f32 %v2743, %v2752
    %v2756 = vmul.f32 %v2744, %v2752
    %v2757 = vmul.f32 %v2745, %v2752
    %v2758 = vmul.f32 %v2746, %v2752
    %v2759 = vmul.f32 %v2747, %v2752
    %v2760 = vmul.f32 %v2748, %v2752
    %v2761 = vmul.f32 %v2749, %v2752
    %2762 = vset.pattern.permute.xlu0 18
    %2763 = vperm.xlu0 %2762, %v1181
    %v2764 = vpop.permute.xlu0 %2763
    %v2766 = vadd.f32 %v2754, %v2764
    %v2767 = vadd.f32 %v2755, %v2764
    %v2768 = vadd.f32 %v2756, %v2764
    %v2769 = vadd.f32 %v2757, %v2764
    %v2770 = vadd.f32 %v2758, %v2764
    %v2771 = vadd.f32 %v2759, %v2764
    %v2772 = vadd.f32 %v2760, %v2764
    %v2773 = vadd.f32 %v2761, %v2764
    %v2774 = vxor.u32 %v2766, 2147483648
    %v2775 = vxor.u32 %v2767, 2147483648
    %v2776 = vxor.u32 %v2768, 2147483648
    %v2777 = vxor.u32 %v2769, 2147483648
    %v2778 = vxor.u32 %v2770, 2147483648
    %v2779 = vxor.u32 %v2771, 2147483648
    %v2780 = vxor.u32 %v2772, 2147483648
    %v2781 = vxor.u32 %v2773, 2147483648
    %v2782 = vmul.f32 %v2774, 1.442695
    %v2783 = vpow.pop %v2782
    %v2784 = vmul.f32 %v2775, 1.442695
    %v2785 = vpow.pop %v2784
    %v2786 = vmul.f32 %v2776, 1.442695
    %v2787 = vpow.pop %v2786
    %v2788 = vmul.f32 %v2777, 1.442695
    %v2789 = vpow.pop %v2788
    %v2790 = vmul.f32 %v2778, 1.442695
    %v2791 = vpow.pop %v2790
    %v2792 = vmul.f32 %v2779, 1.442695
    %v2793 = vpow.pop %v2792
    %v2794 = vmul.f32 %v2780, 1.442695
    %v2795 = vpow.pop %v2794
    %v2796 = vmul.f32 %v2781, 1.442695
    %v2797 = vpow.pop %v2796
    %v2798 = vadd.f32 %v2783, 1.0
    %v2799 = vadd.f32 %v2785, 1.0
    %v2800 = vadd.f32 %v2787, 1.0
    %v2801 = vadd.f32 %v2789, 1.0
    %v2802 = vadd.f32 %v2791, 1.0
    %v2803 = vadd.f32 %v2793, 1.0
    %v2804 = vadd.f32 %v2795, 1.0
    %v2805 = vadd.f32 %v2797, 1.0
    %v2806 = vrcp.pop %v2798
    %v2807 = vmul.f32 1.0, %v2806
    %v2808 = vrcp.pop %v2799
    %v2809 = vmul.f32 1.0, %v2808
    %v2810 = vrcp.pop %v2800
    %v2811 = vmul.f32 1.0, %v2810
    %v2812 = vrcp.pop %v2801
    %v2813 = vmul.f32 1.0, %v2812
    %v2814 = vrcp.pop %v2802
    %v2815 = vmul.f32 1.0, %v2814
    %v2816 = vrcp.pop %v2803
    %v2817 = vmul.f32 1.0, %v2816
    %v2818 = vrcp.pop %v2804
    %v2819 = vmul.f32 1.0, %v2818
    %v2820 = vrcp.pop %v2805
    %v2821 = vmul.f32 1.0, %v2820
    %v2822 = vmul.f32 %v2766, %v2807
    %v2823 = vmul.f32 %v2767, %v2809
    %v2824 = vmul.f32 %v2768, %v2811
    %v2825 = vmul.f32 %v2769, %v2813
    %v2826 = vmul.f32 %v2770, %v2815
    %v2827 = vmul.f32 %v2771, %v2817
    %v2828 = vmul.f32 %v2772, %v2819
    %v2829 = vmul.f32 %v2773, %v2821
    %v2838 = vrot.slane %v2822, 4
    %v2839 = vrot.slane %v2823, 4
    %v2840 = vrot.slane %v2824, 4
    %v2841 = vrot.slane %v2825, 4
    %v2842 = vrot.slane %v2826, 4
    %v2843 = vrot.slane %v2827, 4
    %v2844 = vrot.slane %v2828, 4
    %v2845 = vrot.slane %v2829, 4
    %v2854 = vsel %vm1702, 0.0, %v2838
    %v2855 = vsel %vm1702, %v2822, %v2839
    %v2856 = vsel %vm1702, %v2823, %v2840
    %v2857 = vsel %vm1702, %v2824, %v2841
    %v2858 = vsel %vm1702, %v2825, %v2842
    %v2859 = vsel %vm1702, %v2826, %v2843
    %v2860 = vsel %vm1702, %v2827, %v2844
    %v2861 = vsel %vm1702, %v2828, %v2845
    %2862 = vset.pattern.permute.xlu0 19
    %2863 = vperm.xlu0 %2862, %v1181
    %v2864 = vpop.permute.xlu0 %2863
    %v2867 = vsel %vm1981, %v2586, 0
    %v2869 = vsel %vm1702, %v2823, 0
    %v2871 = vsel %vm1702, %v2824, 0
    %v2873 = vsel %vm1702, %v2825, 0
    %v2875 = vsel %vm1702, %v2826, 0
    %v2877 = vsel %vm1702, %v2827, 0
    %v2879 = vsel %vm1702, %v2828, 0
    %v2881 = vsel %vm1702, %v2829, 0
    %2883 = vmatprep.subr.mxu0 %v2855
    %2884 = vmatpush1.msra.mxu0 %v2854
    %2885 = vmatprep.subr.mxu0 %v2871
    %2886 = vmatpush1.msra.mxu0 %v2869
    %2887 = vmatprep.subr.mxu0 0.0
    %2888 = vmatpush1.msra.mxu0 0.0
    %2889 = vmatprep.subr.mxu0 0.0
    %2890 = vmatpush1.msra.mxu0 0.0
    %2891 = vmatprep.subr.mxu0 0.0
    %2892 = vmatpush1.msra.mxu0 0.0
    %2893 = vmatprep.subr.mxu0 0.0
    %2894 = vmatpush1.msra.mxu0 0.0
    %2895 = vmatprep.subr.mxu0 0.0
    %2896 = vmatpush1.msra.mxu0 0.0
    %2897 = vmatprep.subr.mxu0 0.0
    %2898 = vmatpush1.msra.mxu0 0.0
    %2899 = vmatprep.subr.mxu0 0.0
    %2900 = vmatpush1.msra.mxu0 0.0
    %2901 = vmatprep.subr.mxu0 0.0
    %2902 = vmatpush1.msra.mxu0 0.0
    %2903 = vmatprep.subr.mxu0 0.0
    %2904 = vmatpush1.msra.mxu0 0.0
    %2905 = vmatprep.subr.mxu0 0.0
    %2906 = vmatpush1.msra.mxu0 0.0
    %2907 = vmatprep.subr.mxu0 0.0
    %2908 = vmatpush1.msra.mxu0 0.0
    %2909 = vmatprep.subr.mxu0 0.0
    %2910 = vmatpush1.msra.mxu0 0.0
    %2911 = vmatprep.subr.mxu0 0.0
    %2912 = vmatpush1.msra.mxu0 0.0
    %2913 = vmatprep.subr.mxu0 0.0
    %2914 = vmatpush1.msra.mxu0 0.0
    %2915 = vmatprep.subr.mxu0 0.0
    %2916 = vmatpush1.msra.mxu0 0.0
    %2917 = vmatprep.subr.mxu0 0.0
    %2918 = vmatpush1.msra.mxu0 0.0
    %2919 = vmatprep.subr.mxu0 0.0
    %2920 = vmatpush1.msra.mxu0 0.0
    %2921 = vmatprep.subr.mxu0 0.0
    %2922 = vmatpush1.msra.mxu0 0.0
    %2923 = vmatprep.subr.mxu0 0.0
    %2924 = vmatpush1.msra.mxu0 0.0
    %2925 = vmatprep.subr.mxu0 0.0
    %2926 = vmatpush1.msra.mxu0 0.0
    %2927 = vmatprep.subr.mxu0 0.0
    %2928 = vmatpush1.msra.mxu0 0.0
    %2929 = vmatprep.subr.mxu0 0.0
    %2930 = vmatpush1.msra.mxu0 0.0
    %2931 = vmatprep.subr.mxu0 0.0
    %2932 = vmatpush1.msra.mxu0 0.0
    %2933 = vmatprep.subr.mxu0 0.0
    %2934 = vmatpush1.msra.mxu0 0.0
    %2935 = vmatprep.subr.mxu0 0.0
    %2936 = vmatpush1.msra.mxu0 0.0
    %2937 = vmatprep.subr.mxu0 0.0
    %2938 = vmatpush1.msra.mxu0 0.0
    %2939 = vmatprep.subr.mxu0 0.0
    %2940 = vmatpush1.msra.mxu0 0.0
    %2941 = vmatprep.subr.mxu0 0.0
    %2942 = vmatpush1.msra.mxu0 0.0
    %2943 = vmatprep.subr.mxu0 0.0
    %2944 = vmatpush1.msra.mxu0 0.0
    %2945 = vmatprep.subr.mxu0 0.0
    %2946 = vmatpush1.msra.mxu0 0.0
    %2947 = vmatprep.mubr.f32.mxu0 0.0
    %2948 = vmatmul.mubr.f32.gmra.mrb[0].mxu0 %v2867
    %v2949 = vpop.f32.mrb[0].mxu0
    %v2950 = vadd.f32 %v2864, %v2949
    %v2951 = vpop.f32.mrb[0].mxu0
    %v2952 = vadd.f32 %v2864, %v2951
    %2953 = vdwg.mxu0
    %2954 = vmatprep.subr.mxu0 %v2857
    %2955 = vmatpush1.msra.mxu0 %v2856
    %2956 = vmatprep.subr.mxu0 %v2875
    %2957 = vmatpush1.msra.mxu0 %v2873
    %2958 = vmatprep.subr.mxu0 0.0
    %2959 = vmatpush1.msra.mxu0 0.0
    %2960 = vmatprep.subr.mxu0 0.0
    %2961 = vmatpush1.msra.mxu0 0.0
    %2962 = vmatprep.subr.mxu0 0.0
    %2963 = vmatpush1.msra.mxu0 0.0
    %2964 = vmatprep.subr.mxu0 0.0
    %2965 = vmatpush1.msra.mxu0 0.0
    %2966 = vmatprep.subr.mxu0 0.0
    %2967 = vmatpush1.msra.mxu0 0.0
    %2968 = vmatprep.subr.mxu0 0.0
    %2969 = vmatpush1.msra.mxu0 0.0
    %2970 = vmatprep.subr.mxu0 0.0
    %2971 = vmatpush1.msra.mxu0 0.0
    %2972 = vmatprep.subr.mxu0 0.0
    %2973 = vmatpush1.msra.mxu0 0.0
    %2974 = vmatprep.subr.mxu0 0.0
    %2975 = vmatpush1.msra.mxu0 0.0
    %2976 = vmatprep.subr.mxu0 0.0
    %2977 = vmatpush1.msra.mxu0 0.0
    %2978 = vmatprep.subr.mxu0 0.0
    %2979 = vmatpush1.msra.mxu0 0.0
    %2980 = vmatprep.subr.mxu0 0.0
    %2981 = vmatpush1.msra.mxu0 0.0
    %2982 = vmatprep.subr.mxu0 0.0
    %2983 = vmatpush1.msra.mxu0 0.0
    %2984 = vmatprep.subr.mxu0 0.0
    %2985 = vmatpush1.msra.mxu0 0.0
    %2986 = vmatprep.subr.mxu0 0.0
    %2987 = vmatpush1.msra.mxu0 0.0
    %2988 = vmatprep.subr.mxu0 0.0
    %2989 = vmatpush1.msra.mxu0 0.0
    %2990 = vmatprep.subr.mxu0 0.0
    %2991 = vmatpush1.msra.mxu0 0.0
    %2992 = vmatprep.subr.mxu0 0.0
    %2993 = vmatpush1.msra.mxu0 0.0
    %2994 = vmatprep.subr.mxu0 0.0
    %2995 = vmatpush1.msra.mxu0 0.0
    %2996 = vmatprep.subr.mxu0 0.0
    %2997 = vmatpush1.msra.mxu0 0.0
    %2998 = vmatprep.subr.mxu0 0.0
    %2999 = vmatpush1.msra.mxu0 0.0
    %3000 = vmatprep.subr.mxu0 0.0
    %3001 = vmatpush1.msra.mxu0 0.0
    %3002 = vmatprep.subr.mxu0 0.0
    %3003 = vmatpush1.msra.mxu0 0.0
    %3004 = vmatprep.subr.mxu0 0.0
    %3005 = vmatpush1.msra.mxu0 0.0
    %3006 = vmatprep.subr.mxu0 0.0
    %3007 = vmatpush1.msra.mxu0 0.0
    %3008 = vmatprep.subr.mxu0 0.0
    %3009 = vmatpush1.msra.mxu0 0.0
    %3010 = vmatprep.subr.mxu0 0.0
    %3011 = vmatpush1.msra.mxu0 0.0
    %3012 = vmatprep.subr.mxu0 0.0
    %3013 = vmatpush1.msra.mxu0 0.0
    %3014 = vmatprep.subr.mxu0 0.0
    %3015 = vmatpush1.msra.mxu0 0.0
    %3016 = vmatprep.subr.mxu0 0.0
    %3017 = vmatpush1.msra.mxu0 0.0
    %3018 = vmatprep.mubr.f32.mxu0 0.0
    %3019 = vmatmul.mubr.f32.gmra.mrb[0].mxu0 %v2867
    %v3020 = vpop.f32.mrb[0].mxu0
    %v3021 = vadd.f32 %v2864, %v3020
    %v3022 = vpop.f32.mrb[0].mxu0
    %v3023 = vadd.f32 %v2864, %v3022
    %3024 = vdwg.mxu0
    %3025 = vmatprep.subr.mxu0 %v2859
    %3026 = vmatpush1.msra.mxu0 %v2858
    %3027 = vmatprep.subr.mxu0 %v2879
    %3028 = vmatpush1.msra.mxu0 %v2877
    %3029 = vmatprep.subr.mxu0 0.0
    %3030 = vmatpush1.msra.mxu0 0.0
    %3031 = vmatprep.subr.mxu0 0.0
    %3032 = vmatpush1.msra.mxu0 0.0
    %3033 = vmatprep.subr.mxu0 0.0
    %3034 = vmatpush1.msra.mxu0 0.0
    %3035 = vmatprep.subr.mxu0 0.0
    %3036 = vmatpush1.msra.mxu0 0.0
    %3037 = vmatprep.subr.mxu0 0.0
    %3038 = vmatpush1.msra.mxu0 0.0
    %3039 = vmatprep.subr.mxu0 0.0
    %3040 = vmatpush1.msra.mxu0 0.0
    %3041 = vmatprep.subr.mxu0 0.0
    %3042 = vmatpush1.msra.mxu0 0.0
    %3043 = vmatprep.subr.mxu0 0.0
    %3044 = vmatpush1.msra.mxu0 0.0
    %3045 = vmatprep.subr.mxu0 0.0
    %3046 = vmatpush1.msra.mxu0 0.0
    %3047 = vmatprep.subr.mxu0 0.0
    %3048 = vmatpush1.msra.mxu0 0.0
    %3049 = vmatprep.subr.mxu0 0.0
    %3050 = vmatpush1.msra.mxu0 0.0
    %3051 = vmatprep.subr.mxu0 0.0
    %3052 = vmatpush1.msra.mxu0 0.0
    %3053 = vmatprep.subr.mxu0 0.0
    %3054 = vmatpush1.msra.mxu0 0.0
    %3055 = vmatprep.subr.mxu0 0.0
    %3056 = vmatpush1.msra.mxu0 0.0
    %3057 = vmatprep.subr.mxu0 0.0
    %3058 = vmatpush1.msra.mxu0 0.0
    %3059 = vmatprep.subr.mxu0 0.0
    %3060 = vmatpush1.msra.mxu0 0.0
    %3061 = vmatprep.subr.mxu0 0.0
    %3062 = vmatpush1.msra.mxu0 0.0
    %3063 = vmatprep.subr.mxu0 0.0
    %3064 = vmatpush1.msra.mxu0 0.0
    %3065 = vmatprep.subr.mxu0 0.0
    %3066 = vmatpush1.msra.mxu0 0.0
    %3067 = vmatprep.subr.mxu0 0.0
    %3068 = vmatpush1.msra.mxu0 0.0
    %3069 = vmatprep.subr.mxu0 0.0
    %3070 = vmatpush1.msra.mxu0 0.0
    %3071 = vmatprep.subr.mxu0 0.0
    %3072 = vmatpush1.msra.mxu0 0.0
    %3073 = vmatprep.subr.mxu0 0.0
    %3074 = vmatpush1.msra.mxu0 0.0
    %3075 = vmatprep.subr.mxu0 0.0
    %3076 = vmatpush1.msra.mxu0 0.0
    %3077 = vmatprep.subr.mxu0 0.0
    %3078 = vmatpush1.msra.mxu0 0.0
    %3079 = vmatprep.subr.mxu0 0.0
    %3080 = vmatpush1.msra.mxu0 0.0
    %3081 = vmatprep.subr.mxu0 0.0
    %3082 = vmatpush1.msra.mxu0 0.0
    %3083 = vmatprep.subr.mxu0 0.0
    %3084 = vmatpush1.msra.mxu0 0.0
    %3085 = vmatprep.subr.mxu0 0.0
    %3086 = vmatpush1.msra.mxu0 0.0
    %3087 = vmatprep.subr.mxu0 0.0
    %3088 = vmatpush1.msra.mxu0 0.0
    %3089 = vmatprep.mubr.f32.mxu0 0.0
    %3090 = vmatmul.mubr.f32.gmra.mrb[0].mxu0 %v2867
    %v3091 = vpop.f32.mrb[0].mxu0
    %v3092 = vadd.f32 %v2864, %v3091
    %v3093 = vpop.f32.mrb[0].mxu0
    %v3094 = vadd.f32 %v2864, %v3093
    %3095 = vdwg.mxu0
    %3096 = vmatprep.subr.mxu0 %v2861
    %3097 = vmatpush1.msra.mxu0 %v2860
    %3098 = vmatprep.subr.mxu0 %v2000
    %3099 = vmatpush1.msra.mxu0 %v2881
    %3100 = vmatprep.subr.mxu0 0.0
    %3101 = vmatpush1.msra.mxu0 0.0
    %3102 = vmatprep.subr.mxu0 0.0
    %3103 = vmatpush1.msra.mxu0 0.0
    %3104 = vmatprep.subr.mxu0 0.0
    %3105 = vmatpush1.msra.mxu0 0.0
    %3106 = vmatprep.subr.mxu0 0.0
    %3107 = vmatpush1.msra.mxu0 0.0
    %3108 = vmatprep.subr.mxu0 0.0
    %3109 = vmatpush1.msra.mxu0 0.0
    %3110 = vmatprep.subr.mxu0 0.0
    %3111 = vmatpush1.msra.mxu0 0.0
    %3112 = vmatprep.subr.mxu0 0.0
    %3113 = vmatpush1.msra.mxu0 0.0
    %3114 = vmatprep.subr.mxu0 0.0
    %3115 = vmatpush1.msra.mxu0 0.0
    %3116 = vmatprep.subr.mxu0 0.0
    %3117 = vmatpush1.msra.mxu0 0.0
    %3118 = vmatprep.subr.mxu0 0.0
    %3119 = vmatpush1.msra.mxu0 0.0
    %3120 = vmatprep.subr.mxu0 0.0
    %3121 = vmatpush1.msra.mxu0 0.0
    %3122 = vmatprep.subr.mxu0 0.0
    %3123 = vmatpush1.msra.mxu0 0.0
    %3124 = vmatprep.subr.mxu0 0.0
    %3125 = vmatpush1.msra.mxu0 0.0
    %3126 = vmatprep.subr.mxu0 0.0
    %3127 = vmatpush1.msra.mxu0 0.0
    %3128 = vmatprep.subr.mxu0 0.0
    %3129 = vmatpush1.msra.mxu0 0.0
    %3130 = vmatprep.subr.mxu0 0.0
    %3131 = vmatpush1.msra.mxu0 0.0
    %3132 = vmatprep.subr.mxu0 0.0
    %3133 = vmatpush1.msra.mxu0 0.0
    %3134 = vmatprep.subr.mxu0 0.0
    %3135 = vmatpush1.msra.mxu0 0.0
    %3136 = vmatprep.subr.mxu0 0.0
    %3137 = vmatpush1.msra.mxu0 0.0
    %3138 = vmatprep.subr.mxu0 0.0
    %3139 = vmatpush1.msra.mxu0 0.0
    %3140 = vmatprep.subr.mxu0 0.0
    %3141 = vmatpush1.msra.mxu0 0.0
    %3142 = vmatprep.subr.mxu0 0.0
    %3143 = vmatpush1.msra.mxu0 0.0
    %3144 = vmatprep.subr.mxu0 0.0
    %3145 = vmatpush1.msra.mxu0 0.0
    %3146 = vmatprep.subr.mxu0 0.0
    %3147 = vmatpush1.msra.mxu0 0.0
    %3148 = vmatprep.subr.mxu0 0.0
    %3149 = vmatpush1.msra.mxu0 0.0
    %3150 = vmatprep.subr.mxu0 0.0
    %3151 = vmatpush1.msra.mxu0 0.0
    %3152 = vmatprep.subr.mxu0 0.0
    %3153 = vmatpush1.msra.mxu0 0.0
    %3154 = vmatprep.subr.mxu0 0.0
    %3155 = vmatpush1.msra.mxu0 0.0
    %3156 = vmatprep.subr.mxu0 0.0
    %3157 = vmatpush1.msra.mxu0 0.0
    %3158 = vmatprep.subr.mxu0 0.0
    %3159 = vmatpush1.msra.mxu0 0.0
    %3160 = vmatprep.mubr.f32.mxu0 0.0
    %3161 = vmatmul.mubr.f32.gmra.mrb[0].mxu0 %v2867
    %v3162 = vpop.f32.mrb[0].mxu0
    %v3163 = vadd.f32 %v2864, %v3162
    %v3164 = vpop.f32.mrb[0].mxu0
    %v3165 = vadd.f32 %v2864, %v3164
    %3166 = vdwg.mxu0
    %v3167 = vsel %vm1702, %v2950, 0.0
    %v3168 = vrot.slane %v3167, 4
    %v3169 = vadd.f32 %v3167, %v3168
    %v3170 = vrot.slane %v3169, 2
    %v3171 = vadd.f32 %v3169, %v3170
    %v3172 = vrot.slane %v3171, 1
    %v3173 = vadd.f32 %v3171, %v3172
    %v3174 = vsel %vm1702, %v2952, 0.0
    %v3175 = vrot.slane %v3174, 4
    %v3176 = vadd.f32 %v3174, %v3175
    %v3177 = vrot.slane %v3176, 2
    %v3178 = vadd.f32 %v3176, %v3177
    %v3179 = vrot.slane %v3178, 1
    %v3180 = vadd.f32 %v3178, %v3179
    %v3181 = vsel %vm1702, %v3021, 0.0
    %v3182 = vrot.slane %v3181, 4
    %v3183 = vadd.f32 %v3181, %v3182
    %v3184 = vrot.slane %v3183, 2
    %v3185 = vadd.f32 %v3183, %v3184
    %v3186 = vrot.slane %v3185, 1
    %v3187 = vadd.f32 %v3185, %v3186
    %v3188 = vsel %vm1702, %v3023, 0.0
    %v3189 = vrot.slane %v3188, 4
    %v3190 = vadd.f32 %v3188, %v3189
    %v3191 = vrot.slane %v3190, 2
    %v3192 = vadd.f32 %v3190, %v3191
    %v3193 = vrot.slane %v3192, 1
    %v3194 = vadd.f32 %v3192, %v3193
    %v3195 = vsel %vm1702, %v3092, 0.0
    %v3196 = vrot.slane %v3195, 4
    %v3197 = vadd.f32 %v3195, %v3196
    %v3198 = vrot.slane %v3197, 2
    %v3199 = vadd.f32 %v3197, %v3198
    %v3200 = vrot.slane %v3199, 1
    %v3201 = vadd.f32 %v3199, %v3200
    %v3202 = vsel %vm1702, %v3094, 0.0
    %v3203 = vrot.slane %v3202, 4
    %v3204 = vadd.f32 %v3202, %v3203
    %v3205 = vrot.slane %v3204, 2
    %v3206 = vadd.f32 %v3204, %v3205
    %v3207 = vrot.slane %v3206, 1
    %v3208 = vadd.f32 %v3206, %v3207
    %v3209 = vsel %vm1702, %v3163, 0.0
    %v3210 = vrot.slane %v3209, 4
    %v3211 = vadd.f32 %v3209, %v3210
    %v3212 = vrot.slane %v3211, 2
    %v3213 = vadd.f32 %v3211, %v3212
    %v3214 = vrot.slane %v3213, 1
    %v3215 = vadd.f32 %v3213, %v3214
    %v3216 = vsel %vm1702, %v3165, 0.0
    %v3217 = vrot.slane %v3216, 4
    %v3218 = vadd.f32 %v3216, %v3217
    %v3219 = vrot.slane %v3218, 2
    %v3220 = vadd.f32 %v3218, %v3219
    %v3221 = vrot.slane %v3220, 1
    %v3222 = vadd.f32 %v3220, %v3221
    %v3223 = vadd.f32 %v3173, %v3180
    %v3224 = vadd.f32 %v3187, %v3194
    %v3225 = vadd.f32 %v3201, %v3208
    %v3226 = vadd.f32 %v3215, %v3222
    %v3227 = vadd.f32 %v3223, %v3224
    %v3228 = vadd.f32 %v3225, %v3226
    %v3229 = vadd.f32 %v3227, %v3228
    %v3230 = vmul.f32 %v3229, 0.03125
    %v3231 = vlaneseq
    %v3232 = vshrl.u32 %v3231, 7
    %v3233 = vsub.s32 0, %v3232
    %v3234 = vrot.slane %v3230, %v3233
    %v3235 = vsub.f32 %v2950, %v3234
    %v3236 = vsub.f32 %v2952, %v3234
    %v3237 = vsub.f32 %v3021, %v3234
    %v3238 = vsub.f32 %v3023, %v3234
    %v3239 = vsub.f32 %v3092, %v3234
    %v3240 = vsub.f32 %v3094, %v3234
    %v3241 = vsub.f32 %v3163, %v3234
    %v3242 = vsub.f32 %v3165, %v3234
    %v3243 = vmul.f32 %v3235, %v3235
    %v3244 = vmul.f32 %v3236, %v3236
    %v3245 = vmul.f32 %v3237, %v3237
    %v3246 = vmul.f32 %v3238, %v3238
    %v3247 = vmul.f32 %v3239, %v3239
    %v3248 = vmul.f32 %v3240, %v3240
    %v3249 = vmul.f32 %v3241, %v3241
    %v3250 = vmul.f32 %v3242, %v3242
    %v3251 = vsel %vm1702, %v3243, 0.0
    %v3252 = vrot.slane %v3251, 4
    %v3253 = vadd.f32 %v3251, %v3252
    %v3254 = vrot.slane %v3253, 2
    %v3255 = vadd.f32 %v3253, %v3254
    %v3256 = vrot.slane %v3255, 1
    %v3257 = vadd.f32 %v3255, %v3256
    %v3258 = vsel %vm1702, %v3244, 0.0
    %v3259 = vrot.slane %v3258, 4
    %v3260 = vadd.f32 %v3258, %v3259
    %v3261 = vrot.slane %v3260, 2
    %v3262 = vadd.f32 %v3260, %v3261
    %v3263 = vrot.slane %v3262, 1
    %v3264 = vadd.f32 %v3262, %v3263
    %v3265 = vsel %vm1702, %v3245, 0.0
    %v3266 = vrot.slane %v3265, 4
    %v3267 = vadd.f32 %v3265, %v3266
    %v3268 = vrot.slane %v3267, 2
    %v3269 = vadd.f32 %v3267, %v3268
    %v3270 = vrot.slane %v3269, 1
    %v3271 = vadd.f32 %v3269, %v3270
    %v3272 = vsel %vm1702, %v3246, 0.0
    %v3273 = vrot.slane %v3272, 4
    %v3274 = vadd.f32 %v3272, %v3273
    %v3275 = vrot.slane %v3274, 2
    %v3276 = vadd.f32 %v3274, %v3275
    %v3277 = vrot.slane %v3276, 1
    %v3278 = vadd.f32 %v3276, %v3277
    %v3279 = vsel %vm1702, %v3247, 0.0
    %v3280 = vrot.slane %v3279, 4
    %v3281 = vadd.f32 %v3279, %v3280
    %v3282 = vrot.slane %v3281, 2
    %v3283 = vadd.f32 %v3281, %v3282
    %v3284 = vrot.slane %v3283, 1
    %v3285 = vadd.f32 %v3283, %v3284
    %v3286 = vsel %vm1702, %v3248, 0.0
    %v3287 = vrot.slane %v3286, 4
    %v3288 = vadd.f32 %v3286, %v3287
    %v3289 = vrot.slane %v3288, 2
    %v3290 = vadd.f32 %v3288, %v3289
    %v3291 = vrot.slane %v3290, 1
    %v3292 = vadd.f32 %v3290, %v3291
    %v3293 = vsel %vm1702, %v3249, 0.0
    %v3294 = vrot.slane %v3293, 4
    %v3295 = vadd.f32 %v3293, %v3294
    %v3296 = vrot.slane %v3295, 2
    %v3297 = vadd.f32 %v3295, %v3296
    %v3298 = vrot.slane %v3297, 1
    %v3299 = vadd.f32 %v3297, %v3298
    %v3300 = vsel %vm1702, %v3250, 0.0
    %v3301 = vrot.slane %v3300, 4
    %v3302 = vadd.f32 %v3300, %v3301
    %v3303 = vrot.slane %v3302, 2
    %v3304 = vadd.f32 %v3302, %v3303
    %v3305 = vrot.slane %v3304, 1
    %v3306 = vadd.f32 %v3304, %v3305
    %v3307 = vadd.f32 %v3257, %v3264
    %v3308 = vadd.f32 %v3271, %v3278
    %v3309 = vadd.f32 %v3285, %v3292
    %v3310 = vadd.f32 %v3299, %v3306
    %v3311 = vadd.f32 %v3307, %v3308
    %v3312 = vadd.f32 %v3309, %v3310
    %v3313 = vadd.f32 %v3311, %v3312
    %v3314 = vmul.f32 %v3313, 0.03125
    %v3315 = vadd.f32 %v3314, 1e-06
    %v3316 = vrsqrt.pop %v3315
    %v3317 = vlaneseq
    %v3318 = vshrl.u32 %v3317, 7
    %v3319 = vsub.s32 0, %v3318
    %v3320 = vrot.slane %v3316, %v3319
    %v3321 = vmul.f32 %v3235, %v3320
    %v3322 = vmul.f32 %v3236, %v3320
    %v3323 = vmul.f32 %v3237, %v3320
    %v3324 = vmul.f32 %v3238, %v3320
    %v3325 = vmul.f32 %v3239, %v3320
    %v3326 = vmul.f32 %v3240, %v3320
    %v3327 = vmul.f32 %v3241, %v3320
    %v3328 = vmul.f32 %v3242, %v3320
    %3329 = vset.pattern.permute.xlu0 20
    %3330 = vperm.xlu0 %3329, %v1181
    %v3331 = vpop.permute.xlu0 %3330
    %v3333 = vmul.f32 %v3321, %v3331
    %v3334 = vmul.f32 %v3322, %v3331
    %v3335 = vmul.f32 %v3323, %v3331
    %v3336 = vmul.f32 %v3324, %v3331
    %v3337 = vmul.f32 %v3325, %v3331
    %v3338 = vmul.f32 %v3326, %v3331
    %v3339 = vmul.f32 %v3327, %v3331
    %v3340 = vmul.f32 %v3328, %v3331
    %3341 = vset.pattern.permute.xlu0 21
    %3342 = vperm.xlu0 %3341, %v1181
    %v3343 = vpop.permute.xlu0 %3342
    %v3345 = vadd.f32 %v3333, %v3343
    %v3346 = vadd.f32 %v3334, %v3343
    %v3347 = vadd.f32 %v3335, %v3343
    %v3348 = vadd.f32 %v3336, %v3343
    %v3349 = vadd.f32 %v3337, %v3343
    %v3350 = vadd.f32 %v3338, %v3343
    %v3351 = vadd.f32 %v3339, %v3343
    %v3352 = vadd.f32 %v3340, %v3343
    %v3353 = vxor.u32 %v3345, 2147483648
    %v3354 = vxor.u32 %v3346, 2147483648
    %v3355 = vxor.u32 %v3347, 2147483648
    %v3356 = vxor.u32 %v3348, 2147483648
    %v3357 = vxor.u32 %v3349, 2147483648
    %v3358 = vxor.u32 %v3350, 2147483648
    %v3359 = vxor.u32 %v3351, 2147483648
    %v3360 = vxor.u32 %v3352, 2147483648
    %v3361 = vmul.f32 %v3353, 1.442695
    %v3362 = vpow.pop %v3361
    %v3363 = vmul.f32 %v3354, 1.442695
    %v3364 = vpow.pop %v3363
    %v3365 = vmul.f32 %v3355, 1.442695
    %v3366 = vpow.pop %v3365
    %v3367 = vmul.f32 %v3356, 1.442695
    %v3368 = vpow.pop %v3367
    %v3369 = vmul.f32 %v3357, 1.442695
    %v3370 = vpow.pop %v3369
    %v3371 = vmul.f32 %v3358, 1.442695
    %v3372 = vpow.pop %v3371
    %v3373 = vmul.f32 %v3359, 1.442695
    %v3374 = vpow.pop %v3373
    %v3375 = vmul.f32 %v3360, 1.442695
    %v3376 = vpow.pop %v3375
    %v3377 = vadd.f32 %v3362, 1.0
    %v3378 = vadd.f32 %v3364, 1.0
    %v3379 = vadd.f32 %v3366, 1.0
    %v3380 = vadd.f32 %v3368, 1.0
    %v3381 = vadd.f32 %v3370, 1.0
    %v3382 = vadd.f32 %v3372, 1.0
    %v3383 = vadd.f32 %v3374, 1.0
    %v3384 = vadd.f32 %v3376, 1.0
    %v3385 = vrcp.pop %v3377
    %v3386 = vmul.f32 1.0, %v3385
    %v3387 = vrcp.pop %v3378
    %v3388 = vmul.f32 1.0, %v3387
    %v3389 = vrcp.pop %v3379
    %v3390 = vmul.f32 1.0, %v3389
    %v3391 = vrcp.pop %v3380
    %v3392 = vmul.f32 1.0, %v3391
    %v3393 = vrcp.pop %v3381
    %v3394 = vmul.f32 1.0, %v3393
    %v3395 = vrcp.pop %v3382
    %v3396 = vmul.f32 1.0, %v3395
    %v3397 = vrcp.pop %v3383
    %v3398 = vmul.f32 1.0, %v3397
    %v3399 = vrcp.pop %v3384
    %v3400 = vmul.f32 1.0, %v3399
    %v3401 = vmul.f32 %v3345, %v3386
    %v3402 = vmul.f32 %v3346, %v3388
    %v3403 = vmul.f32 %v3347, %v3390
    %v3404 = vmul.f32 %v3348, %v3392
    %v3405 = vmul.f32 %v3349, %v3394
    %v3406 = vmul.f32 %v3350, %v3396
    %v3407 = vmul.f32 %v3351, %v3398
    %v3408 = vmul.f32 %v3352, %v3400
    %v3417 = vrot.slane %v3401, 4
    %v3418 = vrot.slane %v3402, 4
    %v3419 = vrot.slane %v3403, 4
    %v3420 = vrot.slane %v3404, 4
    %v3421 = vrot.slane %v3405, 4
    %v3422 = vrot.slane %v3406, 4
    %v3423 = vrot.slane %v3407, 4
    %v3424 = vrot.slane %v3408, 4
    %v3433 = vsel %vm1702, 0.0, %v3417
    %v3434 = vsel %vm1702, %v3401, %v3418
    %v3435 = vsel %vm1702, %v3402, %v3419
    %v3436 = vsel %vm1702, %v3403, %v3420
    %v3437 = vsel %vm1702, %v3404, %v3421
    %v3438 = vsel %vm1702, %v3405, %v3422
    %v3439 = vsel %vm1702, %v3406, %v3423
    %v3440 = vsel %vm1702, %v3407, %v3424
    %3441 = vset.pattern.permute.xlu0 22
    %3442 = vperm.xlu0 %3441, %v1181
    %v3443 = vpop.permute.xlu0 %3442
    %v3446 = vsel %vm1981, %v2587, 0
    %v3448 = vsel %vm1702, %v3402, 0
    %v3450 = vsel %vm1702, %v3403, 0
    %v3452 = vsel %vm1702, %v3404, 0
    %v3454 = vsel %vm1702, %v3405, 0
    %v3456 = vsel %vm1702, %v3406, 0
    %v3458 = vsel %vm1702, %v3407, 0
    %v3460 = vsel %vm1702, %v3408, 0
    %3462 = vmatprep.subr.mxu0 %v3434
    %3463 = vmatpush1.msra.mxu0 %v3433
    %3464 = vmatprep.subr.mxu0 %v3450
    %3465 = vmatpush1.msra.mxu0 %v3448
    %3466 = vmatprep.subr.mxu0 0.0
    %3467 = vmatpush1.msra.mxu0 0.0
    %3468 = vmatprep.subr.mxu0 0.0
    %3469 = vmatpush1.msra.mxu0 0.0
    %3470 = vmatprep.subr.mxu0 0.0
    %3471 = vmatpush1.msra.mxu0 0.0
    %3472 = vmatprep.subr.mxu0 0.0
    %3473 = vmatpush1.msra.mxu0 0.0
    %3474 = vmatprep.subr.mxu0 0.0
    %3475 = vmatpush1.msra.mxu0 0.0
    %3476 = vmatprep.subr.mxu0 0.0
    %3477 = vmatpush1.msra.mxu0 0.0
    %3478 = vmatprep.subr.mxu0 0.0
    %3479 = vmatpush1.msra.mxu0 0.0
    %3480 = vmatprep.subr.mxu0 0.0
    %3481 = vmatpush1.msra.mxu0 0.0
    %3482 = vmatprep.subr.mxu0 0.0
    %3483 = vmatpush1.msra.mxu0 0.0
    %3484 = vmatprep.subr.mxu0 0.0
    %3485 = vmatpush1.msra.mxu0 0.0
    %3486 = vmatprep.subr.mxu0 0.0
    %3487 = vmatpush1.msra.mxu0 0.0
    %3488 = vmatprep.subr.mxu0 0.0
    %3489 = vmatpush1.msra.mxu0 0.0
    %3490 = vmatprep.subr.mxu0 0.0
    %3491 = vmatpush1.msra.mxu0 0.0
    %3492 = vmatprep.subr.mxu0 0.0
    %3493 = vmatpush1.msra.mxu0 0.0
    %3494 = vmatprep.subr.mxu0 0.0
    %3495 = vmatpush1.msra.mxu0 0.0
    %3496 = vmatprep.subr.mxu0 0.0
    %3497 = vmatpush1.msra.mxu0 0.0
    %3498 = vmatprep.subr.mxu0 0.0
    %3499 = vmatpush1.msra.mxu0 0.0
    %3500 = vmatprep.subr.mxu0 0.0
    %3501 = vmatpush1.msra.mxu0 0.0
    %3502 = vmatprep.subr.mxu0 0.0
    %3503 = vmatpush1.msra.mxu0 0.0
    %3504 = vmatprep.subr.mxu0 0.0
    %3505 = vmatpush1.msra.mxu0 0.0
    %3506 = vmatprep.subr.mxu0 0.0
    %3507 = vmatpush1.msra.mxu0 0.0
    %3508 = vmatprep.subr.mxu0 0.0
    %3509 = vmatpush1.msra.mxu0 0.0
    %3510 = vmatprep.subr.mxu0 0.0
    %3511 = vmatpush1.msra.mxu0 0.0
    %3512 = vmatprep.subr.mxu0 0.0
    %3513 = vmatpush1.msra.mxu0 0.0
    %3514 = vmatprep.subr.mxu0 0.0
    %3515 = vmatpush1.msra.mxu0 0.0
    %3516 = vmatprep.subr.mxu0 0.0
    %3517 = vmatpush1.msra.mxu0 0.0
    %3518 = vmatprep.subr.mxu0 0.0
    %3519 = vmatpush1.msra.mxu0 0.0
    %3520 = vmatprep.subr.mxu0 0.0
    %3521 = vmatpush1.msra.mxu0 0.0
    %3522 = vmatprep.subr.mxu0 0.0
    %3523 = vmatpush1.msra.mxu0 0.0
    %3524 = vmatprep.subr.mxu0 0.0
    %3525 = vmatpush1.msra.mxu0 0.0
    %3526 = vmatprep.mubr.f32.mxu0 0.0
    %3527 = vmatmul.mubr.f32.gmra.mrb[0].mxu0 %v3446
    %v3528 = vpop.f32.mrb[0].mxu0
    %v3529 = vadd.f32 %v3443, %v3528
    %v3530 = vpop.f32.mrb[0].mxu0
    %v3531 = vadd.f32 %v3443, %v3530
    %3532 = vdwg.mxu0
    %3533 = vmatprep.subr.mxu0 %v3436
    %3534 = vmatpush1.msra.mxu0 %v3435
    %3535 = vmatprep.subr.mxu0 %v3454
    %3536 = vmatpush1.msra.mxu0 %v3452
    %3537 = vmatprep.subr.mxu0 0.0
    %3538 = vmatpush1.msra.mxu0 0.0
    %3539 = vmatprep.subr.mxu0 0.0
    %3540 = vmatpush1.msra.mxu0 0.0
    %3541 = vmatprep.subr.mxu0 0.0
    %3542 = vmatpush1.msra.mxu0 0.0
    %3543 = vmatprep.subr.mxu0 0.0
    %3544 = vmatpush1.msra.mxu0 0.0
    %3545 = vmatprep.subr.mxu0 0.0
    %3546 = vmatpush1.msra.mxu0 0.0
    %3547 = vmatprep.subr.mxu0 0.0
    %3548 = vmatpush1.msra.mxu0 0.0
    %3549 = vmatprep.subr.mxu0 0.0
    %3550 = vmatpush1.msra.mxu0 0.0
    %3551 = vmatprep.subr.mxu0 0.0
    %3552 = vmatpush1.msra.mxu0 0.0
    %3553 = vmatprep.subr.mxu0 0.0
    %3554 = vmatpush1.msra.mxu0 0.0
    %3555 = vmatprep.subr.mxu0 0.0
    %3556 = vmatpush1.msra.mxu0 0.0
    %3557 = vmatprep.subr.mxu0 0.0
    %3558 = vmatpush1.msra.mxu0 0.0
    %3559 = vmatprep.subr.mxu0 0.0
    %3560 = vmatpush1.msra.mxu0 0.0
    %3561 = vmatprep.subr.mxu0 0.0
    %3562 = vmatpush1.msra.mxu0 0.0
    %3563 = vmatprep.subr.mxu0 0.0
    %3564 = vmatpush1.msra.mxu0 0.0
    %3565 = vmatprep.subr.mxu0 0.0
    %3566 = vmatpush1.msra.mxu0 0.0
    %3567 = vmatprep.subr.mxu0 0.0
    %3568 = vmatpush1.msra.mxu0 0.0
    %3569 = vmatprep.subr.mxu0 0.0
    %3570 = vmatpush1.msra.mxu0 0.0
    %3571 = vmatprep.subr.mxu0 0.0
    %3572 = vmatpush1.msra.mxu0 0.0
    %3573 = vmatprep.subr.mxu0 0.0
    %3574 = vmatpush1.msra.mxu0 0.0
    %3575 = vmatprep.subr.mxu0 0.0
    %3576 = vmatpush1.msra.mxu0 0.0
    %3577 = vmatprep.subr.mxu0 0.0
    %3578 = vmatpush1.msra.mxu0 0.0
    %3579 = vmatprep.subr.mxu0 0.0
    %3580 = vmatpush1.msra.mxu0 0.0
    %3581 = vmatprep.subr.mxu0 0.0
    %3582 = vmatpush1.msra.mxu0 0.0
    %3583 = vmatprep.subr.mxu0 0.0
    %3584 = vmatpush1.msra.mxu0 0.0
    %3585 = vmatprep.subr.mxu0 0.0
    %3586 = vmatpush1.msra.mxu0 0.0
    %3587 = vmatprep.subr.mxu0 0.0
    %3588 = vmatpush1.msra.mxu0 0.0
    %3589 = vmatprep.subr.mxu0 0.0
    %3590 = vmatpush1.msra.mxu0 0.0
    %3591 = vmatprep.subr.mxu0 0.0
    %3592 = vmatpush1.msra.mxu0 0.0
    %3593 = vmatprep.subr.mxu0 0.0
    %3594 = vmatpush1.msra.mxu0 0.0
    %3595 = vmatprep.subr.mxu0 0.0
    %3596 = vmatpush1.msra.mxu0 0.0
    %3597 = vmatprep.mubr.f32.mxu0 0.0
    %3598 = vmatmul.mubr.f32.gmra.mrb[0].mxu0 %v3446
    %v3599 = vpop.f32.mrb[0].mxu0
    %v3600 = vadd.f32 %v3443, %v3599
    %v3601 = vpop.f32.mrb[0].mxu0
    %v3602 = vadd.f32 %v3443, %v3601
    %3603 = vdwg.mxu0
    %3604 = vmatprep.subr.mxu0 %v3438
    %3605 = vmatpush1.msra.mxu0 %v3437
    %3606 = vmatprep.subr.mxu0 %v3458
    %3607 = vmatpush1.msra.mxu0 %v3456
    %3608 = vmatprep.subr.mxu0 0.0
    %3609 = vmatpush1.msra.mxu0 0.0
    %3610 = vmatprep.subr.mxu0 0.0
    %3611 = vmatpush1.msra.mxu0 0.0
    %3612 = vmatprep.subr.mxu0 0.0
    %3613 = vmatpush1.msra.mxu0 0.0
    %3614 = vmatprep.subr.mxu0 0.0
    %3615 = vmatpush1.msra.mxu0 0.0
    %3616 = vmatprep.subr.mxu0 0.0
    %3617 = vmatpush1.msra.mxu0 0.0
    %3618 = vmatprep.subr.mxu0 0.0
    %3619 = vmatpush1.msra.mxu0 0.0
    %3620 = vmatprep.subr.mxu0 0.0
    %3621 = vmatpush1.msra.mxu0 0.0
    %3622 = vmatprep.subr.mxu0 0.0
    %3623 = vmatpush1.msra.mxu0 0.0
    %3624 = vmatprep.subr.mxu0 0.0
    %3625 = vmatpush1.msra.mxu0 0.0
    %3626 = vmatprep.subr.mxu0 0.0
    %3627 = vmatpush1.msra.mxu0 0.0
    %3628 = vmatprep.subr.mxu0 0.0
    %3629 = vmatpush1.msra.mxu0 0.0
    %3630 = vmatprep.subr.mxu0 0.0
    %3631 = vmatpush1.msra.mxu0 0.0
    %3632 = vmatprep.subr.mxu0 0.0
    %3633 = vmatpush1.msra.mxu0 0.0
    %3634 = vmatprep.subr.mxu0 0.0
    %3635 = vmatpush1.msra.mxu0 0.0
    %3636 = vmatprep.subr.mxu0 0.0
    %3637 = vmatpush1.msra.mxu0 0.0
    %3638 = vmatprep.subr.mxu0 0.0
    %3639 = vmatpush1.msra.mxu0 0.0
    %3640 = vmatprep.subr.mxu0 0.0
    %3641 = vmatpush1.msra.mxu0 0.0
    %3642 = vmatprep.subr.mxu0 0.0
    %3643 = vmatpush1.msra.mxu0 0.0
    %3644 = vmatprep.subr.mxu0 0.0
    %3645 = vmatpush1.msra.mxu0 0.0
    %3646 = vmatprep.subr.mxu0 0.0
    %3647 = vmatpush1.msra.mxu0 0.0
    %3648 = vmatprep.subr.mxu0 0.0
    %3649 = vmatpush1.msra.mxu0 0.0
    %3650 = vmatprep.subr.mxu0 0.0
    %3651 = vmatpush1.msra.mxu0 0.0
    %3652 = vmatprep.subr.mxu0 0.0
    %3653 = vmatpush1.msra.mxu0 0.0
    %3654 = vmatprep.subr.mxu0 0.0
    %3655 = vmatpush1.msra.mxu0 0.0
    %3656 = vmatprep.subr.mxu0 0.0
    %3657 = vmatpush1.msra.mxu0 0.0
    %3658 = vmatprep.subr.mxu0 0.0
    %3659 = vmatpush1.msra.mxu0 0.0
    %3660 = vmatprep.subr.mxu0 0.0
    %3661 = vmatpush1.msra.mxu0 0.0
    %3662 = vmatprep.subr.mxu0 0.0
    %3663 = vmatpush1.msra.mxu0 0.0
    %3664 = vmatprep.subr.mxu0 0.0
    %3665 = vmatpush1.msra.mxu0 0.0
    %3666 = vmatprep.subr.mxu0 0.0
    %3667 = vmatpush1.msra.mxu0 0.0
    %3668 = vmatprep.mubr.f32.mxu0 0.0
    %3669 = vmatmul.mubr.f32.gmra.mrb[0].mxu0 %v3446
    %v3670 = vpop.f32.mrb[0].mxu0
    %v3671 = vadd.f32 %v3443, %v3670
    %v3672 = vpop.f32.mrb[0].mxu0
    %v3673 = vadd.f32 %v3443, %v3672
    %3674 = vdwg.mxu0
    %3675 = vmatprep.subr.mxu0 %v3440
    %3676 = vmatpush1.msra.mxu0 %v3439
    %3677 = vmatprep.subr.mxu0 %v2000
    %3678 = vmatpush1.msra.mxu0 %v3460
    %3679 = vmatprep.subr.mxu0 0.0
    %3680 = vmatpush1.msra.mxu0 0.0
    %3681 = vmatprep.subr.mxu0 0.0
    %3682 = vmatpush1.msra.mxu0 0.0
    %3683 = vmatprep.subr.mxu0 0.0
    %3684 = vmatpush1.msra.mxu0 0.0
    %3685 = vmatprep.subr.mxu0 0.0
    %3686 = vmatpush1.msra.mxu0 0.0
    %3687 = vmatprep.subr.mxu0 0.0
    %3688 = vmatpush1.msra.mxu0 0.0
    %3689 = vmatprep.subr.mxu0 0.0
    %3690 = vmatpush1.msra.mxu0 0.0
    %3691 = vmatprep.subr.mxu0 0.0
    %3692 = vmatpush1.msra.mxu0 0.0
    %3693 = vmatprep.subr.mxu0 0.0
    %3694 = vmatpush1.msra.mxu0 0.0
    %3695 = vmatprep.subr.mxu0 0.0
    %3696 = vmatpush1.msra.mxu0 0.0
    %3697 = vmatprep.subr.mxu0 0.0
    %3698 = vmatpush1.msra.mxu0 0.0
    %3699 = vmatprep.subr.mxu0 0.0
    %3700 = vmatpush1.msra.mxu0 0.0
    %3701 = vmatprep.subr.mxu0 0.0
    %3702 = vmatpush1.msra.mxu0 0.0
    %3703 = vmatprep.subr.mxu0 0.0
    %3704 = vmatpush1.msra.mxu0 0.0
    %3705 = vmatprep.subr.mxu0 0.0
    %3706 = vmatpush1.msra.mxu0 0.0
    %3707 = vmatprep.subr.mxu0 0.0
    %3708 = vmatpush1.msra.mxu0 0.0
    %3709 = vmatprep.subr.mxu0 0.0
    %3710 = vmatpush1.msra.mxu0 0.0
    %3711 = vmatprep.subr.mxu0 0.0
    %3712 = vmatpush1.msra.mxu0 0.0
    %3713 = vmatprep.subr.mxu0 0.0
    %3714 = vmatpush1.msra.mxu0 0.0
    %3715 = vmatprep.subr.mxu0 0.0
    %3716 = vmatpush1.msra.mxu0 0.0
    %3717 = vmatprep.subr.mxu0 0.0
    %3718 = vmatpush1.msra.mxu0 0.0
    %3719 = vmatprep.subr.mxu0 0.0
    %3720 = vmatpush1.msra.mxu0 0.0
    %3721 = vmatprep.subr.mxu0 0.0
    %3722 = vmatpush1.msra.mxu0 0.0
    %3723 = vmatprep.subr.mxu0 0.0
    %3724 = vmatpush1.msra.mxu0 0.0
    %3725 = vmatprep.subr.mxu0 0.0
    %3726 = vmatpush1.msra.mxu0 0.0
    %3727 = vmatprep.subr.mxu0 0.0
    %3728 = vmatpush1.msra.mxu0 0.0
    %3729 = vmatprep.subr.mxu0 0.0
    %3730 = vmatpush1.msra.mxu0 0.0
    %3731 = vmatprep.subr.mxu0 0.0
    %3732 = vmatpush1.msra.mxu0 0.0
    %3733 = vmatprep.subr.mxu0 0.0
    %3734 = vmatpush1.msra.mxu0 0.0
    %3735 = vmatprep.subr.mxu0 0.0
    %3736 = vmatpush1.msra.mxu0 0.0
    %3737 = vmatprep.subr.mxu0 0.0
    %3738 = vmatpush1.msra.mxu0 0.0
    %3739 = vmatprep.mubr.f32.mxu0 0.0
    %3740 = vmatmul.mubr.f32.gmra.mrb[0].mxu0 %v3446
    %v3741 = vpop.f32.mrb[0].mxu0
    %v3742 = vadd.f32 %v3443, %v3741
    %v3743 = vpop.f32.mrb[0].mxu0
    %v3744 = vadd.f32 %v3443, %v3743
    %3745 = vdwg.mxu0
    %v3746 = vadd.f32 %v2578, %v3529
    %v3747 = vadd.f32 %v2579, %v3531
    %v3748 = vadd.f32 %v2580, %v3600
    %v3749 = vadd.f32 %v2581, %v3602
    %v3750 = vadd.f32 %v2582, %v3671
    %v3751 = vadd.f32 %v2583, %v3673
    %v3752 = vadd.f32 %v2584, %v3742
    %v3753 = vadd.f32 %v2585, %v3744
    %v3754 = vld [vmem:[#allocation6 + $0x58] sm:$0xf]
    %v3755 = vld [vmem:[#allocation6 + $0x60] sm:$0xf]
    %3756 = vset.pattern.permute.xlu0 23
    %3757 = vperm.xlu0 %3756, %v1181
    %v3758 = vpop.permute.xlu0 %3757
    %vm3760 = vcmask 31744
    %v3762 = vsel %vm3760, %v3754, 0
    %v3765 = vsel %vm1702, %v3746, 0
    %v3768 = vsel %vm1702, %v3747, 0
    %v3771 = vsel %vm1702, %v3748, 0
    %v3774 = vsel %vm1702, %v3749, 0
    %v3777 = vsel %vm1702, %v3750, 0
    %v3780 = vsel %vm1702, %v3751, 0
    %v3783 = vsel %vm1702, %v3752, 0
    %v3786 = vsel %vm1702, %v3753, 0
    %3788 = vmatprep.subr.mxu0 %v3768
    %3789 = vmatpush1.msra.mxu0 %v3765
    %3790 = vmatprep.subr.mxu0 0.0
    %3791 = vmatpush1.msra.mxu0 0.0
    %3792 = vmatprep.subr.mxu0 0.0
    %3793 = vmatpush1.msra.mxu0 0.0
    %3794 = vmatprep.subr.mxu0 0.0
    %3795 = vmatpush1.msra.mxu0 0.0
    %3796 = vmatprep.subr.mxu0 0.0
    %3797 = vmatpush1.msra.mxu0 0.0
    %3798 = vmatprep.subr.mxu0 0.0
    %3799 = vmatpush1.msra.mxu0 0.0
    %3800 = vmatprep.subr.mxu0 0.0
    %3801 = vmatpush1.msra.mxu0 0.0
    %3802 = vmatprep.subr.mxu0 0.0
    %3803 = vmatpush1.msra.mxu0 0.0
    %3804 = vmatprep.subr.mxu0 0.0
    %3805 = vmatpush1.msra.mxu0 0.0
    %3806 = vmatprep.subr.mxu0 0.0
    %3807 = vmatpush1.msra.mxu0 0.0
    %3808 = vmatprep.subr.mxu0 0.0
    %3809 = vmatpush1.msra.mxu0 0.0
    %3810 = vmatprep.subr.mxu0 0.0
    %3811 = vmatpush1.msra.mxu0 0.0
    %3812 = vmatprep.subr.mxu0 0.0
    %3813 = vmatpush1.msra.mxu0 0.0
    %3814 = vmatprep.subr.mxu0 0.0
    %3815 = vmatpush1.msra.mxu0 0.0
    %3816 = vmatprep.subr.mxu0 0.0
    %3817 = vmatpush1.msra.mxu0 0.0
    %3818 = vmatprep.subr.mxu0 0.0
    %3819 = vmatpush1.msra.mxu0 0.0
    %3820 = vmatprep.subr.mxu0 0.0
    %3821 = vmatpush1.msra.mxu0 0.0
    %3822 = vmatprep.subr.mxu0 0.0
    %3823 = vmatpush1.msra.mxu0 0.0
    %3824 = vmatprep.subr.mxu0 0.0
    %3825 = vmatpush1.msra.mxu0 0.0
    %3826 = vmatprep.subr.mxu0 0.0
    %3827 = vmatpush1.msra.mxu0 0.0
    %3828 = vmatprep.subr.mxu0 0.0
    %3829 = vmatpush1.msra.mxu0 0.0
    %3830 = vmatprep.subr.mxu0 0.0
    %3831 = vmatpush1.msra.mxu0 0.0
    %3832 = vmatprep.subr.mxu0 0.0
    %3833 = vmatpush1.msra.mxu0 0.0
    %3834 = vmatprep.subr.mxu0 0.0
    %3835 = vmatpush1.msra.mxu0 0.0
    %3836 = vmatprep.subr.mxu0 0.0
    %3837 = vmatpush1.msra.mxu0 0.0
    %3838 = vmatprep.subr.mxu0 0.0
    %3839 = vmatpush1.msra.mxu0 0.0
    %3840 = vmatprep.subr.mxu0 0.0
    %3841 = vmatpush1.msra.mxu0 0.0
    %3842 = vmatprep.subr.mxu0 0.0
    %3843 = vmatpush1.msra.mxu0 0.0
    %3844 = vmatprep.subr.mxu0 0.0
    %3845 = vmatpush1.msra.mxu0 0.0
    %3846 = vmatprep.subr.mxu0 0.0
    %3847 = vmatpush1.msra.mxu0 0.0
    %3848 = vmatprep.subr.mxu0 0.0
    %3849 = vmatpush1.msra.mxu0 0.0
    %3850 = vmatprep.subr.mxu0 0.0
    %3851 = vmatpush1.msra.mxu0 0.0
    %3852 = vmatprep.mubr.f32.mxu0 0.0
    %3853 = vmatmul.mubr.f32.gmra.mrb[0].mxu0 %v3762
    %v3854 = vpop.f32.mrb[0].mxu0
    %v3855 = vadd.f32 %v3758, %v3854
    %v3856 = vpop.f32.mrb[0].mxu0
    %v3857 = vadd.f32 %v3758, %v3856
    %3858 = vdwg.mxu0
    %3859 = vmatprep.subr.mxu0 %v3774
    %3860 = vmatpush1.msra.mxu0 %v3771
    %3861 = vmatprep.subr.mxu0 0.0
    %3862 = vmatpush1.msra.mxu0 0.0
    %3863 = vmatprep.subr.mxu0 0.0
    %3864 = vmatpush1.msra.mxu0 0.0
    %3865 = vmatprep.subr.mxu0 0.0
    %3866 = vmatpush1.msra.mxu0 0.0
    %3867 = vmatprep.subr.mxu0 0.0
    %3868 = vmatpush1.msra.mxu0 0.0
    %3869 = vmatprep.subr.mxu0 0.0
    %3870 = vmatpush1.msra.mxu0 0.0
    %3871 = vmatprep.subr.mxu0 0.0
    %3872 = vmatpush1.msra.mxu0 0.0
    %3873 = vmatprep.subr.mxu0 0.0
    %3874 = vmatpush1.msra.mxu0 0.0
    %3875 = vmatprep.subr.mxu0 0.0
    %3876 = vmatpush1.msra.mxu0 0.0
    %3877 = vmatprep.subr.mxu0 0.0
    %3878 = vmatpush1.msra.mxu0 0.0
    %3879 = vmatprep.subr.mxu0 0.0
    %3880 = vmatpush1.msra.mxu0 0.0
    %3881 = vmatprep.subr.mxu0 0.0
    %3882 = vmatpush1.msra.mxu0 0.0
    %3883 = vmatprep.subr.mxu0 0.0
    %3884 = vmatpush1.msra.mxu0 0.0
    %3885 = vmatprep.subr.mxu0 0.0
    %3886 = vmatpush1.msra.mxu0 0.0
    %3887 = vmatprep.subr.mxu0 0.0
    %3888 = vmatpush1.msra.mxu0 0.0
    %3889 = vmatprep.subr.mxu0 0.0
    %3890 = vmatpush1.msra.mxu0 0.0
    %3891 = vmatprep.subr.mxu0 0.0
    %3892 = vmatpush1.msra.mxu0 0.0
    %3893 = vmatprep.subr.mxu0 0.0
    %3894 = vmatpush1.msra.mxu0 0.0
    %3895 = vmatprep.subr.mxu0 0.0
    %3896 = vmatpush1.msra.mxu0 0.0
    %3897 = vmatprep.subr.mxu0 0.0
    %3898 = vmatpush1.msra.mxu0 0.0
    %3899 = vmatprep.subr.mxu0 0.0
    %3900 = vmatpush1.msra.mxu0 0.0
    %3901 = vmatprep.subr.mxu0 0.0
    %3902 = vmatpush1.msra.mxu0 0.0
    %3903 = vmatprep.subr.mxu0 0.0
    %3904 = vmatpush1.msra.mxu0 0.0
    %3905 = vmatprep.subr.mxu0 0.0
    %3906 = vmatpush1.msra.mxu0 0.0
    %3907 = vmatprep.subr.mxu0 0.0
    %3908 = vmatpush1.msra.mxu0 0.0
    %3909 = vmatprep.subr.mxu0 0.0
    %3910 = vmatpush1.msra.mxu0 0.0
    %3911 = vmatprep.subr.mxu0 0.0
    %3912 = vmatpush1.msra.mxu0 0.0
    %3913 = vmatprep.subr.mxu0 0.0
    %3914 = vmatpush1.msra.mxu0 0.0
    %3915 = vmatprep.subr.mxu0 0.0
    %3916 = vmatpush1.msra.mxu0 0.0
    %3917 = vmatprep.subr.mxu0 0.0
    %3918 = vmatpush1.msra.mxu0 0.0
    %3919 = vmatprep.subr.mxu0 0.0
    %3920 = vmatpush1.msra.mxu0 0.0
    %3921 = vmatprep.subr.mxu0 0.0
    %3922 = vmatpush1.msra.mxu0 0.0
    %3923 = vmatprep.mubr.f32.mxu0 0.0
    %3924 = vmatmul.mubr.f32.gmra.mrb[0].mxu0 %v3762
    %v3925 = vpop.f32.mrb[0].mxu0
    %v3926 = vadd.f32 %v3758, %v3925
    %v3927 = vpop.f32.mrb[0].mxu0
    %v3928 = vadd.f32 %v3758, %v3927
    %3929 = vdwg.mxu0
    %3930 = vmatprep.subr.mxu0 %v3780
    %3931 = vmatpush1.msra.mxu0 %v3777
    %3932 = vmatprep.subr.mxu0 0.0
    %3933 = vmatpush1.msra.mxu0 0.0
    %3934 = vmatprep.subr.mxu0 0.0
    %3935 = vmatpush1.msra.mxu0 0.0
    %3936 = vmatprep.subr.mxu0 0.0
    %3937 = vmatpush1.msra.mxu0 0.0
    %3938 = vmatprep.subr.mxu0 0.0
    %3939 = vmatpush1.msra.mxu0 0.0
    %3940 = vmatprep.subr.mxu0 0.0
    %3941 = vmatpush1.msra.mxu0 0.0
    %3942 = vmatprep.subr.mxu0 0.0
    %3943 = vmatpush1.msra.mxu0 0.0
    %3944 = vmatprep.subr.mxu0 0.0
    %3945 = vmatpush1.msra.mxu0 0.0
    %3946 = vmatprep.subr.mxu0 0.0
    %3947 = vmatpush1.msra.mxu0 0.0
    %3948 = vmatprep.subr.mxu0 0.0
    %3949 = vmatpush1.msra.mxu0 0.0
    %3950 = vmatprep.subr.mxu0 0.0
    %3951 = vmatpush1.msra.mxu0 0.0
    %3952 = vmatprep.subr.mxu0 0.0
    %3953 = vmatpush1.msra.mxu0 0.0
    %3954 = vmatprep.subr.mxu0 0.0
    %3955 = vmatpush1.msra.mxu0 0.0
    %3956 = vmatprep.subr.mxu0 0.0
    %3957 = vmatpush1.msra.mxu0 0.0
    %3958 = vmatprep.subr.mxu0 0.0
    %3959 = vmatpush1.msra.mxu0 0.0
    %3960 = vmatprep.subr.mxu0 0.0
    %3961 = vmatpush1.msra.mxu0 0.0
    %3962 = vmatprep.subr.mxu0 0.0
    %3963 = vmatpush1.msra.mxu0 0.0
    %3964 = vmatprep.subr.mxu0 0.0
    %3965 = vmatpush1.msra.mxu0 0.0
    %3966 = vmatprep.subr.mxu0 0.0
    %3967 = vmatpush1.msra.mxu0 0.0
    %3968 = vmatprep.subr.mxu0 0.0
    %3969 = vmatpush1.msra.mxu0 0.0
    %3970 = vmatprep.subr.mxu0 0.0
    %3971 = vmatpush1.msra.mxu0 0.0
    %3972 = vmatprep.subr.mxu0 0.0
    %3973 = vmatpush1.msra.mxu0 0.0
    %3974 = vmatprep.subr.mxu0 0.0
    %3975 = vmatpush1.msra.mxu0 0.0
    %3976 = vmatprep.subr.mxu0 0.0
    %3977 = vmatpush1.msra.mxu0 0.0
    %3978 = vmatprep.subr.mxu0 0.0
    %3979 = vmatpush1.msra.mxu0 0.0
    %3980 = vmatprep.subr.mxu0 0.0
    %3981 = vmatpush1.msra.mxu0 0.0
    %3982 = vmatprep.subr.mxu0 0.0
    %3983 = vmatpush1.msra.mxu0 0.0
    %3984 = vmatprep.subr.mxu0 0.0
    %3985 = vmatpush1.msra.mxu0 0.0
    %3986 = vmatprep.subr.mxu0 0.0
    %3987 = vmatpush1.msra.mxu0 0.0
    %3988 = vmatprep.subr.mxu0 0.0
    %3989 = vmatpush1.msra.mxu0 0.0
    %3990 = vmatprep.subr.mxu0 0.0
    %3991 = vmatpush1.msra.mxu0 0.0
    %3992 = vmatprep.subr.mxu0 0.0
    %3993 = vmatpush1.msra.mxu0 0.0
    %3994 = vmatprep.mubr.f32.mxu0 0.0
    %3995 = vmatmul.mubr.f32.gmra.mrb[0].mxu0 %v3762
    %v3996 = vpop.f32.mrb[0].mxu0
    %v3997 = vadd.f32 %v3758, %v3996
    %v3998 = vpop.f32.mrb[0].mxu0
    %v3999 = vadd.f32 %v3758, %v3998
    %4000 = vdwg.mxu0
    %4001 = vmatprep.subr.mxu0 %v3786
    %4002 = vmatpush1.msra.mxu0 %v3783
    %4003 = vmatprep.subr.mxu0 0.0
    %4004 = vmatpush1.msra.mxu0 0.0
    %4005 = vmatprep.subr.mxu0 0.0
    %4006 = vmatpush1.msra.mxu0 0.0
    %4007 = vmatprep.subr.mxu0 0.0
    %4008 = vmatpush1.msra.mxu0 0.0
    %4009 = vmatprep.subr.mxu0 0.0
    %4010 = vmatpush1.msra.mxu0 0.0
    %4011 = vmatprep.subr.mxu0 0.0
    %4012 = vmatpush1.msra.mxu0 0.0
    %4013 = vmatprep.subr.mxu0 0.0
    %4014 = vmatpush1.msra.mxu0 0.0
    %4015 = vmatprep.subr.mxu0 0.0
    %4016 = vmatpush1.msra.mxu0 0.0
    %4017 = vmatprep.subr.mxu0 0.0
    %4018 = vmatpush1.msra.mxu0 0.0
    %4019 = vmatprep.subr.mxu0 0.0
    %4020 = vmatpush1.msra.mxu0 0.0
    %4021 = vmatprep.subr.mxu0 0.0
    %4022 = vmatpush1.msra.mxu0 0.0
    %4023 = vmatprep.subr.mxu0 0.0
    %4024 = vmatpush1.msra.mxu0 0.0
    %4025 = vmatprep.subr.mxu0 0.0
    %4026 = vmatpush1.msra.mxu0 0.0
    %4027 = vmatprep.subr.mxu0 0.0
    %4028 = vmatpush1.msra.mxu0 0.0
    %4029 = vmatprep.subr.mxu0 0.0
    %4030 = vmatpush1.msra.mxu0 0.0
    %4031 = vmatprep.subr.mxu0 0.0
    %4032 = vmatpush1.msra.mxu0 0.0
    %4033 = vmatprep.subr.mxu0 0.0
    %4034 = vmatpush1.msra.mxu0 0.0
    %4035 = vmatprep.subr.mxu0 0.0
    %4036 = vmatpush1.msra.mxu0 0.0
    %4037 = vmatprep.subr.mxu0 0.0
    %4038 = vmatpush1.msra.mxu0 0.0
    %4039 = vmatprep.subr.mxu0 0.0
    %4040 = vmatpush1.msra.mxu0 0.0
    %4041 = vmatprep.subr.mxu0 0.0
    %4042 = vmatpush1.msra.mxu0 0.0
    %4043 = vmatprep.subr.mxu0 0.0
    %4044 = vmatpush1.msra.mxu0 0.0
    %4045 = vmatprep.subr.mxu0 0.0
    %4046 = vmatpush1.msra.mxu0 0.0
    %4047 = vmatprep.subr.mxu0 0.0
    %4048 = vmatpush1.msra.mxu0 0.0
    %4049 = vmatprep.subr.mxu0 0.0
    %4050 = vmatpush1.msra.mxu0 0.0
    %4051 = vmatprep.subr.mxu0 0.0
    %4052 = vmatpush1.msra.mxu0 0.0
    %4053 = vmatprep.subr.mxu0 0.0
    %4054 = vmatpush1.msra.mxu0 0.0
    %4055 = vmatprep.subr.mxu0 0.0
    %4056 = vmatpush1.msra.mxu0 0.0
    %4057 = vmatprep.subr.mxu0 0.0
    %4058 = vmatpush1.msra.mxu0 0.0
    %4059 = vmatprep.subr.mxu0 0.0
    %4060 = vmatpush1.msra.mxu0 0.0
    %4061 = vmatprep.subr.mxu0 0.0
    %4062 = vmatpush1.msra.mxu0 0.0
    %4063 = vmatprep.subr.mxu0 0.0
    %4064 = vmatpush1.msra.mxu0 0.0
    %4065 = vmatprep.mubr.f32.mxu0 0.0
    %4066 = vmatmul.mubr.f32.gmra.mrb[0].mxu0 %v3762
    %v4067 = vpop.f32.mrb[0].mxu0
    %v4068 = vadd.f32 %v3758, %v4067
    %v4069 = vpop.f32.mrb[0].mxu0
    %v4070 = vadd.f32 %v3758, %v4069
    %4071 = vdwg.mxu0
    %v4072 = vrot.slane %v3747, 4
    %v4073 = vrot.slane %v3748, 4
    %v4074 = vrot.slane %v3749, 4
    %v4075 = vrot.slane %v3750, 4
    %v4076 = vrot.slane %v3751, 4
    %v4077 = vrot.slane %v3752, 4
    %v4078 = vrot.slane %v3753, 4
    %v4079 = vrot.slane 0.0, 4
    %v4088 = vsel %vm1702, %v3746, %v4072
    %v4089 = vsel %vm1702, %v3747, %v4073
    %v4090 = vsel %vm1702, %v3748, %v4074
    %v4091 = vsel %vm1702, %v3749, %v4075
    %v4092 = vsel %vm1702, %v3750, %v4076
    %v4093 = vsel %vm1702, %v3751, %v4077
    %v4094 = vsel %vm1702, %v3752, %v4078
    %v4095 = vsel %vm1702, %v3753, %v4079
    %v4097 = vsel %vm871, %v3755, 0
    %4099 = vmatprep.subr.mxu0 %v4089
    %4100 = vmatpush1.msra.mxu0 %v4088
    %4101 = vmatprep.subr.mxu0 0.0
    %4102 = vmatpush1.msra.mxu0 0.0
    %4103 = vmatprep.subr.mxu0 0.0
    %4104 = vmatpush1.msra.mxu0 0.0
    %4105 = vmatprep.subr.mxu0 0.0
    %4106 = vmatpush1.msra.mxu0 0.0
    %4107 = vmatprep.subr.mxu0 0.0
    %4108 = vmatpush1.msra.mxu0 0.0
    %4109 = vmatprep.subr.mxu0 0.0
    %4110 = vmatpush1.msra.mxu0 0.0
    %4111 = vmatprep.subr.mxu0 0.0
    %4112 = vmatpush1.msra.mxu0 0.0
    %4113 = vmatprep.subr.mxu0 0.0
    %4114 = vmatpush1.msra.mxu0 0.0
    %4115 = vmatprep.subr.mxu0 0.0
    %4116 = vmatpush1.msra.mxu0 0.0
    %4117 = vmatprep.subr.mxu0 0.0
    %4118 = vmatpush1.msra.mxu0 0.0
    %4119 = vmatprep.subr.mxu0 0.0
    %4120 = vmatpush1.msra.mxu0 0.0
    %4121 = vmatprep.subr.mxu0 0.0
    %4122 = vmatpush1.msra.mxu0 0.0
    %4123 = vmatprep.subr.mxu0 0.0
    %4124 = vmatpush1.msra.mxu0 0.0
    %4125 = vmatprep.subr.mxu0 0.0
    %4126 = vmatpush1.msra.mxu0 0.0
    %4127 = vmatprep.subr.mxu0 0.0
    %4128 = vmatpush1.msra.mxu0 0.0
    %4129 = vmatprep.subr.mxu0 0.0
    %4130 = vmatpush1.msra.mxu0 0.0
    %4131 = vmatprep.subr.mxu0 0.0
    %4132 = vmatpush1.msra.mxu0 0.0
    %4133 = vmatprep.subr.mxu0 0.0
    %4134 = vmatpush1.msra.mxu0 0.0
    %4135 = vmatprep.subr.mxu0 0.0
    %4136 = vmatpush1.msra.mxu0 0.0
    %4137 = vmatprep.subr.mxu0 0.0
    %4138 = vmatpush1.msra.mxu0 0.0
    %4139 = vmatprep.subr.mxu0 0.0
    %4140 = vmatpush1.msra.mxu0 0.0
    %4141 = vmatprep.subr.mxu0 0.0
    %4142 = vmatpush1.msra.mxu0 0.0
    %4143 = vmatprep.subr.mxu0 0.0
    %4144 = vmatpush1.msra.mxu0 0.0
    %4145 = vmatprep.subr.mxu0 0.0
    %4146 = vmatpush1.msra.mxu0 0.0
    %4147 = vmatprep.subr.mxu0 0.0
    %4148 = vmatpush1.msra.mxu0 0.0
    %4149 = vmatprep.subr.mxu0 0.0
    %4150 = vmatpush1.msra.mxu0 0.0
    %4151 = vmatprep.subr.mxu0 0.0
    %4152 = vmatpush1.msra.mxu0 0.0
    %4153 = vmatprep.subr.mxu0 0.0
    %4154 = vmatpush1.msra.mxu0 0.0
    %4155 = vmatprep.subr.mxu0 0.0
    %4156 = vmatpush1.msra.mxu0 0.0
    %4157 = vmatprep.subr.mxu0 0.0
    %4158 = vmatpush1.msra.mxu0 0.0
    %4159 = vmatprep.subr.mxu0 0.0
    %4160 = vmatpush1.msra.mxu0 0.0
    %4161 = vmatprep.subr.mxu0 0.0
    %4162 = vmatpush1.msra.mxu0 0.0
    %4163 = vmatprep.mubr.f32.mxu0 0.0
    %4164 = vmatmul.mubr.f32.gmra.mrb[0].mxu0 %v4097
    %v4165 = vpop.f32.mrb[0].mxu0
    %v4166 = vadd.f32 %v3758, %v4165
    %v4167 = vpop.f32.mrb[0].mxu0
    %v4168 = vadd.f32 %v3758, %v4167
    %4169 = vdwg.mxu0
    %4170 = vmatprep.subr.mxu0 %v4091
    %4171 = vmatpush1.msra.mxu0 %v4090
    %4172 = vmatprep.subr.mxu0 0.0
    %4173 = vmatpush1.msra.mxu0 0.0
    %4174 = vmatprep.subr.mxu0 0.0
    %4175 = vmatpush1.msra.mxu0 0.0
    %4176 = vmatprep.subr.mxu0 0.0
    %4177 = vmatpush1.msra.mxu0 0.0
    %4178 = vmatprep.subr.mxu0 0.0
    %4179 = vmatpush1.msra.mxu0 0.0
    %4180 = vmatprep.subr.mxu0 0.0
    %4181 = vmatpush1.msra.mxu0 0.0
    %4182 = vmatprep.subr.mxu0 0.0
    %4183 = vmatpush1.msra.mxu0 0.0
    %4184 = vmatprep.subr.mxu0 0.0
    %4185 = vmatpush1.msra.mxu0 0.0
    %4186 = vmatprep.subr.mxu0 0.0
    %4187 = vmatpush1.msra.mxu0 0.0
    %4188 = vmatprep.subr.mxu0 0.0
    %4189 = vmatpush1.msra.mxu0 0.0
    %4190 = vmatprep.subr.mxu0 0.0
    %4191 = vmatpush1.msra.mxu0 0.0
    %4192 = vmatprep.subr.mxu0 0.0
    %4193 = vmatpush1.msra.mxu0 0.0
    %4194 = vmatprep.subr.mxu0 0.0
    %4195 = vmatpush1.msra.mxu0 0.0
    %4196 = vmatprep.subr.mxu0 0.0
    %4197 = vmatpush1.msra.mxu0 0.0
    %4198 = vmatprep.subr.mxu0 0.0
    %4199 = vmatpush1.msra.mxu0 0.0
    %4200 = vmatprep.subr.mxu0 0.0
    %4201 = vmatpush1.msra.mxu0 0.0
    %4202 = vmatprep.subr.mxu0 0.0
    %4203 = vmatpush1.msra.mxu0 0.0
    %4204 = vmatprep.subr.mxu0 0.0
    %4205 = vmatpush1.msra.mxu0 0.0
    %4206 = vmatprep.subr.mxu0 0.0
    %4207 = vmatpush1.msra.mxu0 0.0
    %4208 = vmatprep.subr.mxu0 0.0
    %4209 = vmatpush1.msra.mxu0 0.0
    %4210 = vmatprep.subr.mxu0 0.0
    %4211 = vmatpush1.msra.mxu0 0.0
    %4212 = vmatprep.subr.mxu0 0.0
    %4213 = vmatpush1.msra.mxu0 0.0
    %4214 = vmatprep.subr.mxu0 0.0
    %4215 = vmatpush1.msra.mxu0 0.0
    %4216 = vmatprep.subr.mxu0 0.0
    %4217 = vmatpush1.msra.mxu0 0.0
    %4218 = vmatprep.subr.mxu0 0.0
    %4219 = vmatpush1.msra.mxu0 0.0
    %4220 = vmatprep.subr.mxu0 0.0
    %4221 = vmatpush1.msra.mxu0 0.0
    %4222 = vmatprep.subr.mxu0 0.0
    %4223 = vmatpush1.msra.mxu0 0.0
    %4224 = vmatprep.subr.mxu0 0.0
    %4225 = vmatpush1.msra.mxu0 0.0
    %4226 = vmatprep.subr.mxu0 0.0
    %4227 = vmatpush1.msra.mxu0 0.0
    %4228 = vmatprep.subr.mxu0 0.0
    %4229 = vmatpush1.msra.mxu0 0.0
    %4230 = vmatprep.subr.mxu0 0.0
    %4231 = vmatpush1.msra.mxu0 0.0
    %4232 = vmatprep.subr.mxu0 0.0
    %4233 = vmatpush1.msra.mxu0 0.0
    %4234 = vmatprep.mubr.f32.mxu0 0.0
    %4235 = vmatmul.mubr.f32.gmra.mrb[0].mxu0 %v4097
    %v4236 = vpop.f32.mrb[0].mxu0
    %v4237 = vadd.f32 %v3758, %v4236
    %v4238 = vpop.f32.mrb[0].mxu0
    %v4239 = vadd.f32 %v3758, %v4238
    %4240 = vdwg.mxu0
    %4241 = vmatprep.subr.mxu0 %v4093
    %4242 = vmatpush1.msra.mxu0 %v4092
    %4243 = vmatprep.subr.mxu0 0.0
    %4244 = vmatpush1.msra.mxu0 0.0
    %4245 = vmatprep.subr.mxu0 0.0
    %4246 = vmatpush1.msra.mxu0 0.0
    %4247 = vmatprep.subr.mxu0 0.0
    %4248 = vmatpush1.msra.mxu0 0.0
    %4249 = vmatprep.subr.mxu0 0.0
    %4250 = vmatpush1.msra.mxu0 0.0
    %4251 = vmatprep.subr.mxu0 0.0
    %4252 = vmatpush1.msra.mxu0 0.0
    %4253 = vmatprep.subr.mxu0 0.0
    %4254 = vmatpush1.msra.mxu0 0.0
    %4255 = vmatprep.subr.mxu0 0.0
    %4256 = vmatpush1.msra.mxu0 0.0
    %4257 = vmatprep.subr.mxu0 0.0
    %4258 = vmatpush1.msra.mxu0 0.0
    %4259 = vmatprep.subr.mxu0 0.0
    %4260 = vmatpush1.msra.mxu0 0.0
    %4261 = vmatprep.subr.mxu0 0.0
    %4262 = vmatpush1.msra.mxu0 0.0
    %4263 = vmatprep.subr.mxu0 0.0
    %4264 = vmatpush1.msra.mxu0 0.0
    %4265 = vmatprep.subr.mxu0 0.0
    %4266 = vmatpush1.msra.mxu0 0.0
    %4267 = vmatprep.subr.mxu0 0.0
    %4268 = vmatpush1.msra.mxu0 0.0
    %4269 = vmatprep.subr.mxu0 0.0
    %4270 = vmatpush1.msra.mxu0 0.0
    %4271 = vmatprep.subr.mxu0 0.0
    %4272 = vmatpush1.msra.mxu0 0.0
    %4273 = vmatprep.subr.mxu0 0.0
    %4274 = vmatpush1.msra.mxu0 0.0
    %4275 = vmatprep.subr.mxu0 0.0
    %4276 = vmatpush1.msra.mxu0 0.0
    %4277 = vmatprep.subr.mxu0 0.0
    %4278 = vmatpush1.msra.mxu0 0.0
    %4279 = vmatprep.subr.mxu0 0.0
    %4280 = vmatpush1.msra.mxu0 0.0
    %4281 = vmatprep.subr.mxu0 0.0
    %4282 = vmatpush1.msra.mxu0 0.0
    %4283 = vmatprep.subr.mxu0 0.0
    %4284 = vmatpush1.msra.mxu0 0.0
    %4285 = vmatprep.subr.mxu0 0.0
    %4286 = vmatpush1.msra.mxu0 0.0
    %4287 = vmatprep.subr.mxu0 0.0
    %4288 = vmatpush1.msra.mxu0 0.0
    %4289 = vmatprep.subr.mxu0 0.0
    %4290 = vmatpush1.msra.mxu0 0.0
    %4291 = vmatprep.subr.mxu0 0.0
    %4292 = vmatpush1.msra.mxu0 0.0
    %4293 = vmatprep.subr.mxu0 0.0
    %4294 = vmatpush1.msra.mxu0 0.0
    %4295 = vmatprep.subr.mxu0 0.0
    %4296 = vmatpush1.msra.mxu0 0.0
    %4297 = vmatprep.subr.mxu0 0.0
    %4298 = vmatpush1.msra.mxu0 0.0
    %4299 = vmatprep.subr.mxu0 0.0
    %4300 = vmatpush1.msra.mxu0 0.0
    %4301 = vmatprep.subr.mxu0 0.0
    %4302 = vmatpush1.msra.mxu0 0.0
    %4303 = vmatprep.subr.mxu0 0.0
    %4304 = vmatpush1.msra.mxu0 0.0
    %4305 = vmatprep.mubr.f32.mxu0 0.0
    %4306 = vmatmul.mubr.f32.gmra.mrb[0].mxu0 %v4097
    %v4307 = vpop.f32.mrb[0].mxu0
    %v4308 = vadd.f32 %v3758, %v4307
    %v4309 = vpop.f32.mrb[0].mxu0
    %v4310 = vadd.f32 %v3758, %v4309
    %4311 = vdwg.mxu0
    %4312 = vmatprep.subr.mxu0 %v4095
    %4313 = vmatpush1.msra.mxu0 %v4094
    %4314 = vmatprep.subr.mxu0 0.0
    %4315 = vmatpush1.msra.mxu0 0.0
    %4316 = vmatprep.subr.mxu0 0.0
    %4317 = vmatpush1.msra.mxu0 0.0
    %4318 = vmatprep.subr.mxu0 0.0
    %4319 = vmatpush1.msra.mxu0 0.0
    %4320 = vmatprep.subr.mxu0 0.0
    %4321 = vmatpush1.msra.mxu0 0.0
    %4322 = vmatprep.subr.mxu0 0.0
    %4323 = vmatpush1.msra.mxu0 0.0
    %4324 = vmatprep.subr.mxu0 0.0
    %4325 = vmatpush1.msra.mxu0 0.0
    %4326 = vmatprep.subr.mxu0 0.0
    %4327 = vmatpush1.msra.mxu0 0.0
    %4328 = vmatprep.subr.mxu0 0.0
    %4329 = vmatpush1.msra.mxu0 0.0
    %4330 = vmatprep.subr.mxu0 0.0
    %4331 = vmatpush1.msra.mxu0 0.0
    %4332 = vmatprep.subr.mxu0 0.0
    %4333 = vmatpush1.msra.mxu0 0.0
    %4334 = vmatprep.subr.mxu0 0.0
    %4335 = vmatpush1.msra.mxu0 0.0
    %4336 = vmatprep.subr.mxu0 0.0
    %4337 = vmatpush1.msra.mxu0 0.0
    %4338 = vmatprep.subr.mxu0 0.0
    %4339 = vmatpush1.msra.mxu0 0.0
    %4340 = vmatprep.subr.mxu0 0.0
    %4341 = vmatpush1.msra.mxu0 0.0
    %4342 = vmatprep.subr.mxu0 0.0
    %4343 = vmatpush1.msra.mxu0 0.0
    %4344 = vmatprep.subr.mxu0 0.0
    %4345 = vmatpush1.msra.mxu0 0.0
    %4346 = vmatprep.subr.mxu0 0.0
    %4347 = vmatpush1.msra.mxu0 0.0
    %4348 = vmatprep.subr.mxu0 0.0
    %4349 = vmatpush1.msra.mxu0 0.0
    %4350 = vmatprep.subr.mxu0 0.0
    %4351 = vmatpush1.msra.mxu0 0.0
    %4352 = vmatprep.subr.mxu0 0.0
    %4353 = vmatpush1.msra.mxu0 0.0
    %4354 = vmatprep.subr.mxu0 0.0
    %4355 = vmatpush1.msra.mxu0 0.0
    %4356 = vmatprep.subr.mxu0 0.0
    %4357 = vmatpush1.msra.mxu0 0.0
    %4358 = vmatprep.subr.mxu0 0.0
    %4359 = vmatpush1.msra.mxu0 0.0
    %4360 = vmatprep.subr.mxu0 0.0
    %4361 = vmatpush1.msra.mxu0 0.0
    %4362 = vmatprep.subr.mxu0 0.0
    %4363 = vmatpush1.msra.mxu0 0.0
    %4364 = vmatprep.subr.mxu0 0.0
    %4365 = vmatpush1.msra.mxu0 0.0
    %4366 = vmatprep.subr.mxu0 0.0
    %4367 = vmatpush1.msra.mxu0 0.0
    %4368 = vmatprep.subr.mxu0 0.0
    %4369 = vmatpush1.msra.mxu0 0.0
    %4370 = vmatprep.subr.mxu0 0.0
    %4371 = vmatpush1.msra.mxu0 0.0
    %4372 = vmatprep.subr.mxu0 0.0
    %4373 = vmatpush1.msra.mxu0 0.0
    %4374 = vmatprep.subr.mxu0 0.0
    %4375 = vmatpush1.msra.mxu0 0.0
    %4376 = vmatprep.mubr.f32.mxu0 0.0
    %4377 = vmatmul.mubr.f32.gmra.mrb[0].mxu0 %v4097
    %v4378 = vpop.f32.mrb[0].mxu0
    %v4379 = vadd.f32 %v3758, %v4378
    %v4380 = vpop.f32.mrb[0].mxu0
    %v4381 = vadd.f32 %v3758, %v4380
    %4382 = vdwg.mxu0
    %4383 = vst [vmem:[#allocation2] sm:$0xf] %v3855
    %4384 = vst [vmem:[#allocation2 + $0x8] sm:$0xf] %v4166
    %4385 = vst [vmem:[#allocation2 + $0x10] sm:$0xf] %v3857
    %4386 = vst [vmem:[#allocation2 + $0x18] sm:$0xf] %v4168
    %4387 = vst [vmem:[#allocation2 + $0x20] sm:$0xf] %v3926
    %4388 = vst [vmem:[#allocation2 + $0x28] sm:$0xf] %v4237
    %4389 = vst [vmem:[#allocation2 + $0x30] sm:$0xf] %v3928
    %4390 = vst [vmem:[#allocation2 + $0x38] sm:$0xf] %v4239
    %4391 = vst [vmem:[#allocation2 + $0x40] sm:$0xf] %v3997
    %4392 = vst [vmem:[#allocation2 + $0x48] sm:$0xf] %v4308
    %4393 = vst [vmem:[#allocation2 + $0x50] sm:$0xf] %v3999
    %4394 = vst [vmem:[#allocation2 + $0x58] sm:$0xf] %v4310
    %4395 = vst [vmem:[#allocation2 + $0x60] sm:$0xf] %v4068
    %4396 = vst [vmem:[#allocation2 + $0x68] sm:$0xf] %v4379
    %4397 = vst [vmem:[#allocation2 + $0x70] sm:$0xf] %v4070
    %4398 = vst [vmem:[#allocation2 + $0x78] sm:$0xf] %v4381
    %v4399 = vld [vmem:[#allocation2] sm:$0xf]
    %v4400 = vld [vmem:[#allocation2 + $0x8] sm:$0xf]
    %v4401 = vld [vmem:[#allocation2 + $0x10] sm:$0xf]
    %v4402 = vld [vmem:[#allocation2 + $0x18] sm:$0xf]
    %v4403 = vld [vmem:[#allocation2 + $0x20] sm:$0xf]
    %v4404 = vld [vmem:[#allocation2 + $0x28] sm:$0xf]
    %v4405 = vld [vmem:[#allocation2 + $0x30] sm:$0xf]
    %v4406 = vld [vmem:[#allocation2 + $0x38] sm:$0xf]
    %v4407 = vld [vmem:[#allocation2 + $0x40] sm:$0xf]
    %v4408 = vld [vmem:[#allocation2 + $0x48] sm:$0xf]
    %v4409 = vld [vmem:[#allocation2 + $0x50] sm:$0xf]
    %v4410 = vld [vmem:[#allocation2 + $0x58] sm:$0xf]
    %v4411 = vld [vmem:[#allocation2 + $0x60] sm:$0xf]
    %v4412 = vld [vmem:[#allocation2 + $0x68] sm:$0xf]
    %v4413 = vld [vmem:[#allocation2 + $0x70] sm:$0xf]
    %v4414 = vld [vmem:[#allocation2 + $0x78] sm:$0xf]
    %v4415 = vld [vmem:[#allocation6] sm:$0xf]
    %v4416 = vld [vmem:[#allocation6 + $0x68] sm:$0x3]
    %v4417 = vld [vmem:[#allocation6] sm:$0x3]
    %v4418 = vld [vmem:[#allocation6 + $0x70] sm:$0x3]
    %v4419 = vsel %vm1702, %v4399, 0.0
    %v4420 = vrot.slane %v4419, 4
    %v4421 = vadd.f32 %v4419, %v4420
    %v4422 = vrot.slane %v4421, 2
    %v4423 = vadd.f32 %v4421, %v4422
    %v4424 = vrot.slane %v4423, 1
    %v4425 = vadd.f32 %v4423, %v4424
    %v4426 = vsel %vm1702, %v4400, 0.0
    %v4427 = vrot.slane %v4426, 4
    %v4428 = vadd.f32 %v4426, %v4427
    %v4429 = vrot.slane %v4428, 2
    %v4430 = vadd.f32 %v4428, %v4429
    %v4431 = vrot.slane %v4430, 1
    %v4432 = vadd.f32 %v4430, %v4431
    %v4433 = vsel %vm1702, %v4401, 0.0
    %v4434 = vrot.slane %v4433, 4
    %v4435 = vadd.f32 %v4433, %v4434
    %v4436 = vrot.slane %v4435, 2
    %v4437 = vadd.f32 %v4435, %v4436
    %v4438 = vrot.slane %v4437, 1
    %v4439 = vadd.f32 %v4437, %v4438
    %v4440 = vsel %vm1702, %v4402, 0.0
    %v4441 = vrot.slane %v4440, 4
    %v4442 = vadd.f32 %v4440, %v4441
    %v4443 = vrot.slane %v4442, 2
    %v4444 = vadd.f32 %v4442, %v4443
    %v4445 = vrot.slane %v4444, 1
    %v4446 = vadd.f32 %v4444, %v4445
    %v4447 = vsel %vm1702, %v4403, 0.0
    %v4448 = vrot.slane %v4447, 4
    %v4449 = vadd.f32 %v4447, %v4448
    %v4450 = vrot.slane %v4449, 2
    %v4451 = vadd.f32 %v4449, %v4450
    %v4452 = vrot.slane %v4451, 1
    %v4453 = vadd.f32 %v4451, %v4452
    %v4454 = vsel %vm1702, %v4404, 0.0
    %v4455 = vrot.slane %v4454, 4
    %v4456 = vadd.f32 %v4454, %v4455
    %v4457 = vrot.slane %v4456, 2
    %v4458 = vadd.f32 %v4456, %v4457
    %v4459 = vrot.slane %v4458, 1
    %v4460 = vadd.f32 %v4458, %v4459
    %v4461 = vsel %vm1702, %v4405, 0.0
    %v4462 = vrot.slane %v4461, 4
    %v4463 = vadd.f32 %v4461, %v4462
    %v4464 = vrot.slane %v4463, 2
    %v4465 = vadd.f32 %v4463, %v4464
    %v4466 = vrot.slane %v4465, 1
    %v4467 = vadd.f32 %v4465, %v4466
    %v4468 = vsel %vm1702, %v4406, 0.0
    %v4469 = vrot.slane %v4468, 4
    %v4470 = vadd.f32 %v4468, %v4469
    %v4471 = vrot.slane %v4470, 2
    %v4472 = vadd.f32 %v4470, %v4471
    %v4473 = vrot.slane %v4472, 1
    %v4474 = vadd.f32 %v4472, %v4473
    %v4475 = vsel %vm1702, %v4407, 0.0
    %v4476 = vrot.slane %v4475, 4
    %v4477 = vadd.f32 %v4475, %v4476
    %v4478 = vrot.slane %v4477, 2
    %v4479 = vadd.f32 %v4477, %v4478
    %v4480 = vrot.slane %v4479, 1
    %v4481 = vadd.f32 %v4479, %v4480
    %v4482 = vsel %vm1702, %v4408, 0.0
    %v4483 = vrot.slane %v4482, 4
    %v4484 = vadd.f32 %v4482, %v4483
    %v4485 = vrot.slane %v4484, 2
    %v4486 = vadd.f32 %v4484, %v4485
    %v4487 = vrot.slane %v4486, 1
    %v4488 = vadd.f32 %v4486, %v4487
    %v4489 = vsel %vm1702, %v4409, 0.0
    %v4490 = vrot.slane %v4489, 4
    %v4491 = vadd.f32 %v4489, %v4490
    %v4492 = vrot.slane %v4491, 2
    %v4493 = vadd.f32 %v4491, %v4492
    %v4494 = vrot.slane %v4493, 1
    %v4495 = vadd.f32 %v4493, %v4494
    %v4496 = vsel %vm1702, %v4410, 0.0
    %v4497 = vrot.slane %v4496, 4
    %v4498 = vadd.f32 %v4496, %v4497
    %v4499 = vrot.slane %v4498, 2
    %v4500 = vadd.f32 %v4498, %v4499
    %v4501 = vrot.slane %v4500, 1
    %v4502 = vadd.f32 %v4500, %v4501
    %v4503 = vsel %vm1702, %v4411, 0.0
    %v4504 = vrot.slane %v4503, 4
    %v4505 = vadd.f32 %v4503, %v4504
    %v4506 = vrot.slane %v4505, 2
    %v4507 = vadd.f32 %v4505, %v4506
    %v4508 = vrot.slane %v4507, 1
    %v4509 = vadd.f32 %v4507, %v4508
    %v4510 = vsel %vm1702, %v4412, 0.0
    %v4511 = vrot.slane %v4510, 4
    %v4512 = vadd.f32 %v4510, %v4511
    %v4513 = vrot.slane %v4512, 2
    %v4514 = vadd.f32 %v4512, %v4513
    %v4515 = vrot.slane %v4514, 1
    %v4516 = vadd.f32 %v4514, %v4515
    %v4517 = vsel %vm1702, %v4413, 0.0
    %v4518 = vrot.slane %v4517, 4
    %v4519 = vadd.f32 %v4517, %v4518
    %v4520 = vrot.slane %v4519, 2
    %v4521 = vadd.f32 %v4519, %v4520
    %v4522 = vrot.slane %v4521, 1
    %v4523 = vadd.f32 %v4521, %v4522
    %v4524 = vsel %vm1702, %v4414, 0.0
    %v4525 = vrot.slane %v4524, 4
    %v4526 = vadd.f32 %v4524, %v4525
    %v4527 = vrot.slane %v4526, 2
    %v4528 = vadd.f32 %v4526, %v4527
    %v4529 = vrot.slane %v4528, 1
    %v4530 = vadd.f32 %v4528, %v4529
    %v4531 = vadd.f32 %v4425, %v4432
    %v4532 = vadd.f32 %v4439, %v4446
    %v4533 = vadd.f32 %v4453, %v4460
    %v4534 = vadd.f32 %v4467, %v4474
    %v4535 = vadd.f32 %v4481, %v4488
    %v4536 = vadd.f32 %v4495, %v4502
    %v4537 = vadd.f32 %v4509, %v4516
    %v4538 = vadd.f32 %v4523, %v4530
    %v4539 = vadd.f32 %v4531, %v4532
    %v4540 = vadd.f32 %v4533, %v4534
    %v4541 = vadd.f32 %v4535, %v4536
    %v4542 = vadd.f32 %v4537, %v4538
    %v4543 = vadd.f32 %v4539, %v4540
    %v4544 = vadd.f32 %v4541, %v4542
    %v4545 = vadd.f32 %v4543, %v4544
    %v4546 = vmul.f32 %v4545, 0.015625
    %v4547 = vlaneseq
    %v4548 = vshrl.u32 %v4547, 7
    %v4549 = vsub.s32 0, %v4548
    %v4550 = vrot.slane %v4546, %v4549
    %v4551 = vsub.f32 %v4399, %v4550
    %v4552 = vsub.f32 %v4400, %v4550
    %v4553 = vsub.f32 %v4401, %v4550
    %v4554 = vsub.f32 %v4402, %v4550
    %v4555 = vsub.f32 %v4403, %v4550
    %v4556 = vsub.f32 %v4404, %v4550
    %v4557 = vsub.f32 %v4405, %v4550
    %v4558 = vsub.f32 %v4406, %v4550
    %v4559 = vsub.f32 %v4407, %v4550
    %v4560 = vsub.f32 %v4408, %v4550
    %v4561 = vsub.f32 %v4409, %v4550
    %v4562 = vsub.f32 %v4410, %v4550
    %v4563 = vsub.f32 %v4411, %v4550
    %v4564 = vsub.f32 %v4412, %v4550
    %v4565 = vsub.f32 %v4413, %v4550
    %v4566 = vsub.f32 %v4414, %v4550
    %v4567 = vmul.f32 %v4551, %v4551
    %v4568 = vmul.f32 %v4552, %v4552
    %v4569 = vmul.f32 %v4553, %v4553
    %v4570 = vmul.f32 %v4554, %v4554
    %v4571 = vmul.f32 %v4555, %v4555
    %v4572 = vmul.f32 %v4556, %v4556
    %v4573 = vmul.f32 %v4557, %v4557
    %v4574 = vmul.f32 %v4558, %v4558
    %v4575 = vmul.f32 %v4559, %v4559
    %v4576 = vmul.f32 %v4560, %v4560
    %v4577 = vmul.f32 %v4561, %v4561
    %v4578 = vmul.f32 %v4562, %v4562
    %v4579 = vmul.f32 %v4563, %v4563
    %v4580 = vmul.f32 %v4564, %v4564
    %v4581 = vmul.f32 %v4565, %v4565
    %v4582 = vmul.f32 %v4566, %v4566
    %v4583 = vsel %vm1702, %v4567, 0.0
    %v4584 = vrot.slane %v4583, 4
    %v4585 = vadd.f32 %v4583, %v4584
    %v4586 = vrot.slane %v4585, 2
    %v4587 = vadd.f32 %v4585, %v4586
    %v4588 = vrot.slane %v4587, 1
    %v4589 = vadd.f32 %v4587, %v4588
    %v4590 = vsel %vm1702, %v4568, 0.0
    %v4591 = vrot.slane %v4590, 4
    %v4592 = vadd.f32 %v4590, %v4591
    %v4593 = vrot.slane %v4592, 2
    %v4594 = vadd.f32 %v4592, %v4593
    %v4595 = vrot.slane %v4594, 1
    %v4596 = vadd.f32 %v4594, %v4595
    %v4597 = vsel %vm1702, %v4569, 0.0
    %v4598 = vrot.slane %v4597, 4
    %v4599 = vadd.f32 %v4597, %v4598
    %v4600 = vrot.slane %v4599, 2
    %v4601 = vadd.f32 %v4599, %v4600
    %v4602 = vrot.slane %v4601, 1
    %v4603 = vadd.f32 %v4601, %v4602
    %v4604 = vsel %vm1702, %v4570, 0.0
    %v4605 = vrot.slane %v4604, 4
    %v4606 = vadd.f32 %v4604, %v4605
    %v4607 = vrot.slane %v4606, 2
    %v4608 = vadd.f32 %v4606, %v4607
    %v4609 = vrot.slane %v4608, 1
    %v4610 = vadd.f32 %v4608, %v4609
    %v4611 = vsel %vm1702, %v4571, 0.0
    %v4612 = vrot.slane %v4611, 4
    %v4613 = vadd.f32 %v4611, %v4612
    %v4614 = vrot.slane %v4613, 2
    %v4615 = vadd.f32 %v4613, %v4614
    %v4616 = vrot.slane %v4615, 1
    %v4617 = vadd.f32 %v4615, %v4616
    %v4618 = vsel %vm1702, %v4572, 0.0
    %v4619 = vrot.slane %v4618, 4
    %v4620 = vadd.f32 %v4618, %v4619
    %v4621 = vrot.slane %v4620, 2
    %v4622 = vadd.f32 %v4620, %v4621
    %v4623 = vrot.slane %v4622, 1
    %v4624 = vadd.f32 %v4622, %v4623
    %v4625 = vsel %vm1702, %v4573, 0.0
    %v4626 = vrot.slane %v4625, 4
    %v4627 = vadd.f32 %v4625, %v4626
    %v4628 = vrot.slane %v4627, 2
    %v4629 = vadd.f32 %v4627, %v4628
    %v4630 = vrot.slane %v4629, 1
    %v4631 = vadd.f32 %v4629, %v4630
    %v4632 = vsel %vm1702, %v4574, 0.0
    %v4633 = vrot.slane %v4632, 4
    %v4634 = vadd.f32 %v4632, %v4633
    %v4635 = vrot.slane %v4634, 2
    %v4636 = vadd.f32 %v4634, %v4635
    %v4637 = vrot.slane %v4636, 1
    %v4638 = vadd.f32 %v4636, %v4637
    %v4639 = vsel %vm1702, %v4575, 0.0
    %v4640 = vrot.slane %v4639, 4
    %v4641 = vadd.f32 %v4639, %v4640
    %v4642 = vrot.slane %v4641, 2
    %v4643 = vadd.f32 %v4641, %v4642
    %v4644 = vrot.slane %v4643, 1
    %v4645 = vadd.f32 %v4643, %v4644
    %v4646 = vsel %vm1702, %v4576, 0.0
    %v4647 = vrot.slane %v4646, 4
    %v4648 = vadd.f32 %v4646, %v4647
    %v4649 = vrot.slane %v4648, 2
    %v4650 = vadd.f32 %v4648, %v4649
    %v4651 = vrot.slane %v4650, 1
    %v4652 = vadd.f32 %v4650, %v4651
    %v4653 = vsel %vm1702, %v4577, 0.0
    %v4654 = vrot.slane %v4653, 4
    %v4655 = vadd.f32 %v4653, %v4654
    %v4656 = vrot.slane %v4655, 2
    %v4657 = vadd.f32 %v4655, %v4656
    %v4658 = vrot.slane %v4657, 1
    %v4659 = vadd.f32 %v4657, %v4658
    %v4660 = vsel %vm1702, %v4578, 0.0
    %v4661 = vrot.slane %v4660, 4
    %v4662 = vadd.f32 %v4660, %v4661
    %v4663 = vrot.slane %v4662, 2
    %v4664 = vadd.f32 %v4662, %v4663
    %v4665 = vrot.slane %v4664, 1
    %v4666 = vadd.f32 %v4664, %v4665
    %v4667 = vsel %vm1702, %v4579, 0.0
    %v4668 = vrot.slane %v4667, 4
    %v4669 = vadd.f32 %v4667, %v4668
    %v4670 = vrot.slane %v4669, 2
    %v4671 = vadd.f32 %v4669, %v4670
    %v4672 = vrot.slane %v4671, 1
    %v4673 = vadd.f32 %v4671, %v4672
    %v4674 = vsel %vm1702, %v4580, 0.0
    %v4675 = vrot.slane %v4674, 4
    %v4676 = vadd.f32 %v4674, %v4675
    %v4677 = vrot.slane %v4676, 2
    %v4678 = vadd.f32 %v4676, %v4677
    %v4679 = vrot.slane %v4678, 1
    %v4680 = vadd.f32 %v4678, %v4679
    %v4681 = vsel %vm1702, %v4581, 0.0
    %v4682 = vrot.slane %v4681, 4
    %v4683 = vadd.f32 %v4681, %v4682
    %v4684 = vrot.slane %v4683, 2
    %v4685 = vadd.f32 %v4683, %v4684
    %v4686 = vrot.slane %v4685, 1
    %v4687 = vadd.f32 %v4685, %v4686
    %v4688 = vsel %vm1702, %v4582, 0.0
    %v4689 = vrot.slane %v4688, 4
    %v4690 = vadd.f32 %v4688, %v4689
    %v4691 = vrot.slane %v4690, 2
    %v4692 = vadd.f32 %v4690, %v4691
    %v4693 = vrot.slane %v4692, 1
    %v4694 = vadd.f32 %v4692, %v4693
    %v4695 = vadd.f32 %v4589, %v4596
    %v4696 = vadd.f32 %v4603, %v4610
    %v4697 = vadd.f32 %v4617, %v4624
    %v4698 = vadd.f32 %v4631, %v4638
    %v4699 = vadd.f32 %v4645, %v4652
    %v4700 = vadd.f32 %v4659, %v4666
    %v4701 = vadd.f32 %v4673, %v4680
    %v4702 = vadd.f32 %v4687, %v4694
    %v4703 = vadd.f32 %v4695, %v4696
    %v4704 = vadd.f32 %v4697, %v4698
    %v4705 = vadd.f32 %v4699, %v4700
    %v4706 = vadd.f32 %v4701, %v4702
    %v4707 = vadd.f32 %v4703, %v4704
    %v4708 = vadd.f32 %v4705, %v4706
    %v4709 = vadd.f32 %v4707, %v4708
    %v4710 = vmul.f32 %v4709, 0.015625
    %v4711 = vadd.f32 %v4710, 1e-06
    %v4712 = vrsqrt.pop %v4711
    %v4713 = vlaneseq
    %v4714 = vshrl.u32 %v4713, 7
    %v4715 = vsub.s32 0, %v4714
    %v4716 = vrot.slane %v4712, %v4715
    %v4717 = vmul.f32 %v4551, %v4716
    %v4718 = vmul.f32 %v4552, %v4716
    %v4719 = vmul.f32 %v4553, %v4716
    %v4720 = vmul.f32 %v4554, %v4716
    %v4721 = vmul.f32 %v4555, %v4716
    %v4722 = vmul.f32 %v4556, %v4716
    %v4723 = vmul.f32 %v4557, %v4716
    %v4724 = vmul.f32 %v4558, %v4716
    %v4725 = vmul.f32 %v4559, %v4716
    %v4726 = vmul.f32 %v4560, %v4716
    %v4727 = vmul.f32 %v4561, %v4716
    %v4728 = vmul.f32 %v4562, %v4716
    %v4729 = vmul.f32 %v4563, %v4716
    %v4730 = vmul.f32 %v4564, %v4716
    %v4731 = vmul.f32 %v4565, %v4716
    %v4732 = vmul.f32 %v4566, %v4716
    %4734 = vset.pattern.permute.xlu0 24
    %4735 = vperm.xlu0 %4734, %v4415
    %v4736 = vpop.permute.xlu0 %4735
    %v4738 = vmul.f32 %v4717, %v4736
    %v4739 = vmul.f32 %v4718, %v4736
    %v4740 = vmul.f32 %v4719, %v4736
    %v4741 = vmul.f32 %v4720, %v4736
    %v4742 = vmul.f32 %v4721, %v4736
    %v4743 = vmul.f32 %v4722, %v4736
    %v4744 = vmul.f32 %v4723, %v4736
    %v4745 = vmul.f32 %v4724, %v4736
    %v4746 = vmul.f32 %v4725, %v4736
    %v4747 = vmul.f32 %v4726, %v4736
    %v4748 = vmul.f32 %v4727, %v4736
    %v4749 = vmul.f32 %v4728, %v4736
    %v4750 = vmul.f32 %v4729, %v4736
    %v4751 = vmul.f32 %v4730, %v4736
    %v4752 = vmul.f32 %v4731, %v4736
    %v4753 = vmul.f32 %v4732, %v4736
    %4754 = vset.pattern.permute.xlu0 25
    %4755 = vperm.xlu0 %4754, %v4415
    %v4756 = vpop.permute.xlu0 %4755
    %v4758 = vadd.f32 %v4738, %v4756
    %v4759 = vadd.f32 %v4739, %v4756
    %v4760 = vadd.f32 %v4740, %v4756
    %v4761 = vadd.f32 %v4741, %v4756
    %v4762 = vadd.f32 %v4742, %v4756
    %v4763 = vadd.f32 %v4743, %v4756
    %v4764 = vadd.f32 %v4744, %v4756
    %v4765 = vadd.f32 %v4745, %v4756
    %v4766 = vadd.f32 %v4746, %v4756
    %v4767 = vadd.f32 %v4747, %v4756
    %v4768 = vadd.f32 %v4748, %v4756
    %v4769 = vadd.f32 %v4749, %v4756
    %v4770 = vadd.f32 %v4750, %v4756
    %v4771 = vadd.f32 %v4751, %v4756
    %v4772 = vadd.f32 %v4752, %v4756
    %v4773 = vadd.f32 %v4753, %v4756
    %v4774 = vxor.u32 %v4758, 2147483648
    %v4775 = vxor.u32 %v4759, 2147483648
    %v4776 = vxor.u32 %v4760, 2147483648
    %v4777 = vxor.u32 %v4761, 2147483648
    %v4778 = vxor.u32 %v4762, 2147483648
    %v4779 = vxor.u32 %v4763, 2147483648
    %v4780 = vxor.u32 %v4764, 2147483648
    %v4781 = vxor.u32 %v4765, 2147483648
    %v4782 = vxor.u32 %v4766, 2147483648
    %v4783 = vxor.u32 %v4767, 2147483648
    %v4784 = vxor.u32 %v4768, 2147483648
    %v4785 = vxor.u32 %v4769, 2147483648
    %v4786 = vxor.u32 %v4770, 2147483648
    %v4787 = vxor.u32 %v4771, 2147483648
    %v4788 = vxor.u32 %v4772, 2147483648
    %v4789 = vxor.u32 %v4773, 2147483648
    %v4790 = vmul.f32 %v4774, 1.442695
    %v4791 = vpow.pop %v4790
    %v4792 = vmul.f32 %v4775, 1.442695
    %v4793 = vpow.pop %v4792
    %v4794 = vmul.f32 %v4776, 1.442695
    %v4795 = vpow.pop %v4794
    %v4796 = vmul.f32 %v4777, 1.442695
    %v4797 = vpow.pop %v4796
    %v4798 = vmul.f32 %v4778, 1.442695
    %v4799 = vpow.pop %v4798
    %v4800 = vmul.f32 %v4779, 1.442695
    %v4801 = vpow.pop %v4800
    %v4802 = vmul.f32 %v4780, 1.442695
    %v4803 = vpow.pop %v4802
    %v4804 = vmul.f32 %v4781, 1.442695
    %v4805 = vpow.pop %v4804
    %v4806 = vmul.f32 %v4782, 1.442695
    %v4807 = vpow.pop %v4806
    %v4808 = vmul.f32 %v4783, 1.442695
    %v4809 = vpow.pop %v4808
    %v4810 = vmul.f32 %v4784, 1.442695
    %v4811 = vpow.pop %v4810
    %v4812 = vmul.f32 %v4785, 1.442695
    %v4813 = vpow.pop %v4812
    %v4814 = vmul.f32 %v4786, 1.442695
    %v4815 = vpow.pop %v4814
    %v4816 = vmul.f32 %v4787, 1.442695
    %v4817 = vpow.pop %v4816
    %v4818 = vmul.f32 %v4788, 1.442695
    %v4819 = vpow.pop %v4818
    %v4820 = vmul.f32 %v4789, 1.442695
    %v4821 = vpow.pop %v4820
    %v4822 = vadd.f32 %v4791, 1.0
    %v4823 = vadd.f32 %v4793, 1.0
    %v4824 = vadd.f32 %v4795, 1.0
    %v4825 = vadd.f32 %v4797, 1.0
    %v4826 = vadd.f32 %v4799, 1.0
    %v4827 = vadd.f32 %v4801, 1.0
    %v4828 = vadd.f32 %v4803, 1.0
    %v4829 = vadd.f32 %v4805, 1.0
    %v4830 = vadd.f32 %v4807, 1.0
    %v4831 = vadd.f32 %v4809, 1.0
    %v4832 = vadd.f32 %v4811, 1.0
    %v4833 = vadd.f32 %v4813, 1.0
    %v4834 = vadd.f32 %v4815, 1.0
    %v4835 = vadd.f32 %v4817, 1.0
    %v4836 = vadd.f32 %v4819, 1.0
    %v4837 = vadd.f32 %v4821, 1.0
    %v4838 = vrcp.pop %v4822
    %v4839 = vmul.f32 1.0, %v4838
    %v4840 = vrcp.pop %v4823
    %v4841 = vmul.f32 1.0, %v4840
    %v4842 = vrcp.pop %v4824
    %v4843 = vmul.f32 1.0, %v4842
    %v4844 = vrcp.pop %v4825
    %v4845 = vmul.f32 1.0, %v4844
    %v4846 = vrcp.pop %v4826
    %v4847 = vmul.f32 1.0, %v4846
    %v4848 = vrcp.pop %v4827
    %v4849 = vmul.f32 1.0, %v4848
    %v4850 = vrcp.pop %v4828
    %v4851 = vmul.f32 1.0, %v4850
    %v4852 = vrcp.pop %v4829
    %v4853 = vmul.f32 1.0, %v4852
    %v4854 = vrcp.pop %v4830
    %v4855 = vmul.f32 1.0, %v4854
    %v4856 = vrcp.pop %v4831
    %v4857 = vmul.f32 1.0, %v4856
    %v4858 = vrcp.pop %v4832
    %v4859 = vmul.f32 1.0, %v4858
    %v4860 = vrcp.pop %v4833
    %v4861 = vmul.f32 1.0, %v4860
    %v4862 = vrcp.pop %v4834
    %v4863 = vmul.f32 1.0, %v4862
    %v4864 = vrcp.pop %v4835
    %v4865 = vmul.f32 1.0, %v4864
    %v4866 = vrcp.pop %v4836
    %v4867 = vmul.f32 1.0, %v4866
    %v4868 = vrcp.pop %v4837
    %v4869 = vmul.f32 1.0, %v4868
    %v4870 = vmul.f32 %v4758, %v4839
    %v4871 = vmul.f32 %v4759, %v4841
    %v4872 = vmul.f32 %v4760, %v4843
    %v4873 = vmul.f32 %v4761, %v4845
    %v4874 = vmul.f32 %v4762, %v4847
    %v4875 = vmul.f32 %v4763, %v4849
    %v4876 = vmul.f32 %v4764, %v4851
    %v4877 = vmul.f32 %v4765, %v4853
    %v4878 = vmul.f32 %v4766, %v4855
    %v4879 = vmul.f32 %v4767, %v4857
    %v4880 = vmul.f32 %v4768, %v4859
    %v4881 = vmul.f32 %v4769, %v4861
    %v4882 = vmul.f32 %v4770, %v4863
    %v4883 = vmul.f32 %v4771, %v4865
    %v4884 = vmul.f32 %v4772, %v4867
    %v4885 = vmul.f32 %v4773, %v4869
    %v4902 = vrot.slane %v4870, 4
    %v4903 = vrot.slane %v4871, 4
    %v4904 = vrot.slane %v4872, 4
    %v4905 = vrot.slane %v4873, 4
    %v4906 = vrot.slane %v4874, 4
    %v4907 = vrot.slane %v4875, 4
    %v4908 = vrot.slane %v4876, 4
    %v4909 = vrot.slane %v4877, 4
    %v4910 = vrot.slane %v4878, 4
    %v4911 = vrot.slane %v4879, 4
    %v4912 = vrot.slane %v4880, 4
    %v4913 = vrot.slane %v4881, 4
    %v4914 = vrot.slane %v4882, 4
    %v4915 = vrot.slane %v4883, 4
    %v4916 = vrot.slane %v4884, 4
    %v4917 = vrot.slane %v4885, 4
    %v4934 = vsel %vm1702, 0.0, %v4902
    %v4935 = vsel %vm1702, %v4870, %v4903
    %v4936 = vsel %vm1702, %v4871, %v4904
    %v4937 = vsel %vm1702, %v4872, %v4905
    %v4938 = vsel %vm1702, %v4873, %v4906
    %v4939 = vsel %vm1702, %v4874, %v4907
    %v4940 = vsel %vm1702, %v4875, %v4908
    %v4941 = vsel %vm1702, %v4876, %v4909
    %v4942 = vsel %vm1702, %v4877, %v4910
    %v4943 = vsel %vm1702, %v4878, %v4911
    %v4944 = vsel %vm1702, %v4879, %v4912
    %v4945 = vsel %vm1702, %v4880, %v4913
    %v4946 = vsel %vm1702, %v4881, %v4914
    %v4947 = vsel %vm1702, %v4882, %v4915
    %v4948 = vsel %vm1702, %v4883, %v4916
    %v4949 = vsel %vm1702, %v4884, %v4917
    %4951 = vset.pattern.permute.xlu0 26
    %4952 = vperm.xlu0 %4951, %v4417
    %v4953 = vpop.permute.xlu0 %4952
    %v4956 = vsel %vm1981, %v4416, 0
    %v4958 = vsel %vm1702, %v4871, 0
    %v4960 = vsel %vm1702, %v4872, 0
    %v4962 = vsel %vm1702, %v4873, 0
    %v4964 = vsel %vm1702, %v4874, 0
    %v4966 = vsel %vm1702, %v4875, 0
    %v4968 = vsel %vm1702, %v4876, 0
    %v4970 = vsel %vm1702, %v4877, 0
    %v4972 = vsel %vm1702, %v4878, 0
    %v4974 = vsel %vm1702, %v4879, 0
    %v4976 = vsel %vm1702, %v4880, 0
    %v4978 = vsel %vm1702, %v4881, 0
    %v4980 = vsel %vm1702, %v4882, 0
    %v4982 = vsel %vm1702, %v4883, 0
    %v4984 = vsel %vm1702, %v4884, 0
    %v4986 = vsel %vm1702, %v4885, 0
    %4988 = vmatprep.subr.mxu0 %v4935
    %4989 = vmatpush1.msra.mxu0 %v4934
    %4990 = vmatprep.subr.mxu0 %v4960
    %4991 = vmatpush1.msra.mxu0 %v4958
    %4992 = vmatprep.subr.mxu0 0.0
    %4993 = vmatpush1.msra.mxu0 0.0
    %4994 = vmatprep.subr.mxu0 0.0
    %4995 = vmatpush1.msra.mxu0 0.0
    %4996 = vmatprep.subr.mxu0 0.0
    %4997 = vmatpush1.msra.mxu0 0.0
    %4998 = vmatprep.subr.mxu0 0.0
    %4999 = vmatpush1.msra.mxu0 0.0
    %5000 = vmatprep.subr.mxu0 0.0
    %5001 = vmatpush1.msra.mxu0 0.0
    %5002 = vmatprep.subr.mxu0 0.0
    %5003 = vmatpush1.msra.mxu0 0.0
    %5004 = vmatprep.subr.mxu0 0.0
    %5005 = vmatpush1.msra.mxu0 0.0
    %5006 = vmatprep.subr.mxu0 0.0
    %5007 = vmatpush1.msra.mxu0 0.0
    %5008 = vmatprep.subr.mxu0 0.0
    %5009 = vmatpush1.msra.mxu0 0.0
    %5010 = vmatprep.subr.mxu0 0.0
    %5011 = vmatpush1.msra.mxu0 0.0
    %5012 = vmatprep.subr.mxu0 0.0
    %5013 = vmatpush1.msra.mxu0 0.0
    %5014 = vmatprep.subr.mxu0 0.0
    %5015 = vmatpush1.msra.mxu0 0.0
    %5016 = vmatprep.subr.mxu0 0.0
    %5017 = vmatpush1.msra.mxu0 0.0
    %5018 = vmatprep.subr.mxu0 0.0
    %5019 = vmatpush1.msra.mxu0 0.0
    %5020 = vmatprep.subr.mxu0 0.0
    %5021 = vmatpush1.msra.mxu0 0.0
    %5022 = vmatprep.subr.mxu0 0.0
    %5023 = vmatpush1.msra.mxu0 0.0
    %5024 = vmatprep.subr.mxu0 0.0
    %5025 = vmatpush1.msra.mxu0 0.0
    %5026 = vmatprep.subr.mxu0 0.0
    %5027 = vmatpush1.msra.mxu0 0.0
    %5028 = vmatprep.subr.mxu0 0.0
    %5029 = vmatpush1.msra.mxu0 0.0
    %5030 = vmatprep.subr.mxu0 0.0
    %5031 = vmatpush1.msra.mxu0 0.0
    %5032 = vmatprep.subr.mxu0 0.0
    %5033 = vmatpush1.msra.mxu0 0.0
    %5034 = vmatprep.subr.mxu0 0.0
    %5035 = vmatpush1.msra.mxu0 0.0
    %5036 = vmatprep.subr.mxu0 0.0
    %5037 = vmatpush1.msra.mxu0 0.0
    %5038 = vmatprep.subr.mxu0 0.0
    %5039 = vmatpush1.msra.mxu0 0.0
    %5040 = vmatprep.subr.mxu0 0.0
    %5041 = vmatpush1.msra.mxu0 0.0
    %5042 = vmatprep.subr.mxu0 0.0
    %5043 = vmatpush1.msra.mxu0 0.0
    %5044 = vmatprep.subr.mxu0 0.0
    %5045 = vmatpush1.msra.mxu0 0.0
    %5046 = vmatprep.subr.mxu0 0.0
    %5047 = vmatpush1.msra.mxu0 0.0
    %5048 = vmatprep.subr.mxu0 0.0
    %5049 = vmatpush1.msra.mxu0 0.0
    %5050 = vmatprep.subr.mxu0 0.0
    %5051 = vmatpush1.msra.mxu0 0.0
    %5052 = vmatprep.mubr.f32.mxu0 0.0
    %5053 = vmatmul.mubr.f32.gmra.mrb[0].mxu0 %v4956
    %v5054 = vpop.f32.mrb[0].mxu0
    %v5055 = vadd.f32 %v4953, %v5054
    %v5056 = vpop.f32.mrb[0].mxu0
    %v5057 = vadd.f32 %v4953, %v5056
    %5058 = vdwg.mxu0
    %5059 = vmatprep.subr.mxu0 %v4937
    %5060 = vmatpush1.msra.mxu0 %v4936
    %5061 = vmatprep.subr.mxu0 %v4964
    %5062 = vmatpush1.msra.mxu0 %v4962
    %5063 = vmatprep.subr.mxu0 0.0
    %5064 = vmatpush1.msra.mxu0 0.0
    %5065 = vmatprep.subr.mxu0 0.0
    %5066 = vmatpush1.msra.mxu0 0.0
    %5067 = vmatprep.subr.mxu0 0.0
    %5068 = vmatpush1.msra.mxu0 0.0
    %5069 = vmatprep.subr.mxu0 0.0
    %5070 = vmatpush1.msra.mxu0 0.0
    %5071 = vmatprep.subr.mxu0 0.0
    %5072 = vmatpush1.msra.mxu0 0.0
    %5073 = vmatprep.subr.mxu0 0.0
    %5074 = vmatpush1.msra.mxu0 0.0
    %5075 = vmatprep.subr.mxu0 0.0
    %5076 = vmatpush1.msra.mxu0 0.0
    %5077 = vmatprep.subr.mxu0 0.0
    %5078 = vmatpush1.msra.mxu0 0.0
    %5079 = vmatprep.subr.mxu0 0.0
    %5080 = vmatpush1.msra.mxu0 0.0
    %5081 = vmatprep.subr.mxu0 0.0
    %5082 = vmatpush1.msra.mxu0 0.0
    %5083 = vmatprep.subr.mxu0 0.0
    %5084 = vmatpush1.msra.mxu0 0.0
    %5085 = vmatprep.subr.mxu0 0.0
    %5086 = vmatpush1.msra.mxu0 0.0
    %5087 = vmatprep.subr.mxu0 0.0
    %5088 = vmatpush1.msra.mxu0 0.0
    %5089 = vmatprep.subr.mxu0 0.0
    %5090 = vmatpush1.msra.mxu0 0.0
    %5091 = vmatprep.subr.mxu0 0.0
    %5092 = vmatpush1.msra.mxu0 0.0
    %5093 = vmatprep.subr.mxu0 0.0
    %5094 = vmatpush1.msra.mxu0 0.0
    %5095 = vmatprep.subr.mxu0 0.0
    %5096 = vmatpush1.msra.mxu0 0.0
    %5097 = vmatprep.subr.mxu0 0.0
    %5098 = vmatpush1.msra.mxu0 0.0
    %5099 = vmatprep.subr.mxu0 0.0
    %5100 = vmatpush1.msra.mxu0 0.0
    %5101 = vmatprep.subr.mxu0 0.0
    %5102 = vmatpush1.msra.mxu0 0.0
    %5103 = vmatprep.subr.mxu0 0.0
    %5104 = vmatpush1.msra.mxu0 0.0
    %5105 = vmatprep.subr.mxu0 0.0
    %5106 = vmatpush1.msra.mxu0 0.0
    %5107 = vmatprep.subr.mxu0 0.0
    %5108 = vmatpush1.msra.mxu0 0.0
    %5109 = vmatprep.subr.mxu0 0.0
    %5110 = vmatpush1.msra.mxu0 0.0
    %5111 = vmatprep.subr.mxu0 0.0
    %5112 = vmatpush1.msra.mxu0 0.0
    %5113 = vmatprep.subr.mxu0 0.0
    %5114 = vmatpush1.msra.mxu0 0.0
    %5115 = vmatprep.subr.mxu0 0.0
    %5116 = vmatpush1.msra.mxu0 0.0
    %5117 = vmatprep.subr.mxu0 0.0
    %5118 = vmatpush1.msra.mxu0 0.0
    %5119 = vmatprep.subr.mxu0 0.0
    %5120 = vmatpush1.msra.mxu0 0.0
    %5121 = vmatprep.subr.mxu0 0.0
    %5122 = vmatpush1.msra.mxu0 0.0
    %5123 = vmatprep.mubr.f32.mxu0 0.0
    %5124 = vmatmul.mubr.f32.gmra.mrb[0].mxu0 %v4956
    %v5125 = vpop.f32.mrb[0].mxu0
    %v5126 = vadd.f32 %v4953, %v5125
    %v5127 = vpop.f32.mrb[0].mxu0
    %v5128 = vadd.f32 %v4953, %v5127
    %5129 = vdwg.mxu0
    %5130 = vmatprep.subr.mxu0 %v4939
    %5131 = vmatpush1.msra.mxu0 %v4938
    %5132 = vmatprep.subr.mxu0 %v4968
    %5133 = vmatpush1.msra.mxu0 %v4966
    %5134 = vmatprep.subr.mxu0 0.0
    %5135 = vmatpush1.msra.mxu0 0.0
    %5136 = vmatprep.subr.mxu0 0.0
    %5137 = vmatpush1.msra.mxu0 0.0
    %5138 = vmatprep.subr.mxu0 0.0
    %5139 = vmatpush1.msra.mxu0 0.0
    %5140 = vmatprep.subr.mxu0 0.0
    %5141 = vmatpush1.msra.mxu0 0.0
    %5142 = vmatprep.subr.mxu0 0.0
    %5143 = vmatpush1.msra.mxu0 0.0
    %5144 = vmatprep.subr.mxu0 0.0
    %5145 = vmatpush1.msra.mxu0 0.0
    %5146 = vmatprep.subr.mxu0 0.0
    %5147 = vmatpush1.msra.mxu0 0.0
    %5148 = vmatprep.subr.mxu0 0.0
    %5149 = vmatpush1.msra.mxu0 0.0
    %5150 = vmatprep.subr.mxu0 0.0
    %5151 = vmatpush1.msra.mxu0 0.0
    %5152 = vmatprep.subr.mxu0 0.0
    %5153 = vmatpush1.msra.mxu0 0.0
    %5154 = vmatprep.subr.mxu0 0.0
    %5155 = vmatpush1.msra.mxu0 0.0
    %5156 = vmatprep.subr.mxu0 0.0
    %5157 = vmatpush1.msra.mxu0 0.0
    %5158 = vmatprep.subr.mxu0 0.0
    %5159 = vmatpush1.msra.mxu0 0.0
    %5160 = vmatprep.subr.mxu0 0.0
    %5161 = vmatpush1.msra.mxu0 0.0
    %5162 = vmatprep.subr.mxu0 0.0
    %5163 = vmatpush1.msra.mxu0 0.0
    %5164 = vmatprep.subr.mxu0 0.0
    %5165 = vmatpush1.msra.mxu0 0.0
    %5166 = vmatprep.subr.mxu0 0.0
    %5167 = vmatpush1.msra.mxu0 0.0
    %5168 = vmatprep.subr.mxu0 0.0
    %5169 = vmatpush1.msra.mxu0 0.0
    %5170 = vmatprep.subr.mxu0 0.0
    %5171 = vmatpush1.msra.mxu0 0.0
    %5172 = vmatprep.subr.mxu0 0.0
    %5173 = vmatpush1.msra.mxu0 0.0
    %5174 = vmatprep.subr.mxu0 0.0
    %5175 = vmatpush1.msra.mxu0 0.0
    %5176 = vmatprep.subr.mxu0 0.0
    %5177 = vmatpush1.msra.mxu0 0.0
    %5178 = vmatprep.subr.mxu0 0.0
    %5179 = vmatpush1.msra.mxu0 0.0
    %5180 = vmatprep.subr.mxu0 0.0
    %5181 = vmatpush1.msra.mxu0 0.0
    %5182 = vmatprep.subr.mxu0 0.0
    %5183 = vmatpush1.msra.mxu0 0.0
    %5184 = vmatprep.subr.mxu0 0.0
    %5185 = vmatpush1.msra.mxu0 0.0
    %5186 = vmatprep.subr.mxu0 0.0
    %5187 = vmatpush1.msra.mxu0 0.0
    %5188 = vmatprep.subr.mxu0 0.0
    %5189 = vmatpush1.msra.mxu0 0.0
    %5190 = vmatprep.subr.mxu0 0.0
    %5191 = vmatpush1.msra.mxu0 0.0
    %5192 = vmatprep.subr.mxu0 0.0
    %5193 = vmatpush1.msra.mxu0 0.0
    %5194 = vmatprep.mubr.f32.mxu0 0.0
    %5195 = vmatmul.mubr.f32.gmra.mrb[0].mxu0 %v4956
    %v5196 = vpop.f32.mrb[0].mxu0
    %v5197 = vadd.f32 %v4953, %v5196
    %v5198 = vpop.f32.mrb[0].mxu0
    %v5199 = vadd.f32 %v4953, %v5198
    %5200 = vdwg.mxu0
    %5201 = vmatprep.subr.mxu0 %v4941
    %5202 = vmatpush1.msra.mxu0 %v4940
    %5203 = vmatprep.subr.mxu0 %v4972
    %5204 = vmatpush1.msra.mxu0 %v4970
    %5205 = vmatprep.subr.mxu0 0.0
    %5206 = vmatpush1.msra.mxu0 0.0
    %5207 = vmatprep.subr.mxu0 0.0
    %5208 = vmatpush1.msra.mxu0 0.0
    %5209 = vmatprep.subr.mxu0 0.0
    %5210 = vmatpush1.msra.mxu0 0.0
    %5211 = vmatprep.subr.mxu0 0.0
    %5212 = vmatpush1.msra.mxu0 0.0
    %5213 = vmatprep.subr.mxu0 0.0
    %5214 = vmatpush1.msra.mxu0 0.0
    %5215 = vmatprep.subr.mxu0 0.0
    %5216 = vmatpush1.msra.mxu0 0.0
    %5217 = vmatprep.subr.mxu0 0.0
    %5218 = vmatpush1.msra.mxu0 0.0
    %5219 = vmatprep.subr.mxu0 0.0
    %5220 = vmatpush1.msra.mxu0 0.0
    %5221 = vmatprep.subr.mxu0 0.0
    %5222 = vmatpush1.msra.mxu0 0.0
    %5223 = vmatprep.subr.mxu0 0.0
    %5224 = vmatpush1.msra.mxu0 0.0
    %5225 = vmatprep.subr.mxu0 0.0
    %5226 = vmatpush1.msra.mxu0 0.0
    %5227 = vmatprep.subr.mxu0 0.0
    %5228 = vmatpush1.msra.mxu0 0.0
    %5229 = vmatprep.subr.mxu0 0.0
    %5230 = vmatpush1.msra.mxu0 0.0
    %5231 = vmatprep.subr.mxu0 0.0
    %5232 = vmatpush1.msra.mxu0 0.0
    %5233 = vmatprep.subr.mxu0 0.0
    %5234 = vmatpush1.msra.mxu0 0.0
    %5235 = vmatprep.subr.mxu0 0.0
    %5236 = vmatpush1.msra.mxu0 0.0
    %5237 = vmatprep.subr.mxu0 0.0
    %5238 = vmatpush1.msra.mxu0 0.0
    %5239 = vmatprep.subr.mxu0 0.0
    %5240 = vmatpush1.msra.mxu0 0.0
    %5241 = vmatprep.subr.mxu0 0.0
    %5242 = vmatpush1.msra.mxu0 0.0
    %5243 = vmatprep.subr.mxu0 0.0
    %5244 = vmatpush1.msra.mxu0 0.0
    %5245 = vmatprep.subr.mxu0 0.0
    %5246 = vmatpush1.msra.mxu0 0.0
    %5247 = vmatprep.subr.mxu0 0.0
    %5248 = vmatpush1.msra.mxu0 0.0
    %5249 = vmatprep.subr.mxu0 0.0
    %5250 = vmatpush1.msra.mxu0 0.0
    %5251 = vmatprep.subr.mxu0 0.0
    %5252 = vmatpush1.msra.mxu0 0.0
    %5253 = vmatprep.subr.mxu0 0.0
    %5254 = vmatpush1.msra.mxu0 0.0
    %5255 = vmatprep.subr.mxu0 0.0
    %5256 = vmatpush1.msra.mxu0 0.0
    %5257 = vmatprep.subr.mxu0 0.0
    %5258 = vmatpush1.msra.mxu0 0.0
    %5259 = vmatprep.subr.mxu0 0.0
    %5260 = vmatpush1.msra.mxu0 0.0
    %5261 = vmatprep.subr.mxu0 0.0
    %5262 = vmatpush1.msra.mxu0 0.0
    %5263 = vmatprep.subr.mxu0 0.0
    %5264 = vmatpush1.msra.mxu0 0.0
    %5265 = vmatprep.mubr.f32.mxu0 0.0
    %5266 = vmatmul.mubr.f32.gmra.mrb[0].mxu0 %v4956
    %v5267 = vpop.f32.mrb[0].mxu0
    %v5268 = vadd.f32 %v4953, %v5267
    %v5269 = vpop.f32.mrb[0].mxu0
    %v5270 = vadd.f32 %v4953, %v5269
    %5271 = vdwg.mxu0
    %5272 = vmatprep.subr.mxu0 %v4943
    %5273 = vmatpush1.msra.mxu0 %v4942
    %5274 = vmatprep.subr.mxu0 %v4976
    %5275 = vmatpush1.msra.mxu0 %v4974
    %5276 = vmatprep.subr.mxu0 0.0
    %5277 = vmatpush1.msra.mxu0 0.0
    %5278 = vmatprep.subr.mxu0 0.0
    %5279 = vmatpush1.msra.mxu0 0.0
    %5280 = vmatprep.subr.mxu0 0.0
    %5281 = vmatpush1.msra.mxu0 0.0
    %5282 = vmatprep.subr.mxu0 0.0
    %5283 = vmatpush1.msra.mxu0 0.0
    %5284 = vmatprep.subr.mxu0 0.0
    %5285 = vmatpush1.msra.mxu0 0.0
    %5286 = vmatprep.subr.mxu0 0.0
    %5287 = vmatpush1.msra.mxu0 0.0
    %5288 = vmatprep.subr.mxu0 0.0
    %5289 = vmatpush1.msra.mxu0 0.0
    %5290 = vmatprep.subr.mxu0 0.0
    %5291 = vmatpush1.msra.mxu0 0.0
    %5292 = vmatprep.subr.mxu0 0.0
    %5293 = vmatpush1.msra.mxu0 0.0
    %5294 = vmatprep.subr.mxu0 0.0
    %5295 = vmatpush1.msra.mxu0 0.0
    %5296 = vmatprep.subr.mxu0 0.0
    %5297 = vmatpush1.msra.mxu0 0.0
    %5298 = vmatprep.subr.mxu0 0.0
    %5299 = vmatpush1.msra.mxu0 0.0
    %5300 = vmatprep.subr.mxu0 0.0
    %5301 = vmatpush1.msra.mxu0 0.0
    %5302 = vmatprep.subr.mxu0 0.0
    %5303 = vmatpush1.msra.mxu0 0.0
    %5304 = vmatprep.subr.mxu0 0.0
    %5305 = vmatpush1.msra.mxu0 0.0
    %5306 = vmatprep.subr.mxu0 0.0
    %5307 = vmatpush1.msra.mxu0 0.0
    %5308 = vmatprep.subr.mxu0 0.0
    %5309 = vmatpush1.msra.mxu0 0.0
    %5310 = vmatprep.subr.mxu0 0.0
    %5311 = vmatpush1.msra.mxu0 0.0
    %5312 = vmatprep.subr.mxu0 0.0
    %5313 = vmatpush1.msra.mxu0 0.0
    %5314 = vmatprep.subr.mxu0 0.0
    %5315 = vmatpush1.msra.mxu0 0.0
    %5316 = vmatprep.subr.mxu0 0.0
    %5317 = vmatpush1.msra.mxu0 0.0
    %5318 = vmatprep.subr.mxu0 0.0
    %5319 = vmatpush1.msra.mxu0 0.0
    %5320 = vmatprep.subr.mxu0 0.0
    %5321 = vmatpush1.msra.mxu0 0.0
    %5322 = vmatprep.subr.mxu0 0.0
    %5323 = vmatpush1.msra.mxu0 0.0
    %5324 = vmatprep.subr.mxu0 0.0
    %5325 = vmatpush1.msra.mxu0 0.0
    %5326 = vmatprep.subr.mxu0 0.0
    %5327 = vmatpush1.msra.mxu0 0.0
    %5328 = vmatprep.subr.mxu0 0.0
    %5329 = vmatpush1.msra.mxu0 0.0
    %5330 = vmatprep.subr.mxu0 0.0
    %5331 = vmatpush1.msra.mxu0 0.0
    %5332 = vmatprep.subr.mxu0 0.0
    %5333 = vmatpush1.msra.mxu0 0.0
    %5334 = vmatprep.subr.mxu0 0.0
    %5335 = vmatpush1.msra.mxu0 0.0
    %5336 = vmatprep.mubr.f32.mxu0 0.0
    %5337 = vmatmul.mubr.f32.gmra.mrb[0].mxu0 %v4956
    %v5338 = vpop.f32.mrb[0].mxu0
    %v5339 = vadd.f32 %v4953, %v5338
    %v5340 = vpop.f32.mrb[0].mxu0
    %v5341 = vadd.f32 %v4953, %v5340
    %5342 = vdwg.mxu0
    %5343 = vmatprep.subr.mxu0 %v4945
    %5344 = vmatpush1.msra.mxu0 %v4944
    %5345 = vmatprep.subr.mxu0 %v4980
    %5346 = vmatpush1.msra.mxu0 %v4978
    %5347 = vmatprep.subr.mxu0 0.0
    %5348 = vmatpush1.msra.mxu0 0.0
    %5349 = vmatprep.subr.mxu0 0.0
    %5350 = vmatpush1.msra.mxu0 0.0
    %5351 = vmatprep.subr.mxu0 0.0
    %5352 = vmatpush1.msra.mxu0 0.0
    %5353 = vmatprep.subr.mxu0 0.0
    %5354 = vmatpush1.msra.mxu0 0.0
    %5355 = vmatprep.subr.mxu0 0.0
    %5356 = vmatpush1.msra.mxu0 0.0
    %5357 = vmatprep.subr.mxu0 0.0
    %5358 = vmatpush1.msra.mxu0 0.0
    %5359 = vmatprep.subr.mxu0 0.0
    %5360 = vmatpush1.msra.mxu0 0.0
    %5361 = vmatprep.subr.mxu0 0.0
    %5362 = vmatpush1.msra.mxu0 0.0
    %5363 = vmatprep.subr.mxu0 0.0
    %5364 = vmatpush1.msra.mxu0 0.0
    %5365 = vmatprep.subr.mxu0 0.0
    %5366 = vmatpush1.msra.mxu0 0.0
    %5367 = vmatprep.subr.mxu0 0.0
    %5368 = vmatpush1.msra.mxu0 0.0
    %5369 = vmatprep.subr.mxu0 0.0
    %5370 = vmatpush1.msra.mxu0 0.0
    %5371 = vmatprep.subr.mxu0 0.0
    %5372 = vmatpush1.msra.mxu0 0.0
    %5373 = vmatprep.subr.mxu0 0.0
    %5374 = vmatpush1.msra.mxu0 0.0
    %5375 = vmatprep.subr.mxu0 0.0
    %5376 = vmatpush1.msra.mxu0 0.0
    %5377 = vmatprep.subr.mxu0 0.0
    %5378 = vmatpush1.msra.mxu0 0.0
    %5379 = vmatprep.subr.mxu0 0.0
    %5380 = vmatpush1.msra.mxu0 0.0
    %5381 = vmatprep.subr.mxu0 0.0
    %5382 = vmatpush1.msra.mxu0 0.0
    %5383 = vmatprep.subr.mxu0 0.0
    %5384 = vmatpush1.msra.mxu0 0.0
    %5385 = vmatprep.subr.mxu0 0.0
    %5386 = vmatpush1.msra.mxu0 0.0
    %5387 = vmatprep.subr.mxu0 0.0
    %5388 = vmatpush1.msra.mxu0 0.0
    %5389 = vmatprep.subr.mxu0 0.0
    %5390 = vmatpush1.msra.mxu0 0.0
    %5391 = vmatprep.subr.mxu0 0.0
    %5392 = vmatpush1.msra.mxu0 0.0
    %5393 = vmatprep.subr.mxu0 0.0
    %5394 = vmatpush1.msra.mxu0 0.0
    %5395 = vmatprep.subr.mxu0 0.0
    %5396 = vmatpush1.msra.mxu0 0.0
    %5397 = vmatprep.subr.mxu0 0.0
    %5398 = vmatpush1.msra.mxu0 0.0
    %5399 = vmatprep.subr.mxu0 0.0
    %5400 = vmatpush1.msra.mxu0 0.0
    %5401 = vmatprep.subr.mxu0 0.0
    %5402 = vmatpush1.msra.mxu0 0.0
    %5403 = vmatprep.subr.mxu0 0.0
    %5404 = vmatpush1.msra.mxu0 0.0
    %5405 = vmatprep.subr.mxu0 0.0
    %5406 = vmatpush1.msra.mxu0 0.0
    %5407 = vmatprep.mubr.f32.mxu0 0.0
    %5408 = vmatmul.mubr.f32.gmra.mrb[0].mxu0 %v4956
    %v5409 = vpop.f32.mrb[0].mxu0
    %v5410 = vadd.f32 %v4953, %v5409
    %v5411 = vpop.f32.mrb[0].mxu0
    %v5412 = vadd.f32 %v4953, %v5411
    %5413 = vdwg.mxu0
    %5414 = vmatprep.subr.mxu0 %v4947
    %5415 = vmatpush1.msra.mxu0 %v4946
    %5416 = vmatprep.subr.mxu0 %v4984
    %5417 = vmatpush1.msra.mxu0 %v4982
    %5418 = vmatprep.subr.mxu0 0.0
    %5419 = vmatpush1.msra.mxu0 0.0
    %5420 = vmatprep.subr.mxu0 0.0
    %5421 = vmatpush1.msra.mxu0 0.0
    %5422 = vmatprep.subr.mxu0 0.0
    %5423 = vmatpush1.msra.mxu0 0.0
    %5424 = vmatprep.subr.mxu0 0.0
    %5425 = vmatpush1.msra.mxu0 0.0
    %5426 = vmatprep.subr.mxu0 0.0
    %5427 = vmatpush1.msra.mxu0 0.0
    %5428 = vmatprep.subr.mxu0 0.0
    %5429 = vmatpush1.msra.mxu0 0.0
    %5430 = vmatprep.subr.mxu0 0.0
    %5431 = vmatpush1.msra.mxu0 0.0
    %5432 = vmatprep.subr.mxu0 0.0
    %5433 = vmatpush1.msra.mxu0 0.0
    %5434 = vmatprep.subr.mxu0 0.0
    %5435 = vmatpush1.msra.mxu0 0.0
    %5436 = vmatprep.subr.mxu0 0.0
    %5437 = vmatpush1.msra.mxu0 0.0
    %5438 = vmatprep.subr.mxu0 0.0
    %5439 = vmatpush1.msra.mxu0 0.0
    %5440 = vmatprep.subr.mxu0 0.0
    %5441 = vmatpush1.msra.mxu0 0.0
    %5442 = vmatprep.subr.mxu0 0.0
    %5443 = vmatpush1.msra.mxu0 0.0
    %5444 = vmatprep.subr.mxu0 0.0
    %5445 = vmatpush1.msra.mxu0 0.0
    %5446 = vmatprep.subr.mxu0 0.0
    %5447 = vmatpush1.msra.mxu0 0.0
    %5448 = vmatprep.subr.mxu0 0.0
    %5449 = vmatpush1.msra.mxu0 0.0
    %5450 = vmatprep.subr.mxu0 0.0
    %5451 = vmatpush1.msra.mxu0 0.0
    %5452 = vmatprep.subr.mxu0 0.0
    %5453 = vmatpush1.msra.mxu0 0.0
    %5454 = vmatprep.subr.mxu0 0.0
    %5455 = vmatpush1.msra.mxu0 0.0
    %5456 = vmatprep.subr.mxu0 0.0
    %5457 = vmatpush1.msra.mxu0 0.0
    %5458 = vmatprep.subr.mxu0 0.0
    %5459 = vmatpush1.msra.mxu0 0.0
    %5460 = vmatprep.subr.mxu0 0.0
    %5461 = vmatpush1.msra.mxu0 0.0
    %5462 = vmatprep.subr.mxu0 0.0
    %5463 = vmatpush1.msra.mxu0 0.0
    %5464 = vmatprep.subr.mxu0 0.0
    %5465 = vmatpush1.msra.mxu0 0.0
    %5466 = vmatprep.subr.mxu0 0.0
    %5467 = vmatpush1.msra.mxu0 0.0
    %5468 = vmatprep.subr.mxu0 0.0
    %5469 = vmatpush1.msra.mxu0 0.0
    %5470 = vmatprep.subr.mxu0 0.0
    %5471 = vmatpush1.msra.mxu0 0.0
    %5472 = vmatprep.subr.mxu0 0.0
    %5473 = vmatpush1.msra.mxu0 0.0
    %5474 = vmatprep.subr.mxu0 0.0
    %5475 = vmatpush1.msra.mxu0 0.0
    %5476 = vmatprep.subr.mxu0 0.0
    %5477 = vmatpush1.msra.mxu0 0.0
    %5478 = vmatprep.mubr.f32.mxu0 0.0
    %5479 = vmatmul.mubr.f32.gmra.mrb[0].mxu0 %v4956
    %v5480 = vpop.f32.mrb[0].mxu0
    %v5481 = vadd.f32 %v4953, %v5480
    %v5482 = vpop.f32.mrb[0].mxu0
    %v5483 = vadd.f32 %v4953, %v5482
    %5484 = vdwg.mxu0
    %5485 = vmatprep.subr.mxu0 %v4949
    %5486 = vmatpush1.msra.mxu0 %v4948
    %5487 = vmatprep.subr.mxu0 %v2000
    %5488 = vmatpush1.msra.mxu0 %v4986
    %5489 = vmatprep.subr.mxu0 0.0
    %5490 = vmatpush1.msra.mxu0 0.0
    %5491 = vmatprep.subr.mxu0 0.0
    %5492 = vmatpush1.msra.mxu0 0.0
    %5493 = vmatprep.subr.mxu0 0.0
    %5494 = vmatpush1.msra.mxu0 0.0
    %5495 = vmatprep.subr.mxu0 0.0
    %5496 = vmatpush1.msra.mxu0 0.0
    %5497 = vmatprep.subr.mxu0 0.0
    %5498 = vmatpush1.msra.mxu0 0.0
    %5499 = vmatprep.subr.mxu0 0.0
    %5500 = vmatpush1.msra.mxu0 0.0
    %5501 = vmatprep.subr.mxu0 0.0
    %5502 = vmatpush1.msra.mxu0 0.0
    %5503 = vmatprep.subr.mxu0 0.0
    %5504 = vmatpush1.msra.mxu0 0.0
    %5505 = vmatprep.subr.mxu0 0.0
    %5506 = vmatpush1.msra.mxu0 0.0
    %5507 = vmatprep.subr.mxu0 0.0
    %5508 = vmatpush1.msra.mxu0 0.0
    %5509 = vmatprep.subr.mxu0 0.0
    %5510 = vmatpush1.msra.mxu0 0.0
    %5511 = vmatprep.subr.mxu0 0.0
    %5512 = vmatpush1.msra.mxu0 0.0
    %5513 = vmatprep.subr.mxu0 0.0
    %5514 = vmatpush1.msra.mxu0 0.0
    %5515 = vmatprep.subr.mxu0 0.0
    %5516 = vmatpush1.msra.mxu0 0.0
    %5517 = vmatprep.subr.mxu0 0.0
    %5518 = vmatpush1.msra.mxu0 0.0
    %5519 = vmatprep.subr.mxu0 0.0
    %5520 = vmatpush1.msra.mxu0 0.0
    %5521 = vmatprep.subr.mxu0 0.0
    %5522 = vmatpush1.msra.mxu0 0.0
    %5523 = vmatprep.subr.mxu0 0.0
    %5524 = vmatpush1.msra.mxu0 0.0
    %5525 = vmatprep.subr.mxu0 0.0
    %5526 = vmatpush1.msra.mxu0 0.0
    %5527 = vmatprep.subr.mxu0 0.0
    %5528 = vmatpush1.msra.mxu0 0.0
    %5529 = vmatprep.subr.mxu0 0.0
    %5530 = vmatpush1.msra.mxu0 0.0
    %5531 = vmatprep.subr.mxu0 0.0
    %5532 = vmatpush1.msra.mxu0 0.0
    %5533 = vmatprep.subr.mxu0 0.0
    %5534 = vmatpush1.msra.mxu0 0.0
    %5535 = vmatprep.subr.mxu0 0.0
    %5536 = vmatpush1.msra.mxu0 0.0
    %5537 = vmatprep.subr.mxu0 0.0
    %5538 = vmatpush1.msra.mxu0 0.0
    %5539 = vmatprep.subr.mxu0 0.0
    %5540 = vmatpush1.msra.mxu0 0.0
    %5541 = vmatprep.subr.mxu0 0.0
    %5542 = vmatpush1.msra.mxu0 0.0
    %5543 = vmatprep.subr.mxu0 0.0
    %5544 = vmatpush1.msra.mxu0 0.0
    %5545 = vmatprep.subr.mxu0 0.0
    %5546 = vmatpush1.msra.mxu0 0.0
    %5547 = vmatprep.subr.mxu0 0.0
    %5548 = vmatpush1.msra.mxu0 0.0
    %5549 = vmatprep.mubr.f32.mxu0 0.0
    %5550 = vmatmul.mubr.f32.gmra.mrb[0].mxu0 %v4956
    %v5551 = vpop.f32.mrb[0].mxu0
    %v5552 = vadd.f32 %v4953, %v5551
    %v5553 = vpop.f32.mrb[0].mxu0
    %v5554 = vadd.f32 %v4953, %v5553
    %5555 = vdwg.mxu0
    %vm5556 = vcmask 1041408
    %v5557 = vsel %vm5556, %v5055, 0.0
    %v5558 = vrot.slane %v5557, 4
    %v5559 = vadd.f32 %v5557, %v5558
    %v5560 = vrot.slane %v5559, 2
    %v5561 = vadd.f32 %v5559, %v5560
    %v5562 = vrot.slane %v5561, 1
    %v5563 = vadd.f32 %v5561, %v5562
    %v5564 = vsel %vm5556, %v5057, 0.0
    %v5565 = vrot.slane %v5564, 4
    %v5566 = vadd.f32 %v5564, %v5565
    %v5567 = vrot.slane %v5566, 2
    %v5568 = vadd.f32 %v5566, %v5567
    %v5569 = vrot.slane %v5568, 1
    %v5570 = vadd.f32 %v5568, %v5569
    %v5571 = vsel %vm5556, %v5126, 0.0
    %v5572 = vrot.slane %v5571, 4
    %v5573 = vadd.f32 %v5571, %v5572
    %v5574 = vrot.slane %v5573, 2
    %v5575 = vadd.f32 %v5573, %v5574
    %v5576 = vrot.slane %v5575, 1
    %v5577 = vadd.f32 %v5575, %v5576
    %v5578 = vsel %vm5556, %v5128, 0.0
    %v5579 = vrot.slane %v5578, 4
    %v5580 = vadd.f32 %v5578, %v5579
    %v5581 = vrot.slane %v5580, 2
    %v5582 = vadd.f32 %v5580, %v5581
    %v5583 = vrot.slane %v5582, 1
    %v5584 = vadd.f32 %v5582, %v5583
    %v5585 = vsel %vm5556, %v5197, 0.0
    %v5586 = vrot.slane %v5585, 4
    %v5587 = vadd.f32 %v5585, %v5586
    %v5588 = vrot.slane %v5587, 2
    %v5589 = vadd.f32 %v5587, %v5588
    %v5590 = vrot.slane %v5589, 1
    %v5591 = vadd.f32 %v5589, %v5590
    %v5592 = vsel %vm5556, %v5199, 0.0
    %v5593 = vrot.slane %v5592, 4
    %v5594 = vadd.f32 %v5592, %v5593
    %v5595 = vrot.slane %v5594, 2
    %v5596 = vadd.f32 %v5594, %v5595
    %v5597 = vrot.slane %v5596, 1
    %v5598 = vadd.f32 %v5596, %v5597
    %v5599 = vsel %vm5556, %v5268, 0.0
    %v5600 = vrot.slane %v5599, 4
    %v5601 = vadd.f32 %v5599, %v5600
    %v5602 = vrot.slane %v5601, 2
    %v5603 = vadd.f32 %v5601, %v5602
    %v5604 = vrot.slane %v5603, 1
    %v5605 = vadd.f32 %v5603, %v5604
    %v5606 = vsel %vm5556, %v5270, 0.0
    %v5607 = vrot.slane %v5606, 4
    %v5608 = vadd.f32 %v5606, %v5607
    %v5609 = vrot.slane %v5608, 2
    %v5610 = vadd.f32 %v5608, %v5609
    %v5611 = vrot.slane %v5610, 1
    %v5612 = vadd.f32 %v5610, %v5611
    %v5613 = vsel %vm5556, %v5339, 0.0
    %v5614 = vrot.slane %v5613, 4
    %v5615 = vadd.f32 %v5613, %v5614
    %v5616 = vrot.slane %v5615, 2
    %v5617 = vadd.f32 %v5615, %v5616
    %v5618 = vrot.slane %v5617, 1
    %v5619 = vadd.f32 %v5617, %v5618
    %v5620 = vsel %vm5556, %v5341, 0.0
    %v5621 = vrot.slane %v5620, 4
    %v5622 = vadd.f32 %v5620, %v5621
    %v5623 = vrot.slane %v5622, 2
    %v5624 = vadd.f32 %v5622, %v5623
    %v5625 = vrot.slane %v5624, 1
    %v5626 = vadd.f32 %v5624, %v5625
    %v5627 = vsel %vm5556, %v5410, 0.0
    %v5628 = vrot.slane %v5627, 4
    %v5629 = vadd.f32 %v5627, %v5628
    %v5630 = vrot.slane %v5629, 2
    %v5631 = vadd.f32 %v5629, %v5630
    %v5632 = vrot.slane %v5631, 1
    %v5633 = vadd.f32 %v5631, %v5632
    %v5634 = vsel %vm5556, %v5412, 0.0
    %v5635 = vrot.slane %v5634, 4
    %v5636 = vadd.f32 %v5634, %v5635
    %v5637 = vrot.slane %v5636, 2
    %v5638 = vadd.f32 %v5636, %v5637
    %v5639 = vrot.slane %v5638, 1
    %v5640 = vadd.f32 %v5638, %v5639
    %v5641 = vsel %vm5556, %v5481, 0.0
    %v5642 = vrot.slane %v5641, 4
    %v5643 = vadd.f32 %v5641, %v5642
    %v5644 = vrot.slane %v5643, 2
    %v5645 = vadd.f32 %v5643, %v5644
    %v5646 = vrot.slane %v5645, 1
    %v5647 = vadd.f32 %v5645, %v5646
    %v5648 = vsel %vm5556, %v5483, 0.0
    %v5649 = vrot.slane %v5648, 4
    %v5650 = vadd.f32 %v5648, %v5649
    %v5651 = vrot.slane %v5650, 2
    %v5652 = vadd.f32 %v5650, %v5651
    %v5653 = vrot.slane %v5652, 1
    %v5654 = vadd.f32 %v5652, %v5653
    %v5655 = vsel %vm5556, %v5552, 0.0
    %v5656 = vrot.slane %v5655, 4
    %v5657 = vadd.f32 %v5655, %v5656
    %v5658 = vrot.slane %v5657, 2
    %v5659 = vadd.f32 %v5657, %v5658
    %v5660 = vrot.slane %v5659, 1
    %v5661 = vadd.f32 %v5659, %v5660
    %v5662 = vsel %vm5556, %v5554, 0.0
    %v5663 = vrot.slane %v5662, 4
    %v5664 = vadd.f32 %v5662, %v5663
    %v5665 = vrot.slane %v5664, 2
    %v5666 = vadd.f32 %v5664, %v5665
    %v5667 = vrot.slane %v5666, 1
    %v5668 = vadd.f32 %v5666, %v5667
    %v5669 = vadd.f32 %v5563, %v5570
    %v5670 = vadd.f32 %v5577, %v5584
    %v5671 = vadd.f32 %v5591, %v5598
    %v5672 = vadd.f32 %v5605, %v5612
    %v5673 = vadd.f32 %v5619, %v5626
    %v5674 = vadd.f32 %v5633, %v5640
    %v5675 = vadd.f32 %v5647, %v5654
    %v5676 = vadd.f32 %v5661, %v5668
    %v5677 = vadd.f32 %v5669, %v5670
    %v5678 = vadd.f32 %v5671, %v5672
    %v5679 = vadd.f32 %v5673, %v5674
    %v5680 = vadd.f32 %v5675, %v5676
    %v5681 = vadd.f32 %v5677, %v5678
    %v5682 = vadd.f32 %v5679, %v5680
    %v5683 = vadd.f32 %v5681, %v5682
    %v5684 = vmul.f32 %v5683, 0.03125
    %v5685 = vlaneseq
    %v5686 = vshrl.u32 %v5685, 7
    %v5687 = vsub.s32 0, %v5686
    %v5688 = vrot.slane %v5684, %v5687
    %v5689 = vsub.f32 %v5055, %v5688
    %v5690 = vsub.f32 %v5057, %v5688
    %v5691 = vsub.f32 %v5126, %v5688
    %v5692 = vsub.f32 %v5128, %v5688
    %v5693 = vsub.f32 %v5197, %v5688
    %v5694 = vsub.f32 %v5199, %v5688
    %v5695 = vsub.f32 %v5268, %v5688
    %v5696 = vsub.f32 %v5270, %v5688
    %v5697 = vsub.f32 %v5339, %v5688
    %v5698 = vsub.f32 %v5341, %v5688
    %v5699 = vsub.f32 %v5410, %v5688
    %v5700 = vsub.f32 %v5412, %v5688
    %v5701 = vsub.f32 %v5481, %v5688
    %v5702 = vsub.f32 %v5483, %v5688
    %v5703 = vsub.f32 %v5552, %v5688
    %v5704 = vsub.f32 %v5554, %v5688
    %v5705 = vmul.f32 %v5689, %v5689
    %v5706 = vmul.f32 %v5690, %v5690
    %v5707 = vmul.f32 %v5691, %v5691
    %v5708 = vmul.f32 %v5692, %v5692
    %v5709 = vmul.f32 %v5693, %v5693
    %v5710 = vmul.f32 %v5694, %v5694
    %v5711 = vmul.f32 %v5695, %v5695
    %v5712 = vmul.f32 %v5696, %v5696
    %v5713 = vmul.f32 %v5697, %v5697
    %v5714 = vmul.f32 %v5698, %v5698
    %v5715 = vmul.f32 %v5699, %v5699
    %v5716 = vmul.f32 %v5700, %v5700
    %v5717 = vmul.f32 %v5701, %v5701
    %v5718 = vmul.f32 %v5702, %v5702
    %v5719 = vmul.f32 %v5703, %v5703
    %v5720 = vmul.f32 %v5704, %v5704
    %v5721 = vsel %vm5556, %v5705, 0.0
    %v5722 = vrot.slane %v5721, 4
    %v5723 = vadd.f32 %v5721, %v5722
    %v5724 = vrot.slane %v5723, 2
    %v5725 = vadd.f32 %v5723, %v5724
    %v5726 = vrot.slane %v5725, 1
    %v5727 = vadd.f32 %v5725, %v5726
    %v5728 = vsel %vm5556, %v5706, 0.0
    %v5729 = vrot.slane %v5728, 4
    %v5730 = vadd.f32 %v5728, %v5729
    %v5731 = vrot.slane %v5730, 2
    %v5732 = vadd.f32 %v5730, %v5731
    %v5733 = vrot.slane %v5732, 1
    %v5734 = vadd.f32 %v5732, %v5733
    %v5735 = vsel %vm5556, %v5707, 0.0
    %v5736 = vrot.slane %v5735, 4
    %v5737 = vadd.f32 %v5735, %v5736
    %v5738 = vrot.slane %v5737, 2
    %v5739 = vadd.f32 %v5737, %v5738
    %v5740 = vrot.slane %v5739, 1
    %v5741 = vadd.f32 %v5739, %v5740
    %v5742 = vsel %vm5556, %v5708, 0.0
    %v5743 = vrot.slane %v5742, 4
    %v5744 = vadd.f32 %v5742, %v5743
    %v5745 = vrot.slane %v5744, 2
    %v5746 = vadd.f32 %v5744, %v5745
    %v5747 = vrot.slane %v5746, 1
    %v5748 = vadd.f32 %v5746, %v5747
    %v5749 = vsel %vm5556, %v5709, 0.0
    %v5750 = vrot.slane %v5749, 4
    %v5751 = vadd.f32 %v5749, %v5750
    %v5752 = vrot.slane %v5751, 2
    %v5753 = vadd.f32 %v5751, %v5752
    %v5754 = vrot.slane %v5753, 1
    %v5755 = vadd.f32 %v5753, %v5754
    %v5756 = vsel %vm5556, %v5710, 0.0
    %v5757 = vrot.slane %v5756, 4
    %v5758 = vadd.f32 %v5756, %v5757
    %v5759 = vrot.slane %v5758, 2
    %v5760 = vadd.f32 %v5758, %v5759
    %v5761 = vrot.slane %v5760, 1
    %v5762 = vadd.f32 %v5760, %v5761
    %v5763 = vsel %vm5556, %v5711, 0.0
    %v5764 = vrot.slane %v5763, 4
    %v5765 = vadd.f32 %v5763, %v5764
    %v5766 = vrot.slane %v5765, 2
    %v5767 = vadd.f32 %v5765, %v5766
    %v5768 = vrot.slane %v5767, 1
    %v5769 = vadd.f32 %v5767, %v5768
    %v5770 = vsel %vm5556, %v5712, 0.0
    %v5771 = vrot.slane %v5770, 4
    %v5772 = vadd.f32 %v5770, %v5771
    %v5773 = vrot.slane %v5772, 2
    %v5774 = vadd.f32 %v5772, %v5773
    %v5775 = vrot.slane %v5774, 1
    %v5776 = vadd.f32 %v5774, %v5775
    %v5777 = vsel %vm5556, %v5713, 0.0
    %v5778 = vrot.slane %v5777, 4
    %v5779 = vadd.f32 %v5777, %v5778
    %v5780 = vrot.slane %v5779, 2
    %v5781 = vadd.f32 %v5779, %v5780
    %v5782 = vrot.slane %v5781, 1
    %v5783 = vadd.f32 %v5781, %v5782
    %v5784 = vsel %vm5556, %v5714, 0.0
    %v5785 = vrot.slane %v5784, 4
    %v5786 = vadd.f32 %v5784, %v5785
    %v5787 = vrot.slane %v5786, 2
    %v5788 = vadd.f32 %v5786, %v5787
    %v5789 = vrot.slane %v5788, 1
    %v5790 = vadd.f32 %v5788, %v5789
    %v5791 = vsel %vm5556, %v5715, 0.0
    %v5792 = vrot.slane %v5791, 4
    %v5793 = vadd.f32 %v5791, %v5792
    %v5794 = vrot.slane %v5793, 2
    %v5795 = vadd.f32 %v5793, %v5794
    %v5796 = vrot.slane %v5795, 1
    %v5797 = vadd.f32 %v5795, %v5796
    %v5798 = vsel %vm5556, %v5716, 0.0
    %v5799 = vrot.slane %v5798, 4
    %v5800 = vadd.f32 %v5798, %v5799
    %v5801 = vrot.slane %v5800, 2
    %v5802 = vadd.f32 %v5800, %v5801
    %v5803 = vrot.slane %v5802, 1
    %v5804 = vadd.f32 %v5802, %v5803
    %v5805 = vsel %vm5556, %v5717, 0.0
    %v5806 = vrot.slane %v5805, 4
    %v5807 = vadd.f32 %v5805, %v5806
    %v5808 = vrot.slane %v5807, 2
    %v5809 = vadd.f32 %v5807, %v5808
    %v5810 = vrot.slane %v5809, 1
    %v5811 = vadd.f32 %v5809, %v5810
    %v5812 = vsel %vm5556, %v5718, 0.0
    %v5813 = vrot.slane %v5812, 4
    %v5814 = vadd.f32 %v5812, %v5813
    %v5815 = vrot.slane %v5814, 2
    %v5816 = vadd.f32 %v5814, %v5815
    %v5817 = vrot.slane %v5816, 1
    %v5818 = vadd.f32 %v5816, %v5817
    %v5819 = vsel %vm5556, %v5719, 0.0
    %v5820 = vrot.slane %v5819, 4
    %v5821 = vadd.f32 %v5819, %v5820
    %v5822 = vrot.slane %v5821, 2
    %v5823 = vadd.f32 %v5821, %v5822
    %v5824 = vrot.slane %v5823, 1
    %v5825 = vadd.f32 %v5823, %v5824
    %v5826 = vsel %vm5556, %v5720, 0.0
    %v5827 = vrot.slane %v5826, 4
    %v5828 = vadd.f32 %v5826, %v5827
    %v5829 = vrot.slane %v5828, 2
    %v5830 = vadd.f32 %v5828, %v5829
    %v5831 = vrot.slane %v5830, 1
    %v5832 = vadd.f32 %v5830, %v5831
    %v5833 = vadd.f32 %v5727, %v5734
    %v5834 = vadd.f32 %v5741, %v5748
    %v5835 = vadd.f32 %v5755, %v5762
    %v5836 = vadd.f32 %v5769, %v5776
    %v5837 = vadd.f32 %v5783, %v5790
    %v5838 = vadd.f32 %v5797, %v5804
    %v5839 = vadd.f32 %v5811, %v5818
    %v5840 = vadd.f32 %v5825, %v5832
    %v5841 = vadd.f32 %v5833, %v5834
    %v5842 = vadd.f32 %v5835, %v5836
    %v5843 = vadd.f32 %v5837, %v5838
    %v5844 = vadd.f32 %v5839, %v5840
    %v5845 = vadd.f32 %v5841, %v5842
    %v5846 = vadd.f32 %v5843, %v5844
    %v5847 = vadd.f32 %v5845, %v5846
    %v5848 = vmul.f32 %v5847, 0.03125
    %v5849 = vadd.f32 %v5848, 1e-06
    %v5850 = vrsqrt.pop %v5849
    %v5851 = vlaneseq
    %v5852 = vshrl.u32 %v5851, 7
    %v5853 = vsub.s32 0, %v5852
    %v5854 = vrot.slane %v5850, %v5853
    %v5855 = vmul.f32 %v5689, %v5854
    %v5856 = vmul.f32 %v5690, %v5854
    %v5857 = vmul.f32 %v5691, %v5854
    %v5858 = vmul.f32 %v5692, %v5854
    %v5859 = vmul.f32 %v5693, %v5854
    %v5860 = vmul.f32 %v5694, %v5854
    %v5861 = vmul.f32 %v5695, %v5854
    %v5862 = vmul.f32 %v5696, %v5854
    %v5863 = vmul.f32 %v5697, %v5854
    %v5864 = vmul.f32 %v5698, %v5854
    %v5865 = vmul.f32 %v5699, %v5854
    %v5866 = vmul.f32 %v5700, %v5854
    %v5867 = vmul.f32 %v5701, %v5854
    %v5868 = vmul.f32 %v5702, %v5854
    %v5869 = vmul.f32 %v5703, %v5854
    %v5870 = vmul.f32 %v5704, %v5854
    %5871 = vset.pattern.permute.xlu0 27
    %5872 = vperm.xlu0 %5871, %v4417
    %v5873 = vpop.permute.xlu0 %5872
    %v5875 = vmul.f32 %v5855, %v5873
    %v5876 = vmul.f32 %v5856, %v5873
    %v5877 = vmul.f32 %v5857, %v5873
    %v5878 = vmul.f32 %v5858, %v5873
    %v5879 = vmul.f32 %v5859, %v5873
    %v5880 = vmul.f32 %v5860, %v5873
    %v5881 = vmul.f32 %v5861, %v5873
    %v5882 = vmul.f32 %v5862, %v5873
    %v5883 = vmul.f32 %v5863, %v5873
    %v5884 = vmul.f32 %v5864, %v5873
    %v5885 = vmul.f32 %v5865, %v5873
    %v5886 = vmul.f32 %v5866, %v5873
    %v5887 = vmul.f32 %v5867, %v5873
    %v5888 = vmul.f32 %v5868, %v5873
    %v5889 = vmul.f32 %v5869, %v5873
    %v5890 = vmul.f32 %v5870, %v5873
    %5891 = vset.pattern.permute.xlu0 28
    %5892 = vperm.xlu0 %5891, %v4417
    %v5893 = vpop.permute.xlu0 %5892
    %v5895 = vadd.f32 %v5875, %v5893
    %v5896 = vadd.f32 %v5876, %v5893
    %v5897 = vadd.f32 %v5877, %v5893
    %v5898 = vadd.f32 %v5878, %v5893
    %v5899 = vadd.f32 %v5879, %v5893
    %v5900 = vadd.f32 %v5880, %v5893
    %v5901 = vadd.f32 %v5881, %v5893
    %v5902 = vadd.f32 %v5882, %v5893
    %v5903 = vadd.f32 %v5883, %v5893
    %v5904 = vadd.f32 %v5884, %v5893
    %v5905 = vadd.f32 %v5885, %v5893
    %v5906 = vadd.f32 %v5886, %v5893
    %v5907 = vadd.f32 %v5887, %v5893
    %v5908 = vadd.f32 %v5888, %v5893
    %v5909 = vadd.f32 %v5889, %v5893
    %v5910 = vadd.f32 %v5890, %v5893
    %v5911 = vxor.u32 %v5895, 2147483648
    %v5912 = vxor.u32 %v5896, 2147483648
    %v5913 = vxor.u32 %v5897, 2147483648
    %v5914 = vxor.u32 %v5898, 2147483648
    %v5915 = vxor.u32 %v5899, 2147483648
    %v5916 = vxor.u32 %v5900, 2147483648
    %v5917 = vxor.u32 %v5901, 2147483648
    %v5918 = vxor.u32 %v5902, 2147483648
    %v5919 = vxor.u32 %v5903, 2147483648
    %v5920 = vxor.u32 %v5904, 2147483648
    %v5921 = vxor.u32 %v5905, 2147483648
    %v5922 = vxor.u32 %v5906, 2147483648
    %v5923 = vxor.u32 %v5907, 2147483648
    %v5924 = vxor.u32 %v5908, 2147483648
    %v5925 = vxor.u32 %v5909, 2147483648
    %v5926 = vxor.u32 %v5910, 2147483648
    %v5927 = vmul.f32 %v5911, 1.442695
    %v5928 = vpow.pop %v5927
    %v5929 = vmul.f32 %v5912, 1.442695
    %v5930 = vpow.pop %v5929
    %v5931 = vmul.f32 %v5913, 1.442695
    %v5932 = vpow.pop %v5931
    %v5933 = vmul.f32 %v5914, 1.442695
    %v5934 = vpow.pop %v5933
    %v5935 = vmul.f32 %v5915, 1.442695
    %v5936 = vpow.pop %v5935
    %v5937 = vmul.f32 %v5916, 1.442695
    %v5938 = vpow.pop %v5937
    %v5939 = vmul.f32 %v5917, 1.442695
    %v5940 = vpow.pop %v5939
    %v5941 = vmul.f32 %v5918, 1.442695
    %v5942 = vpow.pop %v5941
    %v5943 = vmul.f32 %v5919, 1.442695
    %v5944 = vpow.pop %v5943
    %v5945 = vmul.f32 %v5920, 1.442695
    %v5946 = vpow.pop %v5945
    %v5947 = vmul.f32 %v5921, 1.442695
    %v5948 = vpow.pop %v5947
    %v5949 = vmul.f32 %v5922, 1.442695
    %v5950 = vpow.pop %v5949
    %v5951 = vmul.f32 %v5923, 1.442695
    %v5952 = vpow.pop %v5951
    %v5953 = vmul.f32 %v5924, 1.442695
    %v5954 = vpow.pop %v5953
    %v5955 = vmul.f32 %v5925, 1.442695
    %v5956 = vpow.pop %v5955
    %v5957 = vmul.f32 %v5926, 1.442695
    %v5958 = vpow.pop %v5957
    %v5959 = vadd.f32 %v5928, 1.0
    %v5960 = vadd.f32 %v5930, 1.0
    %v5961 = vadd.f32 %v5932, 1.0
    %v5962 = vadd.f32 %v5934, 1.0
    %v5963 = vadd.f32 %v5936, 1.0
    %v5964 = vadd.f32 %v5938, 1.0
    %v5965 = vadd.f32 %v5940, 1.0
    %v5966 = vadd.f32 %v5942, 1.0
    %v5967 = vadd.f32 %v5944, 1.0
    %v5968 = vadd.f32 %v5946, 1.0
    %v5969 = vadd.f32 %v5948, 1.0
    %v5970 = vadd.f32 %v5950, 1.0
    %v5971 = vadd.f32 %v5952, 1.0
    %v5972 = vadd.f32 %v5954, 1.0
    %v5973 = vadd.f32 %v5956, 1.0
    %v5974 = vadd.f32 %v5958, 1.0
    %v5975 = vrcp.pop %v5959
    %v5976 = vmul.f32 1.0, %v5975
    %v5977 = vrcp.pop %v5960
    %v5978 = vmul.f32 1.0, %v5977
    %v5979 = vrcp.pop %v5961
    %v5980 = vmul.f32 1.0, %v5979
    %v5981 = vrcp.pop %v5962
    %v5982 = vmul.f32 1.0, %v5981
    %v5983 = vrcp.pop %v5963
    %v5984 = vmul.f32 1.0, %v5983
    %v5985 = vrcp.pop %v5964
    %v5986 = vmul.f32 1.0, %v5985
    %v5987 = vrcp.pop %v5965
    %v5988 = vmul.f32 1.0, %v5987
    %v5989 = vrcp.pop %v5966
    %v5990 = vmul.f32 1.0, %v5989
    %v5991 = vrcp.pop %v5967
    %v5992 = vmul.f32 1.0, %v5991
    %v5993 = vrcp.pop %v5968
    %v5994 = vmul.f32 1.0, %v5993
    %v5995 = vrcp.pop %v5969
    %v5996 = vmul.f32 1.0, %v5995
    %v5997 = vrcp.pop %v5970
    %v5998 = vmul.f32 1.0, %v5997
    %v5999 = vrcp.pop %v5971
    %v6000 = vmul.f32 1.0, %v5999
    %v6001 = vrcp.pop %v5972
    %v6002 = vmul.f32 1.0, %v6001
    %v6003 = vrcp.pop %v5973
    %v6004 = vmul.f32 1.0, %v6003
    %v6005 = vrcp.pop %v5974
    %v6006 = vmul.f32 1.0, %v6005
    %v6007 = vmul.f32 %v5895, %v5976
    %v6008 = vmul.f32 %v5896, %v5978
    %v6009 = vmul.f32 %v5897, %v5980
    %v6010 = vmul.f32 %v5898, %v5982
    %v6011 = vmul.f32 %v5899, %v5984
    %v6012 = vmul.f32 %v5900, %v5986
    %v6013 = vmul.f32 %v5901, %v5988
    %v6014 = vmul.f32 %v5902, %v5990
    %v6015 = vmul.f32 %v5903, %v5992
    %v6016 = vmul.f32 %v5904, %v5994
    %v6017 = vmul.f32 %v5905, %v5996
    %v6018 = vmul.f32 %v5906, %v5998
    %v6019 = vmul.f32 %v5907, %v6000
    %v6020 = vmul.f32 %v5908, %v6002
    %v6021 = vmul.f32 %v5909, %v6004
    %v6022 = vmul.f32 %v5910, %v6006
    %v6039 = vrot.slane %v6007, 6
    %v6040 = vrot.slane %v6008, 6
    %v6041 = vrot.slane %v6009, 6
    %v6042 = vrot.slane %v6010, 6
    %v6043 = vrot.slane %v6011, 6
    %v6044 = vrot.slane %v6012, 6
    %v6045 = vrot.slane %v6013, 6
    %v6046 = vrot.slane %v6014, 6
    %v6047 = vrot.slane %v6015, 6
    %v6048 = vrot.slane %v6016, 6
    %v6049 = vrot.slane %v6017, 6
    %v6050 = vrot.slane %v6018, 6
    %v6051 = vrot.slane %v6019, 6
    %v6052 = vrot.slane %v6020, 6
    %v6053 = vrot.slane %v6021, 6
    %v6054 = vrot.slane %v6022, 6
    %v6071 = vrot.slane %v6008, 4
    %v6072 = vrot.slane %v6009, 4
    %v6073 = vrot.slane %v6010, 4
    %v6074 = vrot.slane %v6011, 4
    %v6075 = vrot.slane %v6012, 4
    %v6076 = vrot.slane %v6013, 4
    %v6077 = vrot.slane %v6014, 4
    %v6078 = vrot.slane %v6015, 4
    %v6079 = vrot.slane %v6016, 4
    %v6080 = vrot.slane %v6017, 4
    %v6081 = vrot.slane %v6018, 4
    %v6082 = vrot.slane %v6019, 4
    %v6083 = vrot.slane %v6020, 4
    %v6084 = vrot.slane %v6021, 4
    %v6085 = vrot.slane %v6022, 4
    %v6101 = vsel %vm5556, 0.0, %v6039
    %v6102 = vsel %vm5556, %v6007, %v6040
    %v6103 = vsel %vm5556, %v6008, %v6041
    %v6104 = vsel %vm5556, %v6009, %v6042
    %v6105 = vsel %vm5556, %v6010, %v6043
    %v6106 = vsel %vm5556, %v6011, %v6044
    %v6107 = vsel %vm5556, %v6012, %v6045
    %v6108 = vsel %vm5556, %v6013, %v6046
    %v6109 = vsel %vm5556, %v6014, %v6047
    %v6110 = vsel %vm5556, %v6015, %v6048
    %v6111 = vsel %vm5556, %v6016, %v6049
    %v6112 = vsel %vm5556, %v6017, %v6050
    %v6113 = vsel %vm5556, %v6018, %v6051
    %v6114 = vsel %vm5556, %v6019, %v6052
    %v6115 = vsel %vm5556, %v6020, %v6053
    %v6116 = vsel %vm5556, %v6021, %v6054
    %v6117 = vsel %vm1702, %v6101, %v6071
    %v6118 = vsel %vm1702, %v6102, %v6072
    %v6119 = vsel %vm1702, %v6103, %v6073
    %v6120 = vsel %vm1702, %v6104, %v6074
    %v6121 = vsel %vm1702, %v6105, %v6075
    %v6122 = vsel %vm1702, %v6106, %v6076
    %v6123 = vsel %vm1702, %v6107, %v6077
    %v6124 = vsel %vm1702, %v6108, %v6078
    %v6125 = vsel %vm1702, %v6109, %v6079
    %v6126 = vsel %vm1702, %v6110, %v6080
    %v6127 = vsel %vm1702, %v6111, %v6081
    %v6128 = vsel %vm1702, %v6112, %v6082
    %v6129 = vsel %vm1702, %v6113, %v6083
    %v6130 = vsel %vm1702, %v6114, %v6084
    %v6131 = vsel %vm1702, %v6115, %v6085
    %v6132 = vsel %vm1702, %v6116, %v4079
    %6133 = vset.pattern.permute.xlu0 29
    %6134 = vperm.xlu0 %6133, %v4417
    %v6135 = vpop.permute.xlu0 %6134
    %vm6137 = vcmask 48128
    %v6139 = vsel %vm6137, %v4418, 0
    %vm6141 = vcmask 1045504
    %v6143 = vsel %vm6141, %v6117, 0
    %v6146 = vsel %vm6141, %v6118, 0
    %v6149 = vsel %vm6141, %v6119, 0
    %v6152 = vsel %vm6141, %v6120, 0
    %v6155 = vsel %vm6141, %v6121, 0
    %v6158 = vsel %vm6141, %v6122, 0
    %v6161 = vsel %vm6141, %v6123, 0
    %v6164 = vsel %vm6141, %v6124, 0
    %v6167 = vsel %vm6141, %v6125, 0
    %v6170 = vsel %vm6141, %v6126, 0
    %v6173 = vsel %vm6141, %v6127, 0
    %v6176 = vsel %vm6141, %v6128, 0
    %v6179 = vsel %vm6141, %v6129, 0
    %v6182 = vsel %vm6141, %v6130, 0
    %v6185 = vsel %vm6141, %v6131, 0
    %v6188 = vsel %vm6141, %v6132, 0
    %6190 = vmatprep.subr.mxu0 %v6146
    %6191 = vmatpush1.msra.mxu0 %v6143
    %6192 = vmatprep.subr.mxu0 0.0
    %6193 = vmatpush1.msra.mxu0 0.0
    %6194 = vmatprep.subr.mxu0 0.0
    %6195 = vmatpush1.msra.mxu0 0.0
    %6196 = vmatprep.subr.mxu0 0.0
    %6197 = vmatpush1.msra.mxu0 0.0
    %6198 = vmatprep.subr.mxu0 0.0
    %6199 = vmatpush1.msra.mxu0 0.0
    %6200 = vmatprep.subr.mxu0 0.0
    %6201 = vmatpush1.msra.mxu0 0.0
    %6202 = vmatprep.subr.mxu0 0.0
    %6203 = vmatpush1.msra.mxu0 0.0
    %6204 = vmatprep.subr.mxu0 0.0
    %6205 = vmatpush1.msra.mxu0 0.0
    %6206 = vmatprep.subr.mxu0 0.0
    %6207 = vmatpush1.msra.mxu0 0.0
    %6208 = vmatprep.subr.mxu0 0.0
    %6209 = vmatpush1.msra.mxu0 0.0
    %6210 = vmatprep.subr.mxu0 0.0
    %6211 = vmatpush1.msra.mxu0 0.0
    %6212 = vmatprep.subr.mxu0 0.0
    %6213 = vmatpush1.msra.mxu0 0.0
    %6214 = vmatprep.subr.mxu0 0.0
    %6215 = vmatpush1.msra.mxu0 0.0
    %6216 = vmatprep.subr.mxu0 0.0
    %6217 = vmatpush1.msra.mxu0 0.0
    %6218 = vmatprep.subr.mxu0 0.0
    %6219 = vmatpush1.msra.mxu0 0.0
    %6220 = vmatprep.subr.mxu0 0.0
    %6221 = vmatpush1.msra.mxu0 0.0
    %6222 = vmatprep.subr.mxu0 0.0
    %6223 = vmatpush1.msra.mxu0 0.0
    %6224 = vmatprep.subr.mxu0 0.0
    %6225 = vmatpush1.msra.mxu0 0.0
    %6226 = vmatprep.subr.mxu0 0.0
    %6227 = vmatpush1.msra.mxu0 0.0
    %6228 = vmatprep.subr.mxu0 0.0
    %6229 = vmatpush1.msra.mxu0 0.0
    %6230 = vmatprep.subr.mxu0 0.0
    %6231 = vmatpush1.msra.mxu0 0.0
    %6232 = vmatprep.subr.mxu0 0.0
    %6233 = vmatpush1.msra.mxu0 0.0
    %6234 = vmatprep.subr.mxu0 0.0
    %6235 = vmatpush1.msra.mxu0 0.0
    %6236 = vmatprep.subr.mxu0 0.0
    %6237 = vmatpush1.msra.mxu0 0.0
    %6238 = vmatprep.subr.mxu0 0.0
    %6239 = vmatpush1.msra.mxu0 0.0
    %6240 = vmatprep.subr.mxu0 0.0
    %6241 = vmatpush1.msra.mxu0 0.0
    %6242 = vmatprep.subr.mxu0 0.0
    %6243 = vmatpush1.msra.mxu0 0.0
    %6244 = vmatprep.subr.mxu0 0.0
    %6245 = vmatpush1.msra.mxu0 0.0
    %6246 = vmatprep.subr.mxu0 0.0
    %6247 = vmatpush1.msra.mxu0 0.0
    %6248 = vmatprep.subr.mxu0 0.0
    %6249 = vmatpush1.msra.mxu0 0.0
    %6250 = vmatprep.subr.mxu0 0.0
    %6251 = vmatpush1.msra.mxu0 0.0
    %6252 = vmatprep.subr.mxu0 0.0
    %6253 = vmatpush1.msra.mxu0 0.0
    %6254 = vmatprep.mubr.f32.mxu0 0.0
    %6255 = vmatmul.mubr.f32.gmra.mrb[0].mxu0 %v6139
    %v6256 = vpop.f32.mrb[0].mxu0
    %v6257 = vadd.f32 %v6135, %v6256
    %v6258 = vpop.f32.mrb[0].mxu0
    %v6259 = vadd.f32 %v6135, %v6258
    %6260 = vdwg.mxu0
    %6261 = vmatprep.subr.mxu0 %v6152
    %6262 = vmatpush1.msra.mxu0 %v6149
    %6263 = vmatprep.subr.mxu0 0.0
    %6264 = vmatpush1.msra.mxu0 0.0
    %6265 = vmatprep.subr.mxu0 0.0
    %6266 = vmatpush1.msra.mxu0 0.0
    %6267 = vmatprep.subr.mxu0 0.0
    %6268 = vmatpush1.msra.mxu0 0.0
    %6269 = vmatprep.subr.mxu0 0.0
    %6270 = vmatpush1.msra.mxu0 0.0
    %6271 = vmatprep.subr.mxu0 0.0
    %6272 = vmatpush1.msra.mxu0 0.0
    %6273 = vmatprep.subr.mxu0 0.0
    %6274 = vmatpush1.msra.mxu0 0.0
    %6275 = vmatprep.subr.mxu0 0.0
    %6276 = vmatpush1.msra.mxu0 0.0
    %6277 = vmatprep.subr.mxu0 0.0
    %6278 = vmatpush1.msra.mxu0 0.0
    %6279 = vmatprep.subr.mxu0 0.0
    %6280 = vmatpush1.msra.mxu0 0.0
    %6281 = vmatprep.subr.mxu0 0.0
    %6282 = vmatpush1.msra.mxu0 0.0
    %6283 = vmatprep.subr.mxu0 0.0
    %6284 = vmatpush1.msra.mxu0 0.0
    %6285 = vmatprep.subr.mxu0 0.0
    %6286 = vmatpush1.msra.mxu0 0.0
    %6287 = vmatprep.subr.mxu0 0.0
    %6288 = vmatpush1.msra.mxu0 0.0
    %6289 = vmatprep.subr.mxu0 0.0
    %6290 = vmatpush1.msra.mxu0 0.0
    %6291 = vmatprep.subr.mxu0 0.0
    %6292 = vmatpush1.msra.mxu0 0.0
    %6293 = vmatprep.subr.mxu0 0.0
    %6294 = vmatpush1.msra.mxu0 0.0
    %6295 = vmatprep.subr.mxu0 0.0
    %6296 = vmatpush1.msra.mxu0 0.0
    %6297 = vmatprep.subr.mxu0 0.0
    %6298 = vmatpush1.msra.mxu0 0.0
    %6299 = vmatprep.subr.mxu0 0.0
    %6300 = vmatpush1.msra.mxu0 0.0
    %6301 = vmatprep.subr.mxu0 0.0
    %6302 = vmatpush1.msra.mxu0 0.0
    %6303 = vmatprep.subr.mxu0 0.0
    %6304 = vmatpush1.msra.mxu0 0.0
    %6305 = vmatprep.subr.mxu0 0.0
    %6306 = vmatpush1.msra.mxu0 0.0
    %6307 = vmatprep.subr.mxu0 0.0
    %6308 = vmatpush1.msra.mxu0 0.0
    %6309 = vmatprep.subr.mxu0 0.0
    %6310 = vmatpush1.msra.mxu0 0.0
    %6311 = vmatprep.subr.mxu0 0.0
    %6312 = vmatpush1.msra.mxu0 0.0
    %6313 = vmatprep.subr.mxu0 0.0
    %6314 = vmatpush1.msra.mxu0 0.0
    %6315 = vmatprep.subr.mxu0 0.0
    %6316 = vmatpush1.msra.mxu0 0.0
    %6317 = vmatprep.subr.mxu0 0.0
    %6318 = vmatpush1.msra.mxu0 0.0
    %6319 = vmatprep.subr.mxu0 0.0
    %6320 = vmatpush1.msra.mxu0 0.0
    %6321 = vmatprep.subr.mxu0 0.0
    %6322 = vmatpush1.msra.mxu0 0.0
    %6323 = vmatprep.subr.mxu0 0.0
    %6324 = vmatpush1.msra.mxu0 0.0
    %6325 = vmatprep.mubr.f32.mxu0 0.0
    %6326 = vmatmul.mubr.f32.gmra.mrb[0].mxu0 %v6139
    %v6327 = vpop.f32.mrb[0].mxu0
    %v6328 = vadd.f32 %v6135, %v6327
    %v6329 = vpop.f32.mrb[0].mxu0
    %v6330 = vadd.f32 %v6135, %v6329
    %6331 = vdwg.mxu0
    %6332 = vmatprep.subr.mxu0 %v6158
    %6333 = vmatpush1.msra.mxu0 %v6155
    %6334 = vmatprep.subr.mxu0 0.0
    %6335 = vmatpush1.msra.mxu0 0.0
    %6336 = vmatprep.subr.mxu0 0.0
    %6337 = vmatpush1.msra.mxu0 0.0
    %6338 = vmatprep.subr.mxu0 0.0
    %6339 = vmatpush1.msra.mxu0 0.0
    %6340 = vmatprep.subr.mxu0 0.0
    %6341 = vmatpush1.msra.mxu0 0.0
    %6342 = vmatprep.subr.mxu0 0.0
    %6343 = vmatpush1.msra.mxu0 0.0
    %6344 = vmatprep.subr.mxu0 0.0
    %6345 = vmatpush1.msra.mxu0 0.0
    %6346 = vmatprep.subr.mxu0 0.0
    %6347 = vmatpush1.msra.mxu0 0.0
    %6348 = vmatprep.subr.mxu0 0.0
    %6349 = vmatpush1.msra.mxu0 0.0
    %6350 = vmatprep.subr.mxu0 0.0
    %6351 = vmatpush1.msra.mxu0 0.0
    %6352 = vmatprep.subr.mxu0 0.0
    %6353 = vmatpush1.msra.mxu0 0.0
    %6354 = vmatprep.subr.mxu0 0.0
    %6355 = vmatpush1.msra.mxu0 0.0
    %6356 = vmatprep.subr.mxu0 0.0
    %6357 = vmatpush1.msra.mxu0 0.0
    %6358 = vmatprep.subr.mxu0 0.0
    %6359 = vmatpush1.msra.mxu0 0.0
    %6360 = vmatprep.subr.mxu0 0.0
    %6361 = vmatpush1.msra.mxu0 0.0
    %6362 = vmatprep.subr.mxu0 0.0
    %6363 = vmatpush1.msra.mxu0 0.0
    %6364 = vmatprep.subr.mxu0 0.0
    %6365 = vmatpush1.msra.mxu0 0.0
    %6366 = vmatprep.subr.mxu0 0.0
    %6367 = vmatpush1.msra.mxu0 0.0
    %6368 = vmatprep.subr.mxu0 0.0
    %6369 = vmatpush1.msra.mxu0 0.0
    %6370 = vmatprep.subr.mxu0 0.0
    %6371 = vmatpush1.msra.mxu0 0.0
    %6372 = vmatprep.subr.mxu0 0.0
    %6373 = vmatpush1.msra.mxu0 0.0
    %6374 = vmatprep.subr.mxu0 0.0
    %6375 = vmatpush1.msra.mxu0 0.0
    %6376 = vmatprep.subr.mxu0 0.0
    %6377 = vmatpush1.msra.mxu0 0.0
    %6378 = vmatprep.subr.mxu0 0.0
    %6379 = vmatpush1.msra.mxu0 0.0
    %6380 = vmatprep.subr.mxu0 0.0
    %6381 = vmatpush1.msra.mxu0 0.0
    %6382 = vmatprep.subr.mxu0 0.0
    %6383 = vmatpush1.msra.mxu0 0.0
    %6384 = vmatprep.subr.mxu0 0.0
    %6385 = vmatpush1.msra.mxu0 0.0
    %6386 = vmatprep.subr.mxu0 0.0
    %6387 = vmatpush1.msra.mxu0 0.0
    %6388 = vmatprep.subr.mxu0 0.0
    %6389 = vmatpush1.msra.mxu0 0.0
    %6390 = vmatprep.subr.mxu0 0.0
    %6391 = vmatpush1.msra.mxu0 0.0
    %6392 = vmatprep.subr.mxu0 0.0
    %6393 = vmatpush1.msra.mxu0 0.0
    %6394 = vmatprep.subr.mxu0 0.0
    %6395 = vmatpush1.msra.mxu0 0.0
    %6396 = vmatprep.mubr.f32.mxu0 0.0
    %6397 = vmatmul.mubr.f32.gmra.mrb[0].mxu0 %v6139
    %v6398 = vpop.f32.mrb[0].mxu0
    %v6399 = vadd.f32 %v6135, %v6398
    %v6400 = vpop.f32.mrb[0].mxu0
    %v6401 = vadd.f32 %v6135, %v6400
    %6402 = vdwg.mxu0
    %6403 = vmatprep.subr.mxu0 %v6164
    %6404 = vmatpush1.msra.mxu0 %v6161
    %6405 = vmatprep.subr.mxu0 0.0
    %6406 = vmatpush1.msra.mxu0 0.0
    %6407 = vmatprep.subr.mxu0 0.0
    %6408 = vmatpush1.msra.mxu0 0.0
    %6409 = vmatprep.subr.mxu0 0.0
    %6410 = vmatpush1.msra.mxu0 0.0
    %6411 = vmatprep.subr.mxu0 0.0
    %6412 = vmatpush1.msra.mxu0 0.0
    %6413 = vmatprep.subr.mxu0 0.0
    %6414 = vmatpush1.msra.mxu0 0.0
    %6415 = vmatprep.subr.mxu0 0.0
    %6416 = vmatpush1.msra.mxu0 0.0
    %6417 = vmatprep.subr.mxu0 0.0
    %6418 = vmatpush1.msra.mxu0 0.0
    %6419 = vmatprep.subr.mxu0 0.0
    %6420 = vmatpush1.msra.mxu0 0.0
    %6421 = vmatprep.subr.mxu0 0.0
    %6422 = vmatpush1.msra.mxu0 0.0
    %6423 = vmatprep.subr.mxu0 0.0
    %6424 = vmatpush1.msra.mxu0 0.0
    %6425 = vmatprep.subr.mxu0 0.0
    %6426 = vmatpush1.msra.mxu0 0.0
    %6427 = vmatprep.subr.mxu0 0.0
    %6428 = vmatpush1.msra.mxu0 0.0
    %6429 = vmatprep.subr.mxu0 0.0
    %6430 = vmatpush1.msra.mxu0 0.0
    %6431 = vmatprep.subr.mxu0 0.0
    %6432 = vmatpush1.msra.mxu0 0.0
    %6433 = vmatprep.subr.mxu0 0.0
    %6434 = vmatpush1.msra.mxu0 0.0
    %6435 = vmatprep.subr.mxu0 0.0
    %6436 = vmatpush1.msra.mxu0 0.0
    %6437 = vmatprep.subr.mxu0 0.0
    %6438 = vmatpush1.msra.mxu0 0.0
    %6439 = vmatprep.subr.mxu0 0.0
    %6440 = vmatpush1.msra.mxu0 0.0
    %6441 = vmatprep.subr.mxu0 0.0
    %6442 = vmatpush1.msra.mxu0 0.0
    %6443 = vmatprep.subr.mxu0 0.0
    %6444 = vmatpush1.msra.mxu0 0.0
    %6445 = vmatprep.subr.mxu0 0.0
    %6446 = vmatpush1.msra.mxu0 0.0
    %6447 = vmatprep.subr.mxu0 0.0
    %6448 = vmatpush1.msra.mxu0 0.0
    %6449 = vmatprep.subr.mxu0 0.0
    %6450 = vmatpush1.msra.mxu0 0.0
    %6451 = vmatprep.subr.mxu0 0.0
    %6452 = vmatpush1.msra.mxu0 0.0
    %6453 = vmatprep.subr.mxu0 0.0
    %6454 = vmatpush1.msra.mxu0 0.0
    %6455 = vmatprep.subr.mxu0 0.0
    %6456 = vmatpush1.msra.mxu0 0.0
    %6457 = vmatprep.subr.mxu0 0.0
    %6458 = vmatpush1.msra.mxu0 0.0
    %6459 = vmatprep.subr.mxu0 0.0
    %6460 = vmatpush1.msra.mxu0 0.0
    %6461 = vmatprep.subr.mxu0 0.0
    %6462 = vmatpush1.msra.mxu0 0.0
    %6463 = vmatprep.subr.mxu0 0.0
    %6464 = vmatpush1.msra.mxu0 0.0
    %6465 = vmatprep.subr.mxu0 0.0
    %6466 = vmatpush1.msra.mxu0 0.0
    %6467 = vmatprep.mubr.f32.mxu0 0.0
    %6468 = vmatmul.mubr.f32.gmra.mrb[0].mxu0 %v6139
    %v6469 = vpop.f32.mrb[0].mxu0
    %v6470 = vadd.f32 %v6135, %v6469
    %v6471 = vpop.f32.mrb[0].mxu0
    %v6472 = vadd.f32 %v6135, %v6471
    %6473 = vdwg.mxu0
    %6474 = vmatprep.subr.mxu0 %v6170
    %6475 = vmatpush1.msra.mxu0 %v6167
    %6476 = vmatprep.subr.mxu0 0.0
    %6477 = vmatpush1.msra.mxu0 0.0
    %6478 = vmatprep.subr.mxu0 0.0
    %6479 = vmatpush1.msra.mxu0 0.0
    %6480 = vmatprep.subr.mxu0 0.0
    %6481 = vmatpush1.msra.mxu0 0.0
    %6482 = vmatprep.subr.mxu0 0.0
    %6483 = vmatpush1.msra.mxu0 0.0
    %6484 = vmatprep.subr.mxu0 0.0
    %6485 = vmatpush1.msra.mxu0 0.0
    %6486 = vmatprep.subr.mxu0 0.0
    %6487 = vmatpush1.msra.mxu0 0.0
    %6488 = vmatprep.subr.mxu0 0.0
    %6489 = vmatpush1.msra.mxu0 0.0
    %6490 = vmatprep.subr.mxu0 0.0
    %6491 = vmatpush1.msra.mxu0 0.0
    %6492 = vmatprep.subr.mxu0 0.0
    %6493 = vmatpush1.msra.mxu0 0.0
    %6494 = vmatprep.subr.mxu0 0.0
    %6495 = vmatpush1.msra.mxu0 0.0
    %6496 = vmatprep.subr.mxu0 0.0
    %6497 = vmatpush1.msra.mxu0 0.0
    %6498 = vmatprep.subr.mxu0 0.0
    %6499 = vmatpush1.msra.mxu0 0.0
    %6500 = vmatprep.subr.mxu0 0.0
    %6501 = vmatpush1.msra.mxu0 0.0
    %6502 = vmatprep.subr.mxu0 0.0
    %6503 = vmatpush1.msra.mxu0 0.0
    %6504 = vmatprep.subr.mxu0 0.0
    %6505 = vmatpush1.msra.mxu0 0.0
    %6506 = vmatprep.subr.mxu0 0.0
    %6507 = vmatpush1.msra.mxu0 0.0
    %6508 = vmatprep.subr.mxu0 0.0
    %6509 = vmatpush1.msra.mxu0 0.0
    %6510 = vmatprep.subr.mxu0 0.0
    %6511 = vmatpush1.msra.mxu0 0.0
    %6512 = vmatprep.subr.mxu0 0.0
    %6513 = vmatpush1.msra.mxu0 0.0
    %6514 = vmatprep.subr.mxu0 0.0
    %6515 = vmatpush1.msra.mxu0 0.0
    %6516 = vmatprep.subr.mxu0 0.0
    %6517 = vmatpush1.msra.mxu0 0.0
    %6518 = vmatprep.subr.mxu0 0.0
    %6519 = vmatpush1.msra.mxu0 0.0
    %6520 = vmatprep.subr.mxu0 0.0
    %6521 = vmatpush1.msra.mxu0 0.0
    %6522 = vmatprep.subr.mxu0 0.0
    %6523 = vmatpush1.msra.mxu0 0.0
    %6524 = vmatprep.subr.mxu0 0.0
    %6525 = vmatpush1.msra.mxu0 0.0
    %6526 = vmatprep.subr.mxu0 0.0
    %6527 = vmatpush1.msra.mxu0 0.0
    %6528 = vmatprep.subr.mxu0 0.0
    %6529 = vmatpush1.msra.mxu0 0.0
    %6530 = vmatprep.subr.mxu0 0.0
    %6531 = vmatpush1.msra.mxu0 0.0
    %6532 = vmatprep.subr.mxu0 0.0
    %6533 = vmatpush1.msra.mxu0 0.0
    %6534 = vmatprep.subr.mxu0 0.0
    %6535 = vmatpush1.msra.mxu0 0.0
    %6536 = vmatprep.subr.mxu0 0.0
    %6537 = vmatpush1.msra.mxu0 0.0
    %6538 = vmatprep.mubr.f32.mxu0 0.0
    %6539 = vmatmul.mubr.f32.gmra.mrb[0].mxu0 %v6139
    %v6540 = vpop.f32.mrb[0].mxu0
    %v6541 = vadd.f32 %v6135, %v6540
    %v6542 = vpop.f32.mrb[0].mxu0
    %v6543 = vadd.f32 %v6135, %v6542
    %6544 = vdwg.mxu0
    %6545 = vmatprep.subr.mxu0 %v6176
    %6546 = vmatpush1.msra.mxu0 %v6173
    %6547 = vmatprep.subr.mxu0 0.0
    %6548 = vmatpush1.msra.mxu0 0.0
    %6549 = vmatprep.subr.mxu0 0.0
    %6550 = vmatpush1.msra.mxu0 0.0
    %6551 = vmatprep.subr.mxu0 0.0
    %6552 = vmatpush1.msra.mxu0 0.0
    %6553 = vmatprep.subr.mxu0 0.0
    %6554 = vmatpush1.msra.mxu0 0.0
    %6555 = vmatprep.subr.mxu0 0.0
    %6556 = vmatpush1.msra.mxu0 0.0
    %6557 = vmatprep.subr.mxu0 0.0
    %6558 = vmatpush1.msra.mxu0 0.0
    %6559 = vmatprep.subr.mxu0 0.0
    %6560 = vmatpush1.msra.mxu0 0.0
    %6561 = vmatprep.subr.mxu0 0.0
    %6562 = vmatpush1.msra.mxu0 0.0
    %6563 = vmatprep.subr.mxu0 0.0
    %6564 = vmatpush1.msra.mxu0 0.0
    %6565 = vmatprep.subr.mxu0 0.0
    %6566 = vmatpush1.msra.mxu0 0.0
    %6567 = vmatprep.subr.mxu0 0.0
    %6568 = vmatpush1.msra.mxu0 0.0
    %6569 = vmatprep.subr.mxu0 0.0
    %6570 = vmatpush1.msra.mxu0 0.0
    %6571 = vmatprep.subr.mxu0 0.0
    %6572 = vmatpush1.msra.mxu0 0.0
    %6573 = vmatprep.subr.mxu0 0.0
    %6574 = vmatpush1.msra.mxu0 0.0
    %6575 = vmatprep.subr.mxu0 0.0
    %6576 = vmatpush1.msra.mxu0 0.0
    %6577 = vmatprep.subr.mxu0 0.0
    %6578 = vmatpush1.msra.mxu0 0.0
    %6579 = vmatprep.subr.mxu0 0.0
    %6580 = vmatpush1.msra.mxu0 0.0
    %6581 = vmatprep.subr.mxu0 0.0
    %6582 = vmatpush1.msra.mxu0 0.0
    %6583 = vmatprep.subr.mxu0 0.0
    %6584 = vmatpush1.msra.mxu0 0.0
    %6585 = vmatprep.subr.mxu0 0.0
    %6586 = vmatpush1.msra.mxu0 0.0
    %6587 = vmatprep.subr.mxu0 0.0
    %6588 = vmatpush1.msra.mxu0 0.0
    %6589 = vmatprep.subr.mxu0 0.0
    %6590 = vmatpush1.msra.mxu0 0.0
    %6591 = vmatprep.subr.mxu0 0.0
    %6592 = vmatpush1.msra.mxu0 0.0
    %6593 = vmatprep.subr.mxu0 0.0
    %6594 = vmatpush1.msra.mxu0 0.0
    %6595 = vmatprep.subr.mxu0 0.0
    %6596 = vmatpush1.msra.mxu0 0.0
    %6597 = vmatprep.subr.mxu0 0.0
    %6598 = vmatpush1.msra.mxu0 0.0
    %6599 = vmatprep.subr.mxu0 0.0
    %6600 = vmatpush1.msra.mxu0 0.0
    %6601 = vmatprep.subr.mxu0 0.0
    %6602 = vmatpush1.msra.mxu0 0.0
    %6603 = vmatprep.subr.mxu0 0.0
    %6604 = vmatpush1.msra.mxu0 0.0
    %6605 = vmatprep.subr.mxu0 0.0
    %6606 = vmatpush1.msra.mxu0 0.0
    %6607 = vmatprep.subr.mxu0 0.0
    %6608 = vmatpush1.msra.mxu0 0.0
    %6609 = vmatprep.mubr.f32.mxu0 0.0
    %6610 = vmatmul.mubr.f32.gmra.mrb[0].mxu0 %v6139
    %v6611 = vpop.f32.mrb[0].mxu0
    %v6612 = vadd.f32 %v6135, %v6611
    %v6613 = vpop.f32.mrb[0].mxu0
    %v6614 = vadd.f32 %v6135, %v6613
    %6615 = vdwg.mxu0
    %6616 = vmatprep.subr.mxu0 %v6182
    %6617 = vmatpush1.msra.mxu0 %v6179
    %6618 = vmatprep.subr.mxu0 0.0
    %6619 = vmatpush1.msra.mxu0 0.0
    %6620 = vmatprep.subr.mxu0 0.0
    %6621 = vmatpush1.msra.mxu0 0.0
    %6622 = vmatprep.subr.mxu0 0.0
    %6623 = vmatpush1.msra.mxu0 0.0
    %6624 = vmatprep.subr.mxu0 0.0
    %6625 = vmatpush1.msra.mxu0 0.0
    %6626 = vmatprep.subr.mxu0 0.0
    %6627 = vmatpush1.msra.mxu0 0.0
    %6628 = vmatprep.subr.mxu0 0.0
    %6629 = vmatpush1.msra.mxu0 0.0
    %6630 = vmatprep.subr.mxu0 0.0
    %6631 = vmatpush1.msra.mxu0 0.0
    %6632 = vmatprep.subr.mxu0 0.0
    %6633 = vmatpush1.msra.mxu0 0.0
    %6634 = vmatprep.subr.mxu0 0.0
    %6635 = vmatpush1.msra.mxu0 0.0
    %6636 = vmatprep.subr.mxu0 0.0
    %6637 = vmatpush1.msra.mxu0 0.0
    %6638 = vmatprep.subr.mxu0 0.0
    %6639 = vmatpush1.msra.mxu0 0.0
    %6640 = vmatprep.subr.mxu0 0.0
    %6641 = vmatpush1.msra.mxu0 0.0
    %6642 = vmatprep.subr.mxu0 0.0
    %6643 = vmatpush1.msra.mxu0 0.0
    %6644 = vmatprep.subr.mxu0 0.0
    %6645 = vmatpush1.msra.mxu0 0.0
    %6646 = vmatprep.subr.mxu0 0.0
    %6647 = vmatpush1.msra.mxu0 0.0
    %6648 = vmatprep.subr.mxu0 0.0
    %6649 = vmatpush1.msra.mxu0 0.0
    %6650 = vmatprep.subr.mxu0 0.0
    %6651 = vmatpush1.msra.mxu0 0.0
    %6652 = vmatprep.subr.mxu0 0.0
    %6653 = vmatpush1.msra.mxu0 0.0
    %6654 = vmatprep.subr.mxu0 0.0
    %6655 = vmatpush1.msra.mxu0 0.0
    %6656 = vmatprep.subr.mxu0 0.0
    %6657 = vmatpush1.msra.mxu0 0.0
    %6658 = vmatprep.subr.mxu0 0.0
    %6659 = vmatpush1.msra.mxu0 0.0
    %6660 = vmatprep.subr.mxu0 0.0
    %6661 = vmatpush1.msra.mxu0 0.0
    %6662 = vmatprep.subr.mxu0 0.0
    %6663 = vmatpush1.msra.mxu0 0.0
    %6664 = vmatprep.subr.mxu0 0.0
    %6665 = vmatpush1.msra.mxu0 0.0
    %6666 = vmatprep.subr.mxu0 0.0
    %6667 = vmatpush1.msra.mxu0 0.0
    %6668 = vmatprep.subr.mxu0 0.0
    %6669 = vmatpush1.msra.mxu0 0.0
    %6670 = vmatprep.subr.mxu0 0.0
    %6671 = vmatpush1.msra.mxu0 0.0
    %6672 = vmatprep.subr.mxu0 0.0
    %6673 = vmatpush1.msra.mxu0 0.0
    %6674 = vmatprep.subr.mxu0 0.0
    %6675 = vmatpush1.msra.mxu0 0.0
    %6676 = vmatprep.subr.mxu0 0.0
    %6677 = vmatpush1.msra.mxu0 0.0
    %6678 = vmatprep.subr.mxu0 0.0
    %6679 = vmatpush1.msra.mxu0 0.0
    %6680 = vmatprep.mubr.f32.mxu0 0.0
    %6681 = vmatmul.mubr.f32.gmra.mrb[0].mxu0 %v6139
    %v6682 = vpop.f32.mrb[0].mxu0
    %v6683 = vadd.f32 %v6135, %v6682
    %v6684 = vpop.f32.mrb[0].mxu0
    %v6685 = vadd.f32 %v6135, %v6684
    %6686 = vdwg.mxu0
    %6687 = vmatprep.subr.mxu0 %v6188
    %6688 = vmatpush1.msra.mxu0 %v6185
    %6689 = vmatprep.subr.mxu0 0.0
    %6690 = vmatpush1.msra.mxu0 0.0
    %6691 = vmatprep.subr.mxu0 0.0
    %6692 = vmatpush1.msra.mxu0 0.0
    %6693 = vmatprep.subr.mxu0 0.0
    %6694 = vmatpush1.msra.mxu0 0.0
    %6695 = vmatprep.subr.mxu0 0.0
    %6696 = vmatpush1.msra.mxu0 0.0
    %6697 = vmatprep.subr.mxu0 0.0
    %6698 = vmatpush1.msra.mxu0 0.0
    %6699 = vmatprep.subr.mxu0 0.0
    %6700 = vmatpush1.msra.mxu0 0.0
    %6701 = vmatprep.subr.mxu0 0.0
    %6702 = vmatpush1.msra.mxu0 0.0
    %6703 = vmatprep.subr.mxu0 0.0
    %6704 = vmatpush1.msra.mxu0 0.0
    %6705 = vmatprep.subr.mxu0 0.0
    %6706 = vmatpush1.msra.mxu0 0.0
    %6707 = vmatprep.subr.mxu0 0.0
    %6708 = vmatpush1.msra.mxu0 0.0
    %6709 = vmatprep.subr.mxu0 0.0
    %6710 = vmatpush1.msra.mxu0 0.0
    %6711 = vmatprep.subr.mxu0 0.0
    %6712 = vmatpush1.msra.mxu0 0.0
    %6713 = vmatprep.subr.mxu0 0.0
    %6714 = vmatpush1.msra.mxu0 0.0
    %6715 = vmatprep.subr.mxu0 0.0
    %6716 = vmatpush1.msra.mxu0 0.0
    %6717 = vmatprep.subr.mxu0 0.0
    %6718 = vmatpush1.msra.mxu0 0.0
    %6719 = vmatprep.subr.mxu0 0.0
    %6720 = vmatpush1.msra.mxu0 0.0
    %6721 = vmatprep.subr.mxu0 0.0
    %6722 = vmatpush1.msra.mxu0 0.0
    %6723 = vmatprep.subr.mxu0 0.0
    %6724 = vmatpush1.msra.mxu0 0.0
    %6725 = vmatprep.subr.mxu0 0.0
    %6726 = vmatpush1.msra.mxu0 0.0
    %6727 = vmatprep.subr.mxu0 0.0
    %6728 = vmatpush1.msra.mxu0 0.0
    %6729 = vmatprep.subr.mxu0 0.0
    %6730 = vmatpush1.msra.mxu0 0.0
    %6731 = vmatprep.subr.mxu0 0.0
    %6732 = vmatpush1.msra.mxu0 0.0
    %6733 = vmatprep.subr.mxu0 0.0
    %6734 = vmatpush1.msra.mxu0 0.0
    %6735 = vmatprep.subr.mxu0 0.0
    %6736 = vmatpush1.msra.mxu0 0.0
    %6737 = vmatprep.subr.mxu0 0.0
    %6738 = vmatpush1.msra.mxu0 0.0
    %6739 = vmatprep.subr.mxu0 0.0
    %6740 = vmatpush1.msra.mxu0 0.0
    %6741 = vmatprep.subr.mxu0 0.0
    %6742 = vmatpush1.msra.mxu0 0.0
    %6743 = vmatprep.subr.mxu0 0.0
    %6744 = vmatpush1.msra.mxu0 0.0
    %6745 = vmatprep.subr.mxu0 0.0
    %6746 = vmatpush1.msra.mxu0 0.0
    %6747 = vmatprep.subr.mxu0 0.0
    %6748 = vmatpush1.msra.mxu0 0.0
    %6749 = vmatprep.subr.mxu0 0.0
    %6750 = vmatpush1.msra.mxu0 0.0
    %6751 = vmatprep.mubr.f32.mxu0 0.0
    %6752 = vmatmul.mubr.f32.gmra.mrb[0].mxu0 %v6139
    %v6753 = vpop.f32.mrb[0].mxu0
    %v6754 = vadd.f32 %v6135, %v6753
    %v6755 = vpop.f32.mrb[0].mxu0
    %v6756 = vadd.f32 %v6135, %v6755
    %6757 = vdwg.mxu0
    %v6758 = vld [vmem:[#allocation6 + $0x78] sm:$0x3]
    %6759 = vset.pattern.permute.xlu0 30
    %6760 = vperm.xlu0 %6759, %v4417
    %v6761 = vpop.permute.xlu0 %6760
    %v6764 = vsel %vm3760, %v6758, 0
    %v6767 = vsel %vm1702, %v4399, 0
    %v6770 = vsel %vm1702, %v4400, 0
    %v6773 = vsel %vm1702, %v4401, 0
    %v6776 = vsel %vm1702, %v4402, 0
    %v6779 = vsel %vm1702, %v4403, 0
    %v6782 = vsel %vm1702, %v4404, 0
    %v6785 = vsel %vm1702, %v4405, 0
    %v6788 = vsel %vm1702, %v4406, 0
    %v6791 = vsel %vm1702, %v4407, 0
    %v6794 = vsel %vm1702, %v4408, 0
    %v6797 = vsel %vm1702, %v4409, 0
    %v6800 = vsel %vm1702, %v4410, 0
    %v6803 = vsel %vm1702, %v4411, 0
    %v6806 = vsel %vm1702, %v4412, 0
    %v6809 = vsel %vm1702, %v4413, 0
    %v6812 = vsel %vm1702, %v4414, 0
    %6814 = vmatprep.subr.mxu0 %v6770
    %6815 = vmatpush1.msra.mxu0 %v6767
    %6816 = vmatprep.subr.mxu0 0.0
    %6817 = vmatpush1.msra.mxu0 0.0
    %6818 = vmatprep.subr.mxu0 0.0
    %6819 = vmatpush1.msra.mxu0 0.0
    %6820 = vmatprep.subr.mxu0 0.0
    %6821 = vmatpush1.msra.mxu0 0.0
    %6822 = vmatprep.subr.mxu0 0.0
    %6823 = vmatpush1.msra.mxu0 0.0
    %6824 = vmatprep.subr.mxu0 0.0
    %6825 = vmatpush1.msra.mxu0 0.0
    %6826 = vmatprep.subr.mxu0 0.0
    %6827 = vmatpush1.msra.mxu0 0.0
    %6828 = vmatprep.subr.mxu0 0.0
    %6829 = vmatpush1.msra.mxu0 0.0
    %6830 = vmatprep.subr.mxu0 0.0
    %6831 = vmatpush1.msra.mxu0 0.0
    %6832 = vmatprep.subr.mxu0 0.0
    %6833 = vmatpush1.msra.mxu0 0.0
    %6834 = vmatprep.subr.mxu0 0.0
    %6835 = vmatpush1.msra.mxu0 0.0
    %6836 = vmatprep.subr.mxu0 0.0
    %6837 = vmatpush1.msra.mxu0 0.0
    %6838 = vmatprep.subr.mxu0 0.0
    %6839 = vmatpush1.msra.mxu0 0.0
    %6840 = vmatprep.subr.mxu0 0.0
    %6841 = vmatpush1.msra.mxu0 0.0
    %6842 = vmatprep.subr.mxu0 0.0
    %6843 = vmatpush1.msra.mxu0 0.0
    %6844 = vmatprep.subr.mxu0 0.0
    %6845 = vmatpush1.msra.mxu0 0.0
    %6846 = vmatprep.subr.mxu0 0.0
    %6847 = vmatpush1.msra.mxu0 0.0
    %6848 = vmatprep.subr.mxu0 0.0
    %6849 = vmatpush1.msra.mxu0 0.0
    %6850 = vmatprep.subr.mxu0 0.0
    %6851 = vmatpush1.msra.mxu0 0.0
    %6852 = vmatprep.subr.mxu0 0.0
    %6853 = vmatpush1.msra.mxu0 0.0
    %6854 = vmatprep.subr.mxu0 0.0
    %6855 = vmatpush1.msra.mxu0 0.0
    %6856 = vmatprep.subr.mxu0 0.0
    %6857 = vmatpush1.msra.mxu0 0.0
    %6858 = vmatprep.subr.mxu0 0.0
    %6859 = vmatpush1.msra.mxu0 0.0
    %6860 = vmatprep.subr.mxu0 0.0
    %6861 = vmatpush1.msra.mxu0 0.0
    %6862 = vmatprep.subr.mxu0 0.0
    %6863 = vmatpush1.msra.mxu0 0.0
    %6864 = vmatprep.subr.mxu0 0.0
    %6865 = vmatpush1.msra.mxu0 0.0
    %6866 = vmatprep.subr.mxu0 0.0
    %6867 = vmatpush1.msra.mxu0 0.0
    %6868 = vmatprep.subr.mxu0 0.0
    %6869 = vmatpush1.msra.mxu0 0.0
    %6870 = vmatprep.subr.mxu0 0.0
    %6871 = vmatpush1.msra.mxu0 0.0
    %6872 = vmatprep.subr.mxu0 0.0
    %6873 = vmatpush1.msra.mxu0 0.0
    %6874 = vmatprep.subr.mxu0 0.0
    %6875 = vmatpush1.msra.mxu0 0.0
    %6876 = vmatprep.subr.mxu0 0.0
    %6877 = vmatpush1.msra.mxu0 0.0
    %6878 = vmatprep.mubr.f32.mxu0 0.0
    %6879 = vmatmul.mubr.f32.gmra.mrb[0].mxu0 %v6764
    %v6880 = vpop.f32.mrb[0].mxu0
    %v6881 = vadd.f32 %v6761, %v6880
    %v6882 = vpop.f32.mrb[0].mxu0
    %v6883 = vadd.f32 %v6761, %v6882
    %6884 = vdwg.mxu0
    %6885 = vmatprep.subr.mxu0 %v6776
    %6886 = vmatpush1.msra.mxu0 %v6773
    %6887 = vmatprep.subr.mxu0 0.0
    %6888 = vmatpush1.msra.mxu0 0.0
    %6889 = vmatprep.subr.mxu0 0.0
    %6890 = vmatpush1.msra.mxu0 0.0
    %6891 = vmatprep.subr.mxu0 0.0
    %6892 = vmatpush1.msra.mxu0 0.0
    %6893 = vmatprep.subr.mxu0 0.0
    %6894 = vmatpush1.msra.mxu0 0.0
    %6895 = vmatprep.subr.mxu0 0.0
    %6896 = vmatpush1.msra.mxu0 0.0
    %6897 = vmatprep.subr.mxu0 0.0
    %6898 = vmatpush1.msra.mxu0 0.0
    %6899 = vmatprep.subr.mxu0 0.0
    %6900 = vmatpush1.msra.mxu0 0.0
    %6901 = vmatprep.subr.mxu0 0.0
    %6902 = vmatpush1.msra.mxu0 0.0
    %6903 = vmatprep.subr.mxu0 0.0
    %6904 = vmatpush1.msra.mxu0 0.0
    %6905 = vmatprep.subr.mxu0 0.0
    %6906 = vmatpush1.msra.mxu0 0.0
    %6907 = vmatprep.subr.mxu0 0.0
    %6908 = vmatpush1.msra.mxu0 0.0
    %6909 = vmatprep.subr.mxu0 0.0
    %6910 = vmatpush1.msra.mxu0 0.0
    %6911 = vmatprep.subr.mxu0 0.0
    %6912 = vmatpush1.msra.mxu0 0.0
    %6913 = vmatprep.subr.mxu0 0.0
    %6914 = vmatpush1.msra.mxu0 0.0
    %6915 = vmatprep.subr.mxu0 0.0
    %6916 = vmatpush1.msra.mxu0 0.0
    %6917 = vmatprep.subr.mxu0 0.0
    %6918 = vmatpush1.msra.mxu0 0.0
    %6919 = vmatprep.subr.mxu0 0.0
    %6920 = vmatpush1.msra.mxu0 0.0
    %6921 = vmatprep.subr.mxu0 0.0
    %6922 = vmatpush1.msra.mxu0 0.0
    %6923 = vmatprep.subr.mxu0 0.0
    %6924 = vmatpush1.msra.mxu0 0.0
    %6925 = vmatprep.subr.mxu0 0.0
    %6926 = vmatpush1.msra.mxu0 0.0
    %6927 = vmatprep.subr.mxu0 0.0
    %6928 = vmatpush1.msra.mxu0 0.0
    %6929 = vmatprep.subr.mxu0 0.0
    %6930 = vmatpush1.msra.mxu0 0.0
    %6931 = vmatprep.subr.mxu0 0.0
    %6932 = vmatpush1.msra.mxu0 0.0
    %6933 = vmatprep.subr.mxu0 0.0
    %6934 = vmatpush1.msra.mxu0 0.0
    %6935 = vmatprep.subr.mxu0 0.0
    %6936 = vmatpush1.msra.mxu0 0.0
    %6937 = vmatprep.subr.mxu0 0.0
    %6938 = vmatpush1.msra.mxu0 0.0
    %6939 = vmatprep.subr.mxu0 0.0
    %6940 = vmatpush1.msra.mxu0 0.0
    %6941 = vmatprep.subr.mxu0 0.0
    %6942 = vmatpush1.msra.mxu0 0.0
    %6943 = vmatprep.subr.mxu0 0.0
    %6944 = vmatpush1.msra.mxu0 0.0
    %6945 = vmatprep.subr.mxu0 0.0
    %6946 = vmatpush1.msra.mxu0 0.0
    %6947 = vmatprep.subr.mxu0 0.0
    %6948 = vmatpush1.msra.mxu0 0.0
    %6949 = vmatprep.mubr.f32.mxu0 0.0
    %6950 = vmatmul.mubr.f32.gmra.mrb[0].mxu0 %v6764
    %v6951 = vpop.f32.mrb[0].mxu0
    %v6952 = vadd.f32 %v6761, %v6951
    %v6953 = vpop.f32.mrb[0].mxu0
    %v6954 = vadd.f32 %v6761, %v6953
    %6955 = vdwg.mxu0
    %6956 = vmatprep.subr.mxu0 %v6782
    %6957 = vmatpush1.msra.mxu0 %v6779
    %6958 = vmatprep.subr.mxu0 0.0
    %6959 = vmatpush1.msra.mxu0 0.0
    %6960 = vmatprep.subr.mxu0 0.0
    %6961 = vmatpush1.msra.mxu0 0.0
    %6962 = vmatprep.subr.mxu0 0.0
    %6963 = vmatpush1.msra.mxu0 0.0
    %6964 = vmatprep.subr.mxu0 0.0
    %6965 = vmatpush1.msra.mxu0 0.0
    %6966 = vmatprep.subr.mxu0 0.0
    %6967 = vmatpush1.msra.mxu0 0.0
    %6968 = vmatprep.subr.mxu0 0.0
    %6969 = vmatpush1.msra.mxu0 0.0
    %6970 = vmatprep.subr.mxu0 0.0
    %6971 = vmatpush1.msra.mxu0 0.0
    %6972 = vmatprep.subr.mxu0 0.0
    %6973 = vmatpush1.msra.mxu0 0.0
    %6974 = vmatprep.subr.mxu0 0.0
    %6975 = vmatpush1.msra.mxu0 0.0
    %6976 = vmatprep.subr.mxu0 0.0
    %6977 = vmatpush1.msra.mxu0 0.0
    %6978 = vmatprep.subr.mxu0 0.0
    %6979 = vmatpush1.msra.mxu0 0.0
    %6980 = vmatprep.subr.mxu0 0.0
    %6981 = vmatpush1.msra.mxu0 0.0
    %6982 = vmatprep.subr.mxu0 0.0
    %6983 = vmatpush1.msra.mxu0 0.0
    %6984 = vmatprep.subr.mxu0 0.0
    %6985 = vmatpush1.msra.mxu0 0.0
    %6986 = vmatprep.subr.mxu0 0.0
    %6987 = vmatpush1.msra.mxu0 0.0
    %6988 = vmatprep.subr.mxu0 0.0
    %6989 = vmatpush1.msra.mxu0 0.0
    %6990 = vmatprep.subr.mxu0 0.0
    %6991 = vmatpush1.msra.mxu0 0.0
    %6992 = vmatprep.subr.mxu0 0.0
    %6993 = vmatpush1.msra.mxu0 0.0
    %6994 = vmatprep.subr.mxu0 0.0
    %6995 = vmatpush1.msra.mxu0 0.0
    %6996 = vmatprep.subr.mxu0 0.0
    %6997 = vmatpush1.msra.mxu0 0.0
    %6998 = vmatprep.subr.mxu0 0.0
    %6999 = vmatpush1.msra.mxu0 0.0
    %7000 = vmatprep.subr.mxu0 0.0
    %7001 = vmatpush1.msra.mxu0 0.0
    %7002 = vmatprep.subr.mxu0 0.0
    %7003 = vmatpush1.msra.mxu0 0.0
    %7004 = vmatprep.subr.mxu0 0.0
    %7005 = vmatpush1.msra.mxu0 0.0
    %7006 = vmatprep.subr.mxu0 0.0
    %7007 = vmatpush1.msra.mxu0 0.0
    %7008 = vmatprep.subr.mxu0 0.0
    %7009 = vmatpush1.msra.mxu0 0.0
    %7010 = vmatprep.subr.mxu0 0.0
    %7011 = vmatpush1.msra.mxu0 0.0
    %7012 = vmatprep.subr.mxu0 0.0
    %7013 = vmatpush1.msra.mxu0 0.0
    %7014 = vmatprep.subr.mxu0 0.0
    %7015 = vmatpush1.msra.mxu0 0.0
    %7016 = vmatprep.subr.mxu0 0.0
    %7017 = vmatpush1.msra.mxu0 0.0
    %7018 = vmatprep.subr.mxu0 0.0
    %7019 = vmatpush1.msra.mxu0 0.0
    %7020 = vmatprep.mubr.f32.mxu0 0.0
    %7021 = vmatmul.mubr.f32.gmra.mrb[0].mxu0 %v6764
    %v7022 = vpop.f32.mrb[0].mxu0
    %v7023 = vadd.f32 %v6761, %v7022
    %v7024 = vpop.f32.mrb[0].mxu0
    %v7025 = vadd.f32 %v6761, %v7024
    %7026 = vdwg.mxu0
    %7027 = vmatprep.subr.mxu0 %v6788
    %7028 = vmatpush1.msra.mxu0 %v6785
    %7029 = vmatprep.subr.mxu0 0.0
    %7030 = vmatpush1.msra.mxu0 0.0
    %7031 = vmatprep.subr.mxu0 0.0
    %7032 = vmatpush1.msra.mxu0 0.0
    %7033 = vmatprep.subr.mxu0 0.0
    %7034 = vmatpush1.msra.mxu0 0.0
    %7035 = vmatprep.subr.mxu0 0.0
    %7036 = vmatpush1.msra.mxu0 0.0
    %7037 = vmatprep.subr.mxu0 0.0
    %7038 = vmatpush1.msra.mxu0 0.0
    %7039 = vmatprep.subr.mxu0 0.0
    %7040 = vmatpush1.msra.mxu0 0.0
    %7041 = vmatprep.subr.mxu0 0.0
    %7042 = vmatpush1.msra.mxu0 0.0
    %7043 = vmatprep.subr.mxu0 0.0
    %7044 = vmatpush1.msra.mxu0 0.0
    %7045 = vmatprep.subr.mxu0 0.0
    %7046 = vmatpush1.msra.mxu0 0.0
    %7047 = vmatprep.subr.mxu0 0.0
    %7048 = vmatpush1.msra.mxu0 0.0
    %7049 = vmatprep.subr.mxu0 0.0
    %7050 = vmatpush1.msra.mxu0 0.0
    %7051 = vmatprep.subr.mxu0 0.0
    %7052 = vmatpush1.msra.mxu0 0.0
    %7053 = vmatprep.subr.mxu0 0.0
    %7054 = vmatpush1.msra.mxu0 0.0
    %7055 = vmatprep.subr.mxu0 0.0
    %7056 = vmatpush1.msra.mxu0 0.0
    %7057 = vmatprep.subr.mxu0 0.0
    %7058 = vmatpush1.msra.mxu0 0.0
    %7059 = vmatprep.subr.mxu0 0.0
    %7060 = vmatpush1.msra.mxu0 0.0
    %7061 = vmatprep.subr.mxu0 0.0
    %7062 = vmatpush1.msra.mxu0 0.0
    %7063 = vmatprep.subr.mxu0 0.0
    %7064 = vmatpush1.msra.mxu0 0.0
    %7065 = vmatprep.subr.mxu0 0.0
    %7066 = vmatpush1.msra.mxu0 0.0
    %7067 = vmatprep.subr.mxu0 0.0
    %7068 = vmatpush1.msra.mxu0 0.0
    %7069 = vmatprep.subr.mxu0 0.0
    %7070 = vmatpush1.msra.mxu0 0.0
    %7071 = vmatprep.subr.mxu0 0.0
    %7072 = vmatpush1.msra.mxu0 0.0
    %7073 = vmatprep.subr.mxu0 0.0
    %7074 = vmatpush1.msra.mxu0 0.0
    %7075 = vmatprep.subr.mxu0 0.0
    %7076 = vmatpush1.msra.mxu0 0.0
    %7077 = vmatprep.subr.mxu0 0.0
    %7078 = vmatpush1.msra.mxu0 0.0
    %7079 = vmatprep.subr.mxu0 0.0
    %7080 = vmatpush1.msra.mxu0 0.0
    %7081 = vmatprep.subr.mxu0 0.0
    %7082 = vmatpush1.msra.mxu0 0.0
    %7083 = vmatprep.subr.mxu0 0.0
    %7084 = vmatpush1.msra.mxu0 0.0
    %7085 = vmatprep.subr.mxu0 0.0
    %7086 = vmatpush1.msra.mxu0 0.0
    %7087 = vmatprep.subr.mxu0 0.0
    %7088 = vmatpush1.msra.mxu0 0.0
    %7089 = vmatprep.subr.mxu0 0.0
    %7090 = vmatpush1.msra.mxu0 0.0
    %7091 = vmatprep.mubr.f32.mxu0 0.0
    %7092 = vmatmul.mubr.f32.gmra.mrb[0].mxu0 %v6764
    %v7093 = vpop.f32.mrb[0].mxu0
    %v7094 = vadd.f32 %v6761, %v7093
    %v7095 = vpop.f32.mrb[0].mxu0
    %v7096 = vadd.f32 %v6761, %v7095
    %7097 = vdwg.mxu0
    %7098 = vmatprep.subr.mxu0 %v6794
    %7099 = vmatpush1.msra.mxu0 %v6791
    %7100 = vmatprep.subr.mxu0 0.0
    %7101 = vmatpush1.msra.mxu0 0.0
    %7102 = vmatprep.subr.mxu0 0.0
    %7103 = vmatpush1.msra.mxu0 0.0
    %7104 = vmatprep.subr.mxu0 0.0
    %7105 = vmatpush1.msra.mxu0 0.0
    %7106 = vmatprep.subr.mxu0 0.0
    %7107 = vmatpush1.msra.mxu0 0.0
    %7108 = vmatprep.subr.mxu0 0.0
    %7109 = vmatpush1.msra.mxu0 0.0
    %7110 = vmatprep.subr.mxu0 0.0
    %7111 = vmatpush1.msra.mxu0 0.0
    %7112 = vmatprep.subr.mxu0 0.0
    %7113 = vmatpush1.msra.mxu0 0.0
    %7114 = vmatprep.subr.mxu0 0.0
    %7115 = vmatpush1.msra.mxu0 0.0
    %7116 = vmatprep.subr.mxu0 0.0
    %7117 = vmatpush1.msra.mxu0 0.0
    %7118 = vmatprep.subr.mxu0 0.0
    %7119 = vmatpush1.msra.mxu0 0.0
    %7120 = vmatprep.subr.mxu0 0.0
    %7121 = vmatpush1.msra.mxu0 0.0
    %7122 = vmatprep.subr.mxu0 0.0
    %7123 = vmatpush1.msra.mxu0 0.0
    %7124 = vmatprep.subr.mxu0 0.0
    %7125 = vmatpush1.msra.mxu0 0.0
    %7126 = vmatprep.subr.mxu0 0.0
    %7127 = vmatpush1.msra.mxu0 0.0
    %7128 = vmatprep.subr.mxu0 0.0
    %7129 = vmatpush1.msra.mxu0 0.0
    %7130 = vmatprep.subr.mxu0 0.0
    %7131 = vmatpush1.msra.mxu0 0.0
    %7132 = vmatprep.subr.mxu0 0.0
    %7133 = vmatpush1.msra.mxu0 0.0
    %7134 = vmatprep.subr.mxu0 0.0
    %7135 = vmatpush1.msra.mxu0 0.0
    %7136 = vmatprep.subr.mxu0 0.0
    %7137 = vmatpush1.msra.mxu0 0.0
    %7138 = vmatprep.subr.mxu0 0.0
    %7139 = vmatpush1.msra.mxu0 0.0
    %7140 = vmatprep.subr.mxu0 0.0
    %7141 = vmatpush1.msra.mxu0 0.0
    %7142 = vmatprep.subr.mxu0 0.0
    %7143 = vmatpush1.msra.mxu0 0.0
    %7144 = vmatprep.subr.mxu0 0.0
    %7145 = vmatpush1.msra.mxu0 0.0
    %7146 = vmatprep.subr.mxu0 0.0
    %7147 = vmatpush1.msra.mxu0 0.0
    %7148 = vmatprep.subr.mxu0 0.0
    %7149 = vmatpush1.msra.mxu0 0.0
    %7150 = vmatprep.subr.mxu0 0.0
    %7151 = vmatpush1.msra.mxu0 0.0
    %7152 = vmatprep.subr.mxu0 0.0
    %7153 = vmatpush1.msra.mxu0 0.0
    %7154 = vmatprep.subr.mxu0 0.0
    %7155 = vmatpush1.msra.mxu0 0.0
    %7156 = vmatprep.subr.mxu0 0.0
    %7157 = vmatpush1.msra.mxu0 0.0
    %7158 = vmatprep.subr.mxu0 0.0
    %7159 = vmatpush1.msra.mxu0 0.0
    %7160 = vmatprep.subr.mxu0 0.0
    %7161 = vmatpush1.msra.mxu0 0.0
    %7162 = vmatprep.mubr.f32.mxu0 0.0
    %7163 = vmatmul.mubr.f32.gmra.mrb[0].mxu0 %v6764
    %v7164 = vpop.f32.mrb[0].mxu0
    %v7165 = vadd.f32 %v6761, %v7164
    %v7166 = vpop.f32.mrb[0].mxu0
    %v7167 = vadd.f32 %v6761, %v7166
    %7168 = vdwg.mxu0
    %7169 = vmatprep.subr.mxu0 %v6800
    %7170 = vmatpush1.msra.mxu0 %v6797
    %7171 = vmatprep.subr.mxu0 0.0
    %7172 = vmatpush1.msra.mxu0 0.0
    %7173 = vmatprep.subr.mxu0 0.0
    %7174 = vmatpush1.msra.mxu0 0.0
    %7175 = vmatprep.subr.mxu0 0.0
    %7176 = vmatpush1.msra.mxu0 0.0
    %7177 = vmatprep.subr.mxu0 0.0
    %7178 = vmatpush1.msra.mxu0 0.0
    %7179 = vmatprep.subr.mxu0 0.0
    %7180 = vmatpush1.msra.mxu0 0.0
    %7181 = vmatprep.subr.mxu0 0.0
    %7182 = vmatpush1.msra.mxu0 0.0
    %7183 = vmatprep.subr.mxu0 0.0
    %7184 = vmatpush1.msra.mxu0 0.0
    %7185 = vmatprep.subr.mxu0 0.0
    %7186 = vmatpush1.msra.mxu0 0.0
    %7187 = vmatprep.subr.mxu0 0.0
    %7188 = vmatpush1.msra.mxu0 0.0
    %7189 = vmatprep.subr.mxu0 0.0
    %7190 = vmatpush1.msra.mxu0 0.0
    %7191 = vmatprep.subr.mxu0 0.0
    %7192 = vmatpush1.msra.mxu0 0.0
    %7193 = vmatprep.subr.mxu0 0.0
    %7194 = vmatpush1.msra.mxu0 0.0
    %7195 = vmatprep.subr.mxu0 0.0
    %7196 = vmatpush1.msra.mxu0 0.0
    %7197 = vmatprep.subr.mxu0 0.0
    %7198 = vmatpush1.msra.mxu0 0.0
    %7199 = vmatprep.subr.mxu0 0.0
    %7200 = vmatpush1.msra.mxu0 0.0
    %7201 = vmatprep.subr.mxu0 0.0
    %7202 = vmatpush1.msra.mxu0 0.0
    %7203 = vmatprep.subr.mxu0 0.0
    %7204 = vmatpush1.msra.mxu0 0.0
    %7205 = vmatprep.subr.mxu0 0.0
    %7206 = vmatpush1.msra.mxu0 0.0
    %7207 = vmatprep.subr.mxu0 0.0
    %7208 = vmatpush1.msra.mxu0 0.0
    %7209 = vmatprep.subr.mxu0 0.0
    %7210 = vmatpush1.msra.mxu0 0.0
    %7211 = vmatprep.subr.mxu0 0.0
    %7212 = vmatpush1.msra.mxu0 0.0
    %7213 = vmatprep.subr.mxu0 0.0
    %7214 = vmatpush1.msra.mxu0 0.0
    %7215 = vmatprep.subr.mxu0 0.0
    %7216 = vmatpush1.msra.mxu0 0.0
    %7217 = vmatprep.subr.mxu0 0.0
    %7218 = vmatpush1.msra.mxu0 0.0
    %7219 = vmatprep.subr.mxu0 0.0
    %7220 = vmatpush1.msra.mxu0 0.0
    %7221 = vmatprep.subr.mxu0 0.0
    %7222 = vmatpush1.msra.mxu0 0.0
    %7223 = vmatprep.subr.mxu0 0.0
    %7224 = vmatpush1.msra.mxu0 0.0
    %7225 = vmatprep.subr.mxu0 0.0
    %7226 = vmatpush1.msra.mxu0 0.0
    %7227 = vmatprep.subr.mxu0 0.0
    %7228 = vmatpush1.msra.mxu0 0.0
    %7229 = vmatprep.subr.mxu0 0.0
    %7230 = vmatpush1.msra.mxu0 0.0
    %7231 = vmatprep.subr.mxu0 0.0
    %7232 = vmatpush1.msra.mxu0 0.0
    %7233 = vmatprep.mubr.f32.mxu0 0.0
    %7234 = vmatmul.mubr.f32.gmra.mrb[0].mxu0 %v6764
    %v7235 = vpop.f32.mrb[0].mxu0
    %v7236 = vadd.f32 %v6761, %v7235
    %v7237 = vpop.f32.mrb[0].mxu0
    %v7238 = vadd.f32 %v6761, %v7237
    %7239 = vdwg.mxu0
    %7240 = vmatprep.subr.mxu0 %v6806
    %7241 = vmatpush1.msra.mxu0 %v6803
    %7242 = vmatprep.subr.mxu0 0.0
    %7243 = vmatpush1.msra.mxu0 0.0
    %7244 = vmatprep.subr.mxu0 0.0
    %7245 = vmatpush1.msra.mxu0 0.0
    %7246 = vmatprep.subr.mxu0 0.0
    %7247 = vmatpush1.msra.mxu0 0.0
    %7248 = vmatprep.subr.mxu0 0.0
    %7249 = vmatpush1.msra.mxu0 0.0
    %7250 = vmatprep.subr.mxu0 0.0
    %7251 = vmatpush1.msra.mxu0 0.0
    %7252 = vmatprep.subr.mxu0 0.0
    %7253 = vmatpush1.msra.mxu0 0.0
    %7254 = vmatprep.subr.mxu0 0.0
    %7255 = vmatpush1.msra.mxu0 0.0
    %7256 = vmatprep.subr.mxu0 0.0
    %7257 = vmatpush1.msra.mxu0 0.0
    %7258 = vmatprep.subr.mxu0 0.0
    %7259 = vmatpush1.msra.mxu0 0.0
    %7260 = vmatprep.subr.mxu0 0.0
    %7261 = vmatpush1.msra.mxu0 0.0
    %7262 = vmatprep.subr.mxu0 0.0
    %7263 = vmatpush1.msra.mxu0 0.0
    %7264 = vmatprep.subr.mxu0 0.0
    %7265 = vmatpush1.msra.mxu0 0.0
    %7266 = vmatprep.subr.mxu0 0.0
    %7267 = vmatpush1.msra.mxu0 0.0
    %7268 = vmatprep.subr.mxu0 0.0
    %7269 = vmatpush1.msra.mxu0 0.0
    %7270 = vmatprep.subr.mxu0 0.0
    %7271 = vmatpush1.msra.mxu0 0.0
    %7272 = vmatprep.subr.mxu0 0.0
    %7273 = vmatpush1.msra.mxu0 0.0
    %7274 = vmatprep.subr.mxu0 0.0
    %7275 = vmatpush1.msra.mxu0 0.0
    %7276 = vmatprep.subr.mxu0 0.0
    %7277 = vmatpush1.msra.mxu0 0.0
    %7278 = vmatprep.subr.mxu0 0.0
    %7279 = vmatpush1.msra.mxu0 0.0
    %7280 = vmatprep.subr.mxu0 0.0
    %7281 = vmatpush1.msra.mxu0 0.0
    %7282 = vmatprep.subr.mxu0 0.0
    %7283 = vmatpush1.msra.mxu0 0.0
    %7284 = vmatprep.subr.mxu0 0.0
    %7285 = vmatpush1.msra.mxu0 0.0
    %7286 = vmatprep.subr.mxu0 0.0
    %7287 = vmatpush1.msra.mxu0 0.0
    %7288 = vmatprep.subr.mxu0 0.0
    %7289 = vmatpush1.msra.mxu0 0.0
    %7290 = vmatprep.subr.mxu0 0.0
    %7291 = vmatpush1.msra.mxu0 0.0
    %7292 = vmatprep.subr.mxu0 0.0
    %7293 = vmatpush1.msra.mxu0 0.0
    %7294 = vmatprep.subr.mxu0 0.0
    %7295 = vmatpush1.msra.mxu0 0.0
    %7296 = vmatprep.subr.mxu0 0.0
    %7297 = vmatpush1.msra.mxu0 0.0
    %7298 = vmatprep.subr.mxu0 0.0
    %7299 = vmatpush1.msra.mxu0 0.0
    %7300 = vmatprep.subr.mxu0 0.0
    %7301 = vmatpush1.msra.mxu0 0.0
    %7302 = vmatprep.subr.mxu0 0.0
    %7303 = vmatpush1.msra.mxu0 0.0
    %7304 = vmatprep.mubr.f32.mxu0 0.0
    %7305 = vmatmul.mubr.f32.gmra.mrb[0].mxu0 %v6764
    %v7306 = vpop.f32.mrb[0].mxu0
    %v7307 = vadd.f32 %v6761, %v7306
    %v7308 = vpop.f32.mrb[0].mxu0
    %v7309 = vadd.f32 %v6761, %v7308
    %7310 = vdwg.mxu0
    %7311 = vmatprep.subr.mxu0 %v6812
    %7312 = vmatpush1.msra.mxu0 %v6809
    %7313 = vmatprep.subr.mxu0 0.0
    %7314 = vmatpush1.msra.mxu0 0.0
    %7315 = vmatprep.subr.mxu0 0.0
    %7316 = vmatpush1.msra.mxu0 0.0
    %7317 = vmatprep.subr.mxu0 0.0
    %7318 = vmatpush1.msra.mxu0 0.0
    %7319 = vmatprep.subr.mxu0 0.0
    %7320 = vmatpush1.msra.mxu0 0.0
    %7321 = vmatprep.subr.mxu0 0.0
    %7322 = vmatpush1.msra.mxu0 0.0
    %7323 = vmatprep.subr.mxu0 0.0
    %7324 = vmatpush1.msra.mxu0 0.0
    %7325 = vmatprep.subr.mxu0 0.0
    %7326 = vmatpush1.msra.mxu0 0.0
    %7327 = vmatprep.subr.mxu0 0.0
    %7328 = vmatpush1.msra.mxu0 0.0
    %7329 = vmatprep.subr.mxu0 0.0
    %7330 = vmatpush1.msra.mxu0 0.0
    %7331 = vmatprep.subr.mxu0 0.0
    %7332 = vmatpush1.msra.mxu0 0.0
    %7333 = vmatprep.subr.mxu0 0.0
    %7334 = vmatpush1.msra.mxu0 0.0
    %7335 = vmatprep.subr.mxu0 0.0
    %7336 = vmatpush1.msra.mxu0 0.0
    %7337 = vmatprep.subr.mxu0 0.0
    %7338 = vmatpush1.msra.mxu0 0.0
    %7339 = vmatprep.subr.mxu0 0.0
    %7340 = vmatpush1.msra.mxu0 0.0
    %7341 = vmatprep.subr.mxu0 0.0
    %7342 = vmatpush1.msra.mxu0 0.0
    %7343 = vmatprep.subr.mxu0 0.0
    %7344 = vmatpush1.msra.mxu0 0.0
    %7345 = vmatprep.subr.mxu0 0.0
    %7346 = vmatpush1.msra.mxu0 0.0
    %7347 = vmatprep.subr.mxu0 0.0
    %7348 = vmatpush1.msra.mxu0 0.0
    %7349 = vmatprep.subr.mxu0 0.0
    %7350 = vmatpush1.msra.mxu0 0.0
    %7351 = vmatprep.subr.mxu0 0.0
    %7352 = vmatpush1.msra.mxu0 0.0
    %7353 = vmatprep.subr.mxu0 0.0
    %7354 = vmatpush1.msra.mxu0 0.0
    %7355 = vmatprep.subr.mxu0 0.0
    %7356 = vmatpush1.msra.mxu0 0.0
    %7357 = vmatprep.subr.mxu0 0.0
    %7358 = vmatpush1.msra.mxu0 0.0
    %7359 = vmatprep.subr.mxu0 0.0
    %7360 = vmatpush1.msra.mxu0 0.0
    %7361 = vmatprep.subr.mxu0 0.0
    %7362 = vmatpush1.msra.mxu0 0.0
    %7363 = vmatprep.subr.mxu0 0.0
    %7364 = vmatpush1.msra.mxu0 0.0
    %7365 = vmatprep.subr.mxu0 0.0
    %7366 = vmatpush1.msra.mxu0 0.0
    %7367 = vmatprep.subr.mxu0 0.0
    %7368 = vmatpush1.msra.mxu0 0.0
    %7369 = vmatprep.subr.mxu0 0.0
    %7370 = vmatpush1.msra.mxu0 0.0
    %7371 = vmatprep.subr.mxu0 0.0
    %7372 = vmatpush1.msra.mxu0 0.0
    %7373 = vmatprep.subr.mxu0 0.0
    %7374 = vmatpush1.msra.mxu0 0.0
    %7375 = vmatprep.mubr.f32.mxu0 0.0
    %7376 = vmatmul.mubr.f32.gmra.mrb[0].mxu0 %v6764
    %v7377 = vpop.f32.mrb[0].mxu0
    %v7378 = vadd.f32 %v6761, %v7377
    %v7379 = vpop.f32.mrb[0].mxu0
    %v7380 = vadd.f32 %v6761, %v7379
    %7381 = vdwg.mxu0
    %v7382 = vadd.f32 %v6881, %v6257
    %v7383 = vadd.f32 %v6883, %v6259
    %v7384 = vadd.f32 %v6952, %v6328
    %v7385 = vadd.f32 %v6954, %v6330
    %v7386 = vadd.f32 %v7023, %v6399
    %v7387 = vadd.f32 %v7025, %v6401
    %v7388 = vadd.f32 %v7094, %v6470
    %v7389 = vadd.f32 %v7096, %v6472
    %v7390 = vadd.f32 %v7165, %v6541
    %v7391 = vadd.f32 %v7167, %v6543
    %v7392 = vadd.f32 %v7236, %v6612
    %v7393 = vadd.f32 %v7238, %v6614
    %v7394 = vadd.f32 %v7307, %v6683
    %v7395 = vadd.f32 %v7309, %v6685
    %v7396 = vadd.f32 %v7378, %v6754
    %v7397 = vadd.f32 %v7380, %v6756
    %v7398 = vld [vmem:[#allocation6 + $0x80] sm:$0x1]
    %v7399 = vld [vmem:[#allocation6] sm:$0x1]
    %v7416 = vrot.slane %v7382, 6
    %v7417 = vrot.slane %v7383, 6
    %v7418 = vrot.slane %v7384, 6
    %v7419 = vrot.slane %v7385, 6
    %v7420 = vrot.slane %v7386, 6
    %v7421 = vrot.slane %v7387, 6
    %v7422 = vrot.slane %v7388, 6
    %v7423 = vrot.slane %v7389, 6
    %v7424 = vrot.slane %v7390, 6
    %v7425 = vrot.slane %v7391, 6
    %v7426 = vrot.slane %v7392, 6
    %v7427 = vrot.slane %v7393, 6
    %v7428 = vrot.slane %v7394, 6
    %v7429 = vrot.slane %v7395, 6
    %v7430 = vrot.slane %v7396, 6
    %v7431 = vrot.slane %v7397, 6
    %v7448 = vrot.slane %v7383, 4
    %v7449 = vrot.slane %v7384, 4
    %v7450 = vrot.slane %v7385, 4
    %v7451 = vrot.slane %v7386, 4
    %v7452 = vrot.slane %v7387, 4
    %v7453 = vrot.slane %v7388, 4
    %v7454 = vrot.slane %v7389, 4
    %v7455 = vrot.slane %v7390, 4
    %v7456 = vrot.slane %v7391, 4
    %v7457 = vrot.slane %v7392, 4
    %v7458 = vrot.slane %v7393, 4
    %v7459 = vrot.slane %v7394, 4
    %v7460 = vrot.slane %v7395, 4
    %v7461 = vrot.slane %v7396, 4
    %v7462 = vrot.slane %v7397, 4
    %v7478 = vsel %vm5556, 0.0, %v7416
    %v7479 = vsel %vm5556, %v7382, %v7417
    %v7480 = vsel %vm5556, %v7383, %v7418
    %v7481 = vsel %vm5556, %v7384, %v7419
    %v7482 = vsel %vm5556, %v7385, %v7420
    %v7483 = vsel %vm5556, %v7386, %v7421
    %v7484 = vsel %vm5556, %v7387, %v7422
    %v7485 = vsel %vm5556, %v7388, %v7423
    %v7486 = vsel %vm5556, %v7389, %v7424
    %v7487 = vsel %vm5556, %v7390, %v7425
    %v7488 = vsel %vm5556, %v7391, %v7426
    %v7489 = vsel %vm5556, %v7392, %v7427
    %v7490 = vsel %vm5556, %v7393, %v7428
    %v7491 = vsel %vm5556, %v7394, %v7429
    %v7492 = vsel %vm5556, %v7395, %v7430
    %v7493 = vsel %vm5556, %v7396, %v7431
    %v7494 = vsel %vm1702, %v7478, %v7448
    %v7495 = vsel %vm1702, %v7479, %v7449
    %v7496 = vsel %vm1702, %v7480, %v7450
    %v7497 = vsel %vm1702, %v7481, %v7451
    %v7498 = vsel %vm1702, %v7482, %v7452
    %v7499 = vsel %vm1702, %v7483, %v7453
    %v7500 = vsel %vm1702, %v7484, %v7454
    %v7501 = vsel %vm1702, %v7485, %v7455
    %v7502 = vsel %vm1702, %v7486, %v7456
    %v7503 = vsel %vm1702, %v7487, %v7457
    %v7504 = vsel %vm1702, %v7488, %v7458
    %v7505 = vsel %vm1702, %v7489, %v7459
    %v7506 = vsel %vm1702, %v7490, %v7460
    %v7507 = vsel %vm1702, %v7491, %v7461
    %v7508 = vsel %vm1702, %v7492, %v7462
    %v7509 = vsel %vm1702, %v7493, %v4079
    %7511 = vset.pattern.permute.xlu0 31
    %7512 = vperm.xlu0 %7511, %v7399
    %v7513 = vpop.permute.xlu0 %7512
    %v7516 = vsel %vm6137, %v7398, 0
    %v7519 = vsel %vm6141, %v7494, 0
    %v7522 = vsel %vm6141, %v7495, 0
    %v7525 = vsel %vm6141, %v7496, 0
    %v7528 = vsel %vm6141, %v7497, 0
    %v7531 = vsel %vm6141, %v7498, 0
    %v7534 = vsel %vm6141, %v7499, 0
    %v7537 = vsel %vm6141, %v7500, 0
    %v7540 = vsel %vm6141, %v7501, 0
    %v7543 = vsel %vm6141, %v7502, 0
    %v7546 = vsel %vm6141, %v7503, 0
    %v7549 = vsel %vm6141, %v7504, 0
    %v7552 = vsel %vm6141, %v7505, 0
    %v7555 = vsel %vm6141, %v7506, 0
    %v7558 = vsel %vm6141, %v7507, 0
    %v7561 = vsel %vm6141, %v7508, 0
    %v7564 = vsel %vm6141, %v7509, 0
    %7566 = vmatprep.subr.mxu0 %v7522
    %7567 = vmatpush1.msra.mxu0 %v7519
    %7568 = vmatprep.subr.mxu0 0.0
    %7569 = vmatpush1.msra.mxu0 0.0
    %7570 = vmatprep.subr.mxu0 0.0
    %7571 = vmatpush1.msra.mxu0 0.0
    %7572 = vmatprep.subr.mxu0 0.0
    %7573 = vmatpush1.msra.mxu0 0.0
    %7574 = vmatprep.subr.mxu0 0.0
    %7575 = vmatpush1.msra.mxu0 0.0
    %7576 = vmatprep.subr.mxu0 0.0
    %7577 = vmatpush1.msra.mxu0 0.0
    %7578 = vmatprep.subr.mxu0 0.0
    %7579 = vmatpush1.msra.mxu0 0.0
    %7580 = vmatprep.subr.mxu0 0.0
    %7581 = vmatpush1.msra.mxu0 0.0
    %7582 = vmatprep.subr.mxu0 0.0
    %7583 = vmatpush1.msra.mxu0 0.0
    %7584 = vmatprep.subr.mxu0 0.0
    %7585 = vmatpush1.msra.mxu0 0.0
    %7586 = vmatprep.subr.mxu0 0.0
    %7587 = vmatpush1.msra.mxu0 0.0
    %7588 = vmatprep.subr.mxu0 0.0
    %7589 = vmatpush1.msra.mxu0 0.0
    %7590 = vmatprep.subr.mxu0 0.0
    %7591 = vmatpush1.msra.mxu0 0.0
    %7592 = vmatprep.subr.mxu0 0.0
    %7593 = vmatpush1.msra.mxu0 0.0
    %7594 = vmatprep.subr.mxu0 0.0
    %7595 = vmatpush1.msra.mxu0 0.0
    %7596 = vmatprep.subr.mxu0 0.0
    %7597 = vmatpush1.msra.mxu0 0.0
    %7598 = vmatprep.subr.mxu0 0.0
    %7599 = vmatpush1.msra.mxu0 0.0
    %7600 = vmatprep.subr.mxu0 0.0
    %7601 = vmatpush1.msra.mxu0 0.0
    %7602 = vmatprep.subr.mxu0 0.0
    %7603 = vmatpush1.msra.mxu0 0.0
    %7604 = vmatprep.subr.mxu0 0.0
    %7605 = vmatpush1.msra.mxu0 0.0
    %7606 = vmatprep.subr.mxu0 0.0
    %7607 = vmatpush1.msra.mxu0 0.0
    %7608 = vmatprep.subr.mxu0 0.0
    %7609 = vmatpush1.msra.mxu0 0.0
    %7610 = vmatprep.subr.mxu0 0.0
    %7611 = vmatpush1.msra.mxu0 0.0
    %7612 = vmatprep.subr.mxu0 0.0
    %7613 = vmatpush1.msra.mxu0 0.0
    %7614 = vmatprep.subr.mxu0 0.0
    %7615 = vmatpush1.msra.mxu0 0.0
    %7616 = vmatprep.subr.mxu0 0.0
    %7617 = vmatpush1.msra.mxu0 0.0
    %7618 = vmatprep.subr.mxu0 0.0
    %7619 = vmatpush1.msra.mxu0 0.0
    %7620 = vmatprep.subr.mxu0 0.0
    %7621 = vmatpush1.msra.mxu0 0.0
    %7622 = vmatprep.subr.mxu0 0.0
    %7623 = vmatpush1.msra.mxu0 0.0
    %7624 = vmatprep.subr.mxu0 0.0
    %7625 = vmatpush1.msra.mxu0 0.0
    %7626 = vmatprep.subr.mxu0 0.0
    %7627 = vmatpush1.msra.mxu0 0.0
    %7628 = vmatprep.subr.mxu0 0.0
    %7629 = vmatpush1.msra.mxu0 0.0
    %7630 = vmatprep.mubr.f32.mxu0 0.0
    %7631 = vmatmul.mubr.f32.gmra.mrb[0].mxu0 %v7516
    %v7632 = vpop.f32.mrb[0].mxu0
    %v7633 = vadd.f32 %v7513, %v7632
    %v7634 = vpop.f32.mrb[0].mxu0
    %v7635 = vadd.f32 %v7513, %v7634
    %7636 = vdwg.mxu0
    %7637 = vmatprep.subr.mxu0 %v7528
    %7638 = vmatpush1.msra.mxu0 %v7525
    %7639 = vmatprep.subr.mxu0 0.0
    %7640 = vmatpush1.msra.mxu0 0.0
    %7641 = vmatprep.subr.mxu0 0.0
    %7642 = vmatpush1.msra.mxu0 0.0
    %7643 = vmatprep.subr.mxu0 0.0
    %7644 = vmatpush1.msra.mxu0 0.0
    %7645 = vmatprep.subr.mxu0 0.0
    %7646 = vmatpush1.msra.mxu0 0.0
    %7647 = vmatprep.subr.mxu0 0.0
    %7648 = vmatpush1.msra.mxu0 0.0
    %7649 = vmatprep.subr.mxu0 0.0
    %7650 = vmatpush1.msra.mxu0 0.0
    %7651 = vmatprep.subr.mxu0 0.0
    %7652 = vmatpush1.msra.mxu0 0.0
    %7653 = vmatprep.subr.mxu0 0.0
    %7654 = vmatpush1.msra.mxu0 0.0
    %7655 = vmatprep.subr.mxu0 0.0
    %7656 = vmatpush1.msra.mxu0 0.0
    %7657 = vmatprep.subr.mxu0 0.0
    %7658 = vmatpush1.msra.mxu0 0.0
    %7659 = vmatprep.subr.mxu0 0.0
    %7660 = vmatpush1.msra.mxu0 0.0
    %7661 = vmatprep.subr.mxu0 0.0
    %7662 = vmatpush1.msra.mxu0 0.0
    %7663 = vmatprep.subr.mxu0 0.0
    %7664 = vmatpush1.msra.mxu0 0.0
    %7665 = vmatprep.subr.mxu0 0.0
    %7666 = vmatpush1.msra.mxu0 0.0
    %7667 = vmatprep.subr.mxu0 0.0
    %7668 = vmatpush1.msra.mxu0 0.0
    %7669 = vmatprep.subr.mxu0 0.0
    %7670 = vmatpush1.msra.mxu0 0.0
    %7671 = vmatprep.subr.mxu0 0.0
    %7672 = vmatpush1.msra.mxu0 0.0
    %7673 = vmatprep.subr.mxu0 0.0
    %7674 = vmatpush1.msra.mxu0 0.0
    %7675 = vmatprep.subr.mxu0 0.0
    %7676 = vmatpush1.msra.mxu0 0.0
    %7677 = vmatprep.subr.mxu0 0.0
    %7678 = vmatpush1.msra.mxu0 0.0
    %7679 = vmatprep.subr.mxu0 0.0
    %7680 = vmatpush1.msra.mxu0 0.0
    %7681 = vmatprep.subr.mxu0 0.0
    %7682 = vmatpush1.msra.mxu0 0.0
    %7683 = vmatprep.subr.mxu0 0.0
    %7684 = vmatpush1.msra.mxu0 0.0
    %7685 = vmatprep.subr.mxu0 0.0
    %7686 = vmatpush1.msra.mxu0 0.0
    %7687 = vmatprep.subr.mxu0 0.0
    %7688 = vmatpush1.msra.mxu0 0.0
    %7689 = vmatprep.subr.mxu0 0.0
    %7690 = vmatpush1.msra.mxu0 0.0
    %7691 = vmatprep.subr.mxu0 0.0
    %7692 = vmatpush1.msra.mxu0 0.0
    %7693 = vmatprep.subr.mxu0 0.0
    %7694 = vmatpush1.msra.mxu0 0.0
    %7695 = vmatprep.subr.mxu0 0.0
    %7696 = vmatpush1.msra.mxu0 0.0
    %7697 = vmatprep.subr.mxu0 0.0
    %7698 = vmatpush1.msra.mxu0 0.0
    %7699 = vmatprep.subr.mxu0 0.0
    %7700 = vmatpush1.msra.mxu0 0.0
    %7701 = vmatprep.mubr.f32.mxu0 0.0
    %7702 = vmatmul.mubr.f32.gmra.mrb[0].mxu0 %v7516
    %v7703 = vpop.f32.mrb[0].mxu0
    %v7704 = vadd.f32 %v7513, %v7703
    %v7705 = vpop.f32.mrb[0].mxu0
    %v7706 = vadd.f32 %v7513, %v7705
    %7707 = vdwg.mxu0
    %7708 = vmatprep.subr.mxu0 %v7534
    %7709 = vmatpush1.msra.mxu0 %v7531
    %7710 = vmatprep.subr.mxu0 0.0
    %7711 = vmatpush1.msra.mxu0 0.0
    %7712 = vmatprep.subr.mxu0 0.0
    %7713 = vmatpush1.msra.mxu0 0.0
    %7714 = vmatprep.subr.mxu0 0.0
    %7715 = vmatpush1.msra.mxu0 0.0
    %7716 = vmatprep.subr.mxu0 0.0
    %7717 = vmatpush1.msra.mxu0 0.0
    %7718 = vmatprep.subr.mxu0 0.0
    %7719 = vmatpush1.msra.mxu0 0.0
    %7720 = vmatprep.subr.mxu0 0.0
    %7721 = vmatpush1.msra.mxu0 0.0
    %7722 = vmatprep.subr.mxu0 0.0
    %7723 = vmatpush1.msra.mxu0 0.0
    %7724 = vmatprep.subr.mxu0 0.0
    %7725 = vmatpush1.msra.mxu0 0.0
    %7726 = vmatprep.subr.mxu0 0.0
    %7727 = vmatpush1.msra.mxu0 0.0
    %7728 = vmatprep.subr.mxu0 0.0
    %7729 = vmatpush1.msra.mxu0 0.0
    %7730 = vmatprep.subr.mxu0 0.0
    %7731 = vmatpush1.msra.mxu0 0.0
    %7732 = vmatprep.subr.mxu0 0.0
    %7733 = vmatpush1.msra.mxu0 0.0
    %7734 = vmatprep.subr.mxu0 0.0
    %7735 = vmatpush1.msra.mxu0 0.0
    %7736 = vmatprep.subr.mxu0 0.0
    %7737 = vmatpush1.msra.mxu0 0.0
    %7738 = vmatprep.subr.mxu0 0.0
    %7739 = vmatpush1.msra.mxu0 0.0
    %7740 = vmatprep.subr.mxu0 0.0
    %7741 = vmatpush1.msra.mxu0 0.0
    %7742 = vmatprep.subr.mxu0 0.0
    %7743 = vmatpush1.msra.mxu0 0.0
    %7744 = vmatprep.subr.mxu0 0.0
    %7745 = vmatpush1.msra.mxu0 0.0
    %7746 = vmatprep.subr.mxu0 0.0
    %7747 = vmatpush1.msra.mxu0 0.0
    %7748 = vmatprep.subr.mxu0 0.0
    %7749 = vmatpush1.msra.mxu0 0.0
    %7750 = vmatprep.subr.mxu0 0.0
    %7751 = vmatpush1.msra.mxu0 0.0
    %7752 = vmatprep.subr.mxu0 0.0
    %7753 = vmatpush1.msra.mxu0 0.0
    %7754 = vmatprep.subr.mxu0 0.0
    %7755 = vmatpush1.msra.mxu0 0.0
    %7756 = vmatprep.subr.mxu0 0.0
    %7757 = vmatpush1.msra.mxu0 0.0
    %7758 = vmatprep.subr.mxu0 0.0
    %7759 = vmatpush1.msra.mxu0 0.0
    %7760 = vmatprep.subr.mxu0 0.0
    %7761 = vmatpush1.msra.mxu0 0.0
    %7762 = vmatprep.subr.mxu0 0.0
    %7763 = vmatpush1.msra.mxu0 0.0
    %7764 = vmatprep.subr.mxu0 0.0
    %7765 = vmatpush1.msra.mxu0 0.0
    %7766 = vmatprep.subr.mxu0 0.0
    %7767 = vmatpush1.msra.mxu0 0.0
    %7768 = vmatprep.subr.mxu0 0.0
    %7769 = vmatpush1.msra.mxu0 0.0
    %7770 = vmatprep.subr.mxu0 0.0
    %7771 = vmatpush1.msra.mxu0 0.0
    %7772 = vmatprep.mubr.f32.mxu0 0.0
    %7773 = vmatmul.mubr.f32.gmra.mrb[0].mxu0 %v7516
    %v7774 = vpop.f32.mrb[0].mxu0
    %v7775 = vadd.f32 %v7513, %v7774
    %v7776 = vpop.f32.mrb[0].mxu0
    %v7777 = vadd.f32 %v7513, %v7776
    %7778 = vdwg.mxu0
    %7779 = vmatprep.subr.mxu0 %v7540
    %7780 = vmatpush1.msra.mxu0 %v7537
    %7781 = vmatprep.subr.mxu0 0.0
    %7782 = vmatpush1.msra.mxu0 0.0
    %7783 = vmatprep.subr.mxu0 0.0
    %7784 = vmatpush1.msra.mxu0 0.0
    %7785 = vmatprep.subr.mxu0 0.0
    %7786 = vmatpush1.msra.mxu0 0.0
    %7787 = vmatprep.subr.mxu0 0.0
    %7788 = vmatpush1.msra.mxu0 0.0
    %7789 = vmatprep.subr.mxu0 0.0
    %7790 = vmatpush1.msra.mxu0 0.0
    %7791 = vmatprep.subr.mxu0 0.0
    %7792 = vmatpush1.msra.mxu0 0.0
    %7793 = vmatprep.subr.mxu0 0.0
    %7794 = vmatpush1.msra.mxu0 0.0
    %7795 = vmatprep.subr.mxu0 0.0
    %7796 = vmatpush1.msra.mxu0 0.0
    %7797 = vmatprep.subr.mxu0 0.0
    %7798 = vmatpush1.msra.mxu0 0.0
    %7799 = vmatprep.subr.mxu0 0.0
    %7800 = vmatpush1.msra.mxu0 0.0
    %7801 = vmatprep.subr.mxu0 0.0
    %7802 = vmatpush1.msra.mxu0 0.0
    %7803 = vmatprep.subr.mxu0 0.0
    %7804 = vmatpush1.msra.mxu0 0.0
    %7805 = vmatprep.subr.mxu0 0.0
    %7806 = vmatpush1.msra.mxu0 0.0
    %7807 = vmatprep.subr.mxu0 0.0
    %7808 = vmatpush1.msra.mxu0 0.0
    %7809 = vmatprep.subr.mxu0 0.0
    %7810 = vmatpush1.msra.mxu0 0.0
    %7811 = vmatprep.subr.mxu0 0.0
    %7812 = vmatpush1.msra.mxu0 0.0
    %7813 = vmatprep.subr.mxu0 0.0
    %7814 = vmatpush1.msra.mxu0 0.0
    %7815 = vmatprep.subr.mxu0 0.0
    %7816 = vmatpush1.msra.mxu0 0.0
    %7817 = vmatprep.subr.mxu0 0.0
    %7818 = vmatpush1.msra.mxu0 0.0
    %7819 = vmatprep.subr.mxu0 0.0
    %7820 = vmatpush1.msra.mxu0 0.0
    %7821 = vmatprep.subr.mxu0 0.0
    %7822 = vmatpush1.msra.mxu0 0.0
    %7823 = vmatprep.subr.mxu0 0.0
    %7824 = vmatpush1.msra.mxu0 0.0
    %7825 = vmatprep.subr.mxu0 0.0
    %7826 = vmatpush1.msra.mxu0 0.0
    %7827 = vmatprep.subr.mxu0 0.0
    %7828 = vmatpush1.msra.mxu0 0.0
    %7829 = vmatprep.subr.mxu0 0.0
    %7830 = vmatpush1.msra.mxu0 0.0
    %7831 = vmatprep.subr.mxu0 0.0
    %7832 = vmatpush1.msra.mxu0 0.0
    %7833 = vmatprep.subr.mxu0 0.0
    %7834 = vmatpush1.msra.mxu0 0.0
    %7835 = vmatprep.subr.mxu0 0.0
    %7836 = vmatpush1.msra.mxu0 0.0
    %7837 = vmatprep.subr.mxu0 0.0
    %7838 = vmatpush1.msra.mxu0 0.0
    %7839 = vmatprep.subr.mxu0 0.0
    %7840 = vmatpush1.msra.mxu0 0.0
    %7841 = vmatprep.subr.mxu0 0.0
    %7842 = vmatpush1.msra.mxu0 0.0
    %7843 = vmatprep.mubr.f32.mxu0 0.0
    %7844 = vmatmul.mubr.f32.gmra.mrb[0].mxu0 %v7516
    %v7845 = vpop.f32.mrb[0].mxu0
    %v7846 = vadd.f32 %v7513, %v7845
    %v7847 = vpop.f32.mrb[0].mxu0
    %v7848 = vadd.f32 %v7513, %v7847
    %7849 = vdwg.mxu0
    %7850 = vmatprep.subr.mxu0 %v7546
    %7851 = vmatpush1.msra.mxu0 %v7543
    %7852 = vmatprep.subr.mxu0 0.0
    %7853 = vmatpush1.msra.mxu0 0.0
    %7854 = vmatprep.subr.mxu0 0.0
    %7855 = vmatpush1.msra.mxu0 0.0
    %7856 = vmatprep.subr.mxu0 0.0
    %7857 = vmatpush1.msra.mxu0 0.0
    %7858 = vmatprep.subr.mxu0 0.0
    %7859 = vmatpush1.msra.mxu0 0.0
    %7860 = vmatprep.subr.mxu0 0.0
    %7861 = vmatpush1.msra.mxu0 0.0
    %7862 = vmatprep.subr.mxu0 0.0
    %7863 = vmatpush1.msra.mxu0 0.0
    %7864 = vmatprep.subr.mxu0 0.0
    %7865 = vmatpush1.msra.mxu0 0.0
    %7866 = vmatprep.subr.mxu0 0.0
    %7867 = vmatpush1.msra.mxu0 0.0
    %7868 = vmatprep.subr.mxu0 0.0
    %7869 = vmatpush1.msra.mxu0 0.0
    %7870 = vmatprep.subr.mxu0 0.0
    %7871 = vmatpush1.msra.mxu0 0.0
    %7872 = vmatprep.subr.mxu0 0.0
    %7873 = vmatpush1.msra.mxu0 0.0
    %7874 = vmatprep.subr.mxu0 0.0
    %7875 = vmatpush1.msra.mxu0 0.0
    %7876 = vmatprep.subr.mxu0 0.0
    %7877 = vmatpush1.msra.mxu0 0.0
    %7878 = vmatprep.subr.mxu0 0.0
    %7879 = vmatpush1.msra.mxu0 0.0
    %7880 = vmatprep.subr.mxu0 0.0
    %7881 = vmatpush1.msra.mxu0 0.0
    %7882 = vmatprep.subr.mxu0 0.0
    %7883 = vmatpush1.msra.mxu0 0.0
    %7884 = vmatprep.subr.mxu0 0.0
    %7885 = vmatpush1.msra.mxu0 0.0
    %7886 = vmatprep.subr.mxu0 0.0
    %7887 = vmatpush1.msra.mxu0 0.0
    %7888 = vmatprep.subr.mxu0 0.0
    %7889 = vmatpush1.msra.mxu0 0.0
    %7890 = vmatprep.subr.mxu0 0.0
    %7891 = vmatpush1.msra.mxu0 0.0
    %7892 = vmatprep.subr.mxu0 0.0
    %7893 = vmatpush1.msra.mxu0 0.0
    %7894 = vmatprep.subr.mxu0 0.0
    %7895 = vmatpush1.msra.mxu0 0.0
    %7896 = vmatprep.subr.mxu0 0.0
    %7897 = vmatpush1.msra.mxu0 0.0
    %7898 = vmatprep.subr.mxu0 0.0
    %7899 = vmatpush1.msra.mxu0 0.0
    %7900 = vmatprep.subr.mxu0 0.0
    %7901 = vmatpush1.msra.mxu0 0.0
    %7902 = vmatprep.subr.mxu0 0.0
    %7903 = vmatpush1.msra.mxu0 0.0
    %7904 = vmatprep.subr.mxu0 0.0
    %7905 = vmatpush1.msra.mxu0 0.0
    %7906 = vmatprep.subr.mxu0 0.0
    %7907 = vmatpush1.msra.mxu0 0.0
    %7908 = vmatprep.subr.mxu0 0.0
    %7909 = vmatpush1.msra.mxu0 0.0
    %7910 = vmatprep.subr.mxu0 0.0
    %7911 = vmatpush1.msra.mxu0 0.0
    %7912 = vmatprep.subr.mxu0 0.0
    %7913 = vmatpush1.msra.mxu0 0.0
    %7914 = vmatprep.mubr.f32.mxu0 0.0
    %7915 = vmatmul.mubr.f32.gmra.mrb[0].mxu0 %v7516
    %v7916 = vpop.f32.mrb[0].mxu0
    %v7917 = vadd.f32 %v7513, %v7916
    %v7918 = vpop.f32.mrb[0].mxu0
    %v7919 = vadd.f32 %v7513, %v7918
    %7920 = vdwg.mxu0
    %7921 = vmatprep.subr.mxu0 %v7552
    %7922 = vmatpush1.msra.mxu0 %v7549
    %7923 = vmatprep.subr.mxu0 0.0
    %7924 = vmatpush1.msra.mxu0 0.0
    %7925 = vmatprep.subr.mxu0 0.0
    %7926 = vmatpush1.msra.mxu0 0.0
    %7927 = vmatprep.subr.mxu0 0.0
    %7928 = vmatpush1.msra.mxu0 0.0
    %7929 = vmatprep.subr.mxu0 0.0
    %7930 = vmatpush1.msra.mxu0 0.0
    %7931 = vmatprep.subr.mxu0 0.0
    %7932 = vmatpush1.msra.mxu0 0.0
    %7933 = vmatprep.subr.mxu0 0.0
    %7934 = vmatpush1.msra.mxu0 0.0
    %7935 = vmatprep.subr.mxu0 0.0
    %7936 = vmatpush1.msra.mxu0 0.0
    %7937 = vmatprep.subr.mxu0 0.0
    %7938 = vmatpush1.msra.mxu0 0.0
    %7939 = vmatprep.subr.mxu0 0.0
    %7940 = vmatpush1.msra.mxu0 0.0
    %7941 = vmatprep.subr.mxu0 0.0
    %7942 = vmatpush1.msra.mxu0 0.0
    %7943 = vmatprep.subr.mxu0 0.0
    %7944 = vmatpush1.msra.mxu0 0.0
    %7945 = vmatprep.subr.mxu0 0.0
    %7946 = vmatpush1.msra.mxu0 0.0
    %7947 = vmatprep.subr.mxu0 0.0
    %7948 = vmatpush1.msra.mxu0 0.0
    %7949 = vmatprep.subr.mxu0 0.0
    %7950 = vmatpush1.msra.mxu0 0.0
    %7951 = vmatprep.subr.mxu0 0.0
    %7952 = vmatpush1.msra.mxu0 0.0
    %7953 = vmatprep.subr.mxu0 0.0
    %7954 = vmatpush1.msra.mxu0 0.0
    %7955 = vmatprep.subr.mxu0 0.0
    %7956 = vmatpush1.msra.mxu0 0.0
    %7957 = vmatprep.subr.mxu0 0.0
    %7958 = vmatpush1.msra.mxu0 0.0
    %7959 = vmatprep.subr.mxu0 0.0
    %7960 = vmatpush1.msra.mxu0 0.0
    %7961 = vmatprep.subr.mxu0 0.0
    %7962 = vmatpush1.msra.mxu0 0.0
    %7963 = vmatprep.subr.mxu0 0.0
    %7964 = vmatpush1.msra.mxu0 0.0
    %7965 = vmatprep.subr.mxu0 0.0
    %7966 = vmatpush1.msra.mxu0 0.0
    %7967 = vmatprep.subr.mxu0 0.0
    %7968 = vmatpush1.msra.mxu0 0.0
    %7969 = vmatprep.subr.mxu0 0.0
    %7970 = vmatpush1.msra.mxu0 0.0
    %7971 = vmatprep.subr.mxu0 0.0
    %7972 = vmatpush1.msra.mxu0 0.0
    %7973 = vmatprep.subr.mxu0 0.0
    %7974 = vmatpush1.msra.mxu0 0.0
    %7975 = vmatprep.subr.mxu0 0.0
    %7976 = vmatpush1.msra.mxu0 0.0
    %7977 = vmatprep.subr.mxu0 0.0
    %7978 = vmatpush1.msra.mxu0 0.0
    %7979 = vmatprep.subr.mxu0 0.0
    %7980 = vmatpush1.msra.mxu0 0.0
    %7981 = vmatprep.subr.mxu0 0.0
    %7982 = vmatpush1.msra.mxu0 0.0
    %7983 = vmatprep.subr.mxu0 0.0
    %7984 = vmatpush1.msra.mxu0 0.0
    %7985 = vmatprep.mubr.f32.mxu0 0.0
    %7986 = vmatmul.mubr.f32.gmra.mrb[0].mxu0 %v7516
    %v7987 = vpop.f32.mrb[0].mxu0
    %v7988 = vadd.f32 %v7513, %v7987
    %v7989 = vpop.f32.mrb[0].mxu0
    %v7990 = vadd.f32 %v7513, %v7989
    %7991 = vdwg.mxu0
    %7992 = vmatprep.subr.mxu0 %v7558
    %7993 = vmatpush1.msra.mxu0 %v7555
    %7994 = vmatprep.subr.mxu0 0.0
    %7995 = vmatpush1.msra.mxu0 0.0
    %7996 = vmatprep.subr.mxu0 0.0
    %7997 = vmatpush1.msra.mxu0 0.0
    %7998 = vmatprep.subr.mxu0 0.0
    %7999 = vmatpush1.msra.mxu0 0.0
    %8000 = vmatprep.subr.mxu0 0.0
    %8001 = vmatpush1.msra.mxu0 0.0
    %8002 = vmatprep.subr.mxu0 0.0
    %8003 = vmatpush1.msra.mxu0 0.0
    %8004 = vmatprep.subr.mxu0 0.0
    %8005 = vmatpush1.msra.mxu0 0.0
    %8006 = vmatprep.subr.mxu0 0.0
    %8007 = vmatpush1.msra.mxu0 0.0
    %8008 = vmatprep.subr.mxu0 0.0
    %8009 = vmatpush1.msra.mxu0 0.0
    %8010 = vmatprep.subr.mxu0 0.0
    %8011 = vmatpush1.msra.mxu0 0.0
    %8012 = vmatprep.subr.mxu0 0.0
    %8013 = vmatpush1.msra.mxu0 0.0
    %8014 = vmatprep.subr.mxu0 0.0
    %8015 = vmatpush1.msra.mxu0 0.0
    %8016 = vmatprep.subr.mxu0 0.0
    %8017 = vmatpush1.msra.mxu0 0.0
    %8018 = vmatprep.subr.mxu0 0.0
    %8019 = vmatpush1.msra.mxu0 0.0
    %8020 = vmatprep.subr.mxu0 0.0
    %8021 = vmatpush1.msra.mxu0 0.0
    %8022 = vmatprep.subr.mxu0 0.0
    %8023 = vmatpush1.msra.mxu0 0.0
    %8024 = vmatprep.subr.mxu0 0.0
    %8025 = vmatpush1.msra.mxu0 0.0
    %8026 = vmatprep.subr.mxu0 0.0
    %8027 = vmatpush1.msra.mxu0 0.0
    %8028 = vmatprep.subr.mxu0 0.0
    %8029 = vmatpush1.msra.mxu0 0.0
    %8030 = vmatprep.subr.mxu0 0.0
    %8031 = vmatpush1.msra.mxu0 0.0
    %8032 = vmatprep.subr.mxu0 0.0
    %8033 = vmatpush1.msra.mxu0 0.0
    %8034 = vmatprep.subr.mxu0 0.0
    %8035 = vmatpush1.msra.mxu0 0.0
    %8036 = vmatprep.subr.mxu0 0.0
    %8037 = vmatpush1.msra.mxu0 0.0
    %8038 = vmatprep.subr.mxu0 0.0
    %8039 = vmatpush1.msra.mxu0 0.0
    %8040 = vmatprep.subr.mxu0 0.0
    %8041 = vmatpush1.msra.mxu0 0.0
    %8042 = vmatprep.subr.mxu0 0.0
    %8043 = vmatpush1.msra.mxu0 0.0
    %8044 = vmatprep.subr.mxu0 0.0
    %8045 = vmatpush1.msra.mxu0 0.0
    %8046 = vmatprep.subr.mxu0 0.0
    %8047 = vmatpush1.msra.mxu0 0.0
    %8048 = vmatprep.subr.mxu0 0.0
    %8049 = vmatpush1.msra.mxu0 0.0
    %8050 = vmatprep.subr.mxu0 0.0
    %8051 = vmatpush1.msra.mxu0 0.0
    %8052 = vmatprep.subr.mxu0 0.0
    %8053 = vmatpush1.msra.mxu0 0.0
    %8054 = vmatprep.subr.mxu0 0.0
    %8055 = vmatpush1.msra.mxu0 0.0
    %8056 = vmatprep.mubr.f32.mxu0 0.0
    %8057 = vmatmul.mubr.f32.gmra.mrb[0].mxu0 %v7516
    %v8058 = vpop.f32.mrb[0].mxu0
    %v8059 = vadd.f32 %v7513, %v8058
    %v8060 = vpop.f32.mrb[0].mxu0
    %v8061 = vadd.f32 %v7513, %v8060
    %8062 = vdwg.mxu0
    %8063 = vmatprep.subr.mxu0 %v7564
    %8064 = vmatpush1.msra.mxu0 %v7561
    %8065 = vmatprep.subr.mxu0 0.0
    %8066 = vmatpush1.msra.mxu0 0.0
    %8067 = vmatprep.subr.mxu0 0.0
    %8068 = vmatpush1.msra.mxu0 0.0
    %8069 = vmatprep.subr.mxu0 0.0
    %8070 = vmatpush1.msra.mxu0 0.0
    %8071 = vmatprep.subr.mxu0 0.0
    %8072 = vmatpush1.msra.mxu0 0.0
    %8073 = vmatprep.subr.mxu0 0.0
    %8074 = vmatpush1.msra.mxu0 0.0
    %8075 = vmatprep.subr.mxu0 0.0
    %8076 = vmatpush1.msra.mxu0 0.0
    %8077 = vmatprep.subr.mxu0 0.0
    %8078 = vmatpush1.msra.mxu0 0.0
    %8079 = vmatprep.subr.mxu0 0.0
    %8080 = vmatpush1.msra.mxu0 0.0
    %8081 = vmatprep.subr.mxu0 0.0
    %8082 = vmatpush1.msra.mxu0 0.0
    %8083 = vmatprep.subr.mxu0 0.0
    %8084 = vmatpush1.msra.mxu0 0.0
    %8085 = vmatprep.subr.mxu0 0.0
    %8086 = vmatpush1.msra.mxu0 0.0
    %8087 = vmatprep.subr.mxu0 0.0
    %8088 = vmatpush1.msra.mxu0 0.0
    %8089 = vmatprep.subr.mxu0 0.0
    %8090 = vmatpush1.msra.mxu0 0.0
    %8091 = vmatprep.subr.mxu0 0.0
    %8092 = vmatpush1.msra.mxu0 0.0
    %8093 = vmatprep.subr.mxu0 0.0
    %8094 = vmatpush1.msra.mxu0 0.0
    %8095 = vmatprep.subr.mxu0 0.0
    %8096 = vmatpush1.msra.mxu0 0.0
    %8097 = vmatprep.subr.mxu0 0.0
    %8098 = vmatpush1.msra.mxu0 0.0
    %8099 = vmatprep.subr.mxu0 0.0
    %8100 = vmatpush1.msra.mxu0 0.0
    %8101 = vmatprep.subr.mxu0 0.0
    %8102 = vmatpush1.msra.mxu0 0.0
    %8103 = vmatprep.subr.mxu0 0.0
    %8104 = vmatpush1.msra.mxu0 0.0
    %8105 = vmatprep.subr.mxu0 0.0
    %8106 = vmatpush1.msra.mxu0 0.0
    %8107 = vmatprep.subr.mxu0 0.0
    %8108 = vmatpush1.msra.mxu0 0.0
    %8109 = vmatprep.subr.mxu0 0.0
    %8110 = vmatpush1.msra.mxu0 0.0
    %8111 = vmatprep.subr.mxu0 0.0
    %8112 = vmatpush1.msra.mxu0 0.0
    %8113 = vmatprep.subr.mxu0 0.0
    %8114 = vmatpush1.msra.mxu0 0.0
    %8115 = vmatprep.subr.mxu0 0.0
    %8116 = vmatpush1.msra.mxu0 0.0
    %8117 = vmatprep.subr.mxu0 0.0
    %8118 = vmatpush1.msra.mxu0 0.0
    %8119 = vmatprep.subr.mxu0 0.0
    %8120 = vmatpush1.msra.mxu0 0.0
    %8121 = vmatprep.subr.mxu0 0.0
    %8122 = vmatpush1.msra.mxu0 0.0
    %8123 = vmatprep.subr.mxu0 0.0
    %8124 = vmatpush1.msra.mxu0 0.0
    %8125 = vmatprep.subr.mxu0 0.0
    %8126 = vmatpush1.msra.mxu0 0.0
    %8127 = vmatprep.mubr.f32.mxu0 0.0
    %8128 = vmatmul.mubr.f32.gmra.mrb[0].mxu0 %v7516
    %v8129 = vpop.f32.mrb[0].mxu0
    %v8130 = vadd.f32 %v7513, %v8129
    %v8131 = vpop.f32.mrb[0].mxu0
    %v8132 = vadd.f32 %v7513, %v8131
    %8133 = vdwg.mxu0
    %v8150 = vcombine.low %v7633, %v7635
    %v8151 = vcombine.low %v7704, %v7706
    %v8152 = vcombine.low %v7775, %v7777
    %v8153 = vcombine.low %v7846, %v7848
    %v8155 = vunpack.c.l.s4 1966171168
    %v8156 = vunpack.c.0.s8 %v8155
    %v8157 = vlaneseq
    %v8158 = vshrl.u32 %v8157, 7
    %v8159 = vsub.s32 %v8156, %v8158
    %v8160 = vrot.slane %v8150, %v8159
    %v8162 = vunpack.c.l.s4 1966171168
    %v8163 = vunpack.c.0.s8 %v8162
    %v8164 = vlaneseq
    %v8165 = vshrl.u32 %v8164, 7
    %v8166 = vsub.s32 %v8163, %v8165
    %v8167 = vrot.slane %v8151, %v8166
    %v8169 = vunpack.c.l.s4 1966171168
    %v8170 = vunpack.c.0.s8 %v8169
    %v8171 = vlaneseq
    %v8172 = vshrl.u32 %v8171, 7
    %v8173 = vsub.s32 %v8170, %v8172
    %v8174 = vrot.slane %v8152, %v8173
    %v8176 = vunpack.c.l.s4 1966171168
    %v8177 = vunpack.c.0.s8 %v8176
    %v8178 = vlaneseq
    %v8179 = vshrl.u32 %v8178, 7
    %v8180 = vsub.s32 %v8177, %v8179
    %v8181 = vrot.slane %v8153, %v8180
    %v8182 = vcombine.low %v8160, %v8167
    %v8183 = vcombine.low %v8174, %v8181
    %v8185 = vunpack.c.l.s4 1966171168
    %v8186 = vunpack.c.0.s8 %v8185
    %v8187 = vlaneseq
    %v8188 = vshrl.u32 %v8187, 7
    %v8189 = vsub.s32 %v8186, %v8188
    %v8190 = vrot.slane %v8182, %v8189
    %v8192 = vunpack.c.l.s4 1966171168
    %v8193 = vunpack.c.0.s8 %v8192
    %v8194 = vlaneseq
    %v8195 = vshrl.u32 %v8194, 7
    %v8196 = vsub.s32 %v8193, %v8195
    %v8197 = vrot.slane %v8183, %v8196
    %v8198 = vcombine.low %v8190, %v8197
    %v8199 = vcombine.low %v7917, %v7919
    %v8200 = vcombine.low %v7988, %v7990
    %v8201 = vcombine.low %v8059, %v8061
    %v8202 = vcombine.low %v8130, %v8132
    %v8204 = vunpack.c.l.s4 1966171168
    %v8205 = vunpack.c.0.s8 %v8204
    %v8206 = vlaneseq
    %v8207 = vshrl.u32 %v8206, 7
    %v8208 = vsub.s32 %v8205, %v8207
    %v8209 = vrot.slane %v8199, %v8208
    %v8211 = vunpack.c.l.s4 1966171168
    %v8212 = vunpack.c.0.s8 %v8211
    %v8213 = vlaneseq
    %v8214 = vshrl.u32 %v8213, 7
    %v8215 = vsub.s32 %v8212, %v8214
    %v8216 = vrot.slane %v8200, %v8215
    %v8218 = vunpack.c.l.s4 1966171168
    %v8219 = vunpack.c.0.s8 %v8218
    %v8220 = vlaneseq
    %v8221 = vshrl.u32 %v8220, 7
    %v8222 = vsub.s32 %v8219, %v8221
    %v8223 = vrot.slane %v8201, %v8222
    %v8225 = vunpack.c.l.s4 1966171168
    %v8226 = vunpack.c.0.s8 %v8225
    %v8227 = vlaneseq
    %v8228 = vshrl.u32 %v8227, 7
    %v8229 = vsub.s32 %v8226, %v8228
    %v8230 = vrot.slane %v8202, %v8229
    %v8231 = vcombine.low %v8209, %v8216
    %v8232 = vcombine.low %v8223, %v8230
    %v8234 = vunpack.c.l.s4 1966171168
    %v8235 = vunpack.c.0.s8 %v8234
    %v8236 = vlaneseq
    %v8237 = vshrl.u32 %v8236, 7
    %v8238 = vsub.s32 %v8235, %v8237
    %v8239 = vrot.slane %v8231, %v8238
    %v8241 = vunpack.c.l.s4 1966171168
    %v8242 = vunpack.c.0.s8 %v8241
    %v8243 = vlaneseq
    %v8244 = vshrl.u32 %v8243, 7
    %v8245 = vsub.s32 %v8242, %v8244
    %v8246 = vrot.slane %v8232, %v8245
    %v8247 = vcombine.low %v8239, %v8246
    %8250 = vst [vmem:[#allocation8] sm:$0xff] %v8198
    %8251 = vst [vmem:[#allocation8 + $0x8] sm:$0xff] %v8247
    // Predicated region
    $region18: #{tpu_custom_call.1} parent=1 // pred_check
      _
    $region19: #{tpu_custom_call.1} parent=1 // pred_check_branch
      %8253 = sbr.rel (0) target = $region21
    $region20: #{tpu_custom_call.1} parent=1 // pred_region
      %s8255 = ssub.s32 256, 256
      %8256 = vsyncadd [#allocation5], %s8255
      %s8258 = sshll.u32 [#allocation8], 4
      %s8259 = int_to_ptr.vmem [resolvable:$true] %s8258
      %8261 = dma.vmem_to_hbm [thread:$0]  %s8259, 256, %s2, [#allocation5]
    $region21: #{tpu_custom_call.1} parent=1 // pred_fallthru
      _
    // Predicated region
    $region22: #{tpu_custom_call.1} parent=1 // pred_check
      _
    $region23: #{tpu_custom_call.1} parent=1 // pred_check_branch
      %8263 = sbr.rel (0) target = $region25
    $region24: #{tpu_custom_call.1} parent=1 // pred_region
      %8264 = dma.done [#allocation5], 256
    $region25: #{tpu_custom_call.1} parent=1 // pred_fallthru
      _
    %8265 = vsyncpa [#allocation4], 1
    %8266 = vsyncpa [#allocation7], 1
    %8267 = vsyncpa [#allocation5], 1

</llo_original>
